<compile_context>
chip_gen: v6e
topology: v6e:2x2x1
jax: 0.10.0
libtpu: 0.0.40
codegen_flags: <defaults>
</compile_context>

<pallas_src>
import jax
import jax.numpy as jnp
from jax.experimental import pallas as pl
from jax.experimental.pallas import tpu as pltpu

C_IN_PAD = 8  # pad the 3 xyz channels up to 8 for a clean MXU contraction (zeros)


def encoder_kernel(x_ref, w1_ref, b1_ref, w2_ref, b2_ref, w3_ref, b3_ref,
                   wf1a_ref, wf1b_ref, bf1_ref, wf2_ref, bf2_ref, out_ref):
    bt, n, cpad = x_ref.shape
    m = bt * n

    # Flatten (batch_tile, points) so every layer is one big MXU matmul.
    x = x_ref[...].reshape(m, cpad).astype(jnp.bfloat16)              # (M, 8) bf16

    def mm(a_bf16, w_ref):
        return jnp.dot(a_bf16, w_ref[...], preferred_element_type=jnp.float32)

    # conv1 (1x1) + folded BN1 + ReLU  -> local feature (M, 64)
    h1 = jnp.maximum(mm(x, w1_ref) + b1_ref[...], 0.0)
    h1b = h1.astype(jnp.bfloat16)

    # conv2 (1x1) + folded BN2 + ReLU  -> (M, 128)
    h2 = jnp.maximum(mm(h1b, w2_ref) + b2_ref[...], 0.0)

    # conv3 (1x1) + folded BN3 + ReLU  -> (M, 1024)
    h3 = jnp.maximum(mm(h2.astype(jnp.bfloat16), w3_ref) + b3_ref[...], 0.0)

    # global max-pool over points (per point cloud) -> (Bt, 1024)
    g = jnp.max(h3.reshape(bt, n, 1024), axis=1)

    # fc1 on concat([local, global]) along channels.  Because the global feature is
    # constant across points, concat+matmul splits into two matmuls:
    #   fc1(cat(h1, g)) = h1 @ Wf1[:64] + g @ Wf1[64:] + bf1
    # fold the global projection and the bias into one row per point cloud.
    gb = mm(g.astype(jnp.bfloat16), wf1b_ref) + bf1_ref[...]          # (Bt, 1024)
    f1 = jnp.maximum(
        mm(h1b, wf1a_ref).reshape(bt, n, 1024) + gb[:, None, :], 0.0)  # (Bt, N, 1024)

    # fc2 -> (M, 512)
    f2 = mm(f1.reshape(m, 1024).astype(jnp.bfloat16), wf2_ref) + bf2_ref[...]

    # max over points -> (Bt, 512)
    out_ref[...] = jnp.max(f2.reshape(bt, n, 512), axis=1)


def encoder_forward(x, params, *, block_b=None):
    """x: (B, N, 3) float32 point cloud. Returns (B, 1, 512) like the PyTorch module."""
    B, N, c = x.shape
    assert c == 3
    if block_b is None:
        block_b = max(1, -(-256 // N))  # aim for matmul M = block_b * N >= 256
    num_blocks = -(-B // block_b)
    B_pad = num_blocks * block_b

    x_pad = jnp.pad(x, ((0, B_pad - B), (0, 0), (0, C_IN_PAD - c)))

    weights = [
        params["w1"], params["b1"], params["w2"], params["b2"],
        params["w3"], params["b3"], params["wf1a"], params["wf1b"],
        params["bf1"], params["wf2"], params["bf2"],
    ]

    in_specs = [pl.BlockSpec((block_b, N, C_IN_PAD), lambda g: (g, 0, 0))]
    for w in weights:
        in_specs.append(pl.BlockSpec(w.shape, lambda g: (0, 0)))
    # Output laid out as (num_blocks, block_b, 512) so the block's last two dims
    # always equal the full array dims (clean (8,128) rule regardless of block_b).
    out_spec = pl.BlockSpec((None, block_b, 512), lambda g: (g, 0, 0))

    out = pl.pallas_call(
        encoder_kernel,
        out_shape=jax.ShapeDtypeStruct((num_blocks, block_b, 512), jnp.float32),
        grid=(num_blocks,),
        in_specs=in_specs,
        out_specs=out_spec,
        compiler_params=pltpu.CompilerParams(
            dimension_semantics=("parallel",),
            vmem_limit_bytes=32 << 20,
        ),
    )(x_pad, *weights)

    out = out.reshape(B_pad, 512)[:B]
    return out[:, None, :]  # matches torch.max(x, 1, keepdim=True)[0] -> (B, 1, 512)


def make_params(key):
    """Deterministic synthetic parameters with PyTorch-module shapes, BN folded.

    Weights are returned in bf16 (MXU-native); biases stay f32.
    """
    eps = 1e-5
    ks = jax.random.split(key, 32)
    ki = iter(range(32))

    def nrm(shape, scale=0.05):
        return scale * jax.random.normal(ks[next(ki)], shape, dtype=jnp.float32)

    def bn(c):
        gamma = 1.0 + nrm((c,), 0.1)
        beta = nrm((c,), 0.1)
        mu = nrm((c,), 0.1)
        var = jnp.abs(nrm((c,), 0.1)) + 0.5
        return gamma, beta, mu, var

    def fold(w_t, b, gamma, beta, mu, var):
        # w_t: (Cin, Cout), b: (Cout,).  Eval-mode BN folded into the 1x1 conv.
        scale = gamma / jnp.sqrt(var + eps)
        return w_t * scale[None, :], (b - mu) * scale + beta

    # conv1: Conv1d(3, 64, 1)  -> weight (64, 3, 1); used as (Cin, Cout) = (3, 64), padded to 8
    w1 = nrm((3, 64))
    b1 = nrm((64,))
    w1, b1 = fold(w1, b1, *bn(64))
    w1 = jnp.pad(w1, ((0, C_IN_PAD - 3), (0, 0)))

    w2 = nrm((64, 128))
    b2 = nrm((128,))
    w2, b2 = fold(w2, b2, *bn(128))

    w3 = nrm((128, 1024))
    b3 = nrm((1024,))
    w3, b3 = fold(w3, b3, *bn(1024))

    # fc1: Linear(1088, 1024), stored transposed and split into local(64)/global(1024) rows
    wf1 = nrm((1088, 1024))
    bf1 = nrm((1024,))
    wf1a, wf1b = wf1[:64, :], wf1[64:, :]

    # fc2: Linear(1024, 512)
    wf2 = nrm((1024, 512))
    bf2 = nrm((512,))

    bf16 = jnp.bfloat16
    return {
        "w1": w1.astype(bf16), "b1": b1[None, :],
        "w2": w2.astype(bf16), "b2": b2[None, :],
        "w3": w3.astype(bf16), "b3": b3[None, :],
        "wf1a": wf1a.astype(bf16), "wf1b": wf1b.astype(bf16), "bf1": bf1[None, :],
        "wf2": wf2.astype(bf16), "bf2": bf2[None, :],
    }


def encoder_reference(x, params):
    """Pure-JAX reference with the same bf16-matmul / f32-accumulate numerics."""
    def mm(a, w):
        return jnp.dot(a.astype(jnp.bfloat16), w, preferred_element_type=jnp.float32)

    x_pad = jnp.pad(x, ((0, 0), (0, 0), (0, C_IN_PAD - 3)))
    h1 = jax.nn.relu(mm(x_pad, params["w1"]) + params["b1"])        # (B, N, 64)
    h2 = jax.nn.relu(mm(h1, params["w2"]) + params["b2"])           # (B, N, 128)
    h3 = jax.nn.relu(mm(h2, params["w3"]) + params["b3"])           # (B, N, 1024)
    g = jnp.max(h3, axis=1, keepdims=True)                          # (B, 1, 1024)
    gb = mm(g, params["wf1b"]) + params["bf1"]                      # (B, 1, 1024)
    f1 = jax.nn.relu(mm(h1, params["wf1a"]) + gb)                   # (B, N, 1024)
    f2 = mm(f1, params["wf2"]) + params["bf2"]                      # (B, N, 512)
    return jnp.max(f2, axis=1, keepdims=True)                       # (B, 1, 512)


if __name__ == "__main__":
    key = jax.random.PRNGKey(0)
    k_x, k_p = jax.random.split(key)

    B, N = 2, 64  # num_points = 64
    x = jax.random.normal(k_x, (B, N, 3), dtype=jnp.float32)
    params = make_params(k_p)

    out = encoder_forward(x, params)
    out = jax.block_until_ready(out)
    assert out.shape == (B, 1, 512), out.shape

    ref = encoder_reference(x, params)
    err = float(jnp.max(jnp.abs(out - ref)))
    assert jnp.allclose(out, ref, atol=2e-3, rtol=2e-3), err

    print("KERNEL_OK")
</pallas_src>

<mosaic_0001>
module attributes {stable_mosaic.version = 11 : i64} {
  func.func @encoder_kernel(%arg0: i32, %arg1: memref<4x64x8xf32, #tpu.memory_space<vmem>>, %arg2: memref<8x64xbf16, #tpu.memory_space<vmem>>, %arg3: memref<1x64xf32, #tpu.memory_space<vmem>>, %arg4: memref<64x128xbf16, #tpu.memory_space<vmem>>, %arg5: memref<1x128xf32, #tpu.memory_space<vmem>>, %arg6: memref<128x1024xbf16, #tpu.memory_space<vmem>>, %arg7: memref<1x1024xf32, #tpu.memory_space<vmem>>, %arg8: memref<64x1024xbf16, #tpu.memory_space<vmem>>, %arg9: memref<1024x1024xbf16, #tpu.memory_space<vmem>>, %arg10: memref<1x1024xf32, #tpu.memory_space<vmem>>, %arg11: memref<1024x512xbf16, #tpu.memory_space<vmem>>, %arg12: memref<1x512xf32, #tpu.memory_space<vmem>>, %arg13: memref<1x4x512xf32, #tpu.memory_space<vmem>>) attributes {dimension_semantics = [#tpu.dimension_semantics<parallel>], iteration_bounds = array<i64: 1>, scalar_prefetch = 0 : i64, scratch_operands = 0 : i64, tpu.core_type = #tpu.core_type<tc>, window_params = [{transform_indices = @transform_0, window_bounds = array<i64: 4, 64, 8>}, {pipeline_mode = #tpu.pipeline_mode<synchronous>, transform_indices = @transform_1, window_bounds = array<i64: 8, 64>}, {pipeline_mode = #tpu.pipeline_mode<synchronous>, transform_indices = @transform_2, window_bounds = array<i64: 1, 64>}, {pipeline_mode = #tpu.pipeline_mode<synchronous>, transform_indices = @transform_3, window_bounds = array<i64: 64, 128>}, {pipeline_mode = #tpu.pipeline_mode<synchronous>, transform_indices = @transform_4, window_bounds = array<i64: 1, 128>}, {pipeline_mode = #tpu.pipeline_mode<synchronous>, transform_indices = @transform_5, window_bounds = array<i64: 128, 1024>}, {pipeline_mode = #tpu.pipeline_mode<synchronous>, transform_indices = @transform_6, window_bounds = array<i64: 1, 1024>}, {pipeline_mode = #tpu.pipeline_mode<synchronous>, transform_indices = @transform_7, window_bounds = array<i64: 64, 1024>}, {pipeline_mode = #tpu.pipeline_mode<synchronous>, transform_indices = @transform_8, window_bounds = array<i64: 1024, 1024>}, {pipeline_mode = #tpu.pipeline_mode<synchronous>, transform_indices = @transform_9, window_bounds = array<i64: 1, 1024>}, {pipeline_mode = #tpu.pipeline_mode<synchronous>, transform_indices = @transform_10, window_bounds = array<i64: 1024, 512>}, {pipeline_mode = #tpu.pipeline_mode<synchronous>, transform_indices = @transform_11, window_bounds = array<i64: 1, 512>}, {transform_indices = @transform_12, window_bounds = array<i64: 1, 4, 512>}]} {
    %c0 = arith.constant 0 : index
    %c0_0 = arith.constant 0 : index
    %c0_1 = arith.constant 0 : index
    %0 = vector.load %arg1[%c0, %c0_0, %c0_1] : memref<4x64x8xf32, #tpu.memory_space<vmem>>, vector<4x64x8xf32>
    %1 = vector.shape_cast %0 : vector<4x64x8xf32> to vector<256x8xf32>
    %2 = arith.truncf %1 : vector<256x8xf32> to vector<256x8xbf16>
    %c0_2 = arith.constant 0 : index
    %c0_3 = arith.constant 0 : index
    %3 = vector.load %arg2[%c0_2, %c0_3] : memref<8x64xbf16, #tpu.memory_space<vmem>>, vector<8x64xbf16>
    %cst = arith.constant dense<0.000000e+00> : vector<256x64xf32>
    %4 = tpu.matmul %2, %3, %cst {dimension_numbers = #tpu.dot_dimension_numbers<[1], [0], [0], [1], [0, 0, 1, 1], [], []>} : vector<256x8xbf16>, vector<8x64xbf16>, vector<256x64xf32> -> vector<256x64xf32>
    %c0_4 = arith.constant 0 : index
    %c0_5 = arith.constant 0 : index
    %5 = vector.load %arg3[%c0_4, %c0_5] : memref<1x64xf32, #tpu.memory_space<vmem>>, vector<1x64xf32>
    %6 = vector.broadcast %5 : vector<1x64xf32> to vector<256x64xf32>
    %7 = arith.addf %4, %6 : vector<256x64xf32>
    %cst_6 = arith.constant 0.000000e+00 : f32
    %8 = vector.broadcast %cst_6 : f32 to vector<256x64xf32>
    %9 = arith.maximumf %7, %8 : vector<256x64xf32>
    %10 = arith.truncf %9 : vector<256x64xf32> to vector<256x64xbf16>
    %c0_7 = arith.constant 0 : index
    %c0_8 = arith.constant 0 : index
    %11 = vector.load %arg4[%c0_7, %c0_8] : memref<64x128xbf16, #tpu.memory_space<vmem>>, vector<64x128xbf16>
    %cst_9 = arith.constant dense<0.000000e+00> : vector<256x128xf32>
    %12 = tpu.matmul %10, %11, %cst_9 {dimension_numbers = #tpu.dot_dimension_numbers<[1], [0], [0], [1], [0, 0, 1, 1], [], []>} : vector<256x64xbf16>, vector<64x128xbf16>, vector<256x128xf32> -> vector<256x128xf32>
    %c0_10 = arith.constant 0 : index
    %c0_11 = arith.constant 0 : index
    %13 = vector.load %arg5[%c0_10, %c0_11] : memref<1x128xf32, #tpu.memory_space<vmem>>, vector<1x128xf32>
    %14 = vector.broadcast %13 : vector<1x128xf32> to vector<256x128xf32>
    %15 = arith.addf %12, %14 : vector<256x128xf32>
    %cst_12 = arith.constant 0.000000e+00 : f32
    %16 = vector.broadcast %cst_12 : f32 to vector<256x128xf32>
    %17 = arith.maximumf %15, %16 : vector<256x128xf32>
    %18 = arith.truncf %17 : vector<256x128xf32> to vector<256x128xbf16>
    %c0_13 = arith.constant 0 : index
    %c0_14 = arith.constant 0 : index
    %19 = vector.load %arg6[%c0_13, %c0_14] : memref<128x1024xbf16, #tpu.memory_space<vmem>>, vector<128x1024xbf16>
    %cst_15 = arith.constant dense<0.000000e+00> : vector<256x1024xf32>
    %20 = tpu.matmul %18, %19, %cst_15 {dimension_numbers = #tpu.dot_dimension_numbers<[1], [0], [0], [1], [0, 0, 1, 1], [], []>} : vector<256x128xbf16>, vector<128x1024xbf16>, vector<256x1024xf32> -> vector<256x1024xf32>
    %c0_16 = arith.constant 0 : index
    %c0_17 = arith.constant 0 : index
    %21 = vector.load %arg7[%c0_16, %c0_17] : memref<1x1024xf32, #tpu.memory_space<vmem>>, vector<1x1024xf32>
    %22 = vector.broadcast %21 : vector<1x1024xf32> to vector<256x1024xf32>
    %23 = arith.addf %20, %22 : vector<256x1024xf32>
    %cst_18 = arith.constant 0.000000e+00 : f32
    %24 = vector.broadcast %cst_18 : f32 to vector<256x1024xf32>
    %25 = arith.maximumf %23, %24 : vector<256x1024xf32>
    %26 = vector.shape_cast %25 : vector<256x1024xf32> to vector<4x64x1024xf32>
    %cst_19 = arith.constant dense<0xFF800000> : vector<4x1024xf32>
    %27 = vector.multi_reduction <maximumf>, %26, %cst_19 [1] : vector<4x64x1024xf32> to vector<4x1024xf32>
    %28 = arith.truncf %27 : vector<4x1024xf32> to vector<4x1024xbf16>
    %c0_20 = arith.constant 0 : index
    %c0_21 = arith.constant 0 : index
    %29 = vector.load %arg9[%c0_20, %c0_21] : memref<1024x1024xbf16, #tpu.memory_space<vmem>>, vector<1024x1024xbf16>
    %cst_22 = arith.constant dense<0.000000e+00> : vector<4x1024xf32>
    %30 = tpu.matmul %28, %29, %cst_22 {dimension_numbers = #tpu.dot_dimension_numbers<[1], [0], [0], [1], [0, 0, 1, 1], [], []>} : vector<4x1024xbf16>, vector<1024x1024xbf16>, vector<4x1024xf32> -> vector<4x1024xf32>
    %c0_23 = arith.constant 0 : index
    %c0_24 = arith.constant 0 : index
    %31 = vector.load %arg10[%c0_23, %c0_24] : memref<1x1024xf32, #tpu.memory_space<vmem>>, vector<1x1024xf32>
    %32 = vector.broadcast %31 : vector<1x1024xf32> to vector<4x1024xf32>
    %33 = arith.addf %30, %32 : vector<4x1024xf32>
    %c0_25 = arith.constant 0 : index
    %c0_26 = arith.constant 0 : index
    %34 = vector.load %arg8[%c0_25, %c0_26] : memref<64x1024xbf16, #tpu.memory_space<vmem>>, vector<64x1024xbf16>
    %cst_27 = arith.constant dense<0.000000e+00> : vector<256x1024xf32>
    %35 = tpu.matmul %10, %34, %cst_27 {dimension_numbers = #tpu.dot_dimension_numbers<[1], [0], [0], [1], [0, 0, 1, 1], [], []>} : vector<256x64xbf16>, vector<64x1024xbf16>, vector<256x1024xf32> -> vector<256x1024xf32>
    %36 = vector.shape_cast %35 : vector<256x1024xf32> to vector<4x64x1024xf32>
    %37 = vector.shape_cast %33 : vector<4x1024xf32> to vector<4x1x1024xf32>
    %38 = vector.broadcast %37 : vector<4x1x1024xf32> to vector<4x64x1024xf32>
    %39 = arith.addf %36, %38 : vector<4x64x1024xf32>
    %cst_28 = arith.constant 0.000000e+00 : f32
    %40 = vector.broadcast %cst_28 : f32 to vector<4x64x1024xf32>
    %41 = arith.maximumf %39, %40 : vector<4x64x1024xf32>
    %42 = vector.shape_cast %41 : vector<4x64x1024xf32> to vector<256x1024xf32>
    %43 = arith.truncf %42 : vector<256x1024xf32> to vector<256x1024xbf16>
    %c0_29 = arith.constant 0 : index
    %c0_30 = arith.constant 0 : index
    %44 = vector.load %arg11[%c0_29, %c0_30] : memref<1024x512xbf16, #tpu.memory_space<vmem>>, vector<1024x512xbf16>
    %cst_31 = arith.constant dense<0.000000e+00> : vector<256x512xf32>
    %45 = tpu.matmul %43, %44, %cst_31 {dimension_numbers = #tpu.dot_dimension_numbers<[1], [0], [0], [1], [0, 0, 1, 1], [], []>} : vector<256x1024xbf16>, vector<1024x512xbf16>, vector<256x512xf32> -> vector<256x512xf32>
    %c0_32 = arith.constant 0 : index
    %c0_33 = arith.constant 0 : index
    %46 = vector.load %arg12[%c0_32, %c0_33] : memref<1x512xf32, #tpu.memory_space<vmem>>, vector<1x512xf32>
    %47 = vector.broadcast %46 : vector<1x512xf32> to vector<256x512xf32>
    %48 = arith.addf %45, %47 : vector<256x512xf32>
    %49 = vector.shape_cast %48 : vector<256x512xf32> to vector<4x64x512xf32>
    %cst_34 = arith.constant dense<0xFF800000> : vector<4x512xf32>
    %50 = vector.multi_reduction <maximumf>, %49, %cst_34 [1] : vector<4x64x512xf32> to vector<4x512xf32>
    %c0_35 = arith.constant 0 : index
    %c0_36 = arith.constant 0 : index
    %c0_37 = arith.constant 0 : index
    %51 = vector.load %arg13[%c0_35, %c0_36, %c0_37] : memref<1x4x512xf32, #tpu.memory_space<vmem>>, vector<1x4x512xf32>
    %52 = vector.shape_cast %51 : vector<1x4x512xf32> to vector<4x512xf32>
    %53 = vector.shape_cast %50 : vector<4x512xf32> to vector<1x4x512xf32>
    tpu.vector_store %arg13[%c0_35, %c0_36, %c0_37], %53 {strides = array<i32>} : memref<1x4x512xf32, #tpu.memory_space<vmem>>, vector<1x4x512xf32>,
    return
  }
  func.func @transform_0(%arg0: i32) -> (i32, i32, i32) {
    %c0_i32 = arith.constant 0 : i32
    %c0_i32_0 = arith.constant 0 : i32
    %c0_i32_1 = arith.constant 0 : i32
    return %arg0, %c0_i32, %c0_i32_0 : i32, i32, i32
  }
  func.func @transform_1(%arg0: i32) -> (i32, i32) {
    %c0_i32 = arith.constant 0 : i32
    %c0_i32_0 = arith.constant 0 : i32
    %c0_i32_1 = arith.constant 0 : i32
    return %c0_i32, %c0_i32_0 : i32, i32
  }
  func.func @transform_2(%arg0: i32) -> (i32, i32) {
    %c0_i32 = arith.constant 0 : i32
    %c0_i32_0 = arith.constant 0 : i32
    %c0_i32_1 = arith.constant 0 : i32
    return %c0_i32, %c0_i32_0 : i32, i32
  }
  func.func @transform_3(%arg0: i32) -> (i32, i32) {
    %c0_i32 = arith.constant 0 : i32
    %c0_i32_0 = arith.constant 0 : i32
    %c0_i32_1 = arith.constant 0 : i32
    return %c0_i32, %c0_i32_0 : i32, i32
  }
  func.func @transform_4(%arg0: i32) -> (i32, i32) {
    %c0_i32 = arith.constant 0 : i32
    %c0_i32_0 = arith.constant 0 : i32
    %c0_i32_1 = arith.constant 0 : i32
    return %c0_i32, %c0_i32_0 : i32, i32
  }
  func.func @transform_5(%arg0: i32) -> (i32, i32) {
    %c0_i32 = arith.constant 0 : i32
    %c0_i32_0 = arith.constant 0 : i32
    %c0_i32_1 = arith.constant 0 : i32
    return %c0_i32, %c0_i32_0 : i32, i32
  }
  func.func @transform_6(%arg0: i32) -> (i32, i32) {
    %c0_i32 = arith.constant 0 : i32
    %c0_i32_0 = arith.constant 0 : i32
    %c0_i32_1 = arith.constant 0 : i32
    return %c0_i32, %c0_i32_0 : i32, i32
  }
  func.func @transform_7(%arg0: i32) -> (i32, i32) {
    %c0_i32 = arith.constant 0 : i32
    %c0_i32_0 = arith.constant 0 : i32
    %c0_i32_1 = arith.constant 0 : i32
    return %c0_i32, %c0_i32_0 : i32, i32
  }
  func.func @transform_8(%arg0: i32) -> (i32, i32) {
    %c0_i32 = arith.constant 0 : i32
    %c0_i32_0 = arith.constant 0 : i32
    %c0_i32_1 = arith.constant 0 : i32
    return %c0_i32, %c0_i32_0 : i32, i32
  }
  func.func @transform_9(%arg0: i32) -> (i32, i32) {
    %c0_i32 = arith.constant 0 : i32
    %c0_i32_0 = arith.constant 0 : i32
    %c0_i32_1 = arith.constant 0 : i32
    return %c0_i32, %c0_i32_0 : i32, i32
  }
  func.func @transform_10(%arg0: i32) -> (i32, i32) {
    %c0_i32 = arith.constant 0 : i32
    %c0_i32_0 = arith.constant 0 : i32
    %c0_i32_1 = arith.constant 0 : i32
    return %c0_i32, %c0_i32_0 : i32, i32
  }
  func.func @transform_11(%arg0: i32) -> (i32, i32) {
    %c0_i32 = arith.constant 0 : i32
    %c0_i32_0 = arith.constant 0 : i32
    %c0_i32_1 = arith.constant 0 : i32
    return %c0_i32, %c0_i32_0 : i32, i32
  }
  func.func @transform_12(%arg0: i32) -> (i32, i32, i32) {
    %c0_i32 = arith.constant 0 : i32
    %c0_i32_0 = arith.constant 0 : i32
    %c0_i32_1 = arith.constant 0 : i32
    return %arg0, %c0_i32, %c0_i32_0 : i32, i32, i32
  }
}

</mosaic_0001>

<llo_original>
// kernel: tpu_custom_call.1
$region0: #{tpu_custom_call.1}
  #allocation0 [shape = 'u32[]', space=smem, size = 0x4, offset = 0x4, fixed_abs, tag = 'smem constant byte address 0x4 - core index']
  #allocation1 [shape = 'u32[144,128]{1,0:T(1,128)}', space=vmem, size = 0x12000, scoped, tag = 'internal scratch']
  %s0 = inlined_call_operand.vmem [shape: f32[4,64,8], index: 0, kind: input, shape index: {}]
  %s1 = inlined_call_operand.hbm [shape: bf16[8,64], index: 1, kind: input, shape index: {}]
  %s2 = inlined_call_operand.hbm [shape: f32[1,64], index: 2, kind: input, shape index: {}]
  %s3 = inlined_call_operand.hbm [shape: bf16[64,128], index: 3, kind: input, shape index: {}]
  %s4 = inlined_call_operand.hbm [shape: f32[1,128], index: 4, kind: input, shape index: {}]
  %s5 = inlined_call_operand.hbm [shape: bf16[128,1024], index: 5, kind: input, shape index: {}]
  %s6 = inlined_call_operand.hbm [shape: f32[1,1024], index: 6, kind: input, shape index: {}]
  %s7 = inlined_call_operand.hbm [shape: bf16[64,1024], index: 7, kind: input, shape index: {}]
  %s8 = inlined_call_operand.hbm [shape: bf16[1024,1024], index: 8, kind: input, shape index: {}]
  %s9 = inlined_call_operand.hbm [shape: f32[1,1024], index: 9, kind: input, shape index: {}]
  %s10 = inlined_call_operand.hbm [shape: bf16[1024,512], index: 10, kind: input, shape index: {}]
  %s11 = inlined_call_operand.hbm [shape: f32[1,512], index: 11, kind: input, shape index: {}]
  %s12 = inlined_call_operand.hbm [shape: f32[1,4,512], index: 12, kind: output, shape index: {}]
  %s13 = sld [smem:[#allocation0]]
  $region102: #{tpu_custom_call.1} parent=0
    _
  %s15 = ssub.s32 1, %s13
  %s16 = scalar_select 0, %s15, %s13
  $region1: #{tpu_custom_call.1} parent=0
    #allocation2 [shape = 'u8[2048]{0}', space=vmem, size = 0x800, scoped, tag = 'input window, operand 1, single buffered']
    #allocation3 [shape = 's32[1]{0}', space=sflag, size = 0x4, scoped, tag = 'scoped memory for tpu_custom_call.1']
    #allocation4 [shape = 's32[1]{0}', space=sflag, size = 0x4, scoped, tag = 'scoped memory for tpu_custom_call.1']
    #allocation5 [shape = 'u8[512]{0}', space=vmem, size = 0x400, scoped, tag = 'input window, operand 2, single buffered']
    #allocation6 [shape = 's32[1]{0}', space=sflag, size = 0x4, scoped, tag = 'scoped memory for tpu_custom_call.1']
    #allocation7 [shape = 'u8[16384]{0}', space=vmem, size = 0x4000, scoped, tag = 'input window, operand 3, single buffered']
    #allocation8 [shape = 'u8[512]{0}', space=vmem, size = 0x400, scoped, tag = 'input window, operand 4, single buffered']
    #allocation9 [shape = 's32[1]{0}', space=sflag, size = 0x4, scoped, tag = 'scoped memory for tpu_custom_call.1']
    #allocation10 [shape = 'u8[262144]{0}', space=vmem, size = 0x40000, scoped, tag = 'input window, operand 5, single buffered']
    #allocation11 [shape = 'u8[4096]{0}', space=vmem, size = 0x1000, scoped, tag = 'input window, operand 6, single buffered']
    #allocation12 [shape = 's32[1]{0}', space=sflag, size = 0x4, scoped, tag = 'scoped memory for tpu_custom_call.1']
    #allocation13 [shape = 'u8[131072]{0}', space=vmem, size = 0x20000, scoped, tag = 'input window, operand 7, single buffered']
    #allocation14 [shape = 'u8[2097152]{0}', space=vmem, size = 0x200000, scoped, tag = 'input window, operand 8, single buffered']
    #allocation15 [shape = 's32[1]{0}', space=sflag, size = 0x4, scoped, tag = 'scoped memory for tpu_custom_call.1']
    #allocation16 [shape = 'u8[4096]{0}', space=vmem, size = 0x1000, scoped, tag = 'input window, operand 9, single buffered']
    #allocation17 [shape = 'u8[1048576]{0}', space=vmem, size = 0x100000, scoped, tag = 'input window, operand 10, single buffered']
    #allocation18 [shape = 's32[1]{0}', space=sflag, size = 0x4, scoped, tag = 'scoped memory for tpu_custom_call.1']
    #allocation19 [shape = 'u8[2048]{0}', space=vmem, size = 0x800, scoped, tag = 'input window, operand 11, single buffered']
    #allocation20 [shape = 'u8[8192]{0}', space=vmem, size = 0x2000, scoped, tag = 'output window, operand 0, single buffered']
    %17 = vsyncpa [#allocation3], 0
    %18 = vsyncpa [#allocation6], 0
    %19 = vsyncpa [#allocation9], 0
    %20 = vsyncpa [#allocation12], 0
    %21 = vsyncpa [#allocation15], 0
    %22 = vsyncpa [#allocation18], 0
    %23 = vsyncpa [#allocation4], 0
    // Predicated region
    $region2: #{tpu_custom_call.1} parent=1 // pred_check
      _
    $region3: #{tpu_custom_call.1} parent=1 // pred_check_branch
      %25 = sbr.rel (0) target = $region5
    $region4: #{tpu_custom_call.1} parent=1 // pred_region
      _
    $region5: #{tpu_custom_call.1} parent=1 // pred_fallthru
      _
    // Predicated region
    $region6: #{tpu_custom_call.1} parent=1 // pred_check
      _
    $region7: #{tpu_custom_call.1} parent=1 // pred_check_branch
      %27 = sbr.rel (0) target = $region9
    $region8: #{tpu_custom_call.1} parent=1 // pred_region
      %s29 = ssub.s32 64, 64
      %30 = vsyncadd [#allocation3], %s29
      %s32 = sshll.u32 [#allocation2], 4
      %s33 = int_to_ptr.vmem [resolvable:$true] %s32
      %35 = dma.hbm_to_vmem [thread:$0]  %s1, 64, %s33, [#allocation3]
    $region9: #{tpu_custom_call.1} parent=1 // pred_fallthru
      _
    // Predicated region
    $region10: #{tpu_custom_call.1} parent=1 // pred_check
      _
    $region11: #{tpu_custom_call.1} parent=1 // pred_check_branch
      %37 = sbr.rel (0) target = $region13
    $region12: #{tpu_custom_call.1} parent=1 // pred_region
      %s39 = ssub.s32 16, 16
      %40 = vsyncadd [#allocation6], %s39
      %s42 = sshll.u32 [#allocation5], 4
      %s43 = int_to_ptr.vmem [resolvable:$true] %s42
      %45 = dma.hbm_to_vmem [thread:$0]  %s2, 16, %s43, [#allocation6]
    $region13: #{tpu_custom_call.1} parent=1 // pred_fallthru
      _
    // Predicated region
    $region14: #{tpu_custom_call.1} parent=1 // pred_check
      _
    $region15: #{tpu_custom_call.1} parent=1 // pred_check_branch
      %47 = sbr.rel (0) target = $region17
    $region16: #{tpu_custom_call.1} parent=1 // pred_region
      %s49 = ssub.s32 512, 512
      %50 = vsyncadd [#allocation6], %s49
      %s51 = sshll.u32 [#allocation7], 4
      %s52 = int_to_ptr.vmem [resolvable:$true] %s51
      %57 = dma.hbm_to_vmem [thread:$0]  %s3, 512, %s52, [#allocation6], 64, 64, 4
    $region17: #{tpu_custom_call.1} parent=1 // pred_fallthru
      _
    // Predicated region
    $region18: #{tpu_custom_call.1} parent=1 // pred_check
      _
    $region19: #{tpu_custom_call.1} parent=1 // pred_check_branch
      %59 = sbr.rel (0) target = $region21
    $region20: #{tpu_custom_call.1} parent=1 // pred_region
      %s61 = ssub.s32 16, 16
      %62 = vsyncadd [#allocation9], %s61
      %s64 = sshll.u32 [#allocation8], 4
      %s65 = int_to_ptr.vmem [resolvable:$true] %s64
      %67 = dma.hbm_to_vmem [thread:$0]  %s4, 16, %s65, [#allocation9]
    $region21: #{tpu_custom_call.1} parent=1 // pred_fallthru
      _
    // Predicated region
    $region22: #{tpu_custom_call.1} parent=1 // pred_check
      _
    $region23: #{tpu_custom_call.1} parent=1 // pred_check_branch
      %69 = sbr.rel (0) target = $region25
    $region24: #{tpu_custom_call.1} parent=1 // pred_region
      %s71 = ssub.s32 8192, 8192
      %72 = vsyncadd [#allocation9], %s71
      %s73 = sshll.u32 [#allocation10], 4
      %s74 = int_to_ptr.vmem [resolvable:$true] %s73
      %79 = dma.hbm_to_vmem [thread:$0]  %s5, 8192, %s74, [#allocation9], 512, 512, 32
    $region25: #{tpu_custom_call.1} parent=1 // pred_fallthru
      _
    // Predicated region
    $region26: #{tpu_custom_call.1} parent=1 // pred_check
      _
    $region27: #{tpu_custom_call.1} parent=1 // pred_check_branch
      %81 = sbr.rel (0) target = $region29
    $region28: #{tpu_custom_call.1} parent=1 // pred_region
      %s83 = ssub.s32 128, 128
      %84 = vsyncadd [#allocation12], %s83
      %s86 = sshll.u32 [#allocation11], 4
      %s87 = int_to_ptr.vmem [resolvable:$true] %s86
      %89 = dma.hbm_to_vmem [thread:$0]  %s6, 128, %s87, [#allocation12]
    $region29: #{tpu_custom_call.1} parent=1 // pred_fallthru
      _
    // Predicated region
    $region30: #{tpu_custom_call.1} parent=1 // pred_check
      _
    $region31: #{tpu_custom_call.1} parent=1 // pred_check_branch
      %91 = sbr.rel (0) target = $region33
    $region32: #{tpu_custom_call.1} parent=1 // pred_region
      %s93 = ssub.s32 4096, 4096
      %94 = vsyncadd [#allocation12], %s93
      %s95 = sshll.u32 [#allocation13], 4
      %s96 = int_to_ptr.vmem [resolvable:$true] %s95
      %101 = dma.hbm_to_vmem [thread:$0]  %s7, 4096, %s96, [#allocation12], 512, 512, 32
    $region33: #{tpu_custom_call.1} parent=1 // pred_fallthru
      _
    // Predicated region
    $region34: #{tpu_custom_call.1} parent=1 // pred_check
      _
    $region35: #{tpu_custom_call.1} parent=1 // pred_check_branch
      %103 = sbr.rel (0) target = $region37
    $region36: #{tpu_custom_call.1} parent=1 // pred_region
      %s105 = ssub.s32 65536, 65536
      %106 = vsyncadd [#allocation15], %s105
      %s107 = sshll.u32 [#allocation14], 4
      %s108 = int_to_ptr.vmem [resolvable:$true] %s107
      %113 = dma.hbm_to_vmem [thread:$0]  %s8, 65536, %s108, [#allocation15], 512, 512, 32
    $region37: #{tpu_custom_call.1} parent=1 // pred_fallthru
      _
    // Predicated region
    $region38: #{tpu_custom_call.1} parent=1 // pred_check
      _
    $region39: #{tpu_custom_call.1} parent=1 // pred_check_branch
      %115 = sbr.rel (0) target = $region41
    $region40: #{tpu_custom_call.1} parent=1 // pred_region
      %s117 = ssub.s32 128, 128
      %118 = vsyncadd [#allocation15], %s117
      %s120 = sshll.u32 [#allocation16], 4
      %s121 = int_to_ptr.vmem [resolvable:$true] %s120
      %123 = dma.hbm_to_vmem [thread:$0]  %s9, 128, %s121, [#allocation15]
    $region41: #{tpu_custom_call.1} parent=1 // pred_fallthru
      _
    // Predicated region
    $region42: #{tpu_custom_call.1} parent=1 // pred_check
      _
    $region43: #{tpu_custom_call.1} parent=1 // pred_check_branch
      %125 = sbr.rel (0) target = $region45
    $region44: #{tpu_custom_call.1} parent=1 // pred_region
      %s127 = ssub.s32 32768, 32768
      %128 = vsyncadd [#allocation18], %s127
      %s129 = sshll.u32 [#allocation17], 4
      %s130 = int_to_ptr.vmem [resolvable:$true] %s129
      %135 = dma.hbm_to_vmem [thread:$0]  %s10, 32768, %s130, [#allocation18], 256, 256, 16
    $region45: #{tpu_custom_call.1} parent=1 // pred_fallthru
      _
    // Predicated region
    $region46: #{tpu_custom_call.1} parent=1 // pred_check
      _
    $region47: #{tpu_custom_call.1} parent=1 // pred_check_branch
      %137 = sbr.rel (0) target = $region49
    $region48: #{tpu_custom_call.1} parent=1 // pred_region
      %s139 = ssub.s32 64, 64
      %140 = vsyncadd [#allocation18], %s139
      %s142 = sshll.u32 [#allocation19], 4
      %s143 = int_to_ptr.vmem [resolvable:$true] %s142
      %145 = dma.hbm_to_vmem [thread:$0]  %s11, 64, %s143, [#allocation18]
    $region49: #{tpu_custom_call.1} parent=1 // pred_fallthru
      _
    // Predicated region
    $region50: #{tpu_custom_call.1} parent=1 // pred_check
      _
    $region51: #{tpu_custom_call.1} parent=1 // pred_check_branch
      %147 = sbr.rel (0) target = $region53
    $region52: #{tpu_custom_call.1} parent=1 // pred_region
      %148 = dma.done [#allocation3], 64
    $region53: #{tpu_custom_call.1} parent=1 // pred_fallthru
      _
    // Predicated region
    $region54: #{tpu_custom_call.1} parent=1 // pred_check
      _
    $region55: #{tpu_custom_call.1} parent=1 // pred_check_branch
      %150 = sbr.rel (0) target = $region57
    $region56: #{tpu_custom_call.1} parent=1 // pred_region
      %151 = dma.done [#allocation6], 16
    $region57: #{tpu_custom_call.1} parent=1 // pred_fallthru
      _
    // Predicated region
    $region58: #{tpu_custom_call.1} parent=1 // pred_check
      _
    $region59: #{tpu_custom_call.1} parent=1 // pred_check_branch
      %153 = sbr.rel (0) target = $region61
    $region60: #{tpu_custom_call.1} parent=1 // pred_region
      %154 = dma.done [#allocation6], 512
    $region61: #{tpu_custom_call.1} parent=1 // pred_fallthru
      _
    // Predicated region
    $region62: #{tpu_custom_call.1} parent=1 // pred_check
      _
    $region63: #{tpu_custom_call.1} parent=1 // pred_check_branch
      %156 = sbr.rel (0) target = $region65
    $region64: #{tpu_custom_call.1} parent=1 // pred_region
      %157 = dma.done [#allocation9], 16
    $region65: #{tpu_custom_call.1} parent=1 // pred_fallthru
      _
    // Predicated region
    $region66: #{tpu_custom_call.1} parent=1 // pred_check
      _
    $region67: #{tpu_custom_call.1} parent=1 // pred_check_branch
      %159 = sbr.rel (0) target = $region69
    $region68: #{tpu_custom_call.1} parent=1 // pred_region
      %160 = dma.done [#allocation9], 8192
    $region69: #{tpu_custom_call.1} parent=1 // pred_fallthru
      _
    // Predicated region
    $region70: #{tpu_custom_call.1} parent=1 // pred_check
      _
    $region71: #{tpu_custom_call.1} parent=1 // pred_check_branch
      %162 = sbr.rel (0) target = $region73
    $region72: #{tpu_custom_call.1} parent=1 // pred_region
      %163 = dma.done [#allocation12], 128
    $region73: #{tpu_custom_call.1} parent=1 // pred_fallthru
      _
    // Predicated region
    $region74: #{tpu_custom_call.1} parent=1 // pred_check
      _
    $region75: #{tpu_custom_call.1} parent=1 // pred_check_branch
      %165 = sbr.rel (0) target = $region77
    $region76: #{tpu_custom_call.1} parent=1 // pred_region
      %166 = dma.done [#allocation12], 4096
    $region77: #{tpu_custom_call.1} parent=1 // pred_fallthru
      _
    // Predicated region
    $region78: #{tpu_custom_call.1} parent=1 // pred_check
      _
    $region79: #{tpu_custom_call.1} parent=1 // pred_check_branch
      %168 = sbr.rel (0) target = $region81
    $region80: #{tpu_custom_call.1} parent=1 // pred_region
      %169 = dma.done [#allocation15], 65536
    $region81: #{tpu_custom_call.1} parent=1 // pred_fallthru
      _
    // Predicated region
    $region82: #{tpu_custom_call.1} parent=1 // pred_check
      _
    $region83: #{tpu_custom_call.1} parent=1 // pred_check_branch
      %171 = sbr.rel (0) target = $region85
    $region84: #{tpu_custom_call.1} parent=1 // pred_region
      %172 = dma.done [#allocation15], 128
    $region85: #{tpu_custom_call.1} parent=1 // pred_fallthru
      _
    // Predicated region
    $region86: #{tpu_custom_call.1} parent=1 // pred_check
      _
    $region87: #{tpu_custom_call.1} parent=1 // pred_check_branch
      %174 = sbr.rel (0) target = $region89
    $region88: #{tpu_custom_call.1} parent=1 // pred_region
      %175 = dma.done [#allocation18], 32768
    $region89: #{tpu_custom_call.1} parent=1 // pred_fallthru
      _
    // Predicated region
    $region90: #{tpu_custom_call.1} parent=1 // pred_check
      _
    $region91: #{tpu_custom_call.1} parent=1 // pred_check_branch
      %177 = sbr.rel (0) target = $region93
    $region92: #{tpu_custom_call.1} parent=1 // pred_region
      %178 = dma.done [#allocation18], 64
    $region93: #{tpu_custom_call.1} parent=1 // pred_fallthru
      _
    %v180 = vld [vmem:[%s0] sm:$0xff]
    %v181 = vld [vmem:[%s0 + $0x8] sm:$0xff]
    %v182 = vld [vmem:[%s0 + $0x10] sm:$0xff]
    %v183 = vld [vmem:[%s0 + $0x18] sm:$0xff]
    %v184 = vld [vmem:[%s0 + $0x20] sm:$0xff]
    %v185 = vld [vmem:[%s0 + $0x28] sm:$0xff]
    %v186 = vld [vmem:[%s0 + $0x30] sm:$0xff]
    %v187 = vld [vmem:[%s0 + $0x38] sm:$0xff]
    %v188 = vld [vmem:[%s0 + $0x40] sm:$0xff]
    %v189 = vld [vmem:[%s0 + $0x48] sm:$0xff]
    %v190 = vld [vmem:[%s0 + $0x50] sm:$0xff]
    %v191 = vld [vmem:[%s0 + $0x58] sm:$0xff]
    %v192 = vld [vmem:[%s0 + $0x60] sm:$0xff]
    %v193 = vld [vmem:[%s0 + $0x68] sm:$0xff]
    %v194 = vld [vmem:[%s0 + $0x70] sm:$0xff]
    %v195 = vld [vmem:[%s0 + $0x78] sm:$0xff]
    %v196 = vld [vmem:[%s0 + $0x80] sm:$0xff]
    %v197 = vld [vmem:[%s0 + $0x88] sm:$0xff]
    %v198 = vld [vmem:[%s0 + $0x90] sm:$0xff]
    %v199 = vld [vmem:[%s0 + $0x98] sm:$0xff]
    %v200 = vld [vmem:[%s0 + $0xa0] sm:$0xff]
    %v201 = vld [vmem:[%s0 + $0xa8] sm:$0xff]
    %v202 = vld [vmem:[%s0 + $0xb0] sm:$0xff]
    %v203 = vld [vmem:[%s0 + $0xb8] sm:$0xff]
    %v204 = vld [vmem:[%s0 + $0xc0] sm:$0xff]
    %v205 = vld [vmem:[%s0 + $0xc8] sm:$0xff]
    %v206 = vld [vmem:[%s0 + $0xd0] sm:$0xff]
    %v207 = vld [vmem:[%s0 + $0xd8] sm:$0xff]
    %v208 = vld [vmem:[%s0 + $0xe0] sm:$0xff]
    %v209 = vld [vmem:[%s0 + $0xe8] sm:$0xff]
    %v210 = vld [vmem:[%s0 + $0xf0] sm:$0xff]
    %v211 = vld [vmem:[%s0 + $0xf8] sm:$0xff]
    %v212 = vpack.c.bf16 %v181, %v180
    %v213 = vpack.c.bf16 %v183, %v182
    %v214 = vpack.c.bf16 %v185, %v184
    %v215 = vpack.c.bf16 %v187, %v186
    %v216 = vpack.c.bf16 %v189, %v188
    %v217 = vpack.c.bf16 %v191, %v190
    %v218 = vpack.c.bf16 %v193, %v192
    %v219 = vpack.c.bf16 %v195, %v194
    %v220 = vpack.c.bf16 %v197, %v196
    %v221 = vpack.c.bf16 %v199, %v198
    %v222 = vpack.c.bf16 %v201, %v200
    %v223 = vpack.c.bf16 %v203, %v202
    %v224 = vpack.c.bf16 %v205, %v204
    %v225 = vpack.c.bf16 %v207, %v206
    %v226 = vpack.c.bf16 %v209, %v208
    %v227 = vpack.c.bf16 %v211, %v210
    %v228 = vld [vmem:[#allocation2] sm:$0xf]
    %v229 = vld [vmem:[#allocation5] sm:$0x1]
    %v231 = vlaneseq
    %v232 = vshrl.u32 %v231, 7
    %v233 = vsub.s32 0, %v232
    %v234 = vrot.slane %v229, %v233
    %vm236 = vcmask 64512
    %v238 = vsel %vm236, %v212, 0
    %v241 = vsel %vm236, %v213, 0
    %v244 = vsel %vm236, %v214, 0
    %v247 = vsel %vm236, %v215, 0
    %v250 = vsel %vm236, %v216, 0
    %v253 = vsel %vm236, %v217, 0
    %v256 = vsel %vm236, %v218, 0
    %v259 = vsel %vm236, %v219, 0
    %v262 = vsel %vm236, %v220, 0
    %v265 = vsel %vm236, %v221, 0
    %v268 = vsel %vm236, %v222, 0
    %v271 = vsel %vm236, %v223, 0
    %v274 = vsel %vm236, %v224, 0
    %v277 = vsel %vm236, %v225, 0
    %v280 = vsel %vm236, %v226, 0
    %v283 = vsel %vm236, %v227, 0
    %vm285 = vcmask 1043456
    %v287 = vsel %vm285, %v228, 0
    %289 = vmatprep.subr.bf16.mxu0 0
    %290 = vmatpush1.bf16.msra.mxu0 0
    %291 = vmatprep.subr.bf16.mxu0 0
    %292 = vmatpush1.bf16.msra.mxu0 0
    %293 = vmatprep.subr.bf16.mxu0 0
    %294 = vmatpush1.bf16.msra.mxu0 0
    %295 = vmatprep.subr.bf16.mxu0 0
    %296 = vmatpush1.bf16.msra.mxu0 0
    %297 = vmatprep.subr.bf16.mxu0 0
    %298 = vmatpush1.bf16.msra.mxu0 0
    %299 = vmatprep.subr.bf16.mxu0 0
    %300 = vmatpush1.bf16.msra.mxu0 0
    %301 = vmatprep.subr.bf16.mxu0 0
    %302 = vmatpush1.bf16.msra.mxu0 0
    %303 = vmatprep.subr.bf16.mxu0 0
    %304 = vmatpush1.bf16.msra.mxu0 %v287
    %305 = vmatprep.subr.bf16.mxu0 0
    %306 = vmatpush2.bf16.msra.mxu0 0
    %307 = vmatprep.subr.bf16.mxu0 0
    %308 = vmatpush2.bf16.msra.mxu0 0
    %309 = vmatprep.subr.bf16.mxu0 0
    %310 = vmatpush2.bf16.msra.mxu0 0
    %311 = vmatprep.subr.bf16.mxu0 0
    %312 = vmatpush2.bf16.msra.mxu0 0
    %313 = vmatprep.subr.bf16.mxu0 0
    %314 = vmatpush2.bf16.msra.mxu0 0
    %315 = vmatprep.subr.bf16.mxu0 0
    %316 = vmatpush2.bf16.msra.mxu0 0
    %317 = vmatprep.subr.bf16.mxu0 0
    %318 = vmatpush2.bf16.msra.mxu0 0
    %319 = vmatprep.subr.bf16.mxu0 0
    %320 = vmatpush2.bf16.msra.mxu0 0
    %321 = vmatprep.mubr.bf16.mxu0 0
    %322 = vmatmul.mubr.bf16.gmra.mxu0 %v238
    %v323 = vpop.f32.mrf.mxu0
    %v324 = vadd.f32 %v234, %v323
    %v325 = vpop.f32.mrf.mxu0
    %v326 = vpop.f32.mrf.mxu0
    %v327 = vadd.f32 %v234, %v326
    %v328 = vpop.f32.mrf.mxu0
    %329 = vmatprep.mubr.bf16.mxu0 0
    %330 = vmatmul.mubr.bf16.gmra.mxu0 %v241
    %v331 = vpop.f32.mrf.mxu0
    %v332 = vadd.f32 %v234, %v331
    %v333 = vpop.f32.mrf.mxu0
    %v334 = vpop.f32.mrf.mxu0
    %v335 = vadd.f32 %v234, %v334
    %v336 = vpop.f32.mrf.mxu0
    %337 = vmatprep.mubr.bf16.mxu0 0
    %338 = vmatmul.mubr.bf16.gmra.mxu0 %v244
    %v339 = vpop.f32.mrf.mxu0
    %v340 = vadd.f32 %v234, %v339
    %v341 = vpop.f32.mrf.mxu0
    %v342 = vpop.f32.mrf.mxu0
    %v343 = vadd.f32 %v234, %v342
    %v344 = vpop.f32.mrf.mxu0
    %345 = vmatprep.mubr.bf16.mxu0 0
    %346 = vmatmul.mubr.bf16.gmra.mxu0 %v247
    %v347 = vpop.f32.mrf.mxu0
    %v348 = vadd.f32 %v234, %v347
    %v349 = vpop.f32.mrf.mxu0
    %v350 = vpop.f32.mrf.mxu0
    %v351 = vadd.f32 %v234, %v350
    %v352 = vpop.f32.mrf.mxu0
    %353 = vmatprep.mubr.bf16.mxu0 0
    %354 = vmatmul.mubr.bf16.gmra.mxu0 %v250
    %v355 = vpop.f32.mrf.mxu0
    %v356 = vadd.f32 %v234, %v355
    %v357 = vpop.f32.mrf.mxu0
    %v358 = vpop.f32.mrf.mxu0
    %v359 = vadd.f32 %v234, %v358
    %v360 = vpop.f32.mrf.mxu0
    %361 = vmatprep.mubr.bf16.mxu0 0
    %362 = vmatmul.mubr.bf16.gmra.mxu0 %v253
    %v363 = vpop.f32.mrf.mxu0
    %v364 = vadd.f32 %v234, %v363
    %v365 = vpop.f32.mrf.mxu0
    %v366 = vpop.f32.mrf.mxu0
    %v367 = vadd.f32 %v234, %v366
    %v368 = vpop.f32.mrf.mxu0
    %369 = vmatprep.mubr.bf16.mxu0 0
    %370 = vmatmul.mubr.bf16.gmra.mxu0 %v256
    %v371 = vpop.f32.mrf.mxu0
    %v372 = vadd.f32 %v234, %v371
    %v373 = vpop.f32.mrf.mxu0
    %v374 = vpop.f32.mrf.mxu0
    %v375 = vadd.f32 %v234, %v374
    %v376 = vpop.f32.mrf.mxu0
    %377 = vmatprep.mubr.bf16.mxu0 0
    %378 = vmatmul.mubr.bf16.gmra.mxu0 %v259
    %v379 = vpop.f32.mrf.mxu0
    %v380 = vadd.f32 %v234, %v379
    %v381 = vpop.f32.mrf.mxu0
    %v382 = vpop.f32.mrf.mxu0
    %v383 = vadd.f32 %v234, %v382
    %v384 = vpop.f32.mrf.mxu0
    %385 = vmatprep.mubr.bf16.mxu0 0
    %386 = vmatmul.mubr.bf16.gmra.mxu0 %v262
    %v387 = vpop.f32.mrf.mxu0
    %v388 = vadd.f32 %v234, %v387
    %v389 = vpop.f32.mrf.mxu0
    %v390 = vpop.f32.mrf.mxu0
    %v391 = vadd.f32 %v234, %v390
    %v392 = vpop.f32.mrf.mxu0
    %393 = vmatprep.mubr.bf16.mxu0 0
    %394 = vmatmul.mubr.bf16.gmra.mxu0 %v265
    %v395 = vpop.f32.mrf.mxu0
    %v396 = vadd.f32 %v234, %v395
    %v397 = vpop.f32.mrf.mxu0
    %v398 = vpop.f32.mrf.mxu0
    %v399 = vadd.f32 %v234, %v398
    %v400 = vpop.f32.mrf.mxu0
    %401 = vmatprep.mubr.bf16.mxu0 0
    %402 = vmatmul.mubr.bf16.gmra.mxu0 %v268
    %v403 = vpop.f32.mrf.mxu0
    %v404 = vadd.f32 %v234, %v403
    %v405 = vpop.f32.mrf.mxu0
    %v406 = vpop.f32.mrf.mxu0
    %v407 = vadd.f32 %v234, %v406
    %v408 = vpop.f32.mrf.mxu0
    %409 = vmatprep.mubr.bf16.mxu0 0
    %410 = vmatmul.mubr.bf16.gmra.mxu0 %v271
    %v411 = vpop.f32.mrf.mxu0
    %v412 = vadd.f32 %v234, %v411
    %v413 = vpop.f32.mrf.mxu0
    %v414 = vpop.f32.mrf.mxu0
    %v415 = vadd.f32 %v234, %v414
    %v416 = vpop.f32.mrf.mxu0
    %417 = vmatprep.mubr.bf16.mxu0 0
    %418 = vmatmul.mubr.bf16.gmra.mxu0 %v274
    %v419 = vpop.f32.mrf.mxu0
    %v420 = vadd.f32 %v234, %v419
    %v421 = vpop.f32.mrf.mxu0
    %v422 = vpop.f32.mrf.mxu0
    %v423 = vadd.f32 %v234, %v422
    %v424 = vpop.f32.mrf.mxu0
    %425 = vmatprep.mubr.bf16.mxu0 0
    %426 = vmatmul.mubr.bf16.gmra.mxu0 %v277
    %v427 = vpop.f32.mrf.mxu0
    %v428 = vadd.f32 %v234, %v427
    %v429 = vpop.f32.mrf.mxu0
    %v430 = vpop.f32.mrf.mxu0
    %v431 = vadd.f32 %v234, %v430
    %v432 = vpop.f32.mrf.mxu0
    %433 = vmatprep.mubr.bf16.mxu0 0
    %434 = vmatmul.mubr.bf16.gmra.mxu0 %v280
    %v435 = vpop.f32.mrf.mxu0
    %v436 = vadd.f32 %v234, %v435
    %v437 = vpop.f32.mrf.mxu0
    %v438 = vpop.f32.mrf.mxu0
    %v439 = vadd.f32 %v234, %v438
    %v440 = vpop.f32.mrf.mxu0
    %441 = vmatprep.mubr.bf16.mxu0 0
    %442 = vmatmul.mubr.bf16.gmra.mxu0 %v283
    %v443 = vpop.f32.mrf.mxu0
    %v444 = vadd.f32 %v234, %v443
    %v445 = vpop.f32.mrf.mxu0
    %v446 = vpop.f32.mrf.mxu0
    %v447 = vadd.f32 %v234, %v446
    %v448 = vpop.f32.mrf.mxu0
    %449 = vdwg.mxu0
    %v450 = vmax.f32 %v324, 0.0
    %v451 = vmax.f32 %v327, 0.0
    %v452 = vmax.f32 %v332, 0.0
    %v453 = vmax.f32 %v335, 0.0
    %v454 = vmax.f32 %v340, 0.0
    %v455 = vmax.f32 %v343, 0.0
    %v456 = vmax.f32 %v348, 0.0
    %v457 = vmax.f32 %v351, 0.0
    %v458 = vmax.f32 %v356, 0.0
    %v459 = vmax.f32 %v359, 0.0
    %v460 = vmax.f32 %v364, 0.0
    %v461 = vmax.f32 %v367, 0.0
    %v462 = vmax.f32 %v372, 0.0
    %v463 = vmax.f32 %v375, 0.0
    %v464 = vmax.f32 %v380, 0.0
    %v465 = vmax.f32 %v383, 0.0
    %v466 = vmax.f32 %v388, 0.0
    %v467 = vmax.f32 %v391, 0.0
    %v468 = vmax.f32 %v396, 0.0
    %v469 = vmax.f32 %v399, 0.0
    %v470 = vmax.f32 %v404, 0.0
    %v471 = vmax.f32 %v407, 0.0
    %v472 = vmax.f32 %v412, 0.0
    %v473 = vmax.f32 %v415, 0.0
    %v474 = vmax.f32 %v420, 0.0
    %v475 = vmax.f32 %v423, 0.0
    %v476 = vmax.f32 %v428, 0.0
    %v477 = vmax.f32 %v431, 0.0
    %v478 = vmax.f32 %v436, 0.0
    %v479 = vmax.f32 %v439, 0.0
    %v480 = vmax.f32 %v444, 0.0
    %v481 = vmax.f32 %v447, 0.0
    %v482 = vpack.c.bf16 %v451, %v450
    %v483 = vpack.c.bf16 %v453, %v452
    %v484 = vpack.c.bf16 %v455, %v454
    %v485 = vpack.c.bf16 %v457, %v456
    %v486 = vpack.c.bf16 %v459, %v458
    %v487 = vpack.c.bf16 %v461, %v460
    %v488 = vpack.c.bf16 %v463, %v462
    %v489 = vpack.c.bf16 %v465, %v464
    %v490 = vpack.c.bf16 %v467, %v466
    %v491 = vpack.c.bf16 %v469, %v468
    %v492 = vpack.c.bf16 %v471, %v470
    %v493 = vpack.c.bf16 %v473, %v472
    %v494 = vpack.c.bf16 %v475, %v474
    %v495 = vpack.c.bf16 %v477, %v476
    %v496 = vpack.c.bf16 %v479, %v478
    %v497 = vpack.c.bf16 %v481, %v480
    %v498 = vld [vmem:[#allocation7] sm:$0xf]
    %v499 = vld [vmem:[#allocation7 + $0x4] sm:$0xf]
    %v500 = vld [vmem:[#allocation7 + $0x8] sm:$0xf]
    %v501 = vld [vmem:[#allocation7 + $0xc] sm:$0xf]
    %v502 = vld [vmem:[#allocation7 + $0x10] sm:$0xf]
    %v503 = vld [vmem:[#allocation7 + $0x14] sm:$0xf]
    %v504 = vld [vmem:[#allocation7 + $0x18] sm:$0xf]
    %v505 = vld [vmem:[#allocation7 + $0x1c] sm:$0xf]
    %v506 = vld [vmem:[#allocation8] sm:$0x1]
    %v508 = vlaneseq
    %v509 = vshrl.u32 %v508, 7
    %v510 = vsub.s32 0, %v509
    %v511 = vrot.slane %v506, %v510
    %v521 = vunpack.c.l.b16 %v498
    %v522 = vunpack.c.l.b16 %v499
    %v523 = vunpack.c.l.b16 %v500
    %v524 = vunpack.c.l.b16 %v501
    %v525 = vunpack.c.l.b16 %v502
    %v526 = vunpack.c.l.b16 %v503
    %v527 = vunpack.c.l.b16 %v504
    %v528 = vunpack.c.l.b16 %v505
    %v529 = vpack.c.b16 %v522, %v521
    %v530 = vpack.c.b16 %v524, %v523
    %v531 = vpack.c.b16 %v526, %v525
    %v532 = vpack.c.b16 %v528, %v527
    %vm537 = vcmask 523264
    %v539 = vsel %vm537, %v482, 0
    %v542 = vsel %vm537, %v483, 0
    %v545 = vsel %vm537, %v484, 0
    %v548 = vsel %vm537, %v485, 0
    %v551 = vsel %vm537, %v486, 0
    %v554 = vsel %vm537, %v487, 0
    %v557 = vsel %vm537, %v488, 0
    %v560 = vsel %vm537, %v489, 0
    %v563 = vsel %vm537, %v490, 0
    %v566 = vsel %vm537, %v491, 0
    %v569 = vsel %vm537, %v492, 0
    %v572 = vsel %vm537, %v493, 0
    %v575 = vsel %vm537, %v494, 0
    %v578 = vsel %vm537, %v495, 0
    %v581 = vsel %vm537, %v496, 0
    %v584 = vsel %vm537, %v497, 0
    %586 = vmatprep.subr.bf16.mxu0 0
    %587 = vmatpush1.bf16.msra.mxu0 0
    %588 = vmatprep.subr.bf16.mxu0 0
    %589 = vmatpush1.bf16.msra.mxu0 0
    %590 = vmatprep.subr.bf16.mxu0 0
    %591 = vmatpush1.bf16.msra.mxu0 0
    %592 = vmatprep.subr.bf16.mxu0 0
    %593 = vmatpush1.bf16.msra.mxu0 0
    %594 = vmatprep.subr.bf16.mxu0 0
    %595 = vmatpush1.bf16.msra.mxu0 %v532
    %596 = vmatprep.subr.bf16.mxu0 0
    %597 = vmatpush1.bf16.msra.mxu0 %v531
    %598 = vmatprep.subr.bf16.mxu0 0
    %599 = vmatpush1.bf16.msra.mxu0 %v530
    %600 = vmatprep.subr.bf16.mxu0 0
    %601 = vmatpush1.bf16.msra.mxu0 %v529
    %602 = vmatprep.subr.bf16.mxu0 0
    %603 = vmatpush2.bf16.msra.mxu0 0
    %604 = vmatprep.subr.bf16.mxu0 0
    %605 = vmatpush2.bf16.msra.mxu0 0
    %606 = vmatprep.subr.bf16.mxu0 0
    %607 = vmatpush2.bf16.msra.mxu0 0
    %608 = vmatprep.subr.bf16.mxu0 0
    %609 = vmatpush2.bf16.msra.mxu0 0
    %610 = vmatprep.subr.bf16.mxu0 0
    %611 = vmatpush2.bf16.msra.mxu0 0
    %612 = vmatprep.subr.bf16.mxu0 0
    %613 = vmatpush2.bf16.msra.mxu0 0
    %614 = vmatprep.subr.bf16.mxu0 0
    %615 = vmatpush2.bf16.msra.mxu0 0
    %616 = vmatprep.subr.bf16.mxu0 0
    %617 = vmatpush2.bf16.msra.mxu0 0
    %618 = vmatprep.mubr.bf16.mxu0 0
    %619 = vmatmul.mubr.bf16.gmra.mxu0 %v539
    %v620 = vpop.f32.mrf.mxu0
    %v621 = vadd.f32 %v511, %v620
    %v622 = vpop.f32.mrf.mxu0
    %v623 = vpop.f32.mrf.mxu0
    %v624 = vadd.f32 %v511, %v623
    %v625 = vpop.f32.mrf.mxu0
    %626 = vmatprep.mubr.bf16.mxu0 0
    %627 = vmatmul.mubr.bf16.gmra.mxu0 %v542
    %v628 = vpop.f32.mrf.mxu0
    %v629 = vadd.f32 %v511, %v628
    %v630 = vpop.f32.mrf.mxu0
    %v631 = vpop.f32.mrf.mxu0
    %v632 = vadd.f32 %v511, %v631
    %v633 = vpop.f32.mrf.mxu0
    %634 = vmatprep.mubr.bf16.mxu0 0
    %635 = vmatmul.mubr.bf16.gmra.mxu0 %v545
    %v636 = vpop.f32.mrf.mxu0
    %v637 = vadd.f32 %v511, %v636
    %v638 = vpop.f32.mrf.mxu0
    %v639 = vpop.f32.mrf.mxu0
    %v640 = vadd.f32 %v511, %v639
    %v641 = vpop.f32.mrf.mxu0
    %642 = vmatprep.mubr.bf16.mxu0 0
    %643 = vmatmul.mubr.bf16.gmra.mxu0 %v548
    %v644 = vpop.f32.mrf.mxu0
    %v645 = vadd.f32 %v511, %v644
    %v646 = vpop.f32.mrf.mxu0
    %v647 = vpop.f32.mrf.mxu0
    %v648 = vadd.f32 %v511, %v647
    %v649 = vpop.f32.mrf.mxu0
    %650 = vmatprep.mubr.bf16.mxu0 0
    %651 = vmatmul.mubr.bf16.gmra.mxu0 %v551
    %v652 = vpop.f32.mrf.mxu0
    %v653 = vadd.f32 %v511, %v652
    %v654 = vpop.f32.mrf.mxu0
    %v655 = vpop.f32.mrf.mxu0
    %v656 = vadd.f32 %v511, %v655
    %v657 = vpop.f32.mrf.mxu0
    %658 = vmatprep.mubr.bf16.mxu0 0
    %659 = vmatmul.mubr.bf16.gmra.mxu0 %v554
    %v660 = vpop.f32.mrf.mxu0
    %v661 = vadd.f32 %v511, %v660
    %v662 = vpop.f32.mrf.mxu0
    %v663 = vpop.f32.mrf.mxu0
    %v664 = vadd.f32 %v511, %v663
    %v665 = vpop.f32.mrf.mxu0
    %666 = vmatprep.mubr.bf16.mxu0 0
    %667 = vmatmul.mubr.bf16.gmra.mxu0 %v557
    %v668 = vpop.f32.mrf.mxu0
    %v669 = vadd.f32 %v511, %v668
    %v670 = vpop.f32.mrf.mxu0
    %v671 = vpop.f32.mrf.mxu0
    %v672 = vadd.f32 %v511, %v671
    %v673 = vpop.f32.mrf.mxu0
    %674 = vmatprep.mubr.bf16.mxu0 0
    %675 = vmatmul.mubr.bf16.gmra.mxu0 %v560
    %v676 = vpop.f32.mrf.mxu0
    %v677 = vadd.f32 %v511, %v676
    %v678 = vpop.f32.mrf.mxu0
    %v679 = vpop.f32.mrf.mxu0
    %v680 = vadd.f32 %v511, %v679
    %v681 = vpop.f32.mrf.mxu0
    %682 = vmatprep.mubr.bf16.mxu0 0
    %683 = vmatmul.mubr.bf16.gmra.mxu0 %v563
    %v684 = vpop.f32.mrf.mxu0
    %v685 = vadd.f32 %v511, %v684
    %v686 = vpop.f32.mrf.mxu0
    %v687 = vpop.f32.mrf.mxu0
    %v688 = vadd.f32 %v511, %v687
    %v689 = vpop.f32.mrf.mxu0
    %690 = vmatprep.mubr.bf16.mxu0 0
    %691 = vmatmul.mubr.bf16.gmra.mxu0 %v566
    %v692 = vpop.f32.mrf.mxu0
    %v693 = vadd.f32 %v511, %v692
    %v694 = vpop.f32.mrf.mxu0
    %v695 = vpop.f32.mrf.mxu0
    %v696 = vadd.f32 %v511, %v695
    %v697 = vpop.f32.mrf.mxu0
    %698 = vmatprep.mubr.bf16.mxu0 0
    %699 = vmatmul.mubr.bf16.gmra.mxu0 %v569
    %v700 = vpop.f32.mrf.mxu0
    %v701 = vadd.f32 %v511, %v700
    %v702 = vpop.f32.mrf.mxu0
    %v703 = vpop.f32.mrf.mxu0
    %v704 = vadd.f32 %v511, %v703
    %v705 = vpop.f32.mrf.mxu0
    %706 = vmatprep.mubr.bf16.mxu0 0
    %707 = vmatmul.mubr.bf16.gmra.mxu0 %v572
    %v708 = vpop.f32.mrf.mxu0
    %v709 = vadd.f32 %v511, %v708
    %v710 = vpop.f32.mrf.mxu0
    %v711 = vpop.f32.mrf.mxu0
    %v712 = vadd.f32 %v511, %v711
    %v713 = vpop.f32.mrf.mxu0
    %714 = vmatprep.mubr.bf16.mxu0 0
    %715 = vmatmul.mubr.bf16.gmra.mxu0 %v575
    %v716 = vpop.f32.mrf.mxu0
    %v717 = vadd.f32 %v511, %v716
    %v718 = vpop.f32.mrf.mxu0
    %v719 = vpop.f32.mrf.mxu0
    %v720 = vadd.f32 %v511, %v719
    %v721 = vpop.f32.mrf.mxu0
    %722 = vmatprep.mubr.bf16.mxu0 0
    %723 = vmatmul.mubr.bf16.gmra.mxu0 %v578
    %v724 = vpop.f32.mrf.mxu0
    %v725 = vadd.f32 %v511, %v724
    %v726 = vpop.f32.mrf.mxu0
    %v727 = vpop.f32.mrf.mxu0
    %v728 = vadd.f32 %v511, %v727
    %v729 = vpop.f32.mrf.mxu0
    %730 = vmatprep.mubr.bf16.mxu0 0
    %731 = vmatmul.mubr.bf16.gmra.mxu0 %v581
    %v732 = vpop.f32.mrf.mxu0
    %v733 = vadd.f32 %v511, %v732
    %v734 = vpop.f32.mrf.mxu0
    %v735 = vpop.f32.mrf.mxu0
    %v736 = vadd.f32 %v511, %v735
    %v737 = vpop.f32.mrf.mxu0
    %738 = vmatprep.mubr.bf16.mxu0 0
    %739 = vmatmul.mubr.bf16.gmra.mxu0 %v584
    %v740 = vpop.f32.mrf.mxu0
    %v741 = vadd.f32 %v511, %v740
    %v742 = vpop.f32.mrf.mxu0
    %v743 = vpop.f32.mrf.mxu0
    %v744 = vadd.f32 %v511, %v743
    %v745 = vpop.f32.mrf.mxu0
    %746 = vdwg.mxu0
    %v747 = vmax.f32 %v621, 0.0
    %v748 = vmax.f32 %v624, 0.0
    %v749 = vmax.f32 %v629, 0.0
    %v750 = vmax.f32 %v632, 0.0
    %v751 = vmax.f32 %v637, 0.0
    %v752 = vmax.f32 %v640, 0.0
    %v753 = vmax.f32 %v645, 0.0
    %v754 = vmax.f32 %v648, 0.0
    %v755 = vmax.f32 %v653, 0.0
    %v756 = vmax.f32 %v656, 0.0
    %v757 = vmax.f32 %v661, 0.0
    %v758 = vmax.f32 %v664, 0.0
    %v759 = vmax.f32 %v669, 0.0
    %v760 = vmax.f32 %v672, 0.0
    %v761 = vmax.f32 %v677, 0.0
    %v762 = vmax.f32 %v680, 0.0
    %v763 = vmax.f32 %v685, 0.0
    %v764 = vmax.f32 %v688, 0.0
    %v765 = vmax.f32 %v693, 0.0
    %v766 = vmax.f32 %v696, 0.0
    %v767 = vmax.f32 %v701, 0.0
    %v768 = vmax.f32 %v704, 0.0
    %v769 = vmax.f32 %v709, 0.0
    %v770 = vmax.f32 %v712, 0.0
    %v771 = vmax.f32 %v717, 0.0
    %v772 = vmax.f32 %v720, 0.0
    %v773 = vmax.f32 %v725, 0.0
    %v774 = vmax.f32 %v728, 0.0
    %v775 = vmax.f32 %v733, 0.0
    %v776 = vmax.f32 %v736, 0.0
    %v777 = vmax.f32 %v741, 0.0
    %v778 = vmax.f32 %v744, 0.0
    %v779 = vpack.c.bf16 %v748, %v747
    %v780 = vpack.c.bf16 %v750, %v749
    %v781 = vpack.c.bf16 %v752, %v751
    %v782 = vpack.c.bf16 %v754, %v753
    %v783 = vpack.c.bf16 %v756, %v755
    %v784 = vpack.c.bf16 %v758, %v757
    %v785 = vpack.c.bf16 %v760, %v759
    %v786 = vpack.c.bf16 %v762, %v761
    %v787 = vpack.c.bf16 %v764, %v763
    %v788 = vpack.c.bf16 %v766, %v765
    %v789 = vpack.c.bf16 %v768, %v767
    %v790 = vpack.c.bf16 %v770, %v769
    %v791 = vpack.c.bf16 %v772, %v771
    %v792 = vpack.c.bf16 %v774, %v773
    %v793 = vpack.c.bf16 %v776, %v775
    %v794 = vpack.c.bf16 %v778, %v777
    %v795 = vld [vmem:[#allocation10] sm:$0xff]
    %v796 = vld [vmem:[#allocation10 + $0x8] sm:$0xff]
    %v797 = vld [vmem:[#allocation10 + $0x10] sm:$0xff]
    %v798 = vld [vmem:[#allocation10 + $0x18] sm:$0xff]
    %v799 = vld [vmem:[#allocation10 + $0x20] sm:$0xff]
    %v800 = vld [vmem:[#allocation10 + $0x28] sm:$0xff]
    %v801 = vld [vmem:[#allocation10 + $0x30] sm:$0xff]
    %v802 = vld [vmem:[#allocation10 + $0x38] sm:$0xff]
    %v803 = vld [vmem:[#allocation10 + $0x40] sm:$0xff]
    %v804 = vld [vmem:[#allocation10 + $0x48] sm:$0xff]
    %v805 = vld [vmem:[#allocation10 + $0x50] sm:$0xff]
    %v806 = vld [vmem:[#allocation10 + $0x58] sm:$0xff]
    %v807 = vld [vmem:[#allocation10 + $0x60] sm:$0xff]
    %v808 = vld [vmem:[#allocation10 + $0x68] sm:$0xff]
    %v809 = vld [vmem:[#allocation10 + $0x70] sm:$0xff]
    %v810 = vld [vmem:[#allocation10 + $0x78] sm:$0xff]
    %v811 = vld [vmem:[#allocation10 + $0x80] sm:$0xff]
    %v812 = vld [vmem:[#allocation10 + $0x88] sm:$0xff]
    %v813 = vld [vmem:[#allocation10 + $0x90] sm:$0xff]
    %v814 = vld [vmem:[#allocation10 + $0x98] sm:$0xff]
    %v815 = vld [vmem:[#allocation10 + $0xa0] sm:$0xff]
    %v816 = vld [vmem:[#allocation10 + $0xa8] sm:$0xff]
    %v817 = vld [vmem:[#allocation10 + $0xb0] sm:$0xff]
    %v818 = vld [vmem:[#allocation10 + $0xb8] sm:$0xff]
    %v819 = vld [vmem:[#allocation10 + $0xc0] sm:$0xff]
    %v820 = vld [vmem:[#allocation10 + $0xc8] sm:$0xff]
    %v821 = vld [vmem:[#allocation10 + $0xd0] sm:$0xff]
    %v822 = vld [vmem:[#allocation10 + $0xd8] sm:$0xff]
    %v823 = vld [vmem:[#allocation10 + $0xe0] sm:$0xff]
    %v824 = vld [vmem:[#allocation10 + $0xe8] sm:$0xff]
    %v825 = vld [vmem:[#allocation10 + $0xf0] sm:$0xff]
    %v826 = vld [vmem:[#allocation10 + $0xf8] sm:$0xff]
    %v827 = vld [vmem:[#allocation10 + $0x100] sm:$0xff]
    %v828 = vld [vmem:[#allocation10 + $0x108] sm:$0xff]
    %v829 = vld [vmem:[#allocation10 + $0x110] sm:$0xff]
    %v830 = vld [vmem:[#allocation10 + $0x118] sm:$0xff]
    %v831 = vld [vmem:[#allocation10 + $0x120] sm:$0xff]
    %v832 = vld [vmem:[#allocation10 + $0x128] sm:$0xff]
    %v833 = vld [vmem:[#allocation10 + $0x130] sm:$0xff]
    %v834 = vld [vmem:[#allocation10 + $0x138] sm:$0xff]
    %v835 = vld [vmem:[#allocation10 + $0x140] sm:$0xff]
    %v836 = vld [vmem:[#allocation10 + $0x148] sm:$0xff]
    %v837 = vld [vmem:[#allocation10 + $0x150] sm:$0xff]
    %v838 = vld [vmem:[#allocation10 + $0x158] sm:$0xff]
    %v839 = vld [vmem:[#allocation10 + $0x160] sm:$0xff]
    %v840 = vld [vmem:[#allocation10 + $0x168] sm:$0xff]
    %v841 = vld [vmem:[#allocation10 + $0x170] sm:$0xff]
    %v842 = vld [vmem:[#allocation10 + $0x178] sm:$0xff]
    %v843 = vld [vmem:[#allocation10 + $0x180] sm:$0xff]
    %v844 = vld [vmem:[#allocation10 + $0x188] sm:$0xff]
    %v845 = vld [vmem:[#allocation10 + $0x190] sm:$0xff]
    %v846 = vld [vmem:[#allocation10 + $0x198] sm:$0xff]
    %v847 = vld [vmem:[#allocation10 + $0x1a0] sm:$0xff]
    %v848 = vld [vmem:[#allocation10 + $0x1a8] sm:$0xff]
    %v849 = vld [vmem:[#allocation10 + $0x1b0] sm:$0xff]
    %v850 = vld [vmem:[#allocation10 + $0x1b8] sm:$0xff]
    %v851 = vld [vmem:[#allocation10 + $0x1c0] sm:$0xff]
    %v852 = vld [vmem:[#allocation10 + $0x1c8] sm:$0xff]
    %v853 = vld [vmem:[#allocation10 + $0x1d0] sm:$0xff]
    %v854 = vld [vmem:[#allocation10 + $0x1d8] sm:$0xff]
    %v855 = vld [vmem:[#allocation10 + $0x1e0] sm:$0xff]
    %v856 = vld [vmem:[#allocation10 + $0x1e8] sm:$0xff]
    %v857 = vld [vmem:[#allocation10 + $0x1f0] sm:$0xff]
    %v858 = vld [vmem:[#allocation10 + $0x1f8] sm:$0xff]
    %v859 = vld [vmem:[#allocation11] sm:$0xff]
    %v861 = vlaneseq
    %v862 = vshrl.u32 %v861, 7
    %v863 = vsub.s32 0, %v862
    %v864 = vrot.slane %v859, %v863
    %v865 = vlaneseq
    %v866 = vshrl.u32 %v865, 7
    %v867 = vsub.s32 1, %v866
    %v868 = vrot.slane %v859, %v867
    %v869 = vlaneseq
    %v870 = vshrl.u32 %v869, 7
    %v871 = vsub.s32 2, %v870
    %v872 = vrot.slane %v859, %v871
    %v873 = vlaneseq
    %v874 = vshrl.u32 %v873, 7
    %v875 = vsub.s32 3, %v874
    %v876 = vrot.slane %v859, %v875
    %v877 = vlaneseq
    %v878 = vshrl.u32 %v877, 7
    %v879 = vsub.s32 4, %v878
    %v880 = vrot.slane %v859, %v879
    %v881 = vlaneseq
    %v882 = vshrl.u32 %v881, 7
    %v883 = vsub.s32 5, %v882
    %v884 = vrot.slane %v859, %v883
    %v885 = vlaneseq
    %v886 = vshrl.u32 %v885, 7
    %v887 = vsub.s32 6, %v886
    %v888 = vrot.slane %v859, %v887
    %v889 = vlaneseq
    %v890 = vshrl.u32 %v889, 7
    %v891 = vsub.s32 7, %v890
    %v892 = vrot.slane %v859, %v891
    %v965 = vunpack.c.l.b16 %v795
    %v966 = vunpack.c.h.b16 %v795
    %v967 = vunpack.c.l.b16 %v796
    %v968 = vunpack.c.h.b16 %v796
    %v969 = vunpack.c.l.b16 %v797
    %v970 = vunpack.c.h.b16 %v797
    %v971 = vunpack.c.l.b16 %v798
    %v972 = vunpack.c.h.b16 %v798
    %v973 = vunpack.c.l.b16 %v799
    %v974 = vunpack.c.h.b16 %v799
    %v975 = vunpack.c.l.b16 %v800
    %v976 = vunpack.c.h.b16 %v800
    %v977 = vunpack.c.l.b16 %v801
    %v978 = vunpack.c.h.b16 %v801
    %v979 = vunpack.c.l.b16 %v802
    %v980 = vunpack.c.h.b16 %v802
    %v981 = vunpack.c.l.b16 %v803
    %v982 = vunpack.c.h.b16 %v803
    %v983 = vunpack.c.l.b16 %v804
    %v984 = vunpack.c.h.b16 %v804
    %v985 = vunpack.c.l.b16 %v805
    %v986 = vunpack.c.h.b16 %v805
    %v987 = vunpack.c.l.b16 %v806
    %v988 = vunpack.c.h.b16 %v806
    %v989 = vunpack.c.l.b16 %v807
    %v990 = vunpack.c.h.b16 %v807
    %v991 = vunpack.c.l.b16 %v808
    %v992 = vunpack.c.h.b16 %v808
    %v993 = vunpack.c.l.b16 %v809
    %v994 = vunpack.c.h.b16 %v809
    %v995 = vunpack.c.l.b16 %v810
    %v996 = vunpack.c.h.b16 %v810
    %v997 = vunpack.c.l.b16 %v811
    %v998 = vunpack.c.h.b16 %v811
    %v999 = vunpack.c.l.b16 %v812
    %v1000 = vunpack.c.h.b16 %v812
    %v1001 = vunpack.c.l.b16 %v813
    %v1002 = vunpack.c.h.b16 %v813
    %v1003 = vunpack.c.l.b16 %v814
    %v1004 = vunpack.c.h.b16 %v814
    %v1005 = vunpack.c.l.b16 %v815
    %v1006 = vunpack.c.h.b16 %v815
    %v1007 = vunpack.c.l.b16 %v816
    %v1008 = vunpack.c.h.b16 %v816
    %v1009 = vunpack.c.l.b16 %v817
    %v1010 = vunpack.c.h.b16 %v817
    %v1011 = vunpack.c.l.b16 %v818
    %v1012 = vunpack.c.h.b16 %v818
    %v1013 = vunpack.c.l.b16 %v819
    %v1014 = vunpack.c.h.b16 %v819
    %v1015 = vunpack.c.l.b16 %v820
    %v1016 = vunpack.c.h.b16 %v820
    %v1017 = vunpack.c.l.b16 %v821
    %v1018 = vunpack.c.h.b16 %v821
    %v1019 = vunpack.c.l.b16 %v822
    %v1020 = vunpack.c.h.b16 %v822
    %v1021 = vunpack.c.l.b16 %v823
    %v1022 = vunpack.c.h.b16 %v823
    %v1023 = vunpack.c.l.b16 %v824
    %v1024 = vunpack.c.h.b16 %v824
    %v1025 = vunpack.c.l.b16 %v825
    %v1026 = vunpack.c.h.b16 %v825
    %v1027 = vunpack.c.l.b16 %v826
    %v1028 = vunpack.c.h.b16 %v826
    %v1029 = vunpack.c.l.b16 %v827
    %v1030 = vunpack.c.h.b16 %v827
    %v1031 = vunpack.c.l.b16 %v828
    %v1032 = vunpack.c.h.b16 %v828
    %v1033 = vunpack.c.l.b16 %v829
    %v1034 = vunpack.c.h.b16 %v829
    %v1035 = vunpack.c.l.b16 %v830
    %v1036 = vunpack.c.h.b16 %v830
    %v1037 = vunpack.c.l.b16 %v831
    %v1038 = vunpack.c.h.b16 %v831
    %v1039 = vunpack.c.l.b16 %v832
    %v1040 = vunpack.c.h.b16 %v832
    %v1041 = vunpack.c.l.b16 %v833
    %v1042 = vunpack.c.h.b16 %v833
    %v1043 = vunpack.c.l.b16 %v834
    %v1044 = vunpack.c.h.b16 %v834
    %v1045 = vunpack.c.l.b16 %v835
    %v1046 = vunpack.c.h.b16 %v835
    %v1047 = vunpack.c.l.b16 %v836
    %v1048 = vunpack.c.h.b16 %v836
    %v1049 = vunpack.c.l.b16 %v837
    %v1050 = vunpack.c.h.b16 %v837
    %v1051 = vunpack.c.l.b16 %v838
    %v1052 = vunpack.c.h.b16 %v838
    %v1053 = vunpack.c.l.b16 %v839
    %v1054 = vunpack.c.h.b16 %v839
    %v1055 = vunpack.c.l.b16 %v840
    %v1056 = vunpack.c.h.b16 %v840
    %v1057 = vunpack.c.l.b16 %v841
    %v1058 = vunpack.c.h.b16 %v841
    %v1059 = vunpack.c.l.b16 %v842
    %v1060 = vunpack.c.h.b16 %v842
    %v1061 = vunpack.c.l.b16 %v843
    %v1062 = vunpack.c.h.b16 %v843
    %v1063 = vunpack.c.l.b16 %v844
    %v1064 = vunpack.c.h.b16 %v844
    %v1065 = vunpack.c.l.b16 %v845
    %v1066 = vunpack.c.h.b16 %v845
    %v1067 = vunpack.c.l.b16 %v846
    %v1068 = vunpack.c.h.b16 %v846
    %v1069 = vunpack.c.l.b16 %v847
    %v1070 = vunpack.c.h.b16 %v847
    %v1071 = vunpack.c.l.b16 %v848
    %v1072 = vunpack.c.h.b16 %v848
    %v1073 = vunpack.c.l.b16 %v849
    %v1074 = vunpack.c.h.b16 %v849
    %v1075 = vunpack.c.l.b16 %v850
    %v1076 = vunpack.c.h.b16 %v850
    %v1077 = vunpack.c.l.b16 %v851
    %v1078 = vunpack.c.h.b16 %v851
    %v1079 = vunpack.c.l.b16 %v852
    %v1080 = vunpack.c.h.b16 %v852
    %v1081 = vunpack.c.l.b16 %v853
    %v1082 = vunpack.c.h.b16 %v853
    %v1083 = vunpack.c.l.b16 %v854
    %v1084 = vunpack.c.h.b16 %v854
    %v1085 = vunpack.c.l.b16 %v855
    %v1086 = vunpack.c.h.b16 %v855
    %v1087 = vunpack.c.l.b16 %v856
    %v1088 = vunpack.c.h.b16 %v856
    %v1089 = vunpack.c.l.b16 %v857
    %v1090 = vunpack.c.h.b16 %v857
    %v1091 = vunpack.c.l.b16 %v858
    %v1092 = vunpack.c.h.b16 %v858
    %v1093 = vpack.c.b16 %v973, %v965
    %v1094 = vpack.c.b16 %v974, %v966
    %v1095 = vpack.c.b16 %v975, %v967
    %v1096 = vpack.c.b16 %v976, %v968
    %v1097 = vpack.c.b16 %v977, %v969
    %v1098 = vpack.c.b16 %v978, %v970
    %v1099 = vpack.c.b16 %v979, %v971
    %v1100 = vpack.c.b16 %v980, %v972
    %v1101 = vpack.c.b16 %v989, %v981
    %v1102 = vpack.c.b16 %v990, %v982
    %v1103 = vpack.c.b16 %v991, %v983
    %v1104 = vpack.c.b16 %v992, %v984
    %v1105 = vpack.c.b16 %v993, %v985
    %v1106 = vpack.c.b16 %v994, %v986
    %v1107 = vpack.c.b16 %v995, %v987
    %v1108 = vpack.c.b16 %v996, %v988
    %v1109 = vpack.c.b16 %v1005, %v997
    %v1110 = vpack.c.b16 %v1006, %v998
    %v1111 = vpack.c.b16 %v1007, %v999
    %v1112 = vpack.c.b16 %v1008, %v1000
    %v1113 = vpack.c.b16 %v1009, %v1001
    %v1114 = vpack.c.b16 %v1010, %v1002
    %v1115 = vpack.c.b16 %v1011, %v1003
    %v1116 = vpack.c.b16 %v1012, %v1004
    %v1117 = vpack.c.b16 %v1021, %v1013
    %v1118 = vpack.c.b16 %v1022, %v1014
    %v1119 = vpack.c.b16 %v1023, %v1015
    %v1120 = vpack.c.b16 %v1024, %v1016
    %v1121 = vpack.c.b16 %v1025, %v1017
    %v1122 = vpack.c.b16 %v1026, %v1018
    %v1123 = vpack.c.b16 %v1027, %v1019
    %v1124 = vpack.c.b16 %v1028, %v1020
    %v1125 = vpack.c.b16 %v1037, %v1029
    %v1126 = vpack.c.b16 %v1038, %v1030
    %v1127 = vpack.c.b16 %v1039, %v1031
    %v1128 = vpack.c.b16 %v1040, %v1032
    %v1129 = vpack.c.b16 %v1041, %v1033
    %v1130 = vpack.c.b16 %v1042, %v1034
    %v1131 = vpack.c.b16 %v1043, %v1035
    %v1132 = vpack.c.b16 %v1044, %v1036
    %v1133 = vpack.c.b16 %v1053, %v1045
    %v1134 = vpack.c.b16 %v1054, %v1046
    %v1135 = vpack.c.b16 %v1055, %v1047
    %v1136 = vpack.c.b16 %v1056, %v1048
    %v1137 = vpack.c.b16 %v1057, %v1049
    %v1138 = vpack.c.b16 %v1058, %v1050
    %v1139 = vpack.c.b16 %v1059, %v1051
    %v1140 = vpack.c.b16 %v1060, %v1052
    %v1141 = vpack.c.b16 %v1069, %v1061
    %v1142 = vpack.c.b16 %v1070, %v1062
    %v1143 = vpack.c.b16 %v1071, %v1063
    %v1144 = vpack.c.b16 %v1072, %v1064
    %v1145 = vpack.c.b16 %v1073, %v1065
    %v1146 = vpack.c.b16 %v1074, %v1066
    %v1147 = vpack.c.b16 %v1075, %v1067
    %v1148 = vpack.c.b16 %v1076, %v1068
    %v1149 = vpack.c.b16 %v1085, %v1077
    %v1150 = vpack.c.b16 %v1086, %v1078
    %v1151 = vpack.c.b16 %v1087, %v1079
    %v1152 = vpack.c.b16 %v1088, %v1080
    %v1153 = vpack.c.b16 %v1089, %v1081
    %v1154 = vpack.c.b16 %v1090, %v1082
    %v1155 = vpack.c.b16 %v1091, %v1083
    %v1156 = vpack.c.b16 %v1092, %v1084
    %1221 = vmatprep.subr.bf16.mxu0 %v1150
    %1222 = vmatpush1.bf16.msra.mxu0 %v1149
    %1223 = vmatprep.subr.bf16.mxu0 %v1142
    %1224 = vmatpush1.bf16.msra.mxu0 %v1141
    %1225 = vmatprep.subr.bf16.mxu0 %v1134
    %1226 = vmatpush1.bf16.msra.mxu0 %v1133
    %1227 = vmatprep.subr.bf16.mxu0 %v1126
    %1228 = vmatpush1.bf16.msra.mxu0 %v1125
    %1229 = vmatprep.subr.bf16.mxu0 %v1118
    %1230 = vmatpush1.bf16.msra.mxu0 %v1117
    %1231 = vmatprep.subr.bf16.mxu0 %v1110
    %1232 = vmatpush1.bf16.msra.mxu0 %v1109
    %1233 = vmatprep.subr.bf16.mxu0 %v1102
    %1234 = vmatpush1.bf16.msra.mxu0 %v1101
    %1235 = vmatprep.subr.bf16.mxu0 %v1094
    %1236 = vmatpush1.bf16.msra.mxu0 %v1093
    %1237 = vmatprep.subr.bf16.mxu0 0
    %1238 = vmatpush2.bf16.msra.mxu0 0
    %1239 = vmatprep.subr.bf16.mxu0 0
    %1240 = vmatpush2.bf16.msra.mxu0 0
    %1241 = vmatprep.subr.bf16.mxu0 0
    %1242 = vmatpush2.bf16.msra.mxu0 0
    %1243 = vmatprep.subr.bf16.mxu0 0
    %1244 = vmatpush2.bf16.msra.mxu0 0
    %1245 = vmatprep.subr.bf16.mxu0 0
    %1246 = vmatpush2.bf16.msra.mxu0 0
    %1247 = vmatprep.subr.bf16.mxu0 0
    %1248 = vmatpush2.bf16.msra.mxu0 0
    %1249 = vmatprep.subr.bf16.mxu0 0
    %1250 = vmatpush2.bf16.msra.mxu0 0
    %1251 = vmatprep.subr.bf16.mxu0 0
    %1252 = vmatpush2.bf16.msra.mxu0 0
    %1253 = vmatprep.mubr.bf16.mxu0 0
    %1254 = vmatmul.mubr.bf16.gmra.mxu0 %v779
    %v1255 = vpop.f32.mrf.mxu0
    %v1256 = vadd.f32 %v864, %v1255
    %v1257 = vpop.f32.mrf.mxu0
    %v1258 = vadd.f32 %v868, %v1257
    %v1259 = vpop.f32.mrf.mxu0
    %v1260 = vadd.f32 %v864, %v1259
    %v1261 = vpop.f32.mrf.mxu0
    %v1262 = vadd.f32 %v868, %v1261
    %1263 = vmatprep.mubr.bf16.mxu0 0
    %1264 = vmatmul.mubr.bf16.gmra.mxu0 %v780
    %v1265 = vpop.f32.mrf.mxu0
    %v1266 = vadd.f32 %v864, %v1265
    %v1267 = vpop.f32.mrf.mxu0
    %v1268 = vadd.f32 %v868, %v1267
    %v1269 = vpop.f32.mrf.mxu0
    %v1270 = vadd.f32 %v864, %v1269
    %v1271 = vpop.f32.mrf.mxu0
    %v1272 = vadd.f32 %v868, %v1271
    %1273 = vmatprep.mubr.bf16.mxu0 0
    %1274 = vmatmul.mubr.bf16.gmra.mxu0 %v781
    %v1275 = vpop.f32.mrf.mxu0
    %v1276 = vadd.f32 %v864, %v1275
    %v1277 = vpop.f32.mrf.mxu0
    %v1278 = vadd.f32 %v868, %v1277
    %v1279 = vpop.f32.mrf.mxu0
    %v1280 = vadd.f32 %v864, %v1279
    %v1281 = vpop.f32.mrf.mxu0
    %v1282 = vadd.f32 %v868, %v1281
    %1283 = vmatprep.mubr.bf16.mxu0 0
    %1284 = vmatmul.mubr.bf16.gmra.mxu0 %v782
    %v1285 = vpop.f32.mrf.mxu0
    %v1286 = vadd.f32 %v864, %v1285
    %v1287 = vpop.f32.mrf.mxu0
    %v1288 = vadd.f32 %v868, %v1287
    %v1289 = vpop.f32.mrf.mxu0
    %v1290 = vadd.f32 %v864, %v1289
    %v1291 = vpop.f32.mrf.mxu0
    %v1292 = vadd.f32 %v868, %v1291
    %1293 = vmatprep.mubr.bf16.mxu0 0
    %1294 = vmatmul.mubr.bf16.gmra.mxu0 %v783
    %v1295 = vpop.f32.mrf.mxu0
    %v1296 = vadd.f32 %v864, %v1295
    %v1297 = vpop.f32.mrf.mxu0
    %v1298 = vadd.f32 %v868, %v1297
    %v1299 = vpop.f32.mrf.mxu0
    %v1300 = vadd.f32 %v864, %v1299
    %v1301 = vpop.f32.mrf.mxu0
    %v1302 = vadd.f32 %v868, %v1301
    %1303 = vmatprep.mubr.bf16.mxu0 0
    %1304 = vmatmul.mubr.bf16.gmra.mxu0 %v784
    %v1305 = vpop.f32.mrf.mxu0
    %v1306 = vadd.f32 %v864, %v1305
    %v1307 = vpop.f32.mrf.mxu0
    %v1308 = vadd.f32 %v868, %v1307
    %v1309 = vpop.f32.mrf.mxu0
    %v1310 = vadd.f32 %v864, %v1309
    %v1311 = vpop.f32.mrf.mxu0
    %v1312 = vadd.f32 %v868, %v1311
    %1313 = vmatprep.mubr.bf16.mxu0 0
    %1314 = vmatmul.mubr.bf16.gmra.mxu0 %v785
    %v1315 = vpop.f32.mrf.mxu0
    %v1316 = vadd.f32 %v864, %v1315
    %v1317 = vpop.f32.mrf.mxu0
    %v1318 = vadd.f32 %v868, %v1317
    %v1319 = vpop.f32.mrf.mxu0
    %v1320 = vadd.f32 %v864, %v1319
    %v1321 = vpop.f32.mrf.mxu0
    %v1322 = vadd.f32 %v868, %v1321
    %1323 = vmatprep.mubr.bf16.mxu0 0
    %1324 = vmatmul.mubr.bf16.gmra.mxu0 %v786
    %v1325 = vpop.f32.mrf.mxu0
    %v1326 = vadd.f32 %v864, %v1325
    %v1327 = vpop.f32.mrf.mxu0
    %v1328 = vadd.f32 %v868, %v1327
    %v1329 = vpop.f32.mrf.mxu0
    %v1330 = vadd.f32 %v864, %v1329
    %v1331 = vpop.f32.mrf.mxu0
    %v1332 = vadd.f32 %v868, %v1331
    %1333 = vmatprep.mubr.bf16.mxu0 0
    %1334 = vmatmul.mubr.bf16.gmra.mxu0 %v787
    %v1335 = vpop.f32.mrf.mxu0
    %v1336 = vadd.f32 %v864, %v1335
    %v1337 = vpop.f32.mrf.mxu0
    %v1338 = vadd.f32 %v868, %v1337
    %v1339 = vpop.f32.mrf.mxu0
    %v1340 = vadd.f32 %v864, %v1339
    %v1341 = vpop.f32.mrf.mxu0
    %v1342 = vadd.f32 %v868, %v1341
    %1343 = vmatprep.mubr.bf16.mxu0 0
    %1344 = vmatmul.mubr.bf16.gmra.mxu0 %v788
    %v1345 = vpop.f32.mrf.mxu0
    %v1346 = vadd.f32 %v864, %v1345
    %v1347 = vpop.f32.mrf.mxu0
    %v1348 = vadd.f32 %v868, %v1347
    %v1349 = vpop.f32.mrf.mxu0
    %v1350 = vadd.f32 %v864, %v1349
    %v1351 = vpop.f32.mrf.mxu0
    %v1352 = vadd.f32 %v868, %v1351
    %1353 = vmatprep.mubr.bf16.mxu0 0
    %1354 = vmatmul.mubr.bf16.gmra.mxu0 %v789
    %v1355 = vpop.f32.mrf.mxu0
    %v1356 = vadd.f32 %v864, %v1355
    %v1357 = vpop.f32.mrf.mxu0
    %v1358 = vadd.f32 %v868, %v1357
    %v1359 = vpop.f32.mrf.mxu0
    %v1360 = vadd.f32 %v864, %v1359
    %v1361 = vpop.f32.mrf.mxu0
    %v1362 = vadd.f32 %v868, %v1361
    %1363 = vmatprep.mubr.bf16.mxu0 0
    %1364 = vmatmul.mubr.bf16.gmra.mxu0 %v790
    %v1365 = vpop.f32.mrf.mxu0
    %v1366 = vadd.f32 %v864, %v1365
    %v1367 = vpop.f32.mrf.mxu0
    %v1368 = vadd.f32 %v868, %v1367
    %v1369 = vpop.f32.mrf.mxu0
    %v1370 = vadd.f32 %v864, %v1369
    %v1371 = vpop.f32.mrf.mxu0
    %v1372 = vadd.f32 %v868, %v1371
    %1373 = vmatprep.mubr.bf16.mxu0 0
    %1374 = vmatmul.mubr.bf16.gmra.mxu0 %v791
    %v1375 = vpop.f32.mrf.mxu0
    %v1376 = vadd.f32 %v864, %v1375
    %v1377 = vpop.f32.mrf.mxu0
    %v1378 = vadd.f32 %v868, %v1377
    %v1379 = vpop.f32.mrf.mxu0
    %v1380 = vadd.f32 %v864, %v1379
    %v1381 = vpop.f32.mrf.mxu0
    %v1382 = vadd.f32 %v868, %v1381
    %1383 = vmatprep.mubr.bf16.mxu0 0
    %1384 = vmatmul.mubr.bf16.gmra.mxu0 %v792
    %v1385 = vpop.f32.mrf.mxu0
    %v1386 = vadd.f32 %v864, %v1385
    %v1387 = vpop.f32.mrf.mxu0
    %v1388 = vadd.f32 %v868, %v1387
    %v1389 = vpop.f32.mrf.mxu0
    %v1390 = vadd.f32 %v864, %v1389
    %v1391 = vpop.f32.mrf.mxu0
    %v1392 = vadd.f32 %v868, %v1391
    %1393 = vmatprep.mubr.bf16.mxu0 0
    %1394 = vmatmul.mubr.bf16.gmra.mxu0 %v793
    %v1395 = vpop.f32.mrf.mxu0
    %v1396 = vadd.f32 %v864, %v1395
    %v1397 = vpop.f32.mrf.mxu0
    %v1398 = vadd.f32 %v868, %v1397
    %v1399 = vpop.f32.mrf.mxu0
    %v1400 = vadd.f32 %v864, %v1399
    %v1401 = vpop.f32.mrf.mxu0
    %v1402 = vadd.f32 %v868, %v1401
    %1403 = vmatprep.mubr.bf16.mxu0 0
    %1404 = vmatmul.mubr.bf16.gmra.mxu0 %v794
    %v1405 = vpop.f32.mrf.mxu0
    %v1406 = vadd.f32 %v864, %v1405
    %v1407 = vpop.f32.mrf.mxu0
    %v1408 = vadd.f32 %v868, %v1407
    %v1409 = vpop.f32.mrf.mxu0
    %v1410 = vadd.f32 %v864, %v1409
    %v1411 = vpop.f32.mrf.mxu0
    %v1412 = vadd.f32 %v868, %v1411
    %1413 = vdwg.mxu0
    %1414 = vmatprep.subr.bf16.mxu0 %v1152
    %1415 = vmatpush1.bf16.msra.mxu0 %v1151
    %1416 = vmatprep.subr.bf16.mxu0 %v1144
    %1417 = vmatpush1.bf16.msra.mxu0 %v1143
    %1418 = vmatprep.subr.bf16.mxu0 %v1136
    %1419 = vmatpush1.bf16.msra.mxu0 %v1135
    %1420 = vmatprep.subr.bf16.mxu0 %v1128
    %1421 = vmatpush1.bf16.msra.mxu0 %v1127
    %1422 = vmatprep.subr.bf16.mxu0 %v1120
    %1423 = vmatpush1.bf16.msra.mxu0 %v1119
    %1424 = vmatprep.subr.bf16.mxu0 %v1112
    %1425 = vmatpush1.bf16.msra.mxu0 %v1111
    %1426 = vmatprep.subr.bf16.mxu0 %v1104
    %1427 = vmatpush1.bf16.msra.mxu0 %v1103
    %1428 = vmatprep.subr.bf16.mxu0 %v1096
    %1429 = vmatpush1.bf16.msra.mxu0 %v1095
    %1430 = vmatprep.subr.bf16.mxu0 0
    %1431 = vmatpush2.bf16.msra.mxu0 0
    %1432 = vmatprep.subr.bf16.mxu0 0
    %1433 = vmatpush2.bf16.msra.mxu0 0
    %1434 = vmatprep.subr.bf16.mxu0 0
    %1435 = vmatpush2.bf16.msra.mxu0 0
    %1436 = vmatprep.subr.bf16.mxu0 0
    %1437 = vmatpush2.bf16.msra.mxu0 0
    %1438 = vmatprep.subr.bf16.mxu0 0
    %1439 = vmatpush2.bf16.msra.mxu0 0
    %1440 = vmatprep.subr.bf16.mxu0 0
    %1441 = vmatpush2.bf16.msra.mxu0 0
    %1442 = vmatprep.subr.bf16.mxu0 0
    %1443 = vmatpush2.bf16.msra.mxu0 0
    %1444 = vmatprep.subr.bf16.mxu0 0
    %1445 = vmatpush2.bf16.msra.mxu0 0
    %1446 = vmatprep.mubr.bf16.mxu0 0
    %1447 = vmatmul.mubr.bf16.gmra.mxu0 %v779
    %v1448 = vpop.f32.mrf.mxu0
    %v1449 = vadd.f32 %v872, %v1448
    %v1450 = vpop.f32.mrf.mxu0
    %v1451 = vadd.f32 %v876, %v1450
    %v1452 = vpop.f32.mrf.mxu0
    %v1453 = vadd.f32 %v872, %v1452
    %v1454 = vpop.f32.mrf.mxu0
    %v1455 = vadd.f32 %v876, %v1454
    %1456 = vmatprep.mubr.bf16.mxu0 0
    %1457 = vmatmul.mubr.bf16.gmra.mxu0 %v780
    %v1458 = vpop.f32.mrf.mxu0
    %v1459 = vadd.f32 %v872, %v1458
    %v1460 = vpop.f32.mrf.mxu0
    %v1461 = vadd.f32 %v876, %v1460
    %v1462 = vpop.f32.mrf.mxu0
    %v1463 = vadd.f32 %v872, %v1462
    %v1464 = vpop.f32.mrf.mxu0
    %v1465 = vadd.f32 %v876, %v1464
    %1466 = vmatprep.mubr.bf16.mxu0 0
    %1467 = vmatmul.mubr.bf16.gmra.mxu0 %v781
    %v1468 = vpop.f32.mrf.mxu0
    %v1469 = vadd.f32 %v872, %v1468
    %v1470 = vpop.f32.mrf.mxu0
    %v1471 = vadd.f32 %v876, %v1470
    %v1472 = vpop.f32.mrf.mxu0
    %v1473 = vadd.f32 %v872, %v1472
    %v1474 = vpop.f32.mrf.mxu0
    %v1475 = vadd.f32 %v876, %v1474
    %1476 = vmatprep.mubr.bf16.mxu0 0
    %1477 = vmatmul.mubr.bf16.gmra.mxu0 %v782
    %v1478 = vpop.f32.mrf.mxu0
    %v1479 = vadd.f32 %v872, %v1478
    %v1480 = vpop.f32.mrf.mxu0
    %v1481 = vadd.f32 %v876, %v1480
    %v1482 = vpop.f32.mrf.mxu0
    %v1483 = vadd.f32 %v872, %v1482
    %v1484 = vpop.f32.mrf.mxu0
    %v1485 = vadd.f32 %v876, %v1484
    %1486 = vmatprep.mubr.bf16.mxu0 0
    %1487 = vmatmul.mubr.bf16.gmra.mxu0 %v783
    %v1488 = vpop.f32.mrf.mxu0
    %v1489 = vadd.f32 %v872, %v1488
    %v1490 = vpop.f32.mrf.mxu0
    %v1491 = vadd.f32 %v876, %v1490
    %v1492 = vpop.f32.mrf.mxu0
    %v1493 = vadd.f32 %v872, %v1492
    %v1494 = vpop.f32.mrf.mxu0
    %v1495 = vadd.f32 %v876, %v1494
    %1496 = vmatprep.mubr.bf16.mxu0 0
    %1497 = vmatmul.mubr.bf16.gmra.mxu0 %v784
    %v1498 = vpop.f32.mrf.mxu0
    %v1499 = vadd.f32 %v872, %v1498
    %v1500 = vpop.f32.mrf.mxu0
    %v1501 = vadd.f32 %v876, %v1500
    %v1502 = vpop.f32.mrf.mxu0
    %v1503 = vadd.f32 %v872, %v1502
    %v1504 = vpop.f32.mrf.mxu0
    %v1505 = vadd.f32 %v876, %v1504
    %1506 = vmatprep.mubr.bf16.mxu0 0
    %1507 = vmatmul.mubr.bf16.gmra.mxu0 %v785
    %v1508 = vpop.f32.mrf.mxu0
    %v1509 = vadd.f32 %v872, %v1508
    %v1510 = vpop.f32.mrf.mxu0
    %v1511 = vadd.f32 %v876, %v1510
    %v1512 = vpop.f32.mrf.mxu0
    %v1513 = vadd.f32 %v872, %v1512
    %v1514 = vpop.f32.mrf.mxu0
    %v1515 = vadd.f32 %v876, %v1514
    %1516 = vmatprep.mubr.bf16.mxu0 0
    %1517 = vmatmul.mubr.bf16.gmra.mxu0 %v786
    %v1518 = vpop.f32.mrf.mxu0
    %v1519 = vadd.f32 %v872, %v1518
    %v1520 = vpop.f32.mrf.mxu0
    %v1521 = vadd.f32 %v876, %v1520
    %v1522 = vpop.f32.mrf.mxu0
    %v1523 = vadd.f32 %v872, %v1522
    %v1524 = vpop.f32.mrf.mxu0
    %v1525 = vadd.f32 %v876, %v1524
    %1526 = vmatprep.mubr.bf16.mxu0 0
    %1527 = vmatmul.mubr.bf16.gmra.mxu0 %v787
    %v1528 = vpop.f32.mrf.mxu0
    %v1529 = vadd.f32 %v872, %v1528
    %v1530 = vpop.f32.mrf.mxu0
    %v1531 = vadd.f32 %v876, %v1530
    %v1532 = vpop.f32.mrf.mxu0
    %v1533 = vadd.f32 %v872, %v1532
    %v1534 = vpop.f32.mrf.mxu0
    %v1535 = vadd.f32 %v876, %v1534
    %1536 = vmatprep.mubr.bf16.mxu0 0
    %1537 = vmatmul.mubr.bf16.gmra.mxu0 %v788
    %v1538 = vpop.f32.mrf.mxu0
    %v1539 = vadd.f32 %v872, %v1538
    %v1540 = vpop.f32.mrf.mxu0
    %v1541 = vadd.f32 %v876, %v1540
    %v1542 = vpop.f32.mrf.mxu0
    %v1543 = vadd.f32 %v872, %v1542
    %v1544 = vpop.f32.mrf.mxu0
    %v1545 = vadd.f32 %v876, %v1544
    %1546 = vmatprep.mubr.bf16.mxu0 0
    %1547 = vmatmul.mubr.bf16.gmra.mxu0 %v789
    %v1548 = vpop.f32.mrf.mxu0
    %v1549 = vadd.f32 %v872, %v1548
    %v1550 = vpop.f32.mrf.mxu0
    %v1551 = vadd.f32 %v876, %v1550
    %v1552 = vpop.f32.mrf.mxu0
    %v1553 = vadd.f32 %v872, %v1552
    %v1554 = vpop.f32.mrf.mxu0
    %v1555 = vadd.f32 %v876, %v1554
    %1556 = vmatprep.mubr.bf16.mxu0 0
    %1557 = vmatmul.mubr.bf16.gmra.mxu0 %v790
    %v1558 = vpop.f32.mrf.mxu0
    %v1559 = vadd.f32 %v872, %v1558
    %v1560 = vpop.f32.mrf.mxu0
    %v1561 = vadd.f32 %v876, %v1560
    %v1562 = vpop.f32.mrf.mxu0
    %v1563 = vadd.f32 %v872, %v1562
    %v1564 = vpop.f32.mrf.mxu0
    %v1565 = vadd.f32 %v876, %v1564
    %1566 = vmatprep.mubr.bf16.mxu0 0
    %1567 = vmatmul.mubr.bf16.gmra.mxu0 %v791
    %v1568 = vpop.f32.mrf.mxu0
    %v1569 = vadd.f32 %v872, %v1568
    %v1570 = vpop.f32.mrf.mxu0
    %v1571 = vadd.f32 %v876, %v1570
    %v1572 = vpop.f32.mrf.mxu0
    %v1573 = vadd.f32 %v872, %v1572
    %v1574 = vpop.f32.mrf.mxu0
    %v1575 = vadd.f32 %v876, %v1574
    %1576 = vmatprep.mubr.bf16.mxu0 0
    %1577 = vmatmul.mubr.bf16.gmra.mxu0 %v792
    %v1578 = vpop.f32.mrf.mxu0
    %v1579 = vadd.f32 %v872, %v1578
    %v1580 = vpop.f32.mrf.mxu0
    %v1581 = vadd.f32 %v876, %v1580
    %v1582 = vpop.f32.mrf.mxu0
    %v1583 = vadd.f32 %v872, %v1582
    %v1584 = vpop.f32.mrf.mxu0
    %v1585 = vadd.f32 %v876, %v1584
    %1586 = vmatprep.mubr.bf16.mxu0 0
    %1587 = vmatmul.mubr.bf16.gmra.mxu0 %v793
    %v1588 = vpop.f32.mrf.mxu0
    %v1589 = vadd.f32 %v872, %v1588
    %v1590 = vpop.f32.mrf.mxu0
    %v1591 = vadd.f32 %v876, %v1590
    %v1592 = vpop.f32.mrf.mxu0
    %v1593 = vadd.f32 %v872, %v1592
    %v1594 = vpop.f32.mrf.mxu0
    %v1595 = vadd.f32 %v876, %v1594
    %1596 = vmatprep.mubr.bf16.mxu0 0
    %1597 = vmatmul.mubr.bf16.gmra.mxu0 %v794
    %v1598 = vpop.f32.mrf.mxu0
    %v1599 = vadd.f32 %v872, %v1598
    %v1600 = vpop.f32.mrf.mxu0
    %v1601 = vadd.f32 %v876, %v1600
    %v1602 = vpop.f32.mrf.mxu0
    %v1603 = vadd.f32 %v872, %v1602
    %v1604 = vpop.f32.mrf.mxu0
    %v1605 = vadd.f32 %v876, %v1604
    %1606 = vdwg.mxu0
    %1607 = vmatprep.subr.bf16.mxu0 %v1154
    %1608 = vmatpush1.bf16.msra.mxu0 %v1153
    %1609 = vmatprep.subr.bf16.mxu0 %v1146
    %1610 = vmatpush1.bf16.msra.mxu0 %v1145
    %1611 = vmatprep.subr.bf16.mxu0 %v1138
    %1612 = vmatpush1.bf16.msra.mxu0 %v1137
    %1613 = vmatprep.subr.bf16.mxu0 %v1130
    %1614 = vmatpush1.bf16.msra.mxu0 %v1129
    %1615 = vmatprep.subr.bf16.mxu0 %v1122
    %1616 = vmatpush1.bf16.msra.mxu0 %v1121
    %1617 = vmatprep.subr.bf16.mxu0 %v1114
    %1618 = vmatpush1.bf16.msra.mxu0 %v1113
    %1619 = vmatprep.subr.bf16.mxu0 %v1106
    %1620 = vmatpush1.bf16.msra.mxu0 %v1105
    %1621 = vmatprep.subr.bf16.mxu0 %v1098
    %1622 = vmatpush1.bf16.msra.mxu0 %v1097
    %1623 = vmatprep.subr.bf16.mxu0 0
    %1624 = vmatpush2.bf16.msra.mxu0 0
    %1625 = vmatprep.subr.bf16.mxu0 0
    %1626 = vmatpush2.bf16.msra.mxu0 0
    %1627 = vmatprep.subr.bf16.mxu0 0
    %1628 = vmatpush2.bf16.msra.mxu0 0
    %1629 = vmatprep.subr.bf16.mxu0 0
    %1630 = vmatpush2.bf16.msra.mxu0 0
    %1631 = vmatprep.subr.bf16.mxu0 0
    %1632 = vmatpush2.bf16.msra.mxu0 0
    %1633 = vmatprep.subr.bf16.mxu0 0
    %1634 = vmatpush2.bf16.msra.mxu0 0
    %1635 = vmatprep.subr.bf16.mxu0 0
    %1636 = vmatpush2.bf16.msra.mxu0 0
    %1637 = vmatprep.subr.bf16.mxu0 0
    %1638 = vmatpush2.bf16.msra.mxu0 0
    %1639 = vmatprep.mubr.bf16.mxu0 0
    %1640 = vmatmul.mubr.bf16.gmra.mxu0 %v779
    %v1641 = vpop.f32.mrf.mxu0
    %v1642 = vadd.f32 %v880, %v1641
    %v1643 = vpop.f32.mrf.mxu0
    %v1644 = vadd.f32 %v884, %v1643
    %v1645 = vpop.f32.mrf.mxu0
    %v1646 = vadd.f32 %v880, %v1645
    %v1647 = vpop.f32.mrf.mxu0
    %v1648 = vadd.f32 %v884, %v1647
    %1649 = vmatprep.mubr.bf16.mxu0 0
    %1650 = vmatmul.mubr.bf16.gmra.mxu0 %v780
    %v1651 = vpop.f32.mrf.mxu0
    %v1652 = vadd.f32 %v880, %v1651
    %v1653 = vpop.f32.mrf.mxu0
    %v1654 = vadd.f32 %v884, %v1653
    %v1655 = vpop.f32.mrf.mxu0
    %v1656 = vadd.f32 %v880, %v1655
    %v1657 = vpop.f32.mrf.mxu0
    %v1658 = vadd.f32 %v884, %v1657
    %1659 = vmatprep.mubr.bf16.mxu0 0
    %1660 = vmatmul.mubr.bf16.gmra.mxu0 %v781
    %v1661 = vpop.f32.mrf.mxu0
    %v1662 = vadd.f32 %v880, %v1661
    %v1663 = vpop.f32.mrf.mxu0
    %v1664 = vadd.f32 %v884, %v1663
    %v1665 = vpop.f32.mrf.mxu0
    %v1666 = vadd.f32 %v880, %v1665
    %v1667 = vpop.f32.mrf.mxu0
    %v1668 = vadd.f32 %v884, %v1667
    %1669 = vmatprep.mubr.bf16.mxu0 0
    %1670 = vmatmul.mubr.bf16.gmra.mxu0 %v782
    %v1671 = vpop.f32.mrf.mxu0
    %v1672 = vadd.f32 %v880, %v1671
    %v1673 = vpop.f32.mrf.mxu0
    %v1674 = vadd.f32 %v884, %v1673
    %v1675 = vpop.f32.mrf.mxu0
    %v1676 = vadd.f32 %v880, %v1675
    %v1677 = vpop.f32.mrf.mxu0
    %v1678 = vadd.f32 %v884, %v1677
    %1679 = vmatprep.mubr.bf16.mxu0 0
    %1680 = vmatmul.mubr.bf16.gmra.mxu0 %v783
    %v1681 = vpop.f32.mrf.mxu0
    %v1682 = vadd.f32 %v880, %v1681
    %v1683 = vpop.f32.mrf.mxu0
    %v1684 = vadd.f32 %v884, %v1683
    %v1685 = vpop.f32.mrf.mxu0
    %v1686 = vadd.f32 %v880, %v1685
    %v1687 = vpop.f32.mrf.mxu0
    %v1688 = vadd.f32 %v884, %v1687
    %1689 = vmatprep.mubr.bf16.mxu0 0
    %1690 = vmatmul.mubr.bf16.gmra.mxu0 %v784
    %v1691 = vpop.f32.mrf.mxu0
    %v1692 = vadd.f32 %v880, %v1691
    %v1693 = vpop.f32.mrf.mxu0
    %v1694 = vadd.f32 %v884, %v1693
    %v1695 = vpop.f32.mrf.mxu0
    %v1696 = vadd.f32 %v880, %v1695
    %v1697 = vpop.f32.mrf.mxu0
    %v1698 = vadd.f32 %v884, %v1697
    %1699 = vmatprep.mubr.bf16.mxu0 0
    %1700 = vmatmul.mubr.bf16.gmra.mxu0 %v785
    %v1701 = vpop.f32.mrf.mxu0
    %v1702 = vadd.f32 %v880, %v1701
    %v1703 = vpop.f32.mrf.mxu0
    %v1704 = vadd.f32 %v884, %v1703
    %v1705 = vpop.f32.mrf.mxu0
    %v1706 = vadd.f32 %v880, %v1705
    %v1707 = vpop.f32.mrf.mxu0
    %v1708 = vadd.f32 %v884, %v1707
    %1709 = vmatprep.mubr.bf16.mxu0 0
    %1710 = vmatmul.mubr.bf16.gmra.mxu0 %v786
    %v1711 = vpop.f32.mrf.mxu0
    %v1712 = vadd.f32 %v880, %v1711
    %v1713 = vpop.f32.mrf.mxu0
    %v1714 = vadd.f32 %v884, %v1713
    %v1715 = vpop.f32.mrf.mxu0
    %v1716 = vadd.f32 %v880, %v1715
    %v1717 = vpop.f32.mrf.mxu0
    %v1718 = vadd.f32 %v884, %v1717
    %1719 = vmatprep.mubr.bf16.mxu0 0
    %1720 = vmatmul.mubr.bf16.gmra.mxu0 %v787
    %v1721 = vpop.f32.mrf.mxu0
    %v1722 = vadd.f32 %v880, %v1721
    %v1723 = vpop.f32.mrf.mxu0
    %v1724 = vadd.f32 %v884, %v1723
    %v1725 = vpop.f32.mrf.mxu0
    %v1726 = vadd.f32 %v880, %v1725
    %v1727 = vpop.f32.mrf.mxu0
    %v1728 = vadd.f32 %v884, %v1727
    %1729 = vmatprep.mubr.bf16.mxu0 0
    %1730 = vmatmul.mubr.bf16.gmra.mxu0 %v788
    %v1731 = vpop.f32.mrf.mxu0
    %v1732 = vadd.f32 %v880, %v1731
    %v1733 = vpop.f32.mrf.mxu0
    %v1734 = vadd.f32 %v884, %v1733
    %v1735 = vpop.f32.mrf.mxu0
    %v1736 = vadd.f32 %v880, %v1735
    %v1737 = vpop.f32.mrf.mxu0
    %v1738 = vadd.f32 %v884, %v1737
    %1739 = vmatprep.mubr.bf16.mxu0 0
    %1740 = vmatmul.mubr.bf16.gmra.mxu0 %v789
    %v1741 = vpop.f32.mrf.mxu0
    %v1742 = vadd.f32 %v880, %v1741
    %v1743 = vpop.f32.mrf.mxu0
    %v1744 = vadd.f32 %v884, %v1743
    %v1745 = vpop.f32.mrf.mxu0
    %v1746 = vadd.f32 %v880, %v1745
    %v1747 = vpop.f32.mrf.mxu0
    %v1748 = vadd.f32 %v884, %v1747
    %1749 = vmatprep.mubr.bf16.mxu0 0
    %1750 = vmatmul.mubr.bf16.gmra.mxu0 %v790
    %v1751 = vpop.f32.mrf.mxu0
    %v1752 = vadd.f32 %v880, %v1751
    %v1753 = vpop.f32.mrf.mxu0
    %v1754 = vadd.f32 %v884, %v1753
    %v1755 = vpop.f32.mrf.mxu0
    %v1756 = vadd.f32 %v880, %v1755
    %v1757 = vpop.f32.mrf.mxu0
    %v1758 = vadd.f32 %v884, %v1757
    %1759 = vmatprep.mubr.bf16.mxu0 0
    %1760 = vmatmul.mubr.bf16.gmra.mxu0 %v791
    %v1761 = vpop.f32.mrf.mxu0
    %v1762 = vadd.f32 %v880, %v1761
    %v1763 = vpop.f32.mrf.mxu0
    %v1764 = vadd.f32 %v884, %v1763
    %v1765 = vpop.f32.mrf.mxu0
    %v1766 = vadd.f32 %v880, %v1765
    %v1767 = vpop.f32.mrf.mxu0
    %v1768 = vadd.f32 %v884, %v1767
    %1769 = vmatprep.mubr.bf16.mxu0 0
    %1770 = vmatmul.mubr.bf16.gmra.mxu0 %v792
    %v1771 = vpop.f32.mrf.mxu0
    %v1772 = vadd.f32 %v880, %v1771
    %v1773 = vpop.f32.mrf.mxu0
    %v1774 = vadd.f32 %v884, %v1773
    %v1775 = vpop.f32.mrf.mxu0
    %v1776 = vadd.f32 %v880, %v1775
    %v1777 = vpop.f32.mrf.mxu0
    %v1778 = vadd.f32 %v884, %v1777
    %1779 = vmatprep.mubr.bf16.mxu0 0
    %1780 = vmatmul.mubr.bf16.gmra.mxu0 %v793
    %v1781 = vpop.f32.mrf.mxu0
    %v1782 = vadd.f32 %v880, %v1781
    %v1783 = vpop.f32.mrf.mxu0
    %v1784 = vadd.f32 %v884, %v1783
    %v1785 = vpop.f32.mrf.mxu0
    %v1786 = vadd.f32 %v880, %v1785
    %v1787 = vpop.f32.mrf.mxu0
    %v1788 = vadd.f32 %v884, %v1787
    %1789 = vmatprep.mubr.bf16.mxu0 0
    %1790 = vmatmul.mubr.bf16.gmra.mxu0 %v794
    %v1791 = vpop.f32.mrf.mxu0
    %v1792 = vadd.f32 %v880, %v1791
    %v1793 = vpop.f32.mrf.mxu0
    %v1794 = vadd.f32 %v884, %v1793
    %v1795 = vpop.f32.mrf.mxu0
    %v1796 = vadd.f32 %v880, %v1795
    %v1797 = vpop.f32.mrf.mxu0
    %v1798 = vadd.f32 %v884, %v1797
    %1799 = vdwg.mxu0
    %1800 = vmatprep.subr.bf16.mxu0 %v1156
    %1801 = vmatpush1.bf16.msra.mxu0 %v1155
    %1802 = vmatprep.subr.bf16.mxu0 %v1148
    %1803 = vmatpush1.bf16.msra.mxu0 %v1147
    %1804 = vmatprep.subr.bf16.mxu0 %v1140
    %1805 = vmatpush1.bf16.msra.mxu0 %v1139
    %1806 = vmatprep.subr.bf16.mxu0 %v1132
    %1807 = vmatpush1.bf16.msra.mxu0 %v1131
    %1808 = vmatprep.subr.bf16.mxu0 %v1124
    %1809 = vmatpush1.bf16.msra.mxu0 %v1123
    %1810 = vmatprep.subr.bf16.mxu0 %v1116
    %1811 = vmatpush1.bf16.msra.mxu0 %v1115
    %1812 = vmatprep.subr.bf16.mxu0 %v1108
    %1813 = vmatpush1.bf16.msra.mxu0 %v1107
    %1814 = vmatprep.subr.bf16.mxu0 %v1100
    %1815 = vmatpush1.bf16.msra.mxu0 %v1099
    %1816 = vmatprep.subr.bf16.mxu0 0
    %1817 = vmatpush2.bf16.msra.mxu0 0
    %1818 = vmatprep.subr.bf16.mxu0 0
    %1819 = vmatpush2.bf16.msra.mxu0 0
    %1820 = vmatprep.subr.bf16.mxu0 0
    %1821 = vmatpush2.bf16.msra.mxu0 0
    %1822 = vmatprep.subr.bf16.mxu0 0
    %1823 = vmatpush2.bf16.msra.mxu0 0
    %1824 = vmatprep.subr.bf16.mxu0 0
    %1825 = vmatpush2.bf16.msra.mxu0 0
    %1826 = vmatprep.subr.bf16.mxu0 0
    %1827 = vmatpush2.bf16.msra.mxu0 0
    %1828 = vmatprep.subr.bf16.mxu0 0
    %1829 = vmatpush2.bf16.msra.mxu0 0
    %1830 = vmatprep.subr.bf16.mxu0 0
    %1831 = vmatpush2.bf16.msra.mxu0 0
    %1832 = vmatprep.mubr.bf16.mxu0 0
    %1833 = vmatmul.mubr.bf16.gmra.mxu0 %v779
    %v1834 = vpop.f32.mrf.mxu0
    %v1835 = vadd.f32 %v888, %v1834
    %v1836 = vpop.f32.mrf.mxu0
    %v1837 = vadd.f32 %v892, %v1836
    %v1838 = vpop.f32.mrf.mxu0
    %v1839 = vadd.f32 %v888, %v1838
    %v1840 = vpop.f32.mrf.mxu0
    %v1841 = vadd.f32 %v892, %v1840
    %1842 = vmatprep.mubr.bf16.mxu0 0
    %1843 = vmatmul.mubr.bf16.gmra.mxu0 %v780
    %v1844 = vpop.f32.mrf.mxu0
    %v1845 = vadd.f32 %v888, %v1844
    %v1846 = vpop.f32.mrf.mxu0
    %v1847 = vadd.f32 %v892, %v1846
    %v1848 = vpop.f32.mrf.mxu0
    %v1849 = vadd.f32 %v888, %v1848
    %v1850 = vpop.f32.mrf.mxu0
    %v1851 = vadd.f32 %v892, %v1850
    %1852 = vmatprep.mubr.bf16.mxu0 0
    %1853 = vmatmul.mubr.bf16.gmra.mxu0 %v781
    %v1854 = vpop.f32.mrf.mxu0
    %v1855 = vadd.f32 %v888, %v1854
    %v1856 = vpop.f32.mrf.mxu0
    %v1857 = vadd.f32 %v892, %v1856
    %v1858 = vpop.f32.mrf.mxu0
    %v1859 = vadd.f32 %v888, %v1858
    %v1860 = vpop.f32.mrf.mxu0
    %v1861 = vadd.f32 %v892, %v1860
    %1862 = vmatprep.mubr.bf16.mxu0 0
    %1863 = vmatmul.mubr.bf16.gmra.mxu0 %v782
    %v1864 = vpop.f32.mrf.mxu0
    %v1865 = vadd.f32 %v888, %v1864
    %v1866 = vpop.f32.mrf.mxu0
    %v1867 = vadd.f32 %v892, %v1866
    %v1868 = vpop.f32.mrf.mxu0
    %v1869 = vadd.f32 %v888, %v1868
    %v1870 = vpop.f32.mrf.mxu0
    %v1871 = vadd.f32 %v892, %v1870
    %1872 = vmatprep.mubr.bf16.mxu0 0
    %1873 = vmatmul.mubr.bf16.gmra.mxu0 %v783
    %v1874 = vpop.f32.mrf.mxu0
    %v1875 = vadd.f32 %v888, %v1874
    %v1876 = vpop.f32.mrf.mxu0
    %v1877 = vadd.f32 %v892, %v1876
    %v1878 = vpop.f32.mrf.mxu0
    %v1879 = vadd.f32 %v888, %v1878
    %v1880 = vpop.f32.mrf.mxu0
    %v1881 = vadd.f32 %v892, %v1880
    %1882 = vmatprep.mubr.bf16.mxu0 0
    %1883 = vmatmul.mubr.bf16.gmra.mxu0 %v784
    %v1884 = vpop.f32.mrf.mxu0
    %v1885 = vadd.f32 %v888, %v1884
    %v1886 = vpop.f32.mrf.mxu0
    %v1887 = vadd.f32 %v892, %v1886
    %v1888 = vpop.f32.mrf.mxu0
    %v1889 = vadd.f32 %v888, %v1888
    %v1890 = vpop.f32.mrf.mxu0
    %v1891 = vadd.f32 %v892, %v1890
    %1892 = vmatprep.mubr.bf16.mxu0 0
    %1893 = vmatmul.mubr.bf16.gmra.mxu0 %v785
    %v1894 = vpop.f32.mrf.mxu0
    %v1895 = vadd.f32 %v888, %v1894
    %v1896 = vpop.f32.mrf.mxu0
    %v1897 = vadd.f32 %v892, %v1896
    %v1898 = vpop.f32.mrf.mxu0
    %v1899 = vadd.f32 %v888, %v1898
    %v1900 = vpop.f32.mrf.mxu0
    %v1901 = vadd.f32 %v892, %v1900
    %1902 = vmatprep.mubr.bf16.mxu0 0
    %1903 = vmatmul.mubr.bf16.gmra.mxu0 %v786
    %v1904 = vpop.f32.mrf.mxu0
    %v1905 = vadd.f32 %v888, %v1904
    %v1906 = vpop.f32.mrf.mxu0
    %v1907 = vadd.f32 %v892, %v1906
    %v1908 = vpop.f32.mrf.mxu0
    %v1909 = vadd.f32 %v888, %v1908
    %v1910 = vpop.f32.mrf.mxu0
    %v1911 = vadd.f32 %v892, %v1910
    %1912 = vmatprep.mubr.bf16.mxu0 0
    %1913 = vmatmul.mubr.bf16.gmra.mxu0 %v787
    %v1914 = vpop.f32.mrf.mxu0
    %v1915 = vadd.f32 %v888, %v1914
    %v1916 = vpop.f32.mrf.mxu0
    %v1917 = vadd.f32 %v892, %v1916
    %v1918 = vpop.f32.mrf.mxu0
    %v1919 = vadd.f32 %v888, %v1918
    %v1920 = vpop.f32.mrf.mxu0
    %v1921 = vadd.f32 %v892, %v1920
    %1922 = vmatprep.mubr.bf16.mxu0 0
    %1923 = vmatmul.mubr.bf16.gmra.mxu0 %v788
    %v1924 = vpop.f32.mrf.mxu0
    %v1925 = vadd.f32 %v888, %v1924
    %v1926 = vpop.f32.mrf.mxu0
    %v1927 = vadd.f32 %v892, %v1926
    %v1928 = vpop.f32.mrf.mxu0
    %v1929 = vadd.f32 %v888, %v1928
    %v1930 = vpop.f32.mrf.mxu0
    %v1931 = vadd.f32 %v892, %v1930
    %1932 = vmatprep.mubr.bf16.mxu0 0
    %1933 = vmatmul.mubr.bf16.gmra.mxu0 %v789
    %v1934 = vpop.f32.mrf.mxu0
    %v1935 = vadd.f32 %v888, %v1934
    %v1936 = vpop.f32.mrf.mxu0
    %v1937 = vadd.f32 %v892, %v1936
    %v1938 = vpop.f32.mrf.mxu0
    %v1939 = vadd.f32 %v888, %v1938
    %v1940 = vpop.f32.mrf.mxu0
    %v1941 = vadd.f32 %v892, %v1940
    %1942 = vmatprep.mubr.bf16.mxu0 0
    %1943 = vmatmul.mubr.bf16.gmra.mxu0 %v790
    %v1944 = vpop.f32.mrf.mxu0
    %v1945 = vadd.f32 %v888, %v1944
    %v1946 = vpop.f32.mrf.mxu0
    %v1947 = vadd.f32 %v892, %v1946
    %v1948 = vpop.f32.mrf.mxu0
    %v1949 = vadd.f32 %v888, %v1948
    %v1950 = vpop.f32.mrf.mxu0
    %v1951 = vadd.f32 %v892, %v1950
    %1952 = vmatprep.mubr.bf16.mxu0 0
    %1953 = vmatmul.mubr.bf16.gmra.mxu0 %v791
    %v1954 = vpop.f32.mrf.mxu0
    %v1955 = vadd.f32 %v888, %v1954
    %v1956 = vpop.f32.mrf.mxu0
    %v1957 = vadd.f32 %v892, %v1956
    %v1958 = vpop.f32.mrf.mxu0
    %v1959 = vadd.f32 %v888, %v1958
    %v1960 = vpop.f32.mrf.mxu0
    %v1961 = vadd.f32 %v892, %v1960
    %1962 = vmatprep.mubr.bf16.mxu0 0
    %1963 = vmatmul.mubr.bf16.gmra.mxu0 %v792
    %v1964 = vpop.f32.mrf.mxu0
    %v1965 = vadd.f32 %v888, %v1964
    %v1966 = vpop.f32.mrf.mxu0
    %v1967 = vadd.f32 %v892, %v1966
    %v1968 = vpop.f32.mrf.mxu0
    %v1969 = vadd.f32 %v888, %v1968
    %v1970 = vpop.f32.mrf.mxu0
    %v1971 = vadd.f32 %v892, %v1970
    %1972 = vmatprep.mubr.bf16.mxu0 0
    %1973 = vmatmul.mubr.bf16.gmra.mxu0 %v793
    %v1974 = vpop.f32.mrf.mxu0
    %v1975 = vadd.f32 %v888, %v1974
    %v1976 = vpop.f32.mrf.mxu0
    %v1977 = vadd.f32 %v892, %v1976
    %v1978 = vpop.f32.mrf.mxu0
    %v1979 = vadd.f32 %v888, %v1978
    %v1980 = vpop.f32.mrf.mxu0
    %v1981 = vadd.f32 %v892, %v1980
    %1982 = vmatprep.mubr.bf16.mxu0 0
    %1983 = vmatmul.mubr.bf16.gmra.mxu0 %v794
    %v1984 = vpop.f32.mrf.mxu0
    %v1985 = vadd.f32 %v888, %v1984
    %v1986 = vpop.f32.mrf.mxu0
    %v1987 = vadd.f32 %v892, %v1986
    %v1988 = vpop.f32.mrf.mxu0
    %v1989 = vadd.f32 %v888, %v1988
    %v1990 = vpop.f32.mrf.mxu0
    %v1991 = vadd.f32 %v892, %v1990
    %1992 = vdwg.mxu0
    %v1993 = vmax.f32 %v1256, 0.0
    %v1994 = vmax.f32 %v1258, 0.0
    %v1995 = vmax.f32 %v1449, 0.0
    %v1996 = vmax.f32 %v1451, 0.0
    %v1997 = vmax.f32 %v1642, 0.0
    %v1998 = vmax.f32 %v1644, 0.0
    %v1999 = vmax.f32 %v1835, 0.0
    %v2000 = vmax.f32 %v1837, 0.0
    %v2001 = vmax.f32 %v1260, 0.0
    %v2002 = vmax.f32 %v1262, 0.0
    %v2003 = vmax.f32 %v1453, 0.0
    %v2004 = vmax.f32 %v1455, 0.0
    %v2005 = vmax.f32 %v1646, 0.0
    %v2006 = vmax.f32 %v1648, 0.0
    %v2007 = vmax.f32 %v1839, 0.0
    %v2008 = vmax.f32 %v1841, 0.0
    %v2009 = vmax.f32 %v1266, 0.0
    %v2010 = vmax.f32 %v1268, 0.0
    %v2011 = vmax.f32 %v1459, 0.0
    %v2012 = vmax.f32 %v1461, 0.0
    %v2013 = vmax.f32 %v1652, 0.0
    %v2014 = vmax.f32 %v1654, 0.0
    %v2015 = vmax.f32 %v1845, 0.0
    %v2016 = vmax.f32 %v1847, 0.0
    %v2017 = vmax.f32 %v1270, 0.0
    %v2018 = vmax.f32 %v1272, 0.0
    %v2019 = vmax.f32 %v1463, 0.0
    %v2020 = vmax.f32 %v1465, 0.0
    %v2021 = vmax.f32 %v1656, 0.0
    %v2022 = vmax.f32 %v1658, 0.0
    %v2023 = vmax.f32 %v1849, 0.0
    %v2024 = vmax.f32 %v1851, 0.0
    %v2025 = vmax.f32 %v1276, 0.0
    %v2026 = vmax.f32 %v1278, 0.0
    %v2027 = vmax.f32 %v1469, 0.0
    %v2028 = vmax.f32 %v1471, 0.0
    %v2029 = vmax.f32 %v1662, 0.0
    %v2030 = vmax.f32 %v1664, 0.0
    %v2031 = vmax.f32 %v1855, 0.0
    %v2032 = vmax.f32 %v1857, 0.0
    %v2033 = vmax.f32 %v1280, 0.0
    %v2034 = vmax.f32 %v1282, 0.0
    %v2035 = vmax.f32 %v1473, 0.0
    %v2036 = vmax.f32 %v1475, 0.0
    %v2037 = vmax.f32 %v1666, 0.0
    %v2038 = vmax.f32 %v1668, 0.0
    %v2039 = vmax.f32 %v1859, 0.0
    %v2040 = vmax.f32 %v1861, 0.0
    %v2041 = vmax.f32 %v1286, 0.0
    %v2042 = vmax.f32 %v1288, 0.0
    %v2043 = vmax.f32 %v1479, 0.0
    %v2044 = vmax.f32 %v1481, 0.0
    %v2045 = vmax.f32 %v1672, 0.0
    %v2046 = vmax.f32 %v1674, 0.0
    %v2047 = vmax.f32 %v1865, 0.0
    %v2048 = vmax.f32 %v1867, 0.0
    %v2049 = vmax.f32 %v1290, 0.0
    %v2050 = vmax.f32 %v1292, 0.0
    %v2051 = vmax.f32 %v1483, 0.0
    %v2052 = vmax.f32 %v1485, 0.0
    %v2053 = vmax.f32 %v1676, 0.0
    %v2054 = vmax.f32 %v1678, 0.0
    %v2055 = vmax.f32 %v1869, 0.0
    %v2056 = vmax.f32 %v1871, 0.0
    %v2057 = vmax.f32 %v1296, 0.0
    %v2058 = vmax.f32 %v1298, 0.0
    %v2059 = vmax.f32 %v1489, 0.0
    %v2060 = vmax.f32 %v1491, 0.0
    %v2061 = vmax.f32 %v1682, 0.0
    %v2062 = vmax.f32 %v1684, 0.0
    %v2063 = vmax.f32 %v1875, 0.0
    %v2064 = vmax.f32 %v1877, 0.0
    %v2065 = vmax.f32 %v1300, 0.0
    %v2066 = vmax.f32 %v1302, 0.0
    %v2067 = vmax.f32 %v1493, 0.0
    %v2068 = vmax.f32 %v1495, 0.0
    %v2069 = vmax.f32 %v1686, 0.0
    %v2070 = vmax.f32 %v1688, 0.0
    %v2071 = vmax.f32 %v1879, 0.0
    %v2072 = vmax.f32 %v1881, 0.0
    %v2073 = vmax.f32 %v1306, 0.0
    %v2074 = vmax.f32 %v1308, 0.0
    %v2075 = vmax.f32 %v1499, 0.0
    %v2076 = vmax.f32 %v1501, 0.0
    %v2077 = vmax.f32 %v1692, 0.0
    %v2078 = vmax.f32 %v1694, 0.0
    %v2079 = vmax.f32 %v1885, 0.0
    %v2080 = vmax.f32 %v1887, 0.0
    %v2081 = vmax.f32 %v1310, 0.0
    %v2082 = vmax.f32 %v1312, 0.0
    %v2083 = vmax.f32 %v1503, 0.0
    %v2084 = vmax.f32 %v1505, 0.0
    %v2085 = vmax.f32 %v1696, 0.0
    %v2086 = vmax.f32 %v1698, 0.0
    %v2087 = vmax.f32 %v1889, 0.0
    %v2088 = vmax.f32 %v1891, 0.0
    %v2089 = vmax.f32 %v1316, 0.0
    %v2090 = vmax.f32 %v1318, 0.0
    %v2091 = vmax.f32 %v1509, 0.0
    %v2092 = vmax.f32 %v1511, 0.0
    %v2093 = vmax.f32 %v1702, 0.0
    %v2094 = vmax.f32 %v1704, 0.0
    %v2095 = vmax.f32 %v1895, 0.0
    %v2096 = vmax.f32 %v1897, 0.0
    %v2097 = vmax.f32 %v1320, 0.0
    %v2098 = vmax.f32 %v1322, 0.0
    %v2099 = vmax.f32 %v1513, 0.0
    %v2100 = vmax.f32 %v1515, 0.0
    %v2101 = vmax.f32 %v1706, 0.0
    %v2102 = vmax.f32 %v1708, 0.0
    %v2103 = vmax.f32 %v1899, 0.0
    %v2104 = vmax.f32 %v1901, 0.0
    %v2105 = vmax.f32 %v1326, 0.0
    %v2106 = vmax.f32 %v1328, 0.0
    %v2107 = vmax.f32 %v1519, 0.0
    %v2108 = vmax.f32 %v1521, 0.0
    %v2109 = vmax.f32 %v1712, 0.0
    %v2110 = vmax.f32 %v1714, 0.0
    %v2111 = vmax.f32 %v1905, 0.0
    %v2112 = vmax.f32 %v1907, 0.0
    %v2113 = vmax.f32 %v1330, 0.0
    %v2114 = vmax.f32 %v1332, 0.0
    %v2115 = vmax.f32 %v1523, 0.0
    %v2116 = vmax.f32 %v1525, 0.0
    %v2117 = vmax.f32 %v1716, 0.0
    %v2118 = vmax.f32 %v1718, 0.0
    %v2119 = vmax.f32 %v1909, 0.0
    %v2120 = vmax.f32 %v1911, 0.0
    %v2121 = vmax.f32 %v1336, 0.0
    %v2122 = vmax.f32 %v1338, 0.0
    %v2123 = vmax.f32 %v1529, 0.0
    %v2124 = vmax.f32 %v1531, 0.0
    %v2125 = vmax.f32 %v1722, 0.0
    %v2126 = vmax.f32 %v1724, 0.0
    %v2127 = vmax.f32 %v1915, 0.0
    %v2128 = vmax.f32 %v1917, 0.0
    %v2129 = vmax.f32 %v1340, 0.0
    %v2130 = vmax.f32 %v1342, 0.0
    %v2131 = vmax.f32 %v1533, 0.0
    %v2132 = vmax.f32 %v1535, 0.0
    %v2133 = vmax.f32 %v1726, 0.0
    %v2134 = vmax.f32 %v1728, 0.0
    %v2135 = vmax.f32 %v1919, 0.0
    %v2136 = vmax.f32 %v1921, 0.0
    %v2137 = vmax.f32 %v1346, 0.0
    %v2138 = vmax.f32 %v1348, 0.0
    %v2139 = vmax.f32 %v1539, 0.0
    %v2140 = vmax.f32 %v1541, 0.0
    %v2141 = vmax.f32 %v1732, 0.0
    %v2142 = vmax.f32 %v1734, 0.0
    %v2143 = vmax.f32 %v1925, 0.0
    %v2144 = vmax.f32 %v1927, 0.0
    %v2145 = vmax.f32 %v1350, 0.0
    %v2146 = vmax.f32 %v1352, 0.0
    %v2147 = vmax.f32 %v1543, 0.0
    %v2148 = vmax.f32 %v1545, 0.0
    %v2149 = vmax.f32 %v1736, 0.0
    %v2150 = vmax.f32 %v1738, 0.0
    %v2151 = vmax.f32 %v1929, 0.0
    %v2152 = vmax.f32 %v1931, 0.0
    %v2153 = vmax.f32 %v1356, 0.0
    %v2154 = vmax.f32 %v1358, 0.0
    %v2155 = vmax.f32 %v1549, 0.0
    %v2156 = vmax.f32 %v1551, 0.0
    %v2157 = vmax.f32 %v1742, 0.0
    %v2158 = vmax.f32 %v1744, 0.0
    %v2159 = vmax.f32 %v1935, 0.0
    %v2160 = vmax.f32 %v1937, 0.0
    %v2161 = vmax.f32 %v1360, 0.0
    %v2162 = vmax.f32 %v1362, 0.0
    %v2163 = vmax.f32 %v1553, 0.0
    %v2164 = vmax.f32 %v1555, 0.0
    %v2165 = vmax.f32 %v1746, 0.0
    %v2166 = vmax.f32 %v1748, 0.0
    %v2167 = vmax.f32 %v1939, 0.0
    %v2168 = vmax.f32 %v1941, 0.0
    %v2169 = vmax.f32 %v1366, 0.0
    %v2170 = vmax.f32 %v1368, 0.0
    %v2171 = vmax.f32 %v1559, 0.0
    %v2172 = vmax.f32 %v1561, 0.0
    %v2173 = vmax.f32 %v1752, 0.0
    %v2174 = vmax.f32 %v1754, 0.0
    %v2175 = vmax.f32 %v1945, 0.0
    %v2176 = vmax.f32 %v1947, 0.0
    %v2177 = vmax.f32 %v1370, 0.0
    %v2178 = vmax.f32 %v1372, 0.0
    %v2179 = vmax.f32 %v1563, 0.0
    %v2180 = vmax.f32 %v1565, 0.0
    %v2181 = vmax.f32 %v1756, 0.0
    %v2182 = vmax.f32 %v1758, 0.0
    %v2183 = vmax.f32 %v1949, 0.0
    %v2184 = vmax.f32 %v1951, 0.0
    %v2185 = vmax.f32 %v1376, 0.0
    %v2186 = vmax.f32 %v1378, 0.0
    %v2187 = vmax.f32 %v1569, 0.0
    %v2188 = vmax.f32 %v1571, 0.0
    %v2189 = vmax.f32 %v1762, 0.0
    %v2190 = vmax.f32 %v1764, 0.0
    %v2191 = vmax.f32 %v1955, 0.0
    %v2192 = vmax.f32 %v1957, 0.0
    %v2193 = vmax.f32 %v1380, 0.0
    %v2194 = vmax.f32 %v1382, 0.0
    %v2195 = vmax.f32 %v1573, 0.0
    %v2196 = vmax.f32 %v1575, 0.0
    %v2197 = vmax.f32 %v1766, 0.0
    %v2198 = vmax.f32 %v1768, 0.0
    %v2199 = vmax.f32 %v1959, 0.0
    %v2200 = vmax.f32 %v1961, 0.0
    %v2201 = vmax.f32 %v1386, 0.0
    %v2202 = vmax.f32 %v1388, 0.0
    %v2203 = vmax.f32 %v1579, 0.0
    %v2204 = vmax.f32 %v1581, 0.0
    %v2205 = vmax.f32 %v1772, 0.0
    %v2206 = vmax.f32 %v1774, 0.0
    %v2207 = vmax.f32 %v1965, 0.0
    %v2208 = vmax.f32 %v1967, 0.0
    %v2209 = vmax.f32 %v1390, 0.0
    %v2210 = vmax.f32 %v1392, 0.0
    %v2211 = vmax.f32 %v1583, 0.0
    %v2212 = vmax.f32 %v1585, 0.0
    %v2213 = vmax.f32 %v1776, 0.0
    %v2214 = vmax.f32 %v1778, 0.0
    %v2215 = vmax.f32 %v1969, 0.0
    %v2216 = vmax.f32 %v1971, 0.0
    %v2217 = vmax.f32 %v1396, 0.0
    %v2218 = vmax.f32 %v1398, 0.0
    %v2219 = vmax.f32 %v1589, 0.0
    %v2220 = vmax.f32 %v1591, 0.0
    %v2221 = vmax.f32 %v1782, 0.0
    %v2222 = vmax.f32 %v1784, 0.0
    %v2223 = vmax.f32 %v1975, 0.0
    %v2224 = vmax.f32 %v1977, 0.0
    %v2225 = vmax.f32 %v1400, 0.0
    %v2226 = vmax.f32 %v1402, 0.0
    %v2227 = vmax.f32 %v1593, 0.0
    %v2228 = vmax.f32 %v1595, 0.0
    %v2229 = vmax.f32 %v1786, 0.0
    %v2230 = vmax.f32 %v1788, 0.0
    %v2231 = vmax.f32 %v1979, 0.0
    %v2232 = vmax.f32 %v1981, 0.0
    %v2233 = vmax.f32 %v1406, 0.0
    %v2234 = vmax.f32 %v1408, 0.0
    %v2235 = vmax.f32 %v1599, 0.0
    %v2236 = vmax.f32 %v1601, 0.0
    %v2237 = vmax.f32 %v1792, 0.0
    %v2238 = vmax.f32 %v1794, 0.0
    %v2239 = vmax.f32 %v1985, 0.0
    %v2240 = vmax.f32 %v1987, 0.0
    %v2241 = vmax.f32 %v1410, 0.0
    %v2242 = vmax.f32 %v1412, 0.0
    %v2243 = vmax.f32 %v1603, 0.0
    %v2244 = vmax.f32 %v1605, 0.0
    %v2245 = vmax.f32 %v1796, 0.0
    %v2246 = vmax.f32 %v1798, 0.0
    %v2247 = vmax.f32 %v1989, 0.0
    %v2248 = vmax.f32 %v1991, 0.0
    %v2249 = vmax.f32 %v1993, %v2001
    %v2250 = vmax.f32 %v2249, %v2009
    %v2251 = vmax.f32 %v2250, %v2017
    %v2252 = vmax.f32 %v2251, %v2025
    %v2253 = vmax.f32 %v2252, %v2033
    %v2254 = vmax.f32 %v2253, %v2041
    %v2255 = vmax.f32 %v2254, %v2049
    %v2256 = vrot.slane %v2255, 4
    %v2257 = vmax.f32 %v2255, %v2256
    %v2258 = vrot.slane %v2257, 2
    %v2259 = vmax.f32 %v2257, %v2258
    %v2260 = vrot.slane %v2259, 1
    %v2261 = vmax.f32 %v2259, %v2260
    %v2262 = vmax.f32 %v1994, %v2002
    %v2263 = vmax.f32 %v2262, %v2010
    %v2264 = vmax.f32 %v2263, %v2018
    %v2265 = vmax.f32 %v2264, %v2026
    %v2266 = vmax.f32 %v2265, %v2034
    %v2267 = vmax.f32 %v2266, %v2042
    %v2268 = vmax.f32 %v2267, %v2050
    %v2269 = vrot.slane %v2268, 4
    %v2270 = vmax.f32 %v2268, %v2269
    %v2271 = vrot.slane %v2270, 2
    %v2272 = vmax.f32 %v2270, %v2271
    %v2273 = vrot.slane %v2272, 1
    %v2274 = vmax.f32 %v2272, %v2273
    %v2275 = vmax.f32 %v1995, %v2003
    %v2276 = vmax.f32 %v2275, %v2011
    %v2277 = vmax.f32 %v2276, %v2019
    %v2278 = vmax.f32 %v2277, %v2027
    %v2279 = vmax.f32 %v2278, %v2035
    %v2280 = vmax.f32 %v2279, %v2043
    %v2281 = vmax.f32 %v2280, %v2051
    %v2282 = vrot.slane %v2281, 4
    %v2283 = vmax.f32 %v2281, %v2282
    %v2284 = vrot.slane %v2283, 2
    %v2285 = vmax.f32 %v2283, %v2284
    %v2286 = vrot.slane %v2285, 1
    %v2287 = vmax.f32 %v2285, %v2286
    %v2288 = vmax.f32 %v1996, %v2004
    %v2289 = vmax.f32 %v2288, %v2012
    %v2290 = vmax.f32 %v2289, %v2020
    %v2291 = vmax.f32 %v2290, %v2028
    %v2292 = vmax.f32 %v2291, %v2036
    %v2293 = vmax.f32 %v2292, %v2044
    %v2294 = vmax.f32 %v2293, %v2052
    %v2295 = vrot.slane %v2294, 4
    %v2296 = vmax.f32 %v2294, %v2295
    %v2297 = vrot.slane %v2296, 2
    %v2298 = vmax.f32 %v2296, %v2297
    %v2299 = vrot.slane %v2298, 1
    %v2300 = vmax.f32 %v2298, %v2299
    %v2301 = vmax.f32 %v1997, %v2005
    %v2302 = vmax.f32 %v2301, %v2013
    %v2303 = vmax.f32 %v2302, %v2021
    %v2304 = vmax.f32 %v2303, %v2029
    %v2305 = vmax.f32 %v2304, %v2037
    %v2306 = vmax.f32 %v2305, %v2045
    %v2307 = vmax.f32 %v2306, %v2053
    %v2308 = vrot.slane %v2307, 4
    %v2309 = vmax.f32 %v2307, %v2308
    %v2310 = vrot.slane %v2309, 2
    %v2311 = vmax.f32 %v2309, %v2310
    %v2312 = vrot.slane %v2311, 1
    %v2313 = vmax.f32 %v2311, %v2312
    %v2314 = vmax.f32 %v1998, %v2006
    %v2315 = vmax.f32 %v2314, %v2014
    %v2316 = vmax.f32 %v2315, %v2022
    %v2317 = vmax.f32 %v2316, %v2030
    %v2318 = vmax.f32 %v2317, %v2038
    %v2319 = vmax.f32 %v2318, %v2046
    %v2320 = vmax.f32 %v2319, %v2054
    %v2321 = vrot.slane %v2320, 4
    %v2322 = vmax.f32 %v2320, %v2321
    %v2323 = vrot.slane %v2322, 2
    %v2324 = vmax.f32 %v2322, %v2323
    %v2325 = vrot.slane %v2324, 1
    %v2326 = vmax.f32 %v2324, %v2325
    %v2327 = vmax.f32 %v1999, %v2007
    %v2328 = vmax.f32 %v2327, %v2015
    %v2329 = vmax.f32 %v2328, %v2023
    %v2330 = vmax.f32 %v2329, %v2031
    %v2331 = vmax.f32 %v2330, %v2039
    %v2332 = vmax.f32 %v2331, %v2047
    %v2333 = vmax.f32 %v2332, %v2055
    %v2334 = vrot.slane %v2333, 4
    %v2335 = vmax.f32 %v2333, %v2334
    %v2336 = vrot.slane %v2335, 2
    %v2337 = vmax.f32 %v2335, %v2336
    %v2338 = vrot.slane %v2337, 1
    %v2339 = vmax.f32 %v2337, %v2338
    %v2340 = vmax.f32 %v2000, %v2008
    %v2341 = vmax.f32 %v2340, %v2016
    %v2342 = vmax.f32 %v2341, %v2024
    %v2343 = vmax.f32 %v2342, %v2032
    %v2344 = vmax.f32 %v2343, %v2040
    %v2345 = vmax.f32 %v2344, %v2048
    %v2346 = vmax.f32 %v2345, %v2056
    %v2347 = vrot.slane %v2346, 4
    %v2348 = vmax.f32 %v2346, %v2347
    %v2349 = vrot.slane %v2348, 2
    %v2350 = vmax.f32 %v2348, %v2349
    %v2351 = vrot.slane %v2350, 1
    %v2352 = vmax.f32 %v2350, %v2351
    %v2353 = vmax.f32 %v2057, %v2065
    %v2354 = vmax.f32 %v2353, %v2073
    %v2355 = vmax.f32 %v2354, %v2081
    %v2356 = vmax.f32 %v2355, %v2089
    %v2357 = vmax.f32 %v2356, %v2097
    %v2358 = vmax.f32 %v2357, %v2105
    %v2359 = vmax.f32 %v2358, %v2113
    %v2360 = vrot.slane %v2359, 4
    %v2361 = vmax.f32 %v2359, %v2360
    %v2362 = vrot.slane %v2361, 2
    %v2363 = vmax.f32 %v2361, %v2362
    %v2364 = vrot.slane %v2363, 1
    %v2365 = vmax.f32 %v2363, %v2364
    %v2366 = vmax.f32 %v2058, %v2066
    %v2367 = vmax.f32 %v2366, %v2074
    %v2368 = vmax.f32 %v2367, %v2082
    %v2369 = vmax.f32 %v2368, %v2090
    %v2370 = vmax.f32 %v2369, %v2098
    %v2371 = vmax.f32 %v2370, %v2106
    %v2372 = vmax.f32 %v2371, %v2114
    %v2373 = vrot.slane %v2372, 4
    %v2374 = vmax.f32 %v2372, %v2373
    %v2375 = vrot.slane %v2374, 2
    %v2376 = vmax.f32 %v2374, %v2375
    %v2377 = vrot.slane %v2376, 1
    %v2378 = vmax.f32 %v2376, %v2377
    %v2379 = vmax.f32 %v2059, %v2067
    %v2380 = vmax.f32 %v2379, %v2075
    %v2381 = vmax.f32 %v2380, %v2083
    %v2382 = vmax.f32 %v2381, %v2091
    %v2383 = vmax.f32 %v2382, %v2099
    %v2384 = vmax.f32 %v2383, %v2107
    %v2385 = vmax.f32 %v2384, %v2115
    %v2386 = vrot.slane %v2385, 4
    %v2387 = vmax.f32 %v2385, %v2386
    %v2388 = vrot.slane %v2387, 2
    %v2389 = vmax.f32 %v2387, %v2388
    %v2390 = vrot.slane %v2389, 1
    %v2391 = vmax.f32 %v2389, %v2390
    %v2392 = vmax.f32 %v2060, %v2068
    %v2393 = vmax.f32 %v2392, %v2076
    %v2394 = vmax.f32 %v2393, %v2084
    %v2395 = vmax.f32 %v2394, %v2092
    %v2396 = vmax.f32 %v2395, %v2100
    %v2397 = vmax.f32 %v2396, %v2108
    %v2398 = vmax.f32 %v2397, %v2116
    %v2399 = vrot.slane %v2398, 4
    %v2400 = vmax.f32 %v2398, %v2399
    %v2401 = vrot.slane %v2400, 2
    %v2402 = vmax.f32 %v2400, %v2401
    %v2403 = vrot.slane %v2402, 1
    %v2404 = vmax.f32 %v2402, %v2403
    %v2405 = vmax.f32 %v2061, %v2069
    %v2406 = vmax.f32 %v2405, %v2077
    %v2407 = vmax.f32 %v2406, %v2085
    %v2408 = vmax.f32 %v2407, %v2093
    %v2409 = vmax.f32 %v2408, %v2101
    %v2410 = vmax.f32 %v2409, %v2109
    %v2411 = vmax.f32 %v2410, %v2117
    %v2412 = vrot.slane %v2411, 4
    %v2413 = vmax.f32 %v2411, %v2412
    %v2414 = vrot.slane %v2413, 2
    %v2415 = vmax.f32 %v2413, %v2414
    %v2416 = vrot.slane %v2415, 1
    %v2417 = vmax.f32 %v2415, %v2416
    %v2418 = vmax.f32 %v2062, %v2070
    %v2419 = vmax.f32 %v2418, %v2078
    %v2420 = vmax.f32 %v2419, %v2086
    %v2421 = vmax.f32 %v2420, %v2094
    %v2422 = vmax.f32 %v2421, %v2102
    %v2423 = vmax.f32 %v2422, %v2110
    %v2424 = vmax.f32 %v2423, %v2118
    %v2425 = vrot.slane %v2424, 4
    %v2426 = vmax.f32 %v2424, %v2425
    %v2427 = vrot.slane %v2426, 2
    %v2428 = vmax.f32 %v2426, %v2427
    %v2429 = vrot.slane %v2428, 1
    %v2430 = vmax.f32 %v2428, %v2429
    %v2431 = vmax.f32 %v2063, %v2071
    %v2432 = vmax.f32 %v2431, %v2079
    %v2433 = vmax.f32 %v2432, %v2087
    %v2434 = vmax.f32 %v2433, %v2095
    %v2435 = vmax.f32 %v2434, %v2103
    %v2436 = vmax.f32 %v2435, %v2111
    %v2437 = vmax.f32 %v2436, %v2119
    %v2438 = vrot.slane %v2437, 4
    %v2439 = vmax.f32 %v2437, %v2438
    %v2440 = vrot.slane %v2439, 2
    %v2441 = vmax.f32 %v2439, %v2440
    %v2442 = vrot.slane %v2441, 1
    %v2443 = vmax.f32 %v2441, %v2442
    %v2444 = vmax.f32 %v2064, %v2072
    %v2445 = vmax.f32 %v2444, %v2080
    %v2446 = vmax.f32 %v2445, %v2088
    %v2447 = vmax.f32 %v2446, %v2096
    %v2448 = vmax.f32 %v2447, %v2104
    %v2449 = vmax.f32 %v2448, %v2112
    %v2450 = vmax.f32 %v2449, %v2120
    %v2451 = vrot.slane %v2450, 4
    %v2452 = vmax.f32 %v2450, %v2451
    %v2453 = vrot.slane %v2452, 2
    %v2454 = vmax.f32 %v2452, %v2453
    %v2455 = vrot.slane %v2454, 1
    %v2456 = vmax.f32 %v2454, %v2455
    %v2457 = vmax.f32 %v2121, %v2129
    %v2458 = vmax.f32 %v2457, %v2137
    %v2459 = vmax.f32 %v2458, %v2145
    %v2460 = vmax.f32 %v2459, %v2153
    %v2461 = vmax.f32 %v2460, %v2161
    %v2462 = vmax.f32 %v2461, %v2169
    %v2463 = vmax.f32 %v2462, %v2177
    %v2464 = vrot.slane %v2463, 4
    %v2465 = vmax.f32 %v2463, %v2464
    %v2466 = vrot.slane %v2465, 2
    %v2467 = vmax.f32 %v2465, %v2466
    %v2468 = vrot.slane %v2467, 1
    %v2469 = vmax.f32 %v2467, %v2468
    %v2470 = vmax.f32 %v2122, %v2130
    %v2471 = vmax.f32 %v2470, %v2138
    %v2472 = vmax.f32 %v2471, %v2146
    %v2473 = vmax.f32 %v2472, %v2154
    %v2474 = vmax.f32 %v2473, %v2162
    %v2475 = vmax.f32 %v2474, %v2170
    %v2476 = vmax.f32 %v2475, %v2178
    %v2477 = vrot.slane %v2476, 4
    %v2478 = vmax.f32 %v2476, %v2477
    %v2479 = vrot.slane %v2478, 2
    %v2480 = vmax.f32 %v2478, %v2479
    %v2481 = vrot.slane %v2480, 1
    %v2482 = vmax.f32 %v2480, %v2481
    %v2483 = vmax.f32 %v2123, %v2131
    %v2484 = vmax.f32 %v2483, %v2139
    %v2485 = vmax.f32 %v2484, %v2147
    %v2486 = vmax.f32 %v2485, %v2155
    %v2487 = vmax.f32 %v2486, %v2163
    %v2488 = vmax.f32 %v2487, %v2171
    %v2489 = vmax.f32 %v2488, %v2179
    %v2490 = vrot.slane %v2489, 4
    %v2491 = vmax.f32 %v2489, %v2490
    %v2492 = vrot.slane %v2491, 2
    %v2493 = vmax.f32 %v2491, %v2492
    %v2494 = vrot.slane %v2493, 1
    %v2495 = vmax.f32 %v2493, %v2494
    %v2496 = vmax.f32 %v2124, %v2132
    %v2497 = vmax.f32 %v2496, %v2140
    %v2498 = vmax.f32 %v2497, %v2148
    %v2499 = vmax.f32 %v2498, %v2156
    %v2500 = vmax.f32 %v2499, %v2164
    %v2501 = vmax.f32 %v2500, %v2172
    %v2502 = vmax.f32 %v2501, %v2180
    %v2503 = vrot.slane %v2502, 4
    %v2504 = vmax.f32 %v2502, %v2503
    %v2505 = vrot.slane %v2504, 2
    %v2506 = vmax.f32 %v2504, %v2505
    %v2507 = vrot.slane %v2506, 1
    %v2508 = vmax.f32 %v2506, %v2507
    %v2509 = vmax.f32 %v2125, %v2133
    %v2510 = vmax.f32 %v2509, %v2141
    %v2511 = vmax.f32 %v2510, %v2149
    %v2512 = vmax.f32 %v2511, %v2157
    %v2513 = vmax.f32 %v2512, %v2165
    %v2514 = vmax.f32 %v2513, %v2173
    %v2515 = vmax.f32 %v2514, %v2181
    %v2516 = vrot.slane %v2515, 4
    %v2517 = vmax.f32 %v2515, %v2516
    %v2518 = vrot.slane %v2517, 2
    %v2519 = vmax.f32 %v2517, %v2518
    %v2520 = vrot.slane %v2519, 1
    %v2521 = vmax.f32 %v2519, %v2520
    %v2522 = vmax.f32 %v2126, %v2134
    %v2523 = vmax.f32 %v2522, %v2142
    %v2524 = vmax.f32 %v2523, %v2150
    %v2525 = vmax.f32 %v2524, %v2158
    %v2526 = vmax.f32 %v2525, %v2166
    %v2527 = vmax.f32 %v2526, %v2174
    %v2528 = vmax.f32 %v2527, %v2182
    %v2529 = vrot.slane %v2528, 4
    %v2530 = vmax.f32 %v2528, %v2529
    %v2531 = vrot.slane %v2530, 2
    %v2532 = vmax.f32 %v2530, %v2531
    %v2533 = vrot.slane %v2532, 1
    %v2534 = vmax.f32 %v2532, %v2533
    %v2535 = vmax.f32 %v2127, %v2135
    %v2536 = vmax.f32 %v2535, %v2143
    %v2537 = vmax.f32 %v2536, %v2151
    %v2538 = vmax.f32 %v2537, %v2159
    %v2539 = vmax.f32 %v2538, %v2167
    %v2540 = vmax.f32 %v2539, %v2175
    %v2541 = vmax.f32 %v2540, %v2183
    %v2542 = vrot.slane %v2541, 4
    %v2543 = vmax.f32 %v2541, %v2542
    %v2544 = vrot.slane %v2543, 2
    %v2545 = vmax.f32 %v2543, %v2544
    %v2546 = vrot.slane %v2545, 1
    %v2547 = vmax.f32 %v2545, %v2546
    %v2548 = vmax.f32 %v2128, %v2136
    %v2549 = vmax.f32 %v2548, %v2144
    %v2550 = vmax.f32 %v2549, %v2152
    %v2551 = vmax.f32 %v2550, %v2160
    %v2552 = vmax.f32 %v2551, %v2168
    %v2553 = vmax.f32 %v2552, %v2176
    %v2554 = vmax.f32 %v2553, %v2184
    %v2555 = vrot.slane %v2554, 4
    %v2556 = vmax.f32 %v2554, %v2555
    %v2557 = vrot.slane %v2556, 2
    %v2558 = vmax.f32 %v2556, %v2557
    %v2559 = vrot.slane %v2558, 1
    %v2560 = vmax.f32 %v2558, %v2559
    %v2561 = vmax.f32 %v2185, %v2193
    %v2562 = vmax.f32 %v2561, %v2201
    %v2563 = vmax.f32 %v2562, %v2209
    %v2564 = vmax.f32 %v2563, %v2217
    %v2565 = vmax.f32 %v2564, %v2225
    %v2566 = vmax.f32 %v2565, %v2233
    %v2567 = vmax.f32 %v2566, %v2241
    %v2568 = vrot.slane %v2567, 4
    %v2569 = vmax.f32 %v2567, %v2568
    %v2570 = vrot.slane %v2569, 2
    %v2571 = vmax.f32 %v2569, %v2570
    %v2572 = vrot.slane %v2571, 1
    %v2573 = vmax.f32 %v2571, %v2572
    %v2574 = vmax.f32 %v2186, %v2194
    %v2575 = vmax.f32 %v2574, %v2202
    %v2576 = vmax.f32 %v2575, %v2210
    %v2577 = vmax.f32 %v2576, %v2218
    %v2578 = vmax.f32 %v2577, %v2226
    %v2579 = vmax.f32 %v2578, %v2234
    %v2580 = vmax.f32 %v2579, %v2242
    %v2581 = vrot.slane %v2580, 4
    %v2582 = vmax.f32 %v2580, %v2581
    %v2583 = vrot.slane %v2582, 2
    %v2584 = vmax.f32 %v2582, %v2583
    %v2585 = vrot.slane %v2584, 1
    %v2586 = vmax.f32 %v2584, %v2585
    %v2587 = vmax.f32 %v2187, %v2195
    %v2588 = vmax.f32 %v2587, %v2203
    %v2589 = vmax.f32 %v2588, %v2211
    %v2590 = vmax.f32 %v2589, %v2219
    %v2591 = vmax.f32 %v2590, %v2227
    %v2592 = vmax.f32 %v2591, %v2235
    %v2593 = vmax.f32 %v2592, %v2243
    %v2594 = vrot.slane %v2593, 4
    %v2595 = vmax.f32 %v2593, %v2594
    %v2596 = vrot.slane %v2595, 2
    %v2597 = vmax.f32 %v2595, %v2596
    %v2598 = vrot.slane %v2597, 1
    %v2599 = vmax.f32 %v2597, %v2598
    %v2600 = vmax.f32 %v2188, %v2196
    %v2601 = vmax.f32 %v2600, %v2204
    %v2602 = vmax.f32 %v2601, %v2212
    %v2603 = vmax.f32 %v2602, %v2220
    %v2604 = vmax.f32 %v2603, %v2228
    %v2605 = vmax.f32 %v2604, %v2236
    %v2606 = vmax.f32 %v2605, %v2244
    %v2607 = vrot.slane %v2606, 4
    %v2608 = vmax.f32 %v2606, %v2607
    %v2609 = vrot.slane %v2608, 2
    %v2610 = vmax.f32 %v2608, %v2609
    %v2611 = vrot.slane %v2610, 1
    %v2612 = vmax.f32 %v2610, %v2611
    %v2613 = vmax.f32 %v2189, %v2197
    %v2614 = vmax.f32 %v2613, %v2205
    %v2615 = vmax.f32 %v2614, %v2213
    %v2616 = vmax.f32 %v2615, %v2221
    %v2617 = vmax.f32 %v2616, %v2229
    %v2618 = vmax.f32 %v2617, %v2237
    %v2619 = vmax.f32 %v2618, %v2245
    %v2620 = vrot.slane %v2619, 4
    %v2621 = vmax.f32 %v2619, %v2620
    %v2622 = vrot.slane %v2621, 2
    %v2623 = vmax.f32 %v2621, %v2622
    %v2624 = vrot.slane %v2623, 1
    %v2625 = vmax.f32 %v2623, %v2624
    %v2626 = vmax.f32 %v2190, %v2198
    %v2627 = vmax.f32 %v2626, %v2206
    %v2628 = vmax.f32 %v2627, %v2214
    %v2629 = vmax.f32 %v2628, %v2222
    %v2630 = vmax.f32 %v2629, %v2230
    %v2631 = vmax.f32 %v2630, %v2238
    %v2632 = vmax.f32 %v2631, %v2246
    %v2633 = vrot.slane %v2632, 4
    %v2634 = vmax.f32 %v2632, %v2633
    %v2635 = vrot.slane %v2634, 2
    %v2636 = vmax.f32 %v2634, %v2635
    %v2637 = vrot.slane %v2636, 1
    %v2638 = vmax.f32 %v2636, %v2637
    %v2639 = vmax.f32 %v2191, %v2199
    %v2640 = vmax.f32 %v2639, %v2207
    %v2641 = vmax.f32 %v2640, %v2215
    %v2642 = vmax.f32 %v2641, %v2223
    %v2643 = vmax.f32 %v2642, %v2231
    %v2644 = vmax.f32 %v2643, %v2239
    %v2645 = vmax.f32 %v2644, %v2247
    %v2646 = vrot.slane %v2645, 4
    %v2647 = vmax.f32 %v2645, %v2646
    %v2648 = vrot.slane %v2647, 2
    %v2649 = vmax.f32 %v2647, %v2648
    %v2650 = vrot.slane %v2649, 1
    %v2651 = vmax.f32 %v2649, %v2650
    %v2652 = vmax.f32 %v2192, %v2200
    %v2653 = vmax.f32 %v2652, %v2208
    %v2654 = vmax.f32 %v2653, %v2216
    %v2655 = vmax.f32 %v2654, %v2224
    %v2656 = vmax.f32 %v2655, %v2232
    %v2657 = vmax.f32 %v2656, %v2240
    %v2658 = vmax.f32 %v2657, %v2248
    %v2659 = vrot.slane %v2658, 4
    %v2660 = vmax.f32 %v2658, %v2659
    %v2661 = vrot.slane %v2660, 2
    %v2662 = vmax.f32 %v2660, %v2661
    %v2663 = vrot.slane %v2662, 1
    %v2664 = vmax.f32 %v2662, %v2663
    %v2665 = vpack.c.bf16 %v2261, %v2261
    %v2666 = vpack.c.bf16 %v2274, %v2274
    %v2667 = vpack.c.bf16 %v2287, %v2287
    %v2668 = vpack.c.bf16 %v2300, %v2300
    %v2669 = vpack.c.bf16 %v2313, %v2313
    %v2670 = vpack.c.bf16 %v2326, %v2326
    %v2671 = vpack.c.bf16 %v2339, %v2339
    %v2672 = vpack.c.bf16 %v2352, %v2352
    %v2673 = vpack.c.bf16 %v2365, %v2365
    %v2674 = vpack.c.bf16 %v2378, %v2378
    %v2675 = vpack.c.bf16 %v2391, %v2391
    %v2676 = vpack.c.bf16 %v2404, %v2404
    %v2677 = vpack.c.bf16 %v2417, %v2417
    %v2678 = vpack.c.bf16 %v2430, %v2430
    %v2679 = vpack.c.bf16 %v2443, %v2443
    %v2680 = vpack.c.bf16 %v2456, %v2456
    %v2681 = vpack.c.bf16 %v2469, %v2469
    %v2682 = vpack.c.bf16 %v2482, %v2482
    %v2683 = vpack.c.bf16 %v2495, %v2495
    %v2684 = vpack.c.bf16 %v2508, %v2508
    %v2685 = vpack.c.bf16 %v2521, %v2521
    %v2686 = vpack.c.bf16 %v2534, %v2534
    %v2687 = vpack.c.bf16 %v2547, %v2547
    %v2688 = vpack.c.bf16 %v2560, %v2560
    %v2689 = vpack.c.bf16 %v2573, %v2573
    %v2690 = vpack.c.bf16 %v2586, %v2586
    %v2691 = vpack.c.bf16 %v2599, %v2599
    %v2692 = vpack.c.bf16 %v2612, %v2612
    %v2693 = vpack.c.bf16 %v2625, %v2625
    %v2694 = vpack.c.bf16 %v2638, %v2638
    %v2695 = vpack.c.bf16 %v2651, %v2651
    %v2696 = vpack.c.bf16 %v2664, %v2664
    %v2697 = vld [vmem:[#allocation14] sm:$0xff]
    %v2698 = vld [vmem:[#allocation14 + $0x8] sm:$0xff]
    %v2699 = vld [vmem:[#allocation14 + $0x10] sm:$0xff]
    %v2700 = vld [vmem:[#allocation14 + $0x18] sm:$0xff]
    %v2701 = vld [vmem:[#allocation14 + $0x20] sm:$0xff]
    %v2702 = vld [vmem:[#allocation14 + $0x28] sm:$0xff]
    %v2703 = vld [vmem:[#allocation14 + $0x30] sm:$0xff]
    %v2704 = vld [vmem:[#allocation14 + $0x38] sm:$0xff]
    %v2705 = vld [vmem:[#allocation14 + $0x40] sm:$0xff]
    %v2706 = vld [vmem:[#allocation14 + $0x48] sm:$0xff]
    %v2707 = vld [vmem:[#allocation14 + $0x50] sm:$0xff]
    %v2708 = vld [vmem:[#allocation14 + $0x58] sm:$0xff]
    %v2709 = vld [vmem:[#allocation14 + $0x60] sm:$0xff]
    %v2710 = vld [vmem:[#allocation14 + $0x68] sm:$0xff]
    %v2711 = vld [vmem:[#allocation14 + $0x70] sm:$0xff]
    %v2712 = vld [vmem:[#allocation14 + $0x78] sm:$0xff]
    %v2713 = vld [vmem:[#allocation14 + $0x80] sm:$0xff]
    %v2714 = vld [vmem:[#allocation14 + $0x88] sm:$0xff]
    %v2715 = vld [vmem:[#allocation14 + $0x90] sm:$0xff]
    %v2716 = vld [vmem:[#allocation14 + $0x98] sm:$0xff]
    %v2717 = vld [vmem:[#allocation14 + $0xa0] sm:$0xff]
    %v2718 = vld [vmem:[#allocation14 + $0xa8] sm:$0xff]
    %v2719 = vld [vmem:[#allocation14 + $0xb0] sm:$0xff]
    %v2720 = vld [vmem:[#allocation14 + $0xb8] sm:$0xff]
    %v2721 = vld [vmem:[#allocation14 + $0xc0] sm:$0xff]
    %v2722 = vld [vmem:[#allocation14 + $0xc8] sm:$0xff]
    %v2723 = vld [vmem:[#allocation14 + $0xd0] sm:$0xff]
    %v2724 = vld [vmem:[#allocation14 + $0xd8] sm:$0xff]
    %v2725 = vld [vmem:[#allocation14 + $0xe0] sm:$0xff]
    %v2726 = vld [vmem:[#allocation14 + $0xe8] sm:$0xff]
    %v2727 = vld [vmem:[#allocation14 + $0xf0] sm:$0xff]
    %v2728 = vld [vmem:[#allocation14 + $0xf8] sm:$0xff]
    %v2729 = vld [vmem:[#allocation14 + $0x100] sm:$0xff]
    %v2730 = vld [vmem:[#allocation14 + $0x108] sm:$0xff]
    %v2731 = vld [vmem:[#allocation14 + $0x110] sm:$0xff]
    %v2732 = vld [vmem:[#allocation14 + $0x118] sm:$0xff]
    %v2733 = vld [vmem:[#allocation14 + $0x120] sm:$0xff]
    %v2734 = vld [vmem:[#allocation14 + $0x128] sm:$0xff]
    %v2735 = vld [vmem:[#allocation14 + $0x130] sm:$0xff]
    %v2736 = vld [vmem:[#allocation14 + $0x138] sm:$0xff]
    %v2737 = vld [vmem:[#allocation14 + $0x140] sm:$0xff]
    %v2738 = vld [vmem:[#allocation14 + $0x148] sm:$0xff]
    %v2739 = vld [vmem:[#allocation14 + $0x150] sm:$0xff]
    %v2740 = vld [vmem:[#allocation14 + $0x158] sm:$0xff]
    %v2741 = vld [vmem:[#allocation14 + $0x160] sm:$0xff]
    %v2742 = vld [vmem:[#allocation14 + $0x168] sm:$0xff]
    %v2743 = vld [vmem:[#allocation14 + $0x170] sm:$0xff]
    %v2744 = vld [vmem:[#allocation14 + $0x178] sm:$0xff]
    %v2745 = vld [vmem:[#allocation14 + $0x180] sm:$0xff]
    %v2746 = vld [vmem:[#allocation14 + $0x188] sm:$0xff]
    %v2747 = vld [vmem:[#allocation14 + $0x190] sm:$0xff]
    %v2748 = vld [vmem:[#allocation14 + $0x198] sm:$0xff]
    %v2749 = vld [vmem:[#allocation14 + $0x1a0] sm:$0xff]
    %v2750 = vld [vmem:[#allocation14 + $0x1a8] sm:$0xff]
    %v2751 = vld [vmem:[#allocation14 + $0x1b0] sm:$0xff]
    %v2752 = vld [vmem:[#allocation14 + $0x1b8] sm:$0xff]
    %v2753 = vld [vmem:[#allocation14 + $0x1c0] sm:$0xff]
    %v2754 = vld [vmem:[#allocation14 + $0x1c8] sm:$0xff]
    %v2755 = vld [vmem:[#allocation14 + $0x1d0] sm:$0xff]
    %v2756 = vld [vmem:[#allocation14 + $0x1d8] sm:$0xff]
    %v2757 = vld [vmem:[#allocation14 + $0x1e0] sm:$0xff]
    %v2758 = vld [vmem:[#allocation14 + $0x1e8] sm:$0xff]
    %v2759 = vld [vmem:[#allocation14 + $0x1f0] sm:$0xff]
    %v2760 = vld [vmem:[#allocation14 + $0x1f8] sm:$0xff]
    %v2761 = vld [vmem:[#allocation14 + $0x200] sm:$0xff]
    %v2762 = vld [vmem:[#allocation14 + $0x208] sm:$0xff]
    %v2763 = vld [vmem:[#allocation14 + $0x210] sm:$0xff]
    %v2764 = vld [vmem:[#allocation14 + $0x218] sm:$0xff]
    %v2765 = vld [vmem:[#allocation14 + $0x220] sm:$0xff]
    %v2766 = vld [vmem:[#allocation14 + $0x228] sm:$0xff]
    %v2767 = vld [vmem:[#allocation14 + $0x230] sm:$0xff]
    %v2768 = vld [vmem:[#allocation14 + $0x238] sm:$0xff]
    %v2769 = vld [vmem:[#allocation14 + $0x240] sm:$0xff]
    %v2770 = vld [vmem:[#allocation14 + $0x248] sm:$0xff]
    %v2771 = vld [vmem:[#allocation14 + $0x250] sm:$0xff]
    %v2772 = vld [vmem:[#allocation14 + $0x258] sm:$0xff]
    %v2773 = vld [vmem:[#allocation14 + $0x260] sm:$0xff]
    %v2774 = vld [vmem:[#allocation14 + $0x268] sm:$0xff]
    %v2775 = vld [vmem:[#allocation14 + $0x270] sm:$0xff]
    %v2776 = vld [vmem:[#allocation14 + $0x278] sm:$0xff]
    %v2777 = vld [vmem:[#allocation14 + $0x280] sm:$0xff]
    %v2778 = vld [vmem:[#allocation14 + $0x288] sm:$0xff]
    %v2779 = vld [vmem:[#allocation14 + $0x290] sm:$0xff]
    %v2780 = vld [vmem:[#allocation14 + $0x298] sm:$0xff]
    %v2781 = vld [vmem:[#allocation14 + $0x2a0] sm:$0xff]
    %v2782 = vld [vmem:[#allocation14 + $0x2a8] sm:$0xff]
    %v2783 = vld [vmem:[#allocation14 + $0x2b0] sm:$0xff]
    %v2784 = vld [vmem:[#allocation14 + $0x2b8] sm:$0xff]
    %v2785 = vld [vmem:[#allocation14 + $0x2c0] sm:$0xff]
    %v2786 = vld [vmem:[#allocation14 + $0x2c8] sm:$0xff]
    %v2787 = vld [vmem:[#allocation14 + $0x2d0] sm:$0xff]
    %v2788 = vld [vmem:[#allocation14 + $0x2d8] sm:$0xff]
    %v2789 = vld [vmem:[#allocation14 + $0x2e0] sm:$0xff]
    %v2790 = vld [vmem:[#allocation14 + $0x2e8] sm:$0xff]
    %v2791 = vld [vmem:[#allocation14 + $0x2f0] sm:$0xff]
    %v2792 = vld [vmem:[#allocation14 + $0x2f8] sm:$0xff]
    %v2793 = vld [vmem:[#allocation14 + $0x300] sm:$0xff]
    %v2794 = vld [vmem:[#allocation14 + $0x308] sm:$0xff]
    %v2795 = vld [vmem:[#allocation14 + $0x310] sm:$0xff]
    %v2796 = vld [vmem:[#allocation14 + $0x318] sm:$0xff]
    %v2797 = vld [vmem:[#allocation14 + $0x320] sm:$0xff]
    %v2798 = vld [vmem:[#allocation14 + $0x328] sm:$0xff]
    %v2799 = vld [vmem:[#allocation14 + $0x330] sm:$0xff]
    %v2800 = vld [vmem:[#allocation14 + $0x338] sm:$0xff]
    %v2801 = vld [vmem:[#allocation14 + $0x340] sm:$0xff]
    %v2802 = vld [vmem:[#allocation14 + $0x348] sm:$0xff]
    %v2803 = vld [vmem:[#allocation14 + $0x350] sm:$0xff]
    %v2804 = vld [vmem:[#allocation14 + $0x358] sm:$0xff]
    %v2805 = vld [vmem:[#allocation14 + $0x360] sm:$0xff]
    %v2806 = vld [vmem:[#allocation14 + $0x368] sm:$0xff]
    %v2807 = vld [vmem:[#allocation14 + $0x370] sm:$0xff]
    %v2808 = vld [vmem:[#allocation14 + $0x378] sm:$0xff]
    %v2809 = vld [vmem:[#allocation14 + $0x380] sm:$0xff]
    %v2810 = vld [vmem:[#allocation14 + $0x388] sm:$0xff]
    %v2811 = vld [vmem:[#allocation14 + $0x390] sm:$0xff]
    %v2812 = vld [vmem:[#allocation14 + $0x398] sm:$0xff]
    %v2813 = vld [vmem:[#allocation14 + $0x3a0] sm:$0xff]
    %v2814 = vld [vmem:[#allocation14 + $0x3a8] sm:$0xff]
    %v2815 = vld [vmem:[#allocation14 + $0x3b0] sm:$0xff]
    %v2816 = vld [vmem:[#allocation14 + $0x3b8] sm:$0xff]
    %v2817 = vld [vmem:[#allocation14 + $0x3c0] sm:$0xff]
    %v2818 = vld [vmem:[#allocation14 + $0x3c8] sm:$0xff]
    %v2819 = vld [vmem:[#allocation14 + $0x3d0] sm:$0xff]
    %v2820 = vld [vmem:[#allocation14 + $0x3d8] sm:$0xff]
    %v2821 = vld [vmem:[#allocation14 + $0x3e0] sm:$0xff]
    %v2822 = vld [vmem:[#allocation14 + $0x3e8] sm:$0xff]
    %v2823 = vld [vmem:[#allocation14 + $0x3f0] sm:$0xff]
    %v2824 = vld [vmem:[#allocation14 + $0x3f8] sm:$0xff]
    %v2825 = vld [vmem:[#allocation14 + $0x400] sm:$0xff]
    %v2826 = vld [vmem:[#allocation14 + $0x408] sm:$0xff]
    %v2827 = vld [vmem:[#allocation14 + $0x410] sm:$0xff]
    %v2828 = vld [vmem:[#allocation14 + $0x418] sm:$0xff]
    %v2829 = vld [vmem:[#allocation14 + $0x420] sm:$0xff]
    %v2830 = vld [vmem:[#allocation14 + $0x428] sm:$0xff]
    %v2831 = vld [vmem:[#allocation14 + $0x430] sm:$0xff]
    %v2832 = vld [vmem:[#allocation14 + $0x438] sm:$0xff]
    %v2833 = vld [vmem:[#allocation14 + $0x440] sm:$0xff]
    %v2834 = vld [vmem:[#allocation14 + $0x448] sm:$0xff]
    %v2835 = vld [vmem:[#allocation14 + $0x450] sm:$0xff]
    %v2836 = vld [vmem:[#allocation14 + $0x458] sm:$0xff]
    %v2837 = vld [vmem:[#allocation14 + $0x460] sm:$0xff]
    %v2838 = vld [vmem:[#allocation14 + $0x468] sm:$0xff]
    %v2839 = vld [vmem:[#allocation14 + $0x470] sm:$0xff]
    %v2840 = vld [vmem:[#allocation14 + $0x478] sm:$0xff]
    %v2841 = vld [vmem:[#allocation14 + $0x480] sm:$0xff]
    %v2842 = vld [vmem:[#allocation14 + $0x488] sm:$0xff]
    %v2843 = vld [vmem:[#allocation14 + $0x490] sm:$0xff]
    %v2844 = vld [vmem:[#allocation14 + $0x498] sm:$0xff]
    %v2845 = vld [vmem:[#allocation14 + $0x4a0] sm:$0xff]
    %v2846 = vld [vmem:[#allocation14 + $0x4a8] sm:$0xff]
    %v2847 = vld [vmem:[#allocation14 + $0x4b0] sm:$0xff]
    %v2848 = vld [vmem:[#allocation14 + $0x4b8] sm:$0xff]
    %v2849 = vld [vmem:[#allocation14 + $0x4c0] sm:$0xff]
    %v2850 = vld [vmem:[#allocation14 + $0x4c8] sm:$0xff]
    %v2851 = vld [vmem:[#allocation14 + $0x4d0] sm:$0xff]
    %v2852 = vld [vmem:[#allocation14 + $0x4d8] sm:$0xff]
    %v2853 = vld [vmem:[#allocation14 + $0x4e0] sm:$0xff]
    %v2854 = vld [vmem:[#allocation14 + $0x4e8] sm:$0xff]
    %v2855 = vld [vmem:[#allocation14 + $0x4f0] sm:$0xff]
    %v2856 = vld [vmem:[#allocation14 + $0x4f8] sm:$0xff]
    %v2857 = vld [vmem:[#allocation14 + $0x500] sm:$0xff]
    %v2858 = vld [vmem:[#allocation14 + $0x508] sm:$0xff]
    %v2859 = vld [vmem:[#allocation14 + $0x510] sm:$0xff]
    %v2860 = vld [vmem:[#allocation14 + $0x518] sm:$0xff]
    %v2861 = vld [vmem:[#allocation14 + $0x520] sm:$0xff]
    %v2862 = vld [vmem:[#allocation14 + $0x528] sm:$0xff]
    %v2863 = vld [vmem:[#allocation14 + $0x530] sm:$0xff]
    %v2864 = vld [vmem:[#allocation14 + $0x538] sm:$0xff]
    %v2865 = vld [vmem:[#allocation14 + $0x540] sm:$0xff]
    %v2866 = vld [vmem:[#allocation14 + $0x548] sm:$0xff]
    %v2867 = vld [vmem:[#allocation14 + $0x550] sm:$0xff]
    %v2868 = vld [vmem:[#allocation14 + $0x558] sm:$0xff]
    %v2869 = vld [vmem:[#allocation14 + $0x560] sm:$0xff]
    %v2870 = vld [vmem:[#allocation14 + $0x568] sm:$0xff]
    %v2871 = vld [vmem:[#allocation14 + $0x570] sm:$0xff]
    %v2872 = vld [vmem:[#allocation14 + $0x578] sm:$0xff]
    %v2873 = vld [vmem:[#allocation14 + $0x580] sm:$0xff]
    %v2874 = vld [vmem:[#allocation14 + $0x588] sm:$0xff]
    %v2875 = vld [vmem:[#allocation14 + $0x590] sm:$0xff]
    %v2876 = vld [vmem:[#allocation14 + $0x598] sm:$0xff]
    %v2877 = vld [vmem:[#allocation14 + $0x5a0] sm:$0xff]
    %v2878 = vld [vmem:[#allocation14 + $0x5a8] sm:$0xff]
    %v2879 = vld [vmem:[#allocation14 + $0x5b0] sm:$0xff]
    %v2880 = vld [vmem:[#allocation14 + $0x5b8] sm:$0xff]
    %v2881 = vld [vmem:[#allocation14 + $0x5c0] sm:$0xff]
    %v2882 = vld [vmem:[#allocation14 + $0x5c8] sm:$0xff]
    %v2883 = vld [vmem:[#allocation14 + $0x5d0] sm:$0xff]
    %v2884 = vld [vmem:[#allocation14 + $0x5d8] sm:$0xff]
    %v2885 = vld [vmem:[#allocation14 + $0x5e0] sm:$0xff]
    %v2886 = vld [vmem:[#allocation14 + $0x5e8] sm:$0xff]
    %v2887 = vld [vmem:[#allocation14 + $0x5f0] sm:$0xff]
    %v2888 = vld [vmem:[#allocation14 + $0x5f8] sm:$0xff]
    %v2889 = vld [vmem:[#allocation14 + $0x600] sm:$0xff]
    %v2890 = vld [vmem:[#allocation14 + $0x608] sm:$0xff]
    %v2891 = vld [vmem:[#allocation14 + $0x610] sm:$0xff]
    %v2892 = vld [vmem:[#allocation14 + $0x618] sm:$0xff]
    %v2893 = vld [vmem:[#allocation14 + $0x620] sm:$0xff]
    %v2894 = vld [vmem:[#allocation14 + $0x628] sm:$0xff]
    %v2895 = vld [vmem:[#allocation14 + $0x630] sm:$0xff]
    %v2896 = vld [vmem:[#allocation14 + $0x638] sm:$0xff]
    %v2897 = vld [vmem:[#allocation14 + $0x640] sm:$0xff]
    %v2898 = vld [vmem:[#allocation14 + $0x648] sm:$0xff]
    %v2899 = vld [vmem:[#allocation14 + $0x650] sm:$0xff]
    %v2900 = vld [vmem:[#allocation14 + $0x658] sm:$0xff]
    %v2901 = vld [vmem:[#allocation14 + $0x660] sm:$0xff]
    %v2902 = vld [vmem:[#allocation14 + $0x668] sm:$0xff]
    %v2903 = vld [vmem:[#allocation14 + $0x670] sm:$0xff]
    %v2904 = vld [vmem:[#allocation14 + $0x678] sm:$0xff]
    %v2905 = vld [vmem:[#allocation14 + $0x680] sm:$0xff]
    %v2906 = vld [vmem:[#allocation14 + $0x688] sm:$0xff]
    %v2907 = vld [vmem:[#allocation14 + $0x690] sm:$0xff]
    %v2908 = vld [vmem:[#allocation14 + $0x698] sm:$0xff]
    %v2909 = vld [vmem:[#allocation14 + $0x6a0] sm:$0xff]
    %v2910 = vld [vmem:[#allocation14 + $0x6a8] sm:$0xff]
    %v2911 = vld [vmem:[#allocation14 + $0x6b0] sm:$0xff]
    %v2912 = vld [vmem:[#allocation14 + $0x6b8] sm:$0xff]
    %v2913 = vld [vmem:[#allocation14 + $0x6c0] sm:$0xff]
    %v2914 = vld [vmem:[#allocation14 + $0x6c8] sm:$0xff]
    %v2915 = vld [vmem:[#allocation14 + $0x6d0] sm:$0xff]
    %v2916 = vld [vmem:[#allocation14 + $0x6d8] sm:$0xff]
    %v2917 = vld [vmem:[#allocation14 + $0x6e0] sm:$0xff]
    %v2918 = vld [vmem:[#allocation14 + $0x6e8] sm:$0xff]
    %v2919 = vld [vmem:[#allocation14 + $0x6f0] sm:$0xff]
    %v2920 = vld [vmem:[#allocation14 + $0x6f8] sm:$0xff]
    %v2921 = vld [vmem:[#allocation14 + $0x700] sm:$0xff]
    %v2922 = vld [vmem:[#allocation14 + $0x708] sm:$0xff]
    %v2923 = vld [vmem:[#allocation14 + $0x710] sm:$0xff]
    %v2924 = vld [vmem:[#allocation14 + $0x718] sm:$0xff]
    %v2925 = vld [vmem:[#allocation14 + $0x720] sm:$0xff]
    %v2926 = vld [vmem:[#allocation14 + $0x728] sm:$0xff]
    %v2927 = vld [vmem:[#allocation14 + $0x730] sm:$0xff]
    %v2928 = vld [vmem:[#allocation14 + $0x738] sm:$0xff]
    %v2929 = vld [vmem:[#allocation14 + $0x740] sm:$0xff]
    %v2930 = vld [vmem:[#allocation14 + $0x748] sm:$0xff]
    %v2931 = vld [vmem:[#allocation14 + $0x750] sm:$0xff]
    %v2932 = vld [vmem:[#allocation14 + $0x758] sm:$0xff]
    %v2933 = vld [vmem:[#allocation14 + $0x760] sm:$0xff]
    %v2934 = vld [vmem:[#allocation14 + $0x768] sm:$0xff]
    %v2935 = vld [vmem:[#allocation14 + $0x770] sm:$0xff]
    %v2936 = vld [vmem:[#allocation14 + $0x778] sm:$0xff]
    %v2937 = vld [vmem:[#allocation14 + $0x780] sm:$0xff]
    %v2938 = vld [vmem:[#allocation14 + $0x788] sm:$0xff]
    %v2939 = vld [vmem:[#allocation14 + $0x790] sm:$0xff]
    %v2940 = vld [vmem:[#allocation14 + $0x798] sm:$0xff]
    %v2941 = vld [vmem:[#allocation14 + $0x7a0] sm:$0xff]
    %v2942 = vld [vmem:[#allocation14 + $0x7a8] sm:$0xff]
    %v2943 = vld [vmem:[#allocation14 + $0x7b0] sm:$0xff]
    %v2944 = vld [vmem:[#allocation14 + $0x7b8] sm:$0xff]
    %v2945 = vld [vmem:[#allocation14 + $0x7c0] sm:$0xff]
    %v2946 = vld [vmem:[#allocation14 + $0x7c8] sm:$0xff]
    %v2947 = vld [vmem:[#allocation14 + $0x7d0] sm:$0xff]
    %v2948 = vld [vmem:[#allocation14 + $0x7d8] sm:$0xff]
    %v2949 = vld [vmem:[#allocation14 + $0x7e0] sm:$0xff]
    %v2950 = vld [vmem:[#allocation14 + $0x7e8] sm:$0xff]
    %v2951 = vld [vmem:[#allocation14 + $0x7f0] sm:$0xff]
    %v2952 = vld [vmem:[#allocation14 + $0x7f8] sm:$0xff]
    %v2953 = vld [vmem:[#allocation14 + $0x800] sm:$0xff]
    %v2954 = vld [vmem:[#allocation14 + $0x808] sm:$0xff]
    %v2955 = vld [vmem:[#allocation14 + $0x810] sm:$0xff]
    %v2956 = vld [vmem:[#allocation14 + $0x818] sm:$0xff]
    %v2957 = vld [vmem:[#allocation14 + $0x820] sm:$0xff]
    %v2958 = vld [vmem:[#allocation14 + $0x828] sm:$0xff]
    %v2959 = vld [vmem:[#allocation14 + $0x830] sm:$0xff]
    %v2960 = vld [vmem:[#allocation14 + $0x838] sm:$0xff]
    %v2961 = vld [vmem:[#allocation14 + $0x840] sm:$0xff]
    %v2962 = vld [vmem:[#allocation14 + $0x848] sm:$0xff]
    %v2963 = vld [vmem:[#allocation14 + $0x850] sm:$0xff]
    %v2964 = vld [vmem:[#allocation14 + $0x858] sm:$0xff]
    %v2965 = vld [vmem:[#allocation14 + $0x860] sm:$0xff]
    %v2966 = vld [vmem:[#allocation14 + $0x868] sm:$0xff]
    %v2967 = vld [vmem:[#allocation14 + $0x870] sm:$0xff]
    %v2968 = vld [vmem:[#allocation14 + $0x878] sm:$0xff]
    %v2969 = vld [vmem:[#allocation14 + $0x880] sm:$0xff]
    %v2970 = vld [vmem:[#allocation14 + $0x888] sm:$0xff]
    %v2971 = vld [vmem:[#allocation14 + $0x890] sm:$0xff]
    %v2972 = vld [vmem:[#allocation14 + $0x898] sm:$0xff]
    %v2973 = vld [vmem:[#allocation14 + $0x8a0] sm:$0xff]
    %v2974 = vld [vmem:[#allocation14 + $0x8a8] sm:$0xff]
    %v2975 = vld [vmem:[#allocation14 + $0x8b0] sm:$0xff]
    %v2976 = vld [vmem:[#allocation14 + $0x8b8] sm:$0xff]
    %v2977 = vld [vmem:[#allocation14 + $0x8c0] sm:$0xff]
    %v2978 = vld [vmem:[#allocation14 + $0x8c8] sm:$0xff]
    %v2979 = vld [vmem:[#allocation14 + $0x8d0] sm:$0xff]
    %v2980 = vld [vmem:[#allocation14 + $0x8d8] sm:$0xff]
    %v2981 = vld [vmem:[#allocation14 + $0x8e0] sm:$0xff]
    %v2982 = vld [vmem:[#allocation14 + $0x8e8] sm:$0xff]
    %v2983 = vld [vmem:[#allocation14 + $0x8f0] sm:$0xff]
    %v2984 = vld [vmem:[#allocation14 + $0x8f8] sm:$0xff]
    %v2985 = vld [vmem:[#allocation14 + $0x900] sm:$0xff]
    %v2986 = vld [vmem:[#allocation14 + $0x908] sm:$0xff]
    %v2987 = vld [vmem:[#allocation14 + $0x910] sm:$0xff]
    %v2988 = vld [vmem:[#allocation14 + $0x918] sm:$0xff]
    %v2989 = vld [vmem:[#allocation14 + $0x920] sm:$0xff]
    %v2990 = vld [vmem:[#allocation14 + $0x928] sm:$0xff]
    %v2991 = vld [vmem:[#allocation14 + $0x930] sm:$0xff]
    %v2992 = vld [vmem:[#allocation14 + $0x938] sm:$0xff]
    %v2993 = vld [vmem:[#allocation14 + $0x940] sm:$0xff]
    %v2994 = vld [vmem:[#allocation14 + $0x948] sm:$0xff]
    %v2995 = vld [vmem:[#allocation14 + $0x950] sm:$0xff]
    %v2996 = vld [vmem:[#allocation14 + $0x958] sm:$0xff]
    %v2997 = vld [vmem:[#allocation14 + $0x960] sm:$0xff]
    %v2998 = vld [vmem:[#allocation14 + $0x968] sm:$0xff]
    %v2999 = vld [vmem:[#allocation14 + $0x970] sm:$0xff]
    %v3000 = vld [vmem:[#allocation14 + $0x978] sm:$0xff]
    %v3001 = vld [vmem:[#allocation14 + $0x980] sm:$0xff]
    %v3002 = vld [vmem:[#allocation14 + $0x988] sm:$0xff]
    %v3003 = vld [vmem:[#allocation14 + $0x990] sm:$0xff]
    %v3004 = vld [vmem:[#allocation14 + $0x998] sm:$0xff]
    %v3005 = vld [vmem:[#allocation14 + $0x9a0] sm:$0xff]
    %v3006 = vld [vmem:[#allocation14 + $0x9a8] sm:$0xff]
    %v3007 = vld [vmem:[#allocation14 + $0x9b0] sm:$0xff]
    %v3008 = vld [vmem:[#allocation14 + $0x9b8] sm:$0xff]
    %v3009 = vld [vmem:[#allocation14 + $0x9c0] sm:$0xff]
    %v3010 = vld [vmem:[#allocation14 + $0x9c8] sm:$0xff]
    %v3011 = vld [vmem:[#allocation14 + $0x9d0] sm:$0xff]
    %v3012 = vld [vmem:[#allocation14 + $0x9d8] sm:$0xff]
    %v3013 = vld [vmem:[#allocation14 + $0x9e0] sm:$0xff]
    %v3014 = vld [vmem:[#allocation14 + $0x9e8] sm:$0xff]
    %v3015 = vld [vmem:[#allocation14 + $0x9f0] sm:$0xff]
    %v3016 = vld [vmem:[#allocation14 + $0x9f8] sm:$0xff]
    %v3017 = vld [vmem:[#allocation14 + $0xa00] sm:$0xff]
    %v3018 = vld [vmem:[#allocation14 + $0xa08] sm:$0xff]
    %v3019 = vld [vmem:[#allocation14 + $0xa10] sm:$0xff]
    %v3020 = vld [vmem:[#allocation14 + $0xa18] sm:$0xff]
    %v3021 = vld [vmem:[#allocation14 + $0xa20] sm:$0xff]
    %v3022 = vld [vmem:[#allocation14 + $0xa28] sm:$0xff]
    %v3023 = vld [vmem:[#allocation14 + $0xa30] sm:$0xff]
    %v3024 = vld [vmem:[#allocation14 + $0xa38] sm:$0xff]
    %v3025 = vld [vmem:[#allocation14 + $0xa40] sm:$0xff]
    %v3026 = vld [vmem:[#allocation14 + $0xa48] sm:$0xff]
    %v3027 = vld [vmem:[#allocation14 + $0xa50] sm:$0xff]
    %v3028 = vld [vmem:[#allocation14 + $0xa58] sm:$0xff]
    %v3029 = vld [vmem:[#allocation14 + $0xa60] sm:$0xff]
    %v3030 = vld [vmem:[#allocation14 + $0xa68] sm:$0xff]
    %v3031 = vld [vmem:[#allocation14 + $0xa70] sm:$0xff]
    %v3032 = vld [vmem:[#allocation14 + $0xa78] sm:$0xff]
    %v3033 = vld [vmem:[#allocation14 + $0xa80] sm:$0xff]
    %v3034 = vld [vmem:[#allocation14 + $0xa88] sm:$0xff]
    %v3035 = vld [vmem:[#allocation14 + $0xa90] sm:$0xff]
    %v3036 = vld [vmem:[#allocation14 + $0xa98] sm:$0xff]
    %v3037 = vld [vmem:[#allocation14 + $0xaa0] sm:$0xff]
    %v3038 = vld [vmem:[#allocation14 + $0xaa8] sm:$0xff]
    %v3039 = vld [vmem:[#allocation14 + $0xab0] sm:$0xff]
    %v3040 = vld [vmem:[#allocation14 + $0xab8] sm:$0xff]
    %v3041 = vld [vmem:[#allocation14 + $0xac0] sm:$0xff]
    %v3042 = vld [vmem:[#allocation14 + $0xac8] sm:$0xff]
    %v3043 = vld [vmem:[#allocation14 + $0xad0] sm:$0xff]
    %v3044 = vld [vmem:[#allocation14 + $0xad8] sm:$0xff]
    %v3045 = vld [vmem:[#allocation14 + $0xae0] sm:$0xff]
    %v3046 = vld [vmem:[#allocation14 + $0xae8] sm:$0xff]
    %v3047 = vld [vmem:[#allocation14 + $0xaf0] sm:$0xff]
    %v3048 = vld [vmem:[#allocation14 + $0xaf8] sm:$0xff]
    %v3049 = vld [vmem:[#allocation14 + $0xb00] sm:$0xff]
    %v3050 = vld [vmem:[#allocation14 + $0xb08] sm:$0xff]
    %v3051 = vld [vmem:[#allocation14 + $0xb10] sm:$0xff]
    %v3052 = vld [vmem:[#allocation14 + $0xb18] sm:$0xff]
    %v3053 = vld [vmem:[#allocation14 + $0xb20] sm:$0xff]
    %v3054 = vld [vmem:[#allocation14 + $0xb28] sm:$0xff]
    %v3055 = vld [vmem:[#allocation14 + $0xb30] sm:$0xff]
    %v3056 = vld [vmem:[#allocation14 + $0xb38] sm:$0xff]
    %v3057 = vld [vmem:[#allocation14 + $0xb40] sm:$0xff]
    %v3058 = vld [vmem:[#allocation14 + $0xb48] sm:$0xff]
    %v3059 = vld [vmem:[#allocation14 + $0xb50] sm:$0xff]
    %v3060 = vld [vmem:[#allocation14 + $0xb58] sm:$0xff]
    %v3061 = vld [vmem:[#allocation14 + $0xb60] sm:$0xff]
    %v3062 = vld [vmem:[#allocation14 + $0xb68] sm:$0xff]
    %v3063 = vld [vmem:[#allocation14 + $0xb70] sm:$0xff]
    %v3064 = vld [vmem:[#allocation14 + $0xb78] sm:$0xff]
    %v3065 = vld [vmem:[#allocation14 + $0xb80] sm:$0xff]
    %v3066 = vld [vmem:[#allocation14 + $0xb88] sm:$0xff]
    %v3067 = vld [vmem:[#allocation14 + $0xb90] sm:$0xff]
    %v3068 = vld [vmem:[#allocation14 + $0xb98] sm:$0xff]
    %v3069 = vld [vmem:[#allocation14 + $0xba0] sm:$0xff]
    %v3070 = vld [vmem:[#allocation14 + $0xba8] sm:$0xff]
    %v3071 = vld [vmem:[#allocation14 + $0xbb0] sm:$0xff]
    %v3072 = vld [vmem:[#allocation14 + $0xbb8] sm:$0xff]
    %v3073 = vld [vmem:[#allocation14 + $0xbc0] sm:$0xff]
    %v3074 = vld [vmem:[#allocation14 + $0xbc8] sm:$0xff]
    %v3075 = vld [vmem:[#allocation14 + $0xbd0] sm:$0xff]
    %v3076 = vld [vmem:[#allocation14 + $0xbd8] sm:$0xff]
    %v3077 = vld [vmem:[#allocation14 + $0xbe0] sm:$0xff]
    %v3078 = vld [vmem:[#allocation14 + $0xbe8] sm:$0xff]
    %v3079 = vld [vmem:[#allocation14 + $0xbf0] sm:$0xff]
    %v3080 = vld [vmem:[#allocation14 + $0xbf8] sm:$0xff]
    %v3081 = vld [vmem:[#allocation14 + $0xc00] sm:$0xff]
    %v3082 = vld [vmem:[#allocation14 + $0xc08] sm:$0xff]
    %v3083 = vld [vmem:[#allocation14 + $0xc10] sm:$0xff]
    %v3084 = vld [vmem:[#allocation14 + $0xc18] sm:$0xff]
    %v3085 = vld [vmem:[#allocation14 + $0xc20] sm:$0xff]
    %v3086 = vld [vmem:[#allocation14 + $0xc28] sm:$0xff]
    %v3087 = vld [vmem:[#allocation14 + $0xc30] sm:$0xff]
    %v3088 = vld [vmem:[#allocation14 + $0xc38] sm:$0xff]
    %v3089 = vld [vmem:[#allocation14 + $0xc40] sm:$0xff]
    %v3090 = vld [vmem:[#allocation14 + $0xc48] sm:$0xff]
    %v3091 = vld [vmem:[#allocation14 + $0xc50] sm:$0xff]
    %v3092 = vld [vmem:[#allocation14 + $0xc58] sm:$0xff]
    %v3093 = vld [vmem:[#allocation14 + $0xc60] sm:$0xff]
    %v3094 = vld [vmem:[#allocation14 + $0xc68] sm:$0xff]
    %v3095 = vld [vmem:[#allocation14 + $0xc70] sm:$0xff]
    %v3096 = vld [vmem:[#allocation14 + $0xc78] sm:$0xff]
    %v3097 = vld [vmem:[#allocation14 + $0xc80] sm:$0xff]
    %v3098 = vld [vmem:[#allocation14 + $0xc88] sm:$0xff]
    %v3099 = vld [vmem:[#allocation14 + $0xc90] sm:$0xff]
    %v3100 = vld [vmem:[#allocation14 + $0xc98] sm:$0xff]
    %v3101 = vld [vmem:[#allocation14 + $0xca0] sm:$0xff]
    %v3102 = vld [vmem:[#allocation14 + $0xca8] sm:$0xff]
    %v3103 = vld [vmem:[#allocation14 + $0xcb0] sm:$0xff]
    %v3104 = vld [vmem:[#allocation14 + $0xcb8] sm:$0xff]
    %v3105 = vld [vmem:[#allocation14 + $0xcc0] sm:$0xff]
    %v3106 = vld [vmem:[#allocation14 + $0xcc8] sm:$0xff]
    %v3107 = vld [vmem:[#allocation14 + $0xcd0] sm:$0xff]
    %v3108 = vld [vmem:[#allocation14 + $0xcd8] sm:$0xff]
    %v3109 = vld [vmem:[#allocation14 + $0xce0] sm:$0xff]
    %v3110 = vld [vmem:[#allocation14 + $0xce8] sm:$0xff]
    %v3111 = vld [vmem:[#allocation14 + $0xcf0] sm:$0xff]
    %v3112 = vld [vmem:[#allocation14 + $0xcf8] sm:$0xff]
    %v3113 = vld [vmem:[#allocation14 + $0xd00] sm:$0xff]
    %v3114 = vld [vmem:[#allocation14 + $0xd08] sm:$0xff]
    %v3115 = vld [vmem:[#allocation14 + $0xd10] sm:$0xff]
    %v3116 = vld [vmem:[#allocation14 + $0xd18] sm:$0xff]
    %v3117 = vld [vmem:[#allocation14 + $0xd20] sm:$0xff]
    %v3118 = vld [vmem:[#allocation14 + $0xd28] sm:$0xff]
    %v3119 = vld [vmem:[#allocation14 + $0xd30] sm:$0xff]
    %v3120 = vld [vmem:[#allocation14 + $0xd38] sm:$0xff]
    %v3121 = vld [vmem:[#allocation14 + $0xd40] sm:$0xff]
    %v3122 = vld [vmem:[#allocation14 + $0xd48] sm:$0xff]
    %v3123 = vld [vmem:[#allocation14 + $0xd50] sm:$0xff]
    %v3124 = vld [vmem:[#allocation14 + $0xd58] sm:$0xff]
    %v3125 = vld [vmem:[#allocation14 + $0xd60] sm:$0xff]
    %v3126 = vld [vmem:[#allocation14 + $0xd68] sm:$0xff]
    %v3127 = vld [vmem:[#allocation14 + $0xd70] sm:$0xff]
    %v3128 = vld [vmem:[#allocation14 + $0xd78] sm:$0xff]
    %v3129 = vld [vmem:[#allocation14 + $0xd80] sm:$0xff]
    %v3130 = vld [vmem:[#allocation14 + $0xd88] sm:$0xff]
    %v3131 = vld [vmem:[#allocation14 + $0xd90] sm:$0xff]
    %v3132 = vld [vmem:[#allocation14 + $0xd98] sm:$0xff]
    %v3133 = vld [vmem:[#allocation14 + $0xda0] sm:$0xff]
    %v3134 = vld [vmem:[#allocation14 + $0xda8] sm:$0xff]
    %v3135 = vld [vmem:[#allocation14 + $0xdb0] sm:$0xff]
    %v3136 = vld [vmem:[#allocation14 + $0xdb8] sm:$0xff]
    %v3137 = vld [vmem:[#allocation14 + $0xdc0] sm:$0xff]
    %v3138 = vld [vmem:[#allocation14 + $0xdc8] sm:$0xff]
    %v3139 = vld [vmem:[#allocation14 + $0xdd0] sm:$0xff]
    %v3140 = vld [vmem:[#allocation14 + $0xdd8] sm:$0xff]
    %v3141 = vld [vmem:[#allocation14 + $0xde0] sm:$0xff]
    %v3142 = vld [vmem:[#allocation14 + $0xde8] sm:$0xff]
    %v3143 = vld [vmem:[#allocation14 + $0xdf0] sm:$0xff]
    %v3144 = vld [vmem:[#allocation14 + $0xdf8] sm:$0xff]
    %v3145 = vld [vmem:[#allocation14 + $0xe00] sm:$0xff]
    %v3146 = vld [vmem:[#allocation14 + $0xe08] sm:$0xff]
    %v3147 = vld [vmem:[#allocation14 + $0xe10] sm:$0xff]
    %v3148 = vld [vmem:[#allocation14 + $0xe18] sm:$0xff]
    %v3149 = vld [vmem:[#allocation14 + $0xe20] sm:$0xff]
    %v3150 = vld [vmem:[#allocation14 + $0xe28] sm:$0xff]
    %v3151 = vld [vmem:[#allocation14 + $0xe30] sm:$0xff]
    %v3152 = vld [vmem:[#allocation14 + $0xe38] sm:$0xff]
    %v3153 = vld [vmem:[#allocation14 + $0xe40] sm:$0xff]
    %v3154 = vld [vmem:[#allocation14 + $0xe48] sm:$0xff]
    %v3155 = vld [vmem:[#allocation14 + $0xe50] sm:$0xff]
    %v3156 = vld [vmem:[#allocation14 + $0xe58] sm:$0xff]
    %v3157 = vld [vmem:[#allocation14 + $0xe60] sm:$0xff]
    %v3158 = vld [vmem:[#allocation14 + $0xe68] sm:$0xff]
    %v3159 = vld [vmem:[#allocation14 + $0xe70] sm:$0xff]
    %v3160 = vld [vmem:[#allocation14 + $0xe78] sm:$0xff]
    %v3161 = vld [vmem:[#allocation14 + $0xe80] sm:$0xff]
    %v3162 = vld [vmem:[#allocation14 + $0xe88] sm:$0xff]
    %v3163 = vld [vmem:[#allocation14 + $0xe90] sm:$0xff]
    %v3164 = vld [vmem:[#allocation14 + $0xe98] sm:$0xff]
    %v3165 = vld [vmem:[#allocation14 + $0xea0] sm:$0xff]
    %v3166 = vld [vmem:[#allocation14 + $0xea8] sm:$0xff]
    %v3167 = vld [vmem:[#allocation14 + $0xeb0] sm:$0xff]
    %v3168 = vld [vmem:[#allocation14 + $0xeb8] sm:$0xff]
    %v3169 = vld [vmem:[#allocation14 + $0xec0] sm:$0xff]
    %v3170 = vld [vmem:[#allocation14 + $0xec8] sm:$0xff]
    %v3171 = vld [vmem:[#allocation14 + $0xed0] sm:$0xff]
    %v3172 = vld [vmem:[#allocation14 + $0xed8] sm:$0xff]
    %v3173 = vld [vmem:[#allocation14 + $0xee0] sm:$0xff]
    %v3174 = vld [vmem:[#allocation14 + $0xee8] sm:$0xff]
    %v3175 = vld [vmem:[#allocation14 + $0xef0] sm:$0xff]
    %v3176 = vld [vmem:[#allocation14 + $0xef8] sm:$0xff]
    %v3177 = vld [vmem:[#allocation14 + $0xf00] sm:$0xff]
    %v3178 = vld [vmem:[#allocation14 + $0xf08] sm:$0xff]
    %v3179 = vld [vmem:[#allocation14 + $0xf10] sm:$0xff]
    %v3180 = vld [vmem:[#allocation14 + $0xf18] sm:$0xff]
    %v3181 = vld [vmem:[#allocation14 + $0xf20] sm:$0xff]
    %v3182 = vld [vmem:[#allocation14 + $0xf28] sm:$0xff]
    %v3183 = vld [vmem:[#allocation14 + $0xf30] sm:$0xff]
    %v3184 = vld [vmem:[#allocation14 + $0xf38] sm:$0xff]
    %v3185 = vld [vmem:[#allocation14 + $0xf40] sm:$0xff]
    %v3186 = vld [vmem:[#allocation14 + $0xf48] sm:$0xff]
    %v3187 = vld [vmem:[#allocation14 + $0xf50] sm:$0xff]
    %v3188 = vld [vmem:[#allocation14 + $0xf58] sm:$0xff]
    %v3189 = vld [vmem:[#allocation14 + $0xf60] sm:$0xff]
    %v3190 = vld [vmem:[#allocation14 + $0xf68] sm:$0xff]
    %v3191 = vld [vmem:[#allocation14 + $0xf70] sm:$0xff]
    %v3192 = vld [vmem:[#allocation14 + $0xf78] sm:$0xff]
    %v3193 = vld [vmem:[#allocation14 + $0xf80] sm:$0xff]
    %v3194 = vld [vmem:[#allocation14 + $0xf88] sm:$0xff]
    %v3195 = vld [vmem:[#allocation14 + $0xf90] sm:$0xff]
    %v3196 = vld [vmem:[#allocation14 + $0xf98] sm:$0xff]
    %v3197 = vld [vmem:[#allocation14 + $0xfa0] sm:$0xff]
    %v3198 = vld [vmem:[#allocation14 + $0xfa8] sm:$0xff]
    %v3199 = vld [vmem:[#allocation14 + $0xfb0] sm:$0xff]
    %v3200 = vld [vmem:[#allocation14 + $0xfb8] sm:$0xff]
    %v3201 = vld [vmem:[#allocation14 + $0xfc0] sm:$0xff]
    %v3202 = vld [vmem:[#allocation14 + $0xfc8] sm:$0xff]
    %v3203 = vld [vmem:[#allocation14 + $0xfd0] sm:$0xff]
    %v3204 = vld [vmem:[#allocation14 + $0xfd8] sm:$0xff]
    %v3205 = vld [vmem:[#allocation14 + $0xfe0] sm:$0xff]
    %v3206 = vld [vmem:[#allocation14 + $0xfe8] sm:$0xff]
    %v3207 = vld [vmem:[#allocation14 + $0xff0] sm:$0xff]
    %v3208 = vld [vmem:[#allocation14 + $0xff8] sm:$0xff]
    %v3209 = vld [vmem:[#allocation16] sm:$0xff]
    %v3211 = vlaneseq
    %v3212 = vshrl.u32 %v3211, 7
    %v3213 = vsub.s32 0, %v3212
    %v3214 = vrot.slane %v3209, %v3213
    %v3215 = vlaneseq
    %v3216 = vshrl.u32 %v3215, 7
    %v3217 = vsub.s32 1, %v3216
    %v3218 = vrot.slane %v3209, %v3217
    %v3219 = vlaneseq
    %v3220 = vshrl.u32 %v3219, 7
    %v3221 = vsub.s32 2, %v3220
    %v3222 = vrot.slane %v3209, %v3221
    %v3223 = vlaneseq
    %v3224 = vshrl.u32 %v3223, 7
    %v3225 = vsub.s32 3, %v3224
    %v3226 = vrot.slane %v3209, %v3225
    %v3227 = vlaneseq
    %v3228 = vshrl.u32 %v3227, 7
    %v3229 = vsub.s32 4, %v3228
    %v3230 = vrot.slane %v3209, %v3229
    %v3231 = vlaneseq
    %v3232 = vshrl.u32 %v3231, 7
    %v3233 = vsub.s32 5, %v3232
    %v3234 = vrot.slane %v3209, %v3233
    %v3235 = vlaneseq
    %v3236 = vshrl.u32 %v3235, 7
    %v3237 = vsub.s32 6, %v3236
    %v3238 = vrot.slane %v3209, %v3237
    %v3239 = vlaneseq
    %v3240 = vshrl.u32 %v3239, 7
    %v3241 = vsub.s32 7, %v3240
    %v3242 = vrot.slane %v3209, %v3241
    %v3283 = vunpack.c.l.b16 %v2665
    %v3284 = vunpack.c.l.b16 %v2666
    %v3285 = vunpack.c.l.b16 %v2667
    %v3286 = vunpack.c.l.b16 %v2668
    %v3287 = vunpack.c.l.b16 %v2669
    %v3288 = vunpack.c.l.b16 %v2670
    %v3289 = vunpack.c.l.b16 %v2671
    %v3290 = vunpack.c.l.b16 %v2672
    %v3291 = vunpack.c.l.b16 %v2673
    %v3292 = vunpack.c.l.b16 %v2674
    %v3293 = vunpack.c.l.b16 %v2675
    %v3294 = vunpack.c.l.b16 %v2676
    %v3295 = vunpack.c.l.b16 %v2677
    %v3296 = vunpack.c.l.b16 %v2678
    %v3297 = vunpack.c.l.b16 %v2679
    %v3298 = vunpack.c.l.b16 %v2680
    %v3299 = vunpack.c.l.b16 %v2681
    %v3300 = vunpack.c.l.b16 %v2682
    %v3301 = vunpack.c.l.b16 %v2683
    %v3302 = vunpack.c.l.b16 %v2684
    %v3303 = vunpack.c.l.b16 %v2685
    %v3304 = vunpack.c.l.b16 %v2686
    %v3305 = vunpack.c.l.b16 %v2687
    %v3306 = vunpack.c.l.b16 %v2688
    %v3307 = vunpack.c.l.b16 %v2689
    %v3308 = vunpack.c.l.b16 %v2690
    %v3309 = vunpack.c.l.b16 %v2691
    %v3310 = vunpack.c.l.b16 %v2692
    %v3311 = vunpack.c.l.b16 %v2693
    %v3312 = vunpack.c.l.b16 %v2694
    %v3313 = vunpack.c.l.b16 %v2695
    %v3314 = vunpack.c.l.b16 %v2696
    %vm3315 = vcmask 1041409
    %v3316 = vsel %vm3315, %v3291, %v3283
    %vm3317 = vcmask 1042434
    %v3318 = vsel %vm3317, %v3299, %v3316
    %vm3319 = vcmask 1043459
    %v3320 = vsel %vm3319, %v3307, %v3318
    %v3321 = vsel %vm3315, %v3292, %v3284
    %v3322 = vsel %vm3317, %v3300, %v3321
    %v3323 = vsel %vm3319, %v3308, %v3322
    %v3324 = vsel %vm3315, %v3293, %v3285
    %v3325 = vsel %vm3317, %v3301, %v3324
    %v3326 = vsel %vm3319, %v3309, %v3325
    %v3327 = vsel %vm3315, %v3294, %v3286
    %v3328 = vsel %vm3317, %v3302, %v3327
    %v3329 = vsel %vm3319, %v3310, %v3328
    %v3330 = vsel %vm3315, %v3295, %v3287
    %v3331 = vsel %vm3317, %v3303, %v3330
    %v3332 = vsel %vm3319, %v3311, %v3331
    %v3333 = vsel %vm3315, %v3296, %v3288
    %v3334 = vsel %vm3317, %v3304, %v3333
    %v3335 = vsel %vm3319, %v3312, %v3334
    %v3336 = vsel %vm3315, %v3297, %v3289
    %v3337 = vsel %vm3317, %v3305, %v3336
    %v3338 = vsel %vm3319, %v3313, %v3337
    %v3339 = vsel %vm3315, %v3298, %v3290
    %v3340 = vsel %vm3317, %v3306, %v3339
    %v3341 = vsel %vm3319, %v3314, %v3340
    %v3342 = vpack.c.b16 %v3320, %v3320
    %v3343 = vpack.c.b16 %v3323, %v3323
    %v3344 = vpack.c.b16 %v3326, %v3326
    %v3345 = vpack.c.b16 %v3329, %v3329
    %v3346 = vpack.c.b16 %v3332, %v3332
    %v3347 = vpack.c.b16 %v3335, %v3335
    %v3348 = vpack.c.b16 %v3338, %v3338
    %v3349 = vpack.c.b16 %v3341, %v3341
    %v3870 = vunpack.c.l.b16 %v2697
    %v3871 = vunpack.c.h.b16 %v2697
    %v3872 = vunpack.c.l.b16 %v2698
    %v3873 = vunpack.c.h.b16 %v2698
    %v3874 = vunpack.c.l.b16 %v2699
    %v3875 = vunpack.c.h.b16 %v2699
    %v3876 = vunpack.c.l.b16 %v2700
    %v3877 = vunpack.c.h.b16 %v2700
    %v3878 = vunpack.c.l.b16 %v2701
    %v3879 = vunpack.c.h.b16 %v2701
    %v3880 = vunpack.c.l.b16 %v2702
    %v3881 = vunpack.c.h.b16 %v2702
    %v3882 = vunpack.c.l.b16 %v2703
    %v3883 = vunpack.c.h.b16 %v2703
    %v3884 = vunpack.c.l.b16 %v2704
    %v3885 = vunpack.c.h.b16 %v2704
    %v3886 = vunpack.c.l.b16 %v2705
    %v3887 = vunpack.c.h.b16 %v2705
    %v3888 = vunpack.c.l.b16 %v2706
    %v3889 = vunpack.c.h.b16 %v2706
    %v3890 = vunpack.c.l.b16 %v2707
    %v3891 = vunpack.c.h.b16 %v2707
    %v3892 = vunpack.c.l.b16 %v2708
    %v3893 = vunpack.c.h.b16 %v2708
    %v3894 = vunpack.c.l.b16 %v2709
    %v3895 = vunpack.c.h.b16 %v2709
    %v3896 = vunpack.c.l.b16 %v2710
    %v3897 = vunpack.c.h.b16 %v2710
    %v3898 = vunpack.c.l.b16 %v2711
    %v3899 = vunpack.c.h.b16 %v2711
    %v3900 = vunpack.c.l.b16 %v2712
    %v3901 = vunpack.c.h.b16 %v2712
    %v3902 = vunpack.c.l.b16 %v2713
    %v3903 = vunpack.c.h.b16 %v2713
    %v3904 = vunpack.c.l.b16 %v2714
    %v3905 = vunpack.c.h.b16 %v2714
    %v3906 = vunpack.c.l.b16 %v2715
    %v3907 = vunpack.c.h.b16 %v2715
    %v3908 = vunpack.c.l.b16 %v2716
    %v3909 = vunpack.c.h.b16 %v2716
    %v3910 = vunpack.c.l.b16 %v2717
    %v3911 = vunpack.c.h.b16 %v2717
    %v3912 = vunpack.c.l.b16 %v2718
    %v3913 = vunpack.c.h.b16 %v2718
    %v3914 = vunpack.c.l.b16 %v2719
    %v3915 = vunpack.c.h.b16 %v2719
    %v3916 = vunpack.c.l.b16 %v2720
    %v3917 = vunpack.c.h.b16 %v2720
    %v3918 = vunpack.c.l.b16 %v2721
    %v3919 = vunpack.c.h.b16 %v2721
    %v3920 = vunpack.c.l.b16 %v2722
    %v3921 = vunpack.c.h.b16 %v2722
    %v3922 = vunpack.c.l.b16 %v2723
    %v3923 = vunpack.c.h.b16 %v2723
    %v3924 = vunpack.c.l.b16 %v2724
    %v3925 = vunpack.c.h.b16 %v2724
    %v3926 = vunpack.c.l.b16 %v2725
    %v3927 = vunpack.c.h.b16 %v2725
    %v3928 = vunpack.c.l.b16 %v2726
    %v3929 = vunpack.c.h.b16 %v2726
    %v3930 = vunpack.c.l.b16 %v2727
    %v3931 = vunpack.c.h.b16 %v2727
    %v3932 = vunpack.c.l.b16 %v2728
    %v3933 = vunpack.c.h.b16 %v2728
    %v3934 = vunpack.c.l.b16 %v2729
    %v3935 = vunpack.c.h.b16 %v2729
    %v3936 = vunpack.c.l.b16 %v2730
    %v3937 = vunpack.c.h.b16 %v2730
    %v3938 = vunpack.c.l.b16 %v2731
    %v3939 = vunpack.c.h.b16 %v2731
    %v3940 = vunpack.c.l.b16 %v2732
    %v3941 = vunpack.c.h.b16 %v2732
    %v3942 = vunpack.c.l.b16 %v2733
    %v3943 = vunpack.c.h.b16 %v2733
    %v3944 = vunpack.c.l.b16 %v2734
    %v3945 = vunpack.c.h.b16 %v2734
    %v3946 = vunpack.c.l.b16 %v2735
    %v3947 = vunpack.c.h.b16 %v2735
    %v3948 = vunpack.c.l.b16 %v2736
    %v3949 = vunpack.c.h.b16 %v2736
    %v3950 = vunpack.c.l.b16 %v2737
    %v3951 = vunpack.c.h.b16 %v2737
    %v3952 = vunpack.c.l.b16 %v2738
    %v3953 = vunpack.c.h.b16 %v2738
    %v3954 = vunpack.c.l.b16 %v2739
    %v3955 = vunpack.c.h.b16 %v2739
    %v3956 = vunpack.c.l.b16 %v2740
    %v3957 = vunpack.c.h.b16 %v2740
    %v3958 = vunpack.c.l.b16 %v2741
    %v3959 = vunpack.c.h.b16 %v2741
    %v3960 = vunpack.c.l.b16 %v2742
    %v3961 = vunpack.c.h.b16 %v2742
    %v3962 = vunpack.c.l.b16 %v2743
    %v3963 = vunpack.c.h.b16 %v2743
    %v3964 = vunpack.c.l.b16 %v2744
    %v3965 = vunpack.c.h.b16 %v2744
    %v3966 = vunpack.c.l.b16 %v2745
    %v3967 = vunpack.c.h.b16 %v2745
    %v3968 = vunpack.c.l.b16 %v2746
    %v3969 = vunpack.c.h.b16 %v2746
    %v3970 = vunpack.c.l.b16 %v2747
    %v3971 = vunpack.c.h.b16 %v2747
    %v3972 = vunpack.c.l.b16 %v2748
    %v3973 = vunpack.c.h.b16 %v2748
    %v3974 = vunpack.c.l.b16 %v2749
    %v3975 = vunpack.c.h.b16 %v2749
    %v3976 = vunpack.c.l.b16 %v2750
    %v3977 = vunpack.c.h.b16 %v2750
    %v3978 = vunpack.c.l.b16 %v2751
    %v3979 = vunpack.c.h.b16 %v2751
    %v3980 = vunpack.c.l.b16 %v2752
    %v3981 = vunpack.c.h.b16 %v2752
    %v3982 = vunpack.c.l.b16 %v2753
    %v3983 = vunpack.c.h.b16 %v2753
    %v3984 = vunpack.c.l.b16 %v2754
    %v3985 = vunpack.c.h.b16 %v2754
    %v3986 = vunpack.c.l.b16 %v2755
    %v3987 = vunpack.c.h.b16 %v2755
    %v3988 = vunpack.c.l.b16 %v2756
    %v3989 = vunpack.c.h.b16 %v2756
    %v3990 = vunpack.c.l.b16 %v2757
    %v3991 = vunpack.c.h.b16 %v2757
    %v3992 = vunpack.c.l.b16 %v2758
    %v3993 = vunpack.c.h.b16 %v2758
    %v3994 = vunpack.c.l.b16 %v2759
    %v3995 = vunpack.c.h.b16 %v2759
    %v3996 = vunpack.c.l.b16 %v2760
    %v3997 = vunpack.c.h.b16 %v2760
    %v3998 = vunpack.c.l.b16 %v2761
    %v3999 = vunpack.c.h.b16 %v2761
    %v4000 = vunpack.c.l.b16 %v2762
    %v4001 = vunpack.c.h.b16 %v2762
    %v4002 = vunpack.c.l.b16 %v2763
    %v4003 = vunpack.c.h.b16 %v2763
    %v4004 = vunpack.c.l.b16 %v2764
    %v4005 = vunpack.c.h.b16 %v2764
    %v4006 = vunpack.c.l.b16 %v2765
    %v4007 = vunpack.c.h.b16 %v2765
    %v4008 = vunpack.c.l.b16 %v2766
    %v4009 = vunpack.c.h.b16 %v2766
    %v4010 = vunpack.c.l.b16 %v2767
    %v4011 = vunpack.c.h.b16 %v2767
    %v4012 = vunpack.c.l.b16 %v2768
    %v4013 = vunpack.c.h.b16 %v2768
    %v4014 = vunpack.c.l.b16 %v2769
    %v4015 = vunpack.c.h.b16 %v2769
    %v4016 = vunpack.c.l.b16 %v2770
    %v4017 = vunpack.c.h.b16 %v2770
    %v4018 = vunpack.c.l.b16 %v2771
    %v4019 = vunpack.c.h.b16 %v2771
    %v4020 = vunpack.c.l.b16 %v2772
    %v4021 = vunpack.c.h.b16 %v2772
    %v4022 = vunpack.c.l.b16 %v2773
    %v4023 = vunpack.c.h.b16 %v2773
    %v4024 = vunpack.c.l.b16 %v2774
    %v4025 = vunpack.c.h.b16 %v2774
    %v4026 = vunpack.c.l.b16 %v2775
    %v4027 = vunpack.c.h.b16 %v2775
    %v4028 = vunpack.c.l.b16 %v2776
    %v4029 = vunpack.c.h.b16 %v2776
    %v4030 = vunpack.c.l.b16 %v2777
    %v4031 = vunpack.c.h.b16 %v2777
    %v4032 = vunpack.c.l.b16 %v2778
    %v4033 = vunpack.c.h.b16 %v2778
    %v4034 = vunpack.c.l.b16 %v2779
    %v4035 = vunpack.c.h.b16 %v2779
    %v4036 = vunpack.c.l.b16 %v2780
    %v4037 = vunpack.c.h.b16 %v2780
    %v4038 = vunpack.c.l.b16 %v2781
    %v4039 = vunpack.c.h.b16 %v2781
    %v4040 = vunpack.c.l.b16 %v2782
    %v4041 = vunpack.c.h.b16 %v2782
    %v4042 = vunpack.c.l.b16 %v2783
    %v4043 = vunpack.c.h.b16 %v2783
    %v4044 = vunpack.c.l.b16 %v2784
    %v4045 = vunpack.c.h.b16 %v2784
    %v4046 = vunpack.c.l.b16 %v2785
    %v4047 = vunpack.c.h.b16 %v2785
    %v4048 = vunpack.c.l.b16 %v2786
    %v4049 = vunpack.c.h.b16 %v2786
    %v4050 = vunpack.c.l.b16 %v2787
    %v4051 = vunpack.c.h.b16 %v2787
    %v4052 = vunpack.c.l.b16 %v2788
    %v4053 = vunpack.c.h.b16 %v2788
    %v4054 = vunpack.c.l.b16 %v2789
    %v4055 = vunpack.c.h.b16 %v2789
    %v4056 = vunpack.c.l.b16 %v2790
    %v4057 = vunpack.c.h.b16 %v2790
    %v4058 = vunpack.c.l.b16 %v2791
    %v4059 = vunpack.c.h.b16 %v2791
    %v4060 = vunpack.c.l.b16 %v2792
    %v4061 = vunpack.c.h.b16 %v2792
    %v4062 = vunpack.c.l.b16 %v2793
    %v4063 = vunpack.c.h.b16 %v2793
    %v4064 = vunpack.c.l.b16 %v2794
    %v4065 = vunpack.c.h.b16 %v2794
    %v4066 = vunpack.c.l.b16 %v2795
    %v4067 = vunpack.c.h.b16 %v2795
    %v4068 = vunpack.c.l.b16 %v2796
    %v4069 = vunpack.c.h.b16 %v2796
    %v4070 = vunpack.c.l.b16 %v2797
    %v4071 = vunpack.c.h.b16 %v2797
    %v4072 = vunpack.c.l.b16 %v2798
    %v4073 = vunpack.c.h.b16 %v2798
    %v4074 = vunpack.c.l.b16 %v2799
    %v4075 = vunpack.c.h.b16 %v2799
    %v4076 = vunpack.c.l.b16 %v2800
    %v4077 = vunpack.c.h.b16 %v2800
    %v4078 = vunpack.c.l.b16 %v2801
    %v4079 = vunpack.c.h.b16 %v2801
    %v4080 = vunpack.c.l.b16 %v2802
    %v4081 = vunpack.c.h.b16 %v2802
    %v4082 = vunpack.c.l.b16 %v2803
    %v4083 = vunpack.c.h.b16 %v2803
    %v4084 = vunpack.c.l.b16 %v2804
    %v4085 = vunpack.c.h.b16 %v2804
    %v4086 = vunpack.c.l.b16 %v2805
    %v4087 = vunpack.c.h.b16 %v2805
    %v4088 = vunpack.c.l.b16 %v2806
    %v4089 = vunpack.c.h.b16 %v2806
    %v4090 = vunpack.c.l.b16 %v2807
    %v4091 = vunpack.c.h.b16 %v2807
    %v4092 = vunpack.c.l.b16 %v2808
    %v4093 = vunpack.c.h.b16 %v2808
    %v4094 = vunpack.c.l.b16 %v2809
    %v4095 = vunpack.c.h.b16 %v2809
    %v4096 = vunpack.c.l.b16 %v2810
    %v4097 = vunpack.c.h.b16 %v2810
    %v4098 = vunpack.c.l.b16 %v2811
    %v4099 = vunpack.c.h.b16 %v2811
    %v4100 = vunpack.c.l.b16 %v2812
    %v4101 = vunpack.c.h.b16 %v2812
    %v4102 = vunpack.c.l.b16 %v2813
    %v4103 = vunpack.c.h.b16 %v2813
    %v4104 = vunpack.c.l.b16 %v2814
    %v4105 = vunpack.c.h.b16 %v2814
    %v4106 = vunpack.c.l.b16 %v2815
    %v4107 = vunpack.c.h.b16 %v2815
    %v4108 = vunpack.c.l.b16 %v2816
    %v4109 = vunpack.c.h.b16 %v2816
    %v4110 = vunpack.c.l.b16 %v2817
    %v4111 = vunpack.c.h.b16 %v2817
    %v4112 = vunpack.c.l.b16 %v2818
    %v4113 = vunpack.c.h.b16 %v2818
    %v4114 = vunpack.c.l.b16 %v2819
    %v4115 = vunpack.c.h.b16 %v2819
    %v4116 = vunpack.c.l.b16 %v2820
    %v4117 = vunpack.c.h.b16 %v2820
    %v4118 = vunpack.c.l.b16 %v2821
    %v4119 = vunpack.c.h.b16 %v2821
    %v4120 = vunpack.c.l.b16 %v2822
    %v4121 = vunpack.c.h.b16 %v2822
    %v4122 = vunpack.c.l.b16 %v2823
    %v4123 = vunpack.c.h.b16 %v2823
    %v4124 = vunpack.c.l.b16 %v2824
    %v4125 = vunpack.c.h.b16 %v2824
    %v4126 = vunpack.c.l.b16 %v2825
    %v4127 = vunpack.c.h.b16 %v2825
    %v4128 = vunpack.c.l.b16 %v2826
    %v4129 = vunpack.c.h.b16 %v2826
    %v4130 = vunpack.c.l.b16 %v2827
    %v4131 = vunpack.c.h.b16 %v2827
    %v4132 = vunpack.c.l.b16 %v2828
    %v4133 = vunpack.c.h.b16 %v2828
    %v4134 = vunpack.c.l.b16 %v2829
    %v4135 = vunpack.c.h.b16 %v2829
    %v4136 = vunpack.c.l.b16 %v2830
    %v4137 = vunpack.c.h.b16 %v2830
    %v4138 = vunpack.c.l.b16 %v2831
    %v4139 = vunpack.c.h.b16 %v2831
    %v4140 = vunpack.c.l.b16 %v2832
    %v4141 = vunpack.c.h.b16 %v2832
    %v4142 = vunpack.c.l.b16 %v2833
    %v4143 = vunpack.c.h.b16 %v2833
    %v4144 = vunpack.c.l.b16 %v2834
    %v4145 = vunpack.c.h.b16 %v2834
    %v4146 = vunpack.c.l.b16 %v2835
    %v4147 = vunpack.c.h.b16 %v2835
    %v4148 = vunpack.c.l.b16 %v2836
    %v4149 = vunpack.c.h.b16 %v2836
    %v4150 = vunpack.c.l.b16 %v2837
    %v4151 = vunpack.c.h.b16 %v2837
    %v4152 = vunpack.c.l.b16 %v2838
    %v4153 = vunpack.c.h.b16 %v2838
    %v4154 = vunpack.c.l.b16 %v2839
    %v4155 = vunpack.c.h.b16 %v2839
    %v4156 = vunpack.c.l.b16 %v2840
    %v4157 = vunpack.c.h.b16 %v2840
    %v4158 = vunpack.c.l.b16 %v2841
    %v4159 = vunpack.c.h.b16 %v2841
    %v4160 = vunpack.c.l.b16 %v2842
    %v4161 = vunpack.c.h.b16 %v2842
    %v4162 = vunpack.c.l.b16 %v2843
    %v4163 = vunpack.c.h.b16 %v2843
    %v4164 = vunpack.c.l.b16 %v2844
    %v4165 = vunpack.c.h.b16 %v2844
    %v4166 = vunpack.c.l.b16 %v2845
    %v4167 = vunpack.c.h.b16 %v2845
    %v4168 = vunpack.c.l.b16 %v2846
    %v4169 = vunpack.c.h.b16 %v2846
    %v4170 = vunpack.c.l.b16 %v2847
    %v4171 = vunpack.c.h.b16 %v2847
    %v4172 = vunpack.c.l.b16 %v2848
    %v4173 = vunpack.c.h.b16 %v2848
    %v4174 = vunpack.c.l.b16 %v2849
    %v4175 = vunpack.c.h.b16 %v2849
    %v4176 = vunpack.c.l.b16 %v2850
    %v4177 = vunpack.c.h.b16 %v2850
    %v4178 = vunpack.c.l.b16 %v2851
    %v4179 = vunpack.c.h.b16 %v2851
    %v4180 = vunpack.c.l.b16 %v2852
    %v4181 = vunpack.c.h.b16 %v2852
    %v4182 = vunpack.c.l.b16 %v2853
    %v4183 = vunpack.c.h.b16 %v2853
    %v4184 = vunpack.c.l.b16 %v2854
    %v4185 = vunpack.c.h.b16 %v2854
    %v4186 = vunpack.c.l.b16 %v2855
    %v4187 = vunpack.c.h.b16 %v2855
    %v4188 = vunpack.c.l.b16 %v2856
    %v4189 = vunpack.c.h.b16 %v2856
    %v4190 = vunpack.c.l.b16 %v2857
    %v4191 = vunpack.c.h.b16 %v2857
    %v4192 = vunpack.c.l.b16 %v2858
    %v4193 = vunpack.c.h.b16 %v2858
    %v4194 = vunpack.c.l.b16 %v2859
    %v4195 = vunpack.c.h.b16 %v2859
    %v4196 = vunpack.c.l.b16 %v2860
    %v4197 = vunpack.c.h.b16 %v2860
    %v4198 = vunpack.c.l.b16 %v2861
    %v4199 = vunpack.c.h.b16 %v2861
    %v4200 = vunpack.c.l.b16 %v2862
    %v4201 = vunpack.c.h.b16 %v2862
    %v4202 = vunpack.c.l.b16 %v2863
    %v4203 = vunpack.c.h.b16 %v2863
    %v4204 = vunpack.c.l.b16 %v2864
    %v4205 = vunpack.c.h.b16 %v2864
    %v4206 = vunpack.c.l.b16 %v2865
    %v4207 = vunpack.c.h.b16 %v2865
    %v4208 = vunpack.c.l.b16 %v2866
    %v4209 = vunpack.c.h.b16 %v2866
    %v4210 = vunpack.c.l.b16 %v2867
    %v4211 = vunpack.c.h.b16 %v2867
    %v4212 = vunpack.c.l.b16 %v2868
    %v4213 = vunpack.c.h.b16 %v2868
    %v4214 = vunpack.c.l.b16 %v2869
    %v4215 = vunpack.c.h.b16 %v2869
    %v4216 = vunpack.c.l.b16 %v2870
    %v4217 = vunpack.c.h.b16 %v2870
    %v4218 = vunpack.c.l.b16 %v2871
    %v4219 = vunpack.c.h.b16 %v2871
    %v4220 = vunpack.c.l.b16 %v2872
    %v4221 = vunpack.c.h.b16 %v2872
    %v4222 = vunpack.c.l.b16 %v2873
    %v4223 = vunpack.c.h.b16 %v2873
    %v4224 = vunpack.c.l.b16 %v2874
    %v4225 = vunpack.c.h.b16 %v2874
    %v4226 = vunpack.c.l.b16 %v2875
    %v4227 = vunpack.c.h.b16 %v2875
    %v4228 = vunpack.c.l.b16 %v2876
    %v4229 = vunpack.c.h.b16 %v2876
    %v4230 = vunpack.c.l.b16 %v2877
    %v4231 = vunpack.c.h.b16 %v2877
    %v4232 = vunpack.c.l.b16 %v2878
    %v4233 = vunpack.c.h.b16 %v2878
    %v4234 = vunpack.c.l.b16 %v2879
    %v4235 = vunpack.c.h.b16 %v2879
    %v4236 = vunpack.c.l.b16 %v2880
    %v4237 = vunpack.c.h.b16 %v2880
    %v4238 = vunpack.c.l.b16 %v2881
    %v4239 = vunpack.c.h.b16 %v2881
    %v4240 = vunpack.c.l.b16 %v2882
    %v4241 = vunpack.c.h.b16 %v2882
    %v4242 = vunpack.c.l.b16 %v2883
    %v4243 = vunpack.c.h.b16 %v2883
    %v4244 = vunpack.c.l.b16 %v2884
    %v4245 = vunpack.c.h.b16 %v2884
    %v4246 = vunpack.c.l.b16 %v2885
    %v4247 = vunpack.c.h.b16 %v2885
    %v4248 = vunpack.c.l.b16 %v2886
    %v4249 = vunpack.c.h.b16 %v2886
    %v4250 = vunpack.c.l.b16 %v2887
    %v4251 = vunpack.c.h.b16 %v2887
    %v4252 = vunpack.c.l.b16 %v2888
    %v4253 = vunpack.c.h.b16 %v2888
    %v4254 = vunpack.c.l.b16 %v2889
    %v4255 = vunpack.c.h.b16 %v2889
    %v4256 = vunpack.c.l.b16 %v2890
    %v4257 = vunpack.c.h.b16 %v2890
    %v4258 = vunpack.c.l.b16 %v2891
    %v4259 = vunpack.c.h.b16 %v2891
    %v4260 = vunpack.c.l.b16 %v2892
    %v4261 = vunpack.c.h.b16 %v2892
    %v4262 = vunpack.c.l.b16 %v2893
    %v4263 = vunpack.c.h.b16 %v2893
    %v4264 = vunpack.c.l.b16 %v2894
    %v4265 = vunpack.c.h.b16 %v2894
    %v4266 = vunpack.c.l.b16 %v2895
    %v4267 = vunpack.c.h.b16 %v2895
    %v4268 = vunpack.c.l.b16 %v2896
    %v4269 = vunpack.c.h.b16 %v2896
    %v4270 = vunpack.c.l.b16 %v2897
    %v4271 = vunpack.c.h.b16 %v2897
    %v4272 = vunpack.c.l.b16 %v2898
    %v4273 = vunpack.c.h.b16 %v2898
    %v4274 = vunpack.c.l.b16 %v2899
    %v4275 = vunpack.c.h.b16 %v2899
    %v4276 = vunpack.c.l.b16 %v2900
    %v4277 = vunpack.c.h.b16 %v2900
    %v4278 = vunpack.c.l.b16 %v2901
    %v4279 = vunpack.c.h.b16 %v2901
    %v4280 = vunpack.c.l.b16 %v2902
    %v4281 = vunpack.c.h.b16 %v2902
    %v4282 = vunpack.c.l.b16 %v2903
    %v4283 = vunpack.c.h.b16 %v2903
    %v4284 = vunpack.c.l.b16 %v2904
    %v4285 = vunpack.c.h.b16 %v2904
    %v4286 = vunpack.c.l.b16 %v2905
    %v4287 = vunpack.c.h.b16 %v2905
    %v4288 = vunpack.c.l.b16 %v2906
    %v4289 = vunpack.c.h.b16 %v2906
    %v4290 = vunpack.c.l.b16 %v2907
    %v4291 = vunpack.c.h.b16 %v2907
    %v4292 = vunpack.c.l.b16 %v2908
    %v4293 = vunpack.c.h.b16 %v2908
    %v4294 = vunpack.c.l.b16 %v2909
    %v4295 = vunpack.c.h.b16 %v2909
    %v4296 = vunpack.c.l.b16 %v2910
    %v4297 = vunpack.c.h.b16 %v2910
    %v4298 = vunpack.c.l.b16 %v2911
    %v4299 = vunpack.c.h.b16 %v2911
    %v4300 = vunpack.c.l.b16 %v2912
    %v4301 = vunpack.c.h.b16 %v2912
    %v4302 = vunpack.c.l.b16 %v2913
    %v4303 = vunpack.c.h.b16 %v2913
    %v4304 = vunpack.c.l.b16 %v2914
    %v4305 = vunpack.c.h.b16 %v2914
    %v4306 = vunpack.c.l.b16 %v2915
    %v4307 = vunpack.c.h.b16 %v2915
    %v4308 = vunpack.c.l.b16 %v2916
    %v4309 = vunpack.c.h.b16 %v2916
    %v4310 = vunpack.c.l.b16 %v2917
    %v4311 = vunpack.c.h.b16 %v2917
    %v4312 = vunpack.c.l.b16 %v2918
    %v4313 = vunpack.c.h.b16 %v2918
    %v4314 = vunpack.c.l.b16 %v2919
    %v4315 = vunpack.c.h.b16 %v2919
    %v4316 = vunpack.c.l.b16 %v2920
    %v4317 = vunpack.c.h.b16 %v2920
    %v4318 = vunpack.c.l.b16 %v2921
    %v4319 = vunpack.c.h.b16 %v2921
    %v4320 = vunpack.c.l.b16 %v2922
    %v4321 = vunpack.c.h.b16 %v2922
    %v4322 = vunpack.c.l.b16 %v2923
    %v4323 = vunpack.c.h.b16 %v2923
    %v4324 = vunpack.c.l.b16 %v2924
    %v4325 = vunpack.c.h.b16 %v2924
    %v4326 = vunpack.c.l.b16 %v2925
    %v4327 = vunpack.c.h.b16 %v2925
    %v4328 = vunpack.c.l.b16 %v2926
    %v4329 = vunpack.c.h.b16 %v2926
    %v4330 = vunpack.c.l.b16 %v2927
    %v4331 = vunpack.c.h.b16 %v2927
    %v4332 = vunpack.c.l.b16 %v2928
    %v4333 = vunpack.c.h.b16 %v2928
    %v4334 = vunpack.c.l.b16 %v2929
    %v4335 = vunpack.c.h.b16 %v2929
    %v4336 = vunpack.c.l.b16 %v2930
    %v4337 = vunpack.c.h.b16 %v2930
    %v4338 = vunpack.c.l.b16 %v2931
    %v4339 = vunpack.c.h.b16 %v2931
    %v4340 = vunpack.c.l.b16 %v2932
    %v4341 = vunpack.c.h.b16 %v2932
    %v4342 = vunpack.c.l.b16 %v2933
    %v4343 = vunpack.c.h.b16 %v2933
    %v4344 = vunpack.c.l.b16 %v2934
    %v4345 = vunpack.c.h.b16 %v2934
    %v4346 = vunpack.c.l.b16 %v2935
    %v4347 = vunpack.c.h.b16 %v2935
    %v4348 = vunpack.c.l.b16 %v2936
    %v4349 = vunpack.c.h.b16 %v2936
    %v4350 = vunpack.c.l.b16 %v2937
    %v4351 = vunpack.c.h.b16 %v2937
    %v4352 = vunpack.c.l.b16 %v2938
    %v4353 = vunpack.c.h.b16 %v2938
    %v4354 = vunpack.c.l.b16 %v2939
    %v4355 = vunpack.c.h.b16 %v2939
    %v4356 = vunpack.c.l.b16 %v2940
    %v4357 = vunpack.c.h.b16 %v2940
    %v4358 = vunpack.c.l.b16 %v2941
    %v4359 = vunpack.c.h.b16 %v2941
    %v4360 = vunpack.c.l.b16 %v2942
    %v4361 = vunpack.c.h.b16 %v2942
    %v4362 = vunpack.c.l.b16 %v2943
    %v4363 = vunpack.c.h.b16 %v2943
    %v4364 = vunpack.c.l.b16 %v2944
    %v4365 = vunpack.c.h.b16 %v2944
    %v4366 = vunpack.c.l.b16 %v2945
    %v4367 = vunpack.c.h.b16 %v2945
    %v4368 = vunpack.c.l.b16 %v2946
    %v4369 = vunpack.c.h.b16 %v2946
    %v4370 = vunpack.c.l.b16 %v2947
    %v4371 = vunpack.c.h.b16 %v2947
    %v4372 = vunpack.c.l.b16 %v2948
    %v4373 = vunpack.c.h.b16 %v2948
    %v4374 = vunpack.c.l.b16 %v2949
    %v4375 = vunpack.c.h.b16 %v2949
    %v4376 = vunpack.c.l.b16 %v2950
    %v4377 = vunpack.c.h.b16 %v2950
    %v4378 = vunpack.c.l.b16 %v2951
    %v4379 = vunpack.c.h.b16 %v2951
    %v4380 = vunpack.c.l.b16 %v2952
    %v4381 = vunpack.c.h.b16 %v2952
    %v4382 = vunpack.c.l.b16 %v2953
    %v4383 = vunpack.c.h.b16 %v2953
    %v4384 = vunpack.c.l.b16 %v2954
    %v4385 = vunpack.c.h.b16 %v2954
    %v4386 = vunpack.c.l.b16 %v2955
    %v4387 = vunpack.c.h.b16 %v2955
    %v4388 = vunpack.c.l.b16 %v2956
    %v4389 = vunpack.c.h.b16 %v2956
    %v4390 = vunpack.c.l.b16 %v2957
    %v4391 = vunpack.c.h.b16 %v2957
    %v4392 = vunpack.c.l.b16 %v2958
    %v4393 = vunpack.c.h.b16 %v2958
    %v4394 = vunpack.c.l.b16 %v2959
    %v4395 = vunpack.c.h.b16 %v2959
    %v4396 = vunpack.c.l.b16 %v2960
    %v4397 = vunpack.c.h.b16 %v2960
    %v4398 = vunpack.c.l.b16 %v2961
    %v4399 = vunpack.c.h.b16 %v2961
    %v4400 = vunpack.c.l.b16 %v2962
    %v4401 = vunpack.c.h.b16 %v2962
    %v4402 = vunpack.c.l.b16 %v2963
    %v4403 = vunpack.c.h.b16 %v2963
    %v4404 = vunpack.c.l.b16 %v2964
    %v4405 = vunpack.c.h.b16 %v2964
    %v4406 = vunpack.c.l.b16 %v2965
    %v4407 = vunpack.c.h.b16 %v2965
    %v4408 = vunpack.c.l.b16 %v2966
    %v4409 = vunpack.c.h.b16 %v2966
    %v4410 = vunpack.c.l.b16 %v2967
    %v4411 = vunpack.c.h.b16 %v2967
    %v4412 = vunpack.c.l.b16 %v2968
    %v4413 = vunpack.c.h.b16 %v2968
    %v4414 = vunpack.c.l.b16 %v2969
    %v4415 = vunpack.c.h.b16 %v2969
    %v4416 = vunpack.c.l.b16 %v2970
    %v4417 = vunpack.c.h.b16 %v2970
    %v4418 = vunpack.c.l.b16 %v2971
    %v4419 = vunpack.c.h.b16 %v2971
    %v4420 = vunpack.c.l.b16 %v2972
    %v4421 = vunpack.c.h.b16 %v2972
    %v4422 = vunpack.c.l.b16 %v2973
    %v4423 = vunpack.c.h.b16 %v2973
    %v4424 = vunpack.c.l.b16 %v2974
    %v4425 = vunpack.c.h.b16 %v2974
    %v4426 = vunpack.c.l.b16 %v2975
    %v4427 = vunpack.c.h.b16 %v2975
    %v4428 = vunpack.c.l.b16 %v2976
    %v4429 = vunpack.c.h.b16 %v2976
    %v4430 = vunpack.c.l.b16 %v2977
    %v4431 = vunpack.c.h.b16 %v2977
    %v4432 = vunpack.c.l.b16 %v2978
    %v4433 = vunpack.c.h.b16 %v2978
    %v4434 = vunpack.c.l.b16 %v2979
    %v4435 = vunpack.c.h.b16 %v2979
    %v4436 = vunpack.c.l.b16 %v2980
    %v4437 = vunpack.c.h.b16 %v2980
    %v4438 = vunpack.c.l.b16 %v2981
    %v4439 = vunpack.c.h.b16 %v2981
    %v4440 = vunpack.c.l.b16 %v2982
    %v4441 = vunpack.c.h.b16 %v2982
    %v4442 = vunpack.c.l.b16 %v2983
    %v4443 = vunpack.c.h.b16 %v2983
    %v4444 = vunpack.c.l.b16 %v2984
    %v4445 = vunpack.c.h.b16 %v2984
    %v4446 = vunpack.c.l.b16 %v2985
    %v4447 = vunpack.c.h.b16 %v2985
    %v4448 = vunpack.c.l.b16 %v2986
    %v4449 = vunpack.c.h.b16 %v2986
    %v4450 = vunpack.c.l.b16 %v2987
    %v4451 = vunpack.c.h.b16 %v2987
    %v4452 = vunpack.c.l.b16 %v2988
    %v4453 = vunpack.c.h.b16 %v2988
    %v4454 = vunpack.c.l.b16 %v2989
    %v4455 = vunpack.c.h.b16 %v2989
    %v4456 = vunpack.c.l.b16 %v2990
    %v4457 = vunpack.c.h.b16 %v2990
    %v4458 = vunpack.c.l.b16 %v2991
    %v4459 = vunpack.c.h.b16 %v2991
    %v4460 = vunpack.c.l.b16 %v2992
    %v4461 = vunpack.c.h.b16 %v2992
    %v4462 = vunpack.c.l.b16 %v2993
    %v4463 = vunpack.c.h.b16 %v2993
    %v4464 = vunpack.c.l.b16 %v2994
    %v4465 = vunpack.c.h.b16 %v2994
    %v4466 = vunpack.c.l.b16 %v2995
    %v4467 = vunpack.c.h.b16 %v2995
    %v4468 = vunpack.c.l.b16 %v2996
    %v4469 = vunpack.c.h.b16 %v2996
    %v4470 = vunpack.c.l.b16 %v2997
    %v4471 = vunpack.c.h.b16 %v2997
    %v4472 = vunpack.c.l.b16 %v2998
    %v4473 = vunpack.c.h.b16 %v2998
    %v4474 = vunpack.c.l.b16 %v2999
    %v4475 = vunpack.c.h.b16 %v2999
    %v4476 = vunpack.c.l.b16 %v3000
    %v4477 = vunpack.c.h.b16 %v3000
    %v4478 = vunpack.c.l.b16 %v3001
    %v4479 = vunpack.c.h.b16 %v3001
    %v4480 = vunpack.c.l.b16 %v3002
    %v4481 = vunpack.c.h.b16 %v3002
    %v4482 = vunpack.c.l.b16 %v3003
    %v4483 = vunpack.c.h.b16 %v3003
    %v4484 = vunpack.c.l.b16 %v3004
    %v4485 = vunpack.c.h.b16 %v3004
    %v4486 = vunpack.c.l.b16 %v3005
    %v4487 = vunpack.c.h.b16 %v3005
    %v4488 = vunpack.c.l.b16 %v3006
    %v4489 = vunpack.c.h.b16 %v3006
    %v4490 = vunpack.c.l.b16 %v3007
    %v4491 = vunpack.c.h.b16 %v3007
    %v4492 = vunpack.c.l.b16 %v3008
    %v4493 = vunpack.c.h.b16 %v3008
    %v4494 = vunpack.c.l.b16 %v3009
    %v4495 = vunpack.c.h.b16 %v3009
    %v4496 = vunpack.c.l.b16 %v3010
    %v4497 = vunpack.c.h.b16 %v3010
    %v4498 = vunpack.c.l.b16 %v3011
    %v4499 = vunpack.c.h.b16 %v3011
    %v4500 = vunpack.c.l.b16 %v3012
    %v4501 = vunpack.c.h.b16 %v3012
    %v4502 = vunpack.c.l.b16 %v3013
    %v4503 = vunpack.c.h.b16 %v3013
    %v4504 = vunpack.c.l.b16 %v3014
    %v4505 = vunpack.c.h.b16 %v3014
    %v4506 = vunpack.c.l.b16 %v3015
    %v4507 = vunpack.c.h.b16 %v3015
    %v4508 = vunpack.c.l.b16 %v3016
    %v4509 = vunpack.c.h.b16 %v3016
    %v4510 = vunpack.c.l.b16 %v3017
    %v4511 = vunpack.c.h.b16 %v3017
    %v4512 = vunpack.c.l.b16 %v3018
    %v4513 = vunpack.c.h.b16 %v3018
    %v4514 = vunpack.c.l.b16 %v3019
    %v4515 = vunpack.c.h.b16 %v3019
    %v4516 = vunpack.c.l.b16 %v3020
    %v4517 = vunpack.c.h.b16 %v3020
    %v4518 = vunpack.c.l.b16 %v3021
    %v4519 = vunpack.c.h.b16 %v3021
    %v4520 = vunpack.c.l.b16 %v3022
    %v4521 = vunpack.c.h.b16 %v3022
    %v4522 = vunpack.c.l.b16 %v3023
    %v4523 = vunpack.c.h.b16 %v3023
    %v4524 = vunpack.c.l.b16 %v3024
    %v4525 = vunpack.c.h.b16 %v3024
    %v4526 = vunpack.c.l.b16 %v3025
    %v4527 = vunpack.c.h.b16 %v3025
    %v4528 = vunpack.c.l.b16 %v3026
    %v4529 = vunpack.c.h.b16 %v3026
    %v4530 = vunpack.c.l.b16 %v3027
    %v4531 = vunpack.c.h.b16 %v3027
    %v4532 = vunpack.c.l.b16 %v3028
    %v4533 = vunpack.c.h.b16 %v3028
    %v4534 = vunpack.c.l.b16 %v3029
    %v4535 = vunpack.c.h.b16 %v3029
    %v4536 = vunpack.c.l.b16 %v3030
    %v4537 = vunpack.c.h.b16 %v3030
    %v4538 = vunpack.c.l.b16 %v3031
    %v4539 = vunpack.c.h.b16 %v3031
    %v4540 = vunpack.c.l.b16 %v3032
    %v4541 = vunpack.c.h.b16 %v3032
    %v4542 = vunpack.c.l.b16 %v3033
    %v4543 = vunpack.c.h.b16 %v3033
    %v4544 = vunpack.c.l.b16 %v3034
    %v4545 = vunpack.c.h.b16 %v3034
    %v4546 = vunpack.c.l.b16 %v3035
    %v4547 = vunpack.c.h.b16 %v3035
    %v4548 = vunpack.c.l.b16 %v3036
    %v4549 = vunpack.c.h.b16 %v3036
    %v4550 = vunpack.c.l.b16 %v3037
    %v4551 = vunpack.c.h.b16 %v3037
    %v4552 = vunpack.c.l.b16 %v3038
    %v4553 = vunpack.c.h.b16 %v3038
    %v4554 = vunpack.c.l.b16 %v3039
    %v4555 = vunpack.c.h.b16 %v3039
    %v4556 = vunpack.c.l.b16 %v3040
    %v4557 = vunpack.c.h.b16 %v3040
    %v4558 = vunpack.c.l.b16 %v3041
    %v4559 = vunpack.c.h.b16 %v3041
    %v4560 = vunpack.c.l.b16 %v3042
    %v4561 = vunpack.c.h.b16 %v3042
    %v4562 = vunpack.c.l.b16 %v3043
    %v4563 = vunpack.c.h.b16 %v3043
    %v4564 = vunpack.c.l.b16 %v3044
    %v4565 = vunpack.c.h.b16 %v3044
    %v4566 = vunpack.c.l.b16 %v3045
    %v4567 = vunpack.c.h.b16 %v3045
    %v4568 = vunpack.c.l.b16 %v3046
    %v4569 = vunpack.c.h.b16 %v3046
    %v4570 = vunpack.c.l.b16 %v3047
    %v4571 = vunpack.c.h.b16 %v3047
    %v4572 = vunpack.c.l.b16 %v3048
    %v4573 = vunpack.c.h.b16 %v3048
    %v4574 = vunpack.c.l.b16 %v3049
    %v4575 = vunpack.c.h.b16 %v3049
    %v4576 = vunpack.c.l.b16 %v3050
    %v4577 = vunpack.c.h.b16 %v3050
    %v4578 = vunpack.c.l.b16 %v3051
    %v4579 = vunpack.c.h.b16 %v3051
    %v4580 = vunpack.c.l.b16 %v3052
    %v4581 = vunpack.c.h.b16 %v3052
    %v4582 = vunpack.c.l.b16 %v3053
    %v4583 = vunpack.c.h.b16 %v3053
    %v4584 = vunpack.c.l.b16 %v3054
    %v4585 = vunpack.c.h.b16 %v3054
    %v4586 = vunpack.c.l.b16 %v3055
    %v4587 = vunpack.c.h.b16 %v3055
    %v4588 = vunpack.c.l.b16 %v3056
    %v4589 = vunpack.c.h.b16 %v3056
    %v4590 = vunpack.c.l.b16 %v3057
    %v4591 = vunpack.c.h.b16 %v3057
    %v4592 = vunpack.c.l.b16 %v3058
    %v4593 = vunpack.c.h.b16 %v3058
    %v4594 = vunpack.c.l.b16 %v3059
    %v4595 = vunpack.c.h.b16 %v3059
    %v4596 = vunpack.c.l.b16 %v3060
    %v4597 = vunpack.c.h.b16 %v3060
    %v4598 = vunpack.c.l.b16 %v3061
    %v4599 = vunpack.c.h.b16 %v3061
    %v4600 = vunpack.c.l.b16 %v3062
    %v4601 = vunpack.c.h.b16 %v3062
    %v4602 = vunpack.c.l.b16 %v3063
    %v4603 = vunpack.c.h.b16 %v3063
    %v4604 = vunpack.c.l.b16 %v3064
    %v4605 = vunpack.c.h.b16 %v3064
    %v4606 = vunpack.c.l.b16 %v3065
    %v4607 = vunpack.c.h.b16 %v3065
    %v4608 = vunpack.c.l.b16 %v3066
    %v4609 = vunpack.c.h.b16 %v3066
    %v4610 = vunpack.c.l.b16 %v3067
    %v4611 = vunpack.c.h.b16 %v3067
    %v4612 = vunpack.c.l.b16 %v3068
    %v4613 = vunpack.c.h.b16 %v3068
    %v4614 = vunpack.c.l.b16 %v3069
    %v4615 = vunpack.c.h.b16 %v3069
    %v4616 = vunpack.c.l.b16 %v3070
    %v4617 = vunpack.c.h.b16 %v3070
    %v4618 = vunpack.c.l.b16 %v3071
    %v4619 = vunpack.c.h.b16 %v3071
    %v4620 = vunpack.c.l.b16 %v3072
    %v4621 = vunpack.c.h.b16 %v3072
    %v4622 = vunpack.c.l.b16 %v3073
    %v4623 = vunpack.c.h.b16 %v3073
    %v4624 = vunpack.c.l.b16 %v3074
    %v4625 = vunpack.c.h.b16 %v3074
    %v4626 = vunpack.c.l.b16 %v3075
    %v4627 = vunpack.c.h.b16 %v3075
    %v4628 = vunpack.c.l.b16 %v3076
    %v4629 = vunpack.c.h.b16 %v3076
    %v4630 = vunpack.c.l.b16 %v3077
    %v4631 = vunpack.c.h.b16 %v3077
    %v4632 = vunpack.c.l.b16 %v3078
    %v4633 = vunpack.c.h.b16 %v3078
    %v4634 = vunpack.c.l.b16 %v3079
    %v4635 = vunpack.c.h.b16 %v3079
    %v4636 = vunpack.c.l.b16 %v3080
    %v4637 = vunpack.c.h.b16 %v3080
    %v4638 = vunpack.c.l.b16 %v3081
    %v4639 = vunpack.c.h.b16 %v3081
    %v4640 = vunpack.c.l.b16 %v3082
    %v4641 = vunpack.c.h.b16 %v3082
    %v4642 = vunpack.c.l.b16 %v3083
    %v4643 = vunpack.c.h.b16 %v3083
    %v4644 = vunpack.c.l.b16 %v3084
    %v4645 = vunpack.c.h.b16 %v3084
    %v4646 = vunpack.c.l.b16 %v3085
    %v4647 = vunpack.c.h.b16 %v3085
    %v4648 = vunpack.c.l.b16 %v3086
    %v4649 = vunpack.c.h.b16 %v3086
    %v4650 = vunpack.c.l.b16 %v3087
    %v4651 = vunpack.c.h.b16 %v3087
    %v4652 = vunpack.c.l.b16 %v3088
    %v4653 = vunpack.c.h.b16 %v3088
    %v4654 = vunpack.c.l.b16 %v3089
    %v4655 = vunpack.c.h.b16 %v3089
    %v4656 = vunpack.c.l.b16 %v3090
    %v4657 = vunpack.c.h.b16 %v3090
    %v4658 = vunpack.c.l.b16 %v3091
    %v4659 = vunpack.c.h.b16 %v3091
    %v4660 = vunpack.c.l.b16 %v3092
    %v4661 = vunpack.c.h.b16 %v3092
    %v4662 = vunpack.c.l.b16 %v3093
    %v4663 = vunpack.c.h.b16 %v3093
    %v4664 = vunpack.c.l.b16 %v3094
    %v4665 = vunpack.c.h.b16 %v3094
    %v4666 = vunpack.c.l.b16 %v3095
    %v4667 = vunpack.c.h.b16 %v3095
    %v4668 = vunpack.c.l.b16 %v3096
    %v4669 = vunpack.c.h.b16 %v3096
    %v4670 = vunpack.c.l.b16 %v3097
    %v4671 = vunpack.c.h.b16 %v3097
    %v4672 = vunpack.c.l.b16 %v3098
    %v4673 = vunpack.c.h.b16 %v3098
    %v4674 = vunpack.c.l.b16 %v3099
    %v4675 = vunpack.c.h.b16 %v3099
    %v4676 = vunpack.c.l.b16 %v3100
    %v4677 = vunpack.c.h.b16 %v3100
    %v4678 = vunpack.c.l.b16 %v3101
    %v4679 = vunpack.c.h.b16 %v3101
    %v4680 = vunpack.c.l.b16 %v3102
    %v4681 = vunpack.c.h.b16 %v3102
    %v4682 = vunpack.c.l.b16 %v3103
    %v4683 = vunpack.c.h.b16 %v3103
    %v4684 = vunpack.c.l.b16 %v3104
    %v4685 = vunpack.c.h.b16 %v3104
    %v4686 = vunpack.c.l.b16 %v3105
    %v4687 = vunpack.c.h.b16 %v3105
    %v4688 = vunpack.c.l.b16 %v3106
    %v4689 = vunpack.c.h.b16 %v3106
    %v4690 = vunpack.c.l.b16 %v3107
    %v4691 = vunpack.c.h.b16 %v3107
    %v4692 = vunpack.c.l.b16 %v3108
    %v4693 = vunpack.c.h.b16 %v3108
    %v4694 = vunpack.c.l.b16 %v3109
    %v4695 = vunpack.c.h.b16 %v3109
    %v4696 = vunpack.c.l.b16 %v3110
    %v4697 = vunpack.c.h.b16 %v3110
    %v4698 = vunpack.c.l.b16 %v3111
    %v4699 = vunpack.c.h.b16 %v3111
    %v4700 = vunpack.c.l.b16 %v3112
    %v4701 = vunpack.c.h.b16 %v3112
    %v4702 = vunpack.c.l.b16 %v3113
    %v4703 = vunpack.c.h.b16 %v3113
    %v4704 = vunpack.c.l.b16 %v3114
    %v4705 = vunpack.c.h.b16 %v3114
    %v4706 = vunpack.c.l.b16 %v3115
    %v4707 = vunpack.c.h.b16 %v3115
    %v4708 = vunpack.c.l.b16 %v3116
    %v4709 = vunpack.c.h.b16 %v3116
    %v4710 = vunpack.c.l.b16 %v3117
    %v4711 = vunpack.c.h.b16 %v3117
    %v4712 = vunpack.c.l.b16 %v3118
    %v4713 = vunpack.c.h.b16 %v3118
    %v4714 = vunpack.c.l.b16 %v3119
    %v4715 = vunpack.c.h.b16 %v3119
    %v4716 = vunpack.c.l.b16 %v3120
    %v4717 = vunpack.c.h.b16 %v3120
    %v4718 = vunpack.c.l.b16 %v3121
    %v4719 = vunpack.c.h.b16 %v3121
    %v4720 = vunpack.c.l.b16 %v3122
    %v4721 = vunpack.c.h.b16 %v3122
    %v4722 = vunpack.c.l.b16 %v3123
    %v4723 = vunpack.c.h.b16 %v3123
    %v4724 = vunpack.c.l.b16 %v3124
    %v4725 = vunpack.c.h.b16 %v3124
    %v4726 = vunpack.c.l.b16 %v3125
    %v4727 = vunpack.c.h.b16 %v3125
    %v4728 = vunpack.c.l.b16 %v3126
    %v4729 = vunpack.c.h.b16 %v3126
    %v4730 = vunpack.c.l.b16 %v3127
    %v4731 = vunpack.c.h.b16 %v3127
    %v4732 = vunpack.c.l.b16 %v3128
    %v4733 = vunpack.c.h.b16 %v3128
    %v4734 = vunpack.c.l.b16 %v3129
    %v4735 = vunpack.c.h.b16 %v3129
    %v4736 = vunpack.c.l.b16 %v3130
    %v4737 = vunpack.c.h.b16 %v3130
    %v4738 = vunpack.c.l.b16 %v3131
    %v4739 = vunpack.c.h.b16 %v3131
    %v4740 = vunpack.c.l.b16 %v3132
    %v4741 = vunpack.c.h.b16 %v3132
    %v4742 = vunpack.c.l.b16 %v3133
    %v4743 = vunpack.c.h.b16 %v3133
    %v4744 = vunpack.c.l.b16 %v3134
    %v4745 = vunpack.c.h.b16 %v3134
    %v4746 = vunpack.c.l.b16 %v3135
    %v4747 = vunpack.c.h.b16 %v3135
    %v4748 = vunpack.c.l.b16 %v3136
    %v4749 = vunpack.c.h.b16 %v3136
    %v4750 = vunpack.c.l.b16 %v3137
    %v4751 = vunpack.c.h.b16 %v3137
    %v4752 = vunpack.c.l.b16 %v3138
    %v4753 = vunpack.c.h.b16 %v3138
    %v4754 = vunpack.c.l.b16 %v3139
    %v4755 = vunpack.c.h.b16 %v3139
    %v4756 = vunpack.c.l.b16 %v3140
    %v4757 = vunpack.c.h.b16 %v3140
    %v4758 = vunpack.c.l.b16 %v3141
    %v4759 = vunpack.c.h.b16 %v3141
    %v4760 = vunpack.c.l.b16 %v3142
    %v4761 = vunpack.c.h.b16 %v3142
    %v4762 = vunpack.c.l.b16 %v3143
    %v4763 = vunpack.c.h.b16 %v3143
    %v4764 = vunpack.c.l.b16 %v3144
    %v4765 = vunpack.c.h.b16 %v3144
    %v4766 = vunpack.c.l.b16 %v3145
    %v4767 = vunpack.c.h.b16 %v3145
    %v4768 = vunpack.c.l.b16 %v3146
    %v4769 = vunpack.c.h.b16 %v3146
    %v4770 = vunpack.c.l.b16 %v3147
    %v4771 = vunpack.c.h.b16 %v3147
    %v4772 = vunpack.c.l.b16 %v3148
    %v4773 = vunpack.c.h.b16 %v3148
    %v4774 = vunpack.c.l.b16 %v3149
    %v4775 = vunpack.c.h.b16 %v3149
    %v4776 = vunpack.c.l.b16 %v3150
    %v4777 = vunpack.c.h.b16 %v3150
    %v4778 = vunpack.c.l.b16 %v3151
    %v4779 = vunpack.c.h.b16 %v3151
    %v4780 = vunpack.c.l.b16 %v3152
    %v4781 = vunpack.c.h.b16 %v3152
    %v4782 = vunpack.c.l.b16 %v3153
    %v4783 = vunpack.c.h.b16 %v3153
    %v4784 = vunpack.c.l.b16 %v3154
    %v4785 = vunpack.c.h.b16 %v3154
    %v4786 = vunpack.c.l.b16 %v3155
    %v4787 = vunpack.c.h.b16 %v3155
    %v4788 = vunpack.c.l.b16 %v3156
    %v4789 = vunpack.c.h.b16 %v3156
    %v4790 = vunpack.c.l.b16 %v3157
    %v4791 = vunpack.c.h.b16 %v3157
    %v4792 = vunpack.c.l.b16 %v3158
    %v4793 = vunpack.c.h.b16 %v3158
    %v4794 = vunpack.c.l.b16 %v3159
    %v4795 = vunpack.c.h.b16 %v3159
    %v4796 = vunpack.c.l.b16 %v3160
    %v4797 = vunpack.c.h.b16 %v3160
    %v4798 = vunpack.c.l.b16 %v3161
    %v4799 = vunpack.c.h.b16 %v3161
    %v4800 = vunpack.c.l.b16 %v3162
    %v4801 = vunpack.c.h.b16 %v3162
    %v4802 = vunpack.c.l.b16 %v3163
    %v4803 = vunpack.c.h.b16 %v3163
    %v4804 = vunpack.c.l.b16 %v3164
    %v4805 = vunpack.c.h.b16 %v3164
    %v4806 = vunpack.c.l.b16 %v3165
    %v4807 = vunpack.c.h.b16 %v3165
    %v4808 = vunpack.c.l.b16 %v3166
    %v4809 = vunpack.c.h.b16 %v3166
    %v4810 = vunpack.c.l.b16 %v3167
    %v4811 = vunpack.c.h.b16 %v3167
    %v4812 = vunpack.c.l.b16 %v3168
    %v4813 = vunpack.c.h.b16 %v3168
    %v4814 = vunpack.c.l.b16 %v3169
    %v4815 = vunpack.c.h.b16 %v3169
    %v4816 = vunpack.c.l.b16 %v3170
    %v4817 = vunpack.c.h.b16 %v3170
    %v4818 = vunpack.c.l.b16 %v3171
    %v4819 = vunpack.c.h.b16 %v3171
    %v4820 = vunpack.c.l.b16 %v3172
    %v4821 = vunpack.c.h.b16 %v3172
    %v4822 = vunpack.c.l.b16 %v3173
    %v4823 = vunpack.c.h.b16 %v3173
    %v4824 = vunpack.c.l.b16 %v3174
    %v4825 = vunpack.c.h.b16 %v3174
    %v4826 = vunpack.c.l.b16 %v3175
    %v4827 = vunpack.c.h.b16 %v3175
    %v4828 = vunpack.c.l.b16 %v3176
    %v4829 = vunpack.c.h.b16 %v3176
    %v4830 = vunpack.c.l.b16 %v3177
    %v4831 = vunpack.c.h.b16 %v3177
    %v4832 = vunpack.c.l.b16 %v3178
    %v4833 = vunpack.c.h.b16 %v3178
    %v4834 = vunpack.c.l.b16 %v3179
    %v4835 = vunpack.c.h.b16 %v3179
    %v4836 = vunpack.c.l.b16 %v3180
    %v4837 = vunpack.c.h.b16 %v3180
    %v4838 = vunpack.c.l.b16 %v3181
    %v4839 = vunpack.c.h.b16 %v3181
    %v4840 = vunpack.c.l.b16 %v3182
    %v4841 = vunpack.c.h.b16 %v3182
    %v4842 = vunpack.c.l.b16 %v3183
    %v4843 = vunpack.c.h.b16 %v3183
    %v4844 = vunpack.c.l.b16 %v3184
    %v4845 = vunpack.c.h.b16 %v3184
    %v4846 = vunpack.c.l.b16 %v3185
    %v4847 = vunpack.c.h.b16 %v3185
    %v4848 = vunpack.c.l.b16 %v3186
    %v4849 = vunpack.c.h.b16 %v3186
    %v4850 = vunpack.c.l.b16 %v3187
    %v4851 = vunpack.c.h.b16 %v3187
    %v4852 = vunpack.c.l.b16 %v3188
    %v4853 = vunpack.c.h.b16 %v3188
    %v4854 = vunpack.c.l.b16 %v3189
    %v4855 = vunpack.c.h.b16 %v3189
    %v4856 = vunpack.c.l.b16 %v3190
    %v4857 = vunpack.c.h.b16 %v3190
    %v4858 = vunpack.c.l.b16 %v3191
    %v4859 = vunpack.c.h.b16 %v3191
    %v4860 = vunpack.c.l.b16 %v3192
    %v4861 = vunpack.c.h.b16 %v3192
    %v4862 = vunpack.c.l.b16 %v3193
    %v4863 = vunpack.c.h.b16 %v3193
    %v4864 = vunpack.c.l.b16 %v3194
    %v4865 = vunpack.c.h.b16 %v3194
    %v4866 = vunpack.c.l.b16 %v3195
    %v4867 = vunpack.c.h.b16 %v3195
    %v4868 = vunpack.c.l.b16 %v3196
    %v4869 = vunpack.c.h.b16 %v3196
    %v4870 = vunpack.c.l.b16 %v3197
    %v4871 = vunpack.c.h.b16 %v3197
    %v4872 = vunpack.c.l.b16 %v3198
    %v4873 = vunpack.c.h.b16 %v3198
    %v4874 = vunpack.c.l.b16 %v3199
    %v4875 = vunpack.c.h.b16 %v3199
    %v4876 = vunpack.c.l.b16 %v3200
    %v4877 = vunpack.c.h.b16 %v3200
    %v4878 = vunpack.c.l.b16 %v3201
    %v4879 = vunpack.c.h.b16 %v3201
    %v4880 = vunpack.c.l.b16 %v3202
    %v4881 = vunpack.c.h.b16 %v3202
    %v4882 = vunpack.c.l.b16 %v3203
    %v4883 = vunpack.c.h.b16 %v3203
    %v4884 = vunpack.c.l.b16 %v3204
    %v4885 = vunpack.c.h.b16 %v3204
    %v4886 = vunpack.c.l.b16 %v3205
    %v4887 = vunpack.c.h.b16 %v3205
    %v4888 = vunpack.c.l.b16 %v3206
    %v4889 = vunpack.c.h.b16 %v3206
    %v4890 = vunpack.c.l.b16 %v3207
    %v4891 = vunpack.c.h.b16 %v3207
    %v4892 = vunpack.c.l.b16 %v3208
    %v4893 = vunpack.c.h.b16 %v3208
    %v4894 = vpack.c.b16 %v3878, %v3870
    %v4895 = vpack.c.b16 %v3879, %v3871
    %v4896 = vpack.c.b16 %v3880, %v3872
    %v4897 = vpack.c.b16 %v3881, %v3873
    %v4898 = vpack.c.b16 %v3882, %v3874
    %v4899 = vpack.c.b16 %v3883, %v3875
    %v4900 = vpack.c.b16 %v3884, %v3876
    %v4901 = vpack.c.b16 %v3885, %v3877
    %v4902 = vpack.c.b16 %v3894, %v3886
    %v4903 = vpack.c.b16 %v3895, %v3887
    %v4904 = vpack.c.b16 %v3896, %v3888
    %v4905 = vpack.c.b16 %v3897, %v3889
    %v4906 = vpack.c.b16 %v3898, %v3890
    %v4907 = vpack.c.b16 %v3899, %v3891
    %v4908 = vpack.c.b16 %v3900, %v3892
    %v4909 = vpack.c.b16 %v3901, %v3893
    %v4910 = vpack.c.b16 %v3910, %v3902
    %v4911 = vpack.c.b16 %v3911, %v3903
    %v4912 = vpack.c.b16 %v3912, %v3904
    %v4913 = vpack.c.b16 %v3913, %v3905
    %v4914 = vpack.c.b16 %v3914, %v3906
    %v4915 = vpack.c.b16 %v3915, %v3907
    %v4916 = vpack.c.b16 %v3916, %v3908
    %v4917 = vpack.c.b16 %v3917, %v3909
    %v4918 = vpack.c.b16 %v3926, %v3918
    %v4919 = vpack.c.b16 %v3927, %v3919
    %v4920 = vpack.c.b16 %v3928, %v3920
    %v4921 = vpack.c.b16 %v3929, %v3921
    %v4922 = vpack.c.b16 %v3930, %v3922
    %v4923 = vpack.c.b16 %v3931, %v3923
    %v4924 = vpack.c.b16 %v3932, %v3924
    %v4925 = vpack.c.b16 %v3933, %v3925
    %v4926 = vpack.c.b16 %v3942, %v3934
    %v4927 = vpack.c.b16 %v3943, %v3935
    %v4928 = vpack.c.b16 %v3944, %v3936
    %v4929 = vpack.c.b16 %v3945, %v3937
    %v4930 = vpack.c.b16 %v3946, %v3938
    %v4931 = vpack.c.b16 %v3947, %v3939
    %v4932 = vpack.c.b16 %v3948, %v3940
    %v4933 = vpack.c.b16 %v3949, %v3941
    %v4934 = vpack.c.b16 %v3958, %v3950
    %v4935 = vpack.c.b16 %v3959, %v3951
    %v4936 = vpack.c.b16 %v3960, %v3952
    %v4937 = vpack.c.b16 %v3961, %v3953
    %v4938 = vpack.c.b16 %v3962, %v3954
    %v4939 = vpack.c.b16 %v3963, %v3955
    %v4940 = vpack.c.b16 %v3964, %v3956
    %v4941 = vpack.c.b16 %v3965, %v3957
    %v4942 = vpack.c.b16 %v3974, %v3966
    %v4943 = vpack.c.b16 %v3975, %v3967
    %v4944 = vpack.c.b16 %v3976, %v3968
    %v4945 = vpack.c.b16 %v3977, %v3969
    %v4946 = vpack.c.b16 %v3978, %v3970
    %v4947 = vpack.c.b16 %v3979, %v3971
    %v4948 = vpack.c.b16 %v3980, %v3972
    %v4949 = vpack.c.b16 %v3981, %v3973
    %v4950 = vpack.c.b16 %v3990, %v3982
    %v4951 = vpack.c.b16 %v3991, %v3983
    %v4952 = vpack.c.b16 %v3992, %v3984
    %v4953 = vpack.c.b16 %v3993, %v3985
    %v4954 = vpack.c.b16 %v3994, %v3986
    %v4955 = vpack.c.b16 %v3995, %v3987
    %v4956 = vpack.c.b16 %v3996, %v3988
    %v4957 = vpack.c.b16 %v3997, %v3989
    %v4958 = vpack.c.b16 %v4006, %v3998
    %v4959 = vpack.c.b16 %v4007, %v3999
    %v4960 = vpack.c.b16 %v4008, %v4000
    %v4961 = vpack.c.b16 %v4009, %v4001
    %v4962 = vpack.c.b16 %v4010, %v4002
    %v4963 = vpack.c.b16 %v4011, %v4003
    %v4964 = vpack.c.b16 %v4012, %v4004
    %v4965 = vpack.c.b16 %v4013, %v4005
    %v4966 = vpack.c.b16 %v4022, %v4014
    %v4967 = vpack.c.b16 %v4023, %v4015
    %v4968 = vpack.c.b16 %v4024, %v4016
    %v4969 = vpack.c.b16 %v4025, %v4017
    %v4970 = vpack.c.b16 %v4026, %v4018
    %v4971 = vpack.c.b16 %v4027, %v4019
    %v4972 = vpack.c.b16 %v4028, %v4020
    %v4973 = vpack.c.b16 %v4029, %v4021
    %v4974 = vpack.c.b16 %v4038, %v4030
    %v4975 = vpack.c.b16 %v4039, %v4031
    %v4976 = vpack.c.b16 %v4040, %v4032
    %v4977 = vpack.c.b16 %v4041, %v4033
    %v4978 = vpack.c.b16 %v4042, %v4034
    %v4979 = vpack.c.b16 %v4043, %v4035
    %v4980 = vpack.c.b16 %v4044, %v4036
    %v4981 = vpack.c.b16 %v4045, %v4037
    %v4982 = vpack.c.b16 %v4054, %v4046
    %v4983 = vpack.c.b16 %v4055, %v4047
    %v4984 = vpack.c.b16 %v4056, %v4048
    %v4985 = vpack.c.b16 %v4057, %v4049
    %v4986 = vpack.c.b16 %v4058, %v4050
    %v4987 = vpack.c.b16 %v4059, %v4051
    %v4988 = vpack.c.b16 %v4060, %v4052
    %v4989 = vpack.c.b16 %v4061, %v4053
    %v4990 = vpack.c.b16 %v4070, %v4062
    %v4991 = vpack.c.b16 %v4071, %v4063
    %v4992 = vpack.c.b16 %v4072, %v4064
    %v4993 = vpack.c.b16 %v4073, %v4065
    %v4994 = vpack.c.b16 %v4074, %v4066
    %v4995 = vpack.c.b16 %v4075, %v4067
    %v4996 = vpack.c.b16 %v4076, %v4068
    %v4997 = vpack.c.b16 %v4077, %v4069
    %v4998 = vpack.c.b16 %v4086, %v4078
    %v4999 = vpack.c.b16 %v4087, %v4079
    %v5000 = vpack.c.b16 %v4088, %v4080
    %v5001 = vpack.c.b16 %v4089, %v4081
    %v5002 = vpack.c.b16 %v4090, %v4082
    %v5003 = vpack.c.b16 %v4091, %v4083
    %v5004 = vpack.c.b16 %v4092, %v4084
    %v5005 = vpack.c.b16 %v4093, %v4085
    %v5006 = vpack.c.b16 %v4102, %v4094
    %v5007 = vpack.c.b16 %v4103, %v4095
    %v5008 = vpack.c.b16 %v4104, %v4096
    %v5009 = vpack.c.b16 %v4105, %v4097
    %v5010 = vpack.c.b16 %v4106, %v4098
    %v5011 = vpack.c.b16 %v4107, %v4099
    %v5012 = vpack.c.b16 %v4108, %v4100
    %v5013 = vpack.c.b16 %v4109, %v4101
    %v5014 = vpack.c.b16 %v4118, %v4110
    %v5015 = vpack.c.b16 %v4119, %v4111
    %v5016 = vpack.c.b16 %v4120, %v4112
    %v5017 = vpack.c.b16 %v4121, %v4113
    %v5018 = vpack.c.b16 %v4122, %v4114
    %v5019 = vpack.c.b16 %v4123, %v4115
    %v5020 = vpack.c.b16 %v4124, %v4116
    %v5021 = vpack.c.b16 %v4125, %v4117
    %v5022 = vpack.c.b16 %v4134, %v4126
    %v5023 = vpack.c.b16 %v4135, %v4127
    %v5024 = vpack.c.b16 %v4136, %v4128
    %v5025 = vpack.c.b16 %v4137, %v4129
    %v5026 = vpack.c.b16 %v4138, %v4130
    %v5027 = vpack.c.b16 %v4139, %v4131
    %v5028 = vpack.c.b16 %v4140, %v4132
    %v5029 = vpack.c.b16 %v4141, %v4133
    %v5030 = vpack.c.b16 %v4150, %v4142
    %v5031 = vpack.c.b16 %v4151, %v4143
    %v5032 = vpack.c.b16 %v4152, %v4144
    %v5033 = vpack.c.b16 %v4153, %v4145
    %v5034 = vpack.c.b16 %v4154, %v4146
    %v5035 = vpack.c.b16 %v4155, %v4147
    %v5036 = vpack.c.b16 %v4156, %v4148
    %v5037 = vpack.c.b16 %v4157, %v4149
    %v5038 = vpack.c.b16 %v4166, %v4158
    %v5039 = vpack.c.b16 %v4167, %v4159
    %v5040 = vpack.c.b16 %v4168, %v4160
    %v5041 = vpack.c.b16 %v4169, %v4161
    %v5042 = vpack.c.b16 %v4170, %v4162
    %v5043 = vpack.c.b16 %v4171, %v4163
    %v5044 = vpack.c.b16 %v4172, %v4164
    %v5045 = vpack.c.b16 %v4173, %v4165
    %v5046 = vpack.c.b16 %v4182, %v4174
    %v5047 = vpack.c.b16 %v4183, %v4175
    %v5048 = vpack.c.b16 %v4184, %v4176
    %v5049 = vpack.c.b16 %v4185, %v4177
    %v5050 = vpack.c.b16 %v4186, %v4178
    %v5051 = vpack.c.b16 %v4187, %v4179
    %v5052 = vpack.c.b16 %v4188, %v4180
    %v5053 = vpack.c.b16 %v4189, %v4181
    %v5054 = vpack.c.b16 %v4198, %v4190
    %v5055 = vpack.c.b16 %v4199, %v4191
    %v5056 = vpack.c.b16 %v4200, %v4192
    %v5057 = vpack.c.b16 %v4201, %v4193
    %v5058 = vpack.c.b16 %v4202, %v4194
    %v5059 = vpack.c.b16 %v4203, %v4195
    %v5060 = vpack.c.b16 %v4204, %v4196
    %v5061 = vpack.c.b16 %v4205, %v4197
    %v5062 = vpack.c.b16 %v4214, %v4206
    %v5063 = vpack.c.b16 %v4215, %v4207
    %v5064 = vpack.c.b16 %v4216, %v4208
    %v5065 = vpack.c.b16 %v4217, %v4209
    %v5066 = vpack.c.b16 %v4218, %v4210
    %v5067 = vpack.c.b16 %v4219, %v4211
    %v5068 = vpack.c.b16 %v4220, %v4212
    %v5069 = vpack.c.b16 %v4221, %v4213
    %v5070 = vpack.c.b16 %v4230, %v4222
    %v5071 = vpack.c.b16 %v4231, %v4223
    %v5072 = vpack.c.b16 %v4232, %v4224
    %v5073 = vpack.c.b16 %v4233, %v4225
    %v5074 = vpack.c.b16 %v4234, %v4226
    %v5075 = vpack.c.b16 %v4235, %v4227
    %v5076 = vpack.c.b16 %v4236, %v4228
    %v5077 = vpack.c.b16 %v4237, %v4229
    %v5078 = vpack.c.b16 %v4246, %v4238
    %v5079 = vpack.c.b16 %v4247, %v4239
    %v5080 = vpack.c.b16 %v4248, %v4240
    %v5081 = vpack.c.b16 %v4249, %v4241
    %v5082 = vpack.c.b16 %v4250, %v4242
    %v5083 = vpack.c.b16 %v4251, %v4243
    %v5084 = vpack.c.b16 %v4252, %v4244
    %v5085 = vpack.c.b16 %v4253, %v4245
    %v5086 = vpack.c.b16 %v4262, %v4254
    %v5087 = vpack.c.b16 %v4263, %v4255
    %v5088 = vpack.c.b16 %v4264, %v4256
    %v5089 = vpack.c.b16 %v4265, %v4257
    %v5090 = vpack.c.b16 %v4266, %v4258
    %v5091 = vpack.c.b16 %v4267, %v4259
    %v5092 = vpack.c.b16 %v4268, %v4260
    %v5093 = vpack.c.b16 %v4269, %v4261
    %v5094 = vpack.c.b16 %v4278, %v4270
    %v5095 = vpack.c.b16 %v4279, %v4271
    %v5096 = vpack.c.b16 %v4280, %v4272
    %v5097 = vpack.c.b16 %v4281, %v4273
    %v5098 = vpack.c.b16 %v4282, %v4274
    %v5099 = vpack.c.b16 %v4283, %v4275
    %v5100 = vpack.c.b16 %v4284, %v4276
    %v5101 = vpack.c.b16 %v4285, %v4277
    %v5102 = vpack.c.b16 %v4294, %v4286
    %v5103 = vpack.c.b16 %v4295, %v4287
    %v5104 = vpack.c.b16 %v4296, %v4288
    %v5105 = vpack.c.b16 %v4297, %v4289
    %v5106 = vpack.c.b16 %v4298, %v4290
    %v5107 = vpack.c.b16 %v4299, %v4291
    %v5108 = vpack.c.b16 %v4300, %v4292
    %v5109 = vpack.c.b16 %v4301, %v4293
    %v5110 = vpack.c.b16 %v4310, %v4302
    %v5111 = vpack.c.b16 %v4311, %v4303
    %v5112 = vpack.c.b16 %v4312, %v4304
    %v5113 = vpack.c.b16 %v4313, %v4305
    %v5114 = vpack.c.b16 %v4314, %v4306
    %v5115 = vpack.c.b16 %v4315, %v4307
    %v5116 = vpack.c.b16 %v4316, %v4308
    %v5117 = vpack.c.b16 %v4317, %v4309
    %v5118 = vpack.c.b16 %v4326, %v4318
    %v5119 = vpack.c.b16 %v4327, %v4319
    %v5120 = vpack.c.b16 %v4328, %v4320
    %v5121 = vpack.c.b16 %v4329, %v4321
    %v5122 = vpack.c.b16 %v4330, %v4322
    %v5123 = vpack.c.b16 %v4331, %v4323
    %v5124 = vpack.c.b16 %v4332, %v4324
    %v5125 = vpack.c.b16 %v4333, %v4325
    %v5126 = vpack.c.b16 %v4342, %v4334
    %v5127 = vpack.c.b16 %v4343, %v4335
    %v5128 = vpack.c.b16 %v4344, %v4336
    %v5129 = vpack.c.b16 %v4345, %v4337
    %v5130 = vpack.c.b16 %v4346, %v4338
    %v5131 = vpack.c.b16 %v4347, %v4339
    %v5132 = vpack.c.b16 %v4348, %v4340
    %v5133 = vpack.c.b16 %v4349, %v4341
    %v5134 = vpack.c.b16 %v4358, %v4350
    %v5135 = vpack.c.b16 %v4359, %v4351
    %v5136 = vpack.c.b16 %v4360, %v4352
    %v5137 = vpack.c.b16 %v4361, %v4353
    %v5138 = vpack.c.b16 %v4362, %v4354
    %v5139 = vpack.c.b16 %v4363, %v4355
    %v5140 = vpack.c.b16 %v4364, %v4356
    %v5141 = vpack.c.b16 %v4365, %v4357
    %v5142 = vpack.c.b16 %v4374, %v4366
    %v5143 = vpack.c.b16 %v4375, %v4367
    %v5144 = vpack.c.b16 %v4376, %v4368
    %v5145 = vpack.c.b16 %v4377, %v4369
    %v5146 = vpack.c.b16 %v4378, %v4370
    %v5147 = vpack.c.b16 %v4379, %v4371
    %v5148 = vpack.c.b16 %v4380, %v4372
    %v5149 = vpack.c.b16 %v4381, %v4373
    %v5150 = vpack.c.b16 %v4390, %v4382
    %v5151 = vpack.c.b16 %v4391, %v4383
    %v5152 = vpack.c.b16 %v4392, %v4384
    %v5153 = vpack.c.b16 %v4393, %v4385
    %v5154 = vpack.c.b16 %v4394, %v4386
    %v5155 = vpack.c.b16 %v4395, %v4387
    %v5156 = vpack.c.b16 %v4396, %v4388
    %v5157 = vpack.c.b16 %v4397, %v4389
    %v5158 = vpack.c.b16 %v4406, %v4398
    %v5159 = vpack.c.b16 %v4407, %v4399
    %v5160 = vpack.c.b16 %v4408, %v4400
    %v5161 = vpack.c.b16 %v4409, %v4401
    %v5162 = vpack.c.b16 %v4410, %v4402
    %v5163 = vpack.c.b16 %v4411, %v4403
    %v5164 = vpack.c.b16 %v4412, %v4404
    %v5165 = vpack.c.b16 %v4413, %v4405
    %v5166 = vpack.c.b16 %v4422, %v4414
    %v5167 = vpack.c.b16 %v4423, %v4415
    %v5168 = vpack.c.b16 %v4424, %v4416
    %v5169 = vpack.c.b16 %v4425, %v4417
    %v5170 = vpack.c.b16 %v4426, %v4418
    %v5171 = vpack.c.b16 %v4427, %v4419
    %v5172 = vpack.c.b16 %v4428, %v4420
    %v5173 = vpack.c.b16 %v4429, %v4421
    %v5174 = vpack.c.b16 %v4438, %v4430
    %v5175 = vpack.c.b16 %v4439, %v4431
    %v5176 = vpack.c.b16 %v4440, %v4432
    %v5177 = vpack.c.b16 %v4441, %v4433
    %v5178 = vpack.c.b16 %v4442, %v4434
    %v5179 = vpack.c.b16 %v4443, %v4435
    %v5180 = vpack.c.b16 %v4444, %v4436
    %v5181 = vpack.c.b16 %v4445, %v4437
    %v5182 = vpack.c.b16 %v4454, %v4446
    %v5183 = vpack.c.b16 %v4455, %v4447
    %v5184 = vpack.c.b16 %v4456, %v4448
    %v5185 = vpack.c.b16 %v4457, %v4449
    %v5186 = vpack.c.b16 %v4458, %v4450
    %v5187 = vpack.c.b16 %v4459, %v4451
    %v5188 = vpack.c.b16 %v4460, %v4452
    %v5189 = vpack.c.b16 %v4461, %v4453
    %v5190 = vpack.c.b16 %v4470, %v4462
    %v5191 = vpack.c.b16 %v4471, %v4463
    %v5192 = vpack.c.b16 %v4472, %v4464
    %v5193 = vpack.c.b16 %v4473, %v4465
    %v5194 = vpack.c.b16 %v4474, %v4466
    %v5195 = vpack.c.b16 %v4475, %v4467
    %v5196 = vpack.c.b16 %v4476, %v4468
    %v5197 = vpack.c.b16 %v4477, %v4469
    %v5198 = vpack.c.b16 %v4486, %v4478
    %v5199 = vpack.c.b16 %v4487, %v4479
    %v5200 = vpack.c.b16 %v4488, %v4480
    %v5201 = vpack.c.b16 %v4489, %v4481
    %v5202 = vpack.c.b16 %v4490, %v4482
    %v5203 = vpack.c.b16 %v4491, %v4483
    %v5204 = vpack.c.b16 %v4492, %v4484
    %v5205 = vpack.c.b16 %v4493, %v4485
    %v5206 = vpack.c.b16 %v4502, %v4494
    %v5207 = vpack.c.b16 %v4503, %v4495
    %v5208 = vpack.c.b16 %v4504, %v4496
    %v5209 = vpack.c.b16 %v4505, %v4497
    %v5210 = vpack.c.b16 %v4506, %v4498
    %v5211 = vpack.c.b16 %v4507, %v4499
    %v5212 = vpack.c.b16 %v4508, %v4500
    %v5213 = vpack.c.b16 %v4509, %v4501
    %v5214 = vpack.c.b16 %v4518, %v4510
    %v5215 = vpack.c.b16 %v4519, %v4511
    %v5216 = vpack.c.b16 %v4520, %v4512
    %v5217 = vpack.c.b16 %v4521, %v4513
    %v5218 = vpack.c.b16 %v4522, %v4514
    %v5219 = vpack.c.b16 %v4523, %v4515
    %v5220 = vpack.c.b16 %v4524, %v4516
    %v5221 = vpack.c.b16 %v4525, %v4517
    %v5222 = vpack.c.b16 %v4534, %v4526
    %v5223 = vpack.c.b16 %v4535, %v4527
    %v5224 = vpack.c.b16 %v4536, %v4528
    %v5225 = vpack.c.b16 %v4537, %v4529
    %v5226 = vpack.c.b16 %v4538, %v4530
    %v5227 = vpack.c.b16 %v4539, %v4531
    %v5228 = vpack.c.b16 %v4540, %v4532
    %v5229 = vpack.c.b16 %v4541, %v4533
    %v5230 = vpack.c.b16 %v4550, %v4542
    %v5231 = vpack.c.b16 %v4551, %v4543
    %v5232 = vpack.c.b16 %v4552, %v4544
    %v5233 = vpack.c.b16 %v4553, %v4545
    %v5234 = vpack.c.b16 %v4554, %v4546
    %v5235 = vpack.c.b16 %v4555, %v4547
    %v5236 = vpack.c.b16 %v4556, %v4548
    %v5237 = vpack.c.b16 %v4557, %v4549
    %v5238 = vpack.c.b16 %v4566, %v4558
    %v5239 = vpack.c.b16 %v4567, %v4559
    %v5240 = vpack.c.b16 %v4568, %v4560
    %v5241 = vpack.c.b16 %v4569, %v4561
    %v5242 = vpack.c.b16 %v4570, %v4562
    %v5243 = vpack.c.b16 %v4571, %v4563
    %v5244 = vpack.c.b16 %v4572, %v4564
    %v5245 = vpack.c.b16 %v4573, %v4565
    %v5246 = vpack.c.b16 %v4582, %v4574
    %v5247 = vpack.c.b16 %v4583, %v4575
    %v5248 = vpack.c.b16 %v4584, %v4576
    %v5249 = vpack.c.b16 %v4585, %v4577
    %v5250 = vpack.c.b16 %v4586, %v4578
    %v5251 = vpack.c.b16 %v4587, %v4579
    %v5252 = vpack.c.b16 %v4588, %v4580
    %v5253 = vpack.c.b16 %v4589, %v4581
    %v5254 = vpack.c.b16 %v4598, %v4590
    %v5255 = vpack.c.b16 %v4599, %v4591
    %v5256 = vpack.c.b16 %v4600, %v4592
    %v5257 = vpack.c.b16 %v4601, %v4593
    %v5258 = vpack.c.b16 %v4602, %v4594
    %v5259 = vpack.c.b16 %v4603, %v4595
    %v5260 = vpack.c.b16 %v4604, %v4596
    %v5261 = vpack.c.b16 %v4605, %v4597
    %v5262 = vpack.c.b16 %v4614, %v4606
    %v5263 = vpack.c.b16 %v4615, %v4607
    %v5264 = vpack.c.b16 %v4616, %v4608
    %v5265 = vpack.c.b16 %v4617, %v4609
    %v5266 = vpack.c.b16 %v4618, %v4610
    %v5267 = vpack.c.b16 %v4619, %v4611
    %v5268 = vpack.c.b16 %v4620, %v4612
    %v5269 = vpack.c.b16 %v4621, %v4613
    %v5270 = vpack.c.b16 %v4630, %v4622
    %v5271 = vpack.c.b16 %v4631, %v4623
    %v5272 = vpack.c.b16 %v4632, %v4624
    %v5273 = vpack.c.b16 %v4633, %v4625
    %v5274 = vpack.c.b16 %v4634, %v4626
    %v5275 = vpack.c.b16 %v4635, %v4627
    %v5276 = vpack.c.b16 %v4636, %v4628
    %v5277 = vpack.c.b16 %v4637, %v4629
    %v5278 = vpack.c.b16 %v4646, %v4638
    %v5279 = vpack.c.b16 %v4647, %v4639
    %v5280 = vpack.c.b16 %v4648, %v4640
    %v5281 = vpack.c.b16 %v4649, %v4641
    %v5282 = vpack.c.b16 %v4650, %v4642
    %v5283 = vpack.c.b16 %v4651, %v4643
    %v5284 = vpack.c.b16 %v4652, %v4644
    %v5285 = vpack.c.b16 %v4653, %v4645
    %v5286 = vpack.c.b16 %v4662, %v4654
    %v5287 = vpack.c.b16 %v4663, %v4655
    %v5288 = vpack.c.b16 %v4664, %v4656
    %v5289 = vpack.c.b16 %v4665, %v4657
    %v5290 = vpack.c.b16 %v4666, %v4658
    %v5291 = vpack.c.b16 %v4667, %v4659
    %v5292 = vpack.c.b16 %v4668, %v4660
    %v5293 = vpack.c.b16 %v4669, %v4661
    %v5294 = vpack.c.b16 %v4678, %v4670
    %v5295 = vpack.c.b16 %v4679, %v4671
    %v5296 = vpack.c.b16 %v4680, %v4672
    %v5297 = vpack.c.b16 %v4681, %v4673
    %v5298 = vpack.c.b16 %v4682, %v4674
    %v5299 = vpack.c.b16 %v4683, %v4675
    %v5300 = vpack.c.b16 %v4684, %v4676
    %v5301 = vpack.c.b16 %v4685, %v4677
    %v5302 = vpack.c.b16 %v4694, %v4686
    %v5303 = vpack.c.b16 %v4695, %v4687
    %v5304 = vpack.c.b16 %v4696, %v4688
    %v5305 = vpack.c.b16 %v4697, %v4689
    %v5306 = vpack.c.b16 %v4698, %v4690
    %v5307 = vpack.c.b16 %v4699, %v4691
    %v5308 = vpack.c.b16 %v4700, %v4692
    %v5309 = vpack.c.b16 %v4701, %v4693
    %v5310 = vpack.c.b16 %v4710, %v4702
    %v5311 = vpack.c.b16 %v4711, %v4703
    %v5312 = vpack.c.b16 %v4712, %v4704
    %v5313 = vpack.c.b16 %v4713, %v4705
    %v5314 = vpack.c.b16 %v4714, %v4706
    %v5315 = vpack.c.b16 %v4715, %v4707
    %v5316 = vpack.c.b16 %v4716, %v4708
    %v5317 = vpack.c.b16 %v4717, %v4709
    %v5318 = vpack.c.b16 %v4726, %v4718
    %v5319 = vpack.c.b16 %v4727, %v4719
    %v5320 = vpack.c.b16 %v4728, %v4720
    %v5321 = vpack.c.b16 %v4729, %v4721
    %v5322 = vpack.c.b16 %v4730, %v4722
    %v5323 = vpack.c.b16 %v4731, %v4723
    %v5324 = vpack.c.b16 %v4732, %v4724
    %v5325 = vpack.c.b16 %v4733, %v4725
    %v5326 = vpack.c.b16 %v4742, %v4734
    %v5327 = vpack.c.b16 %v4743, %v4735
    %v5328 = vpack.c.b16 %v4744, %v4736
    %v5329 = vpack.c.b16 %v4745, %v4737
    %v5330 = vpack.c.b16 %v4746, %v4738
    %v5331 = vpack.c.b16 %v4747, %v4739
    %v5332 = vpack.c.b16 %v4748, %v4740
    %v5333 = vpack.c.b16 %v4749, %v4741
    %v5334 = vpack.c.b16 %v4758, %v4750
    %v5335 = vpack.c.b16 %v4759, %v4751
    %v5336 = vpack.c.b16 %v4760, %v4752
    %v5337 = vpack.c.b16 %v4761, %v4753
    %v5338 = vpack.c.b16 %v4762, %v4754
    %v5339 = vpack.c.b16 %v4763, %v4755
    %v5340 = vpack.c.b16 %v4764, %v4756
    %v5341 = vpack.c.b16 %v4765, %v4757
    %v5342 = vpack.c.b16 %v4774, %v4766
    %v5343 = vpack.c.b16 %v4775, %v4767
    %v5344 = vpack.c.b16 %v4776, %v4768
    %v5345 = vpack.c.b16 %v4777, %v4769
    %v5346 = vpack.c.b16 %v4778, %v4770
    %v5347 = vpack.c.b16 %v4779, %v4771
    %v5348 = vpack.c.b16 %v4780, %v4772
    %v5349 = vpack.c.b16 %v4781, %v4773
    %v5350 = vpack.c.b16 %v4790, %v4782
    %v5351 = vpack.c.b16 %v4791, %v4783
    %v5352 = vpack.c.b16 %v4792, %v4784
    %v5353 = vpack.c.b16 %v4793, %v4785
    %v5354 = vpack.c.b16 %v4794, %v4786
    %v5355 = vpack.c.b16 %v4795, %v4787
    %v5356 = vpack.c.b16 %v4796, %v4788
    %v5357 = vpack.c.b16 %v4797, %v4789
    %v5358 = vpack.c.b16 %v4806, %v4798
    %v5359 = vpack.c.b16 %v4807, %v4799
    %v5360 = vpack.c.b16 %v4808, %v4800
    %v5361 = vpack.c.b16 %v4809, %v4801
    %v5362 = vpack.c.b16 %v4810, %v4802
    %v5363 = vpack.c.b16 %v4811, %v4803
    %v5364 = vpack.c.b16 %v4812, %v4804
    %v5365 = vpack.c.b16 %v4813, %v4805
    %v5366 = vpack.c.b16 %v4822, %v4814
    %v5367 = vpack.c.b16 %v4823, %v4815
    %v5368 = vpack.c.b16 %v4824, %v4816
    %v5369 = vpack.c.b16 %v4825, %v4817
    %v5370 = vpack.c.b16 %v4826, %v4818
    %v5371 = vpack.c.b16 %v4827, %v4819
    %v5372 = vpack.c.b16 %v4828, %v4820
    %v5373 = vpack.c.b16 %v4829, %v4821
    %v5374 = vpack.c.b16 %v4838, %v4830
    %v5375 = vpack.c.b16 %v4839, %v4831
    %v5376 = vpack.c.b16 %v4840, %v4832
    %v5377 = vpack.c.b16 %v4841, %v4833
    %v5378 = vpack.c.b16 %v4842, %v4834
    %v5379 = vpack.c.b16 %v4843, %v4835
    %v5380 = vpack.c.b16 %v4844, %v4836
    %v5381 = vpack.c.b16 %v4845, %v4837
    %v5382 = vpack.c.b16 %v4854, %v4846
    %v5383 = vpack.c.b16 %v4855, %v4847
    %v5384 = vpack.c.b16 %v4856, %v4848
    %v5385 = vpack.c.b16 %v4857, %v4849
    %v5386 = vpack.c.b16 %v4858, %v4850
    %v5387 = vpack.c.b16 %v4859, %v4851
    %v5388 = vpack.c.b16 %v4860, %v4852
    %v5389 = vpack.c.b16 %v4861, %v4853
    %v5390 = vpack.c.b16 %v4870, %v4862
    %v5391 = vpack.c.b16 %v4871, %v4863
    %v5392 = vpack.c.b16 %v4872, %v4864
    %v5393 = vpack.c.b16 %v4873, %v4865
    %v5394 = vpack.c.b16 %v4874, %v4866
    %v5395 = vpack.c.b16 %v4875, %v4867
    %v5396 = vpack.c.b16 %v4876, %v4868
    %v5397 = vpack.c.b16 %v4877, %v4869
    %v5398 = vpack.c.b16 %v4886, %v4878
    %v5399 = vpack.c.b16 %v4887, %v4879
    %v5400 = vpack.c.b16 %v4888, %v4880
    %v5401 = vpack.c.b16 %v4889, %v4881
    %v5402 = vpack.c.b16 %v4890, %v4882
    %v5403 = vpack.c.b16 %v4891, %v4883
    %v5404 = vpack.c.b16 %v4892, %v4884
    %v5405 = vpack.c.b16 %v4893, %v4885
    %5918 = vmatprep.subr.bf16.mxu0 %v4951
    %5919 = vmatpush1.bf16.msra.mxu0 %v4950
    %5920 = vmatprep.subr.bf16.mxu0 %v4943
    %5921 = vmatpush1.bf16.msra.mxu0 %v4942
    %5922 = vmatprep.subr.bf16.mxu0 %v4935
    %5923 = vmatpush1.bf16.msra.mxu0 %v4934
    %5924 = vmatprep.subr.bf16.mxu0 %v4927
    %5925 = vmatpush1.bf16.msra.mxu0 %v4926
    %5926 = vmatprep.subr.bf16.mxu0 %v4919
    %5927 = vmatpush1.bf16.msra.mxu0 %v4918
    %5928 = vmatprep.subr.bf16.mxu0 %v4911
    %5929 = vmatpush1.bf16.msra.mxu0 %v4910
    %5930 = vmatprep.subr.bf16.mxu0 %v4903
    %5931 = vmatpush1.bf16.msra.mxu0 %v4902
    %5932 = vmatprep.subr.bf16.mxu0 %v4895
    %5933 = vmatpush1.bf16.msra.mxu0 %v4894
    %5934 = vmatprep.subr.bf16.mxu0 %v5015
    %5935 = vmatpush2.bf16.msra.mxu0 %v5014
    %5936 = vmatprep.subr.bf16.mxu0 %v5007
    %5937 = vmatpush2.bf16.msra.mxu0 %v5006
    %5938 = vmatprep.subr.bf16.mxu0 %v4999
    %5939 = vmatpush2.bf16.msra.mxu0 %v4998
    %5940 = vmatprep.subr.bf16.mxu0 %v4991
    %5941 = vmatpush2.bf16.msra.mxu0 %v4990
    %5942 = vmatprep.subr.bf16.mxu0 %v4983
    %5943 = vmatpush2.bf16.msra.mxu0 %v4982
    %5944 = vmatprep.subr.bf16.mxu0 %v4975
    %5945 = vmatpush2.bf16.msra.mxu0 %v4974
    %5946 = vmatprep.subr.bf16.mxu0 %v4967
    %5947 = vmatpush2.bf16.msra.mxu0 %v4966
    %5948 = vmatprep.subr.bf16.mxu0 %v4959
    %5949 = vmatpush2.bf16.msra.mxu0 %v4958
    %5950 = vmatprep.mubr.bf16.mxu0 %v3343
    %5951 = vmatmul.mubr.bf16.gmra.mxu0 %v3342
    %v5952 = vpop.f32.mrf.mxu0
    %v5953 = vadd.f32 %v3214, %v5952
    %v5954 = vpop.f32.mrf.mxu0
    %v5955 = vadd.f32 %v3218, %v5954
    %v5956 = vpop.f32.mrf.mxu0
    %v5957 = vpop.f32.mrf.mxu0
    %5958 = vdwg.mxu0
    %5959 = vmatprep.subr.bf16.mxu0 %v5079
    %5960 = vmatpush1.bf16.msra.mxu0 %v5078
    %5961 = vmatprep.subr.bf16.mxu0 %v5071
    %5962 = vmatpush1.bf16.msra.mxu0 %v5070
    %5963 = vmatprep.subr.bf16.mxu0 %v5063
    %5964 = vmatpush1.bf16.msra.mxu0 %v5062
    %5965 = vmatprep.subr.bf16.mxu0 %v5055
    %5966 = vmatpush1.bf16.msra.mxu0 %v5054
    %5967 = vmatprep.subr.bf16.mxu0 %v5047
    %5968 = vmatpush1.bf16.msra.mxu0 %v5046
    %5969 = vmatprep.subr.bf16.mxu0 %v5039
    %5970 = vmatpush1.bf16.msra.mxu0 %v5038
    %5971 = vmatprep.subr.bf16.mxu0 %v5031
    %5972 = vmatpush1.bf16.msra.mxu0 %v5030
    %5973 = vmatprep.subr.bf16.mxu0 %v5023
    %5974 = vmatpush1.bf16.msra.mxu0 %v5022
    %5975 = vmatprep.subr.bf16.mxu0 %v5143
    %5976 = vmatpush2.bf16.msra.mxu0 %v5142
    %5977 = vmatprep.subr.bf16.mxu0 %v5135
    %5978 = vmatpush2.bf16.msra.mxu0 %v5134
    %5979 = vmatprep.subr.bf16.mxu0 %v5127
    %5980 = vmatpush2.bf16.msra.mxu0 %v5126
    %5981 = vmatprep.subr.bf16.mxu0 %v5119
    %5982 = vmatpush2.bf16.msra.mxu0 %v5118
    %5983 = vmatprep.subr.bf16.mxu0 %v5111
    %5984 = vmatpush2.bf16.msra.mxu0 %v5110
    %5985 = vmatprep.subr.bf16.mxu0 %v5103
    %5986 = vmatpush2.bf16.msra.mxu0 %v5102
    %5987 = vmatprep.subr.bf16.mxu0 %v5095
    %5988 = vmatpush2.bf16.msra.mxu0 %v5094
    %5989 = vmatprep.subr.bf16.mxu0 %v5087
    %5990 = vmatpush2.bf16.msra.mxu0 %v5086
    %5991 = vmatprep.mubr.bf16.mxu0 %v3345
    %5992 = vmatmul.mubr.bf16.gmra.mxu0 %v3344
    %v5993 = vpop.f32.mrf.mxu0
    %v5994 = vadd.f32 %v5953, %v5993
    %v5995 = vpop.f32.mrf.mxu0
    %v5996 = vadd.f32 %v5955, %v5995
    %v5997 = vpop.f32.mrf.mxu0
    %v5998 = vpop.f32.mrf.mxu0
    %5999 = vdwg.mxu0
    %6000 = vmatprep.subr.bf16.mxu0 %v5207
    %6001 = vmatpush1.bf16.msra.mxu0 %v5206
    %6002 = vmatprep.subr.bf16.mxu0 %v5199
    %6003 = vmatpush1.bf16.msra.mxu0 %v5198
    %6004 = vmatprep.subr.bf16.mxu0 %v5191
    %6005 = vmatpush1.bf16.msra.mxu0 %v5190
    %6006 = vmatprep.subr.bf16.mxu0 %v5183
    %6007 = vmatpush1.bf16.msra.mxu0 %v5182
    %6008 = vmatprep.subr.bf16.mxu0 %v5175
    %6009 = vmatpush1.bf16.msra.mxu0 %v5174
    %6010 = vmatprep.subr.bf16.mxu0 %v5167
    %6011 = vmatpush1.bf16.msra.mxu0 %v5166
    %6012 = vmatprep.subr.bf16.mxu0 %v5159
    %6013 = vmatpush1.bf16.msra.mxu0 %v5158
    %6014 = vmatprep.subr.bf16.mxu0 %v5151
    %6015 = vmatpush1.bf16.msra.mxu0 %v5150
    %6016 = vmatprep.subr.bf16.mxu0 %v5271
    %6017 = vmatpush2.bf16.msra.mxu0 %v5270
    %6018 = vmatprep.subr.bf16.mxu0 %v5263
    %6019 = vmatpush2.bf16.msra.mxu0 %v5262
    %6020 = vmatprep.subr.bf16.mxu0 %v5255
    %6021 = vmatpush2.bf16.msra.mxu0 %v5254
    %6022 = vmatprep.subr.bf16.mxu0 %v5247
    %6023 = vmatpush2.bf16.msra.mxu0 %v5246
    %6024 = vmatprep.subr.bf16.mxu0 %v5239
    %6025 = vmatpush2.bf16.msra.mxu0 %v5238
    %6026 = vmatprep.subr.bf16.mxu0 %v5231
    %6027 = vmatpush2.bf16.msra.mxu0 %v5230
    %6028 = vmatprep.subr.bf16.mxu0 %v5223
    %6029 = vmatpush2.bf16.msra.mxu0 %v5222
    %6030 = vmatprep.subr.bf16.mxu0 %v5215
    %6031 = vmatpush2.bf16.msra.mxu0 %v5214
    %6032 = vmatprep.mubr.bf16.mxu0 %v3347
    %6033 = vmatmul.mubr.bf16.gmra.mxu0 %v3346
    %v6034 = vpop.f32.mrf.mxu0
    %v6035 = vadd.f32 %v5994, %v6034
    %v6036 = vpop.f32.mrf.mxu0
    %v6037 = vadd.f32 %v5996, %v6036
    %v6038 = vpop.f32.mrf.mxu0
    %v6039 = vpop.f32.mrf.mxu0
    %6040 = vdwg.mxu0
    %6041 = vmatprep.subr.bf16.mxu0 %v5335
    %6042 = vmatpush1.bf16.msra.mxu0 %v5334
    %6043 = vmatprep.subr.bf16.mxu0 %v5327
    %6044 = vmatpush1.bf16.msra.mxu0 %v5326
    %6045 = vmatprep.subr.bf16.mxu0 %v5319
    %6046 = vmatpush1.bf16.msra.mxu0 %v5318
    %6047 = vmatprep.subr.bf16.mxu0 %v5311
    %6048 = vmatpush1.bf16.msra.mxu0 %v5310
    %6049 = vmatprep.subr.bf16.mxu0 %v5303
    %6050 = vmatpush1.bf16.msra.mxu0 %v5302
    %6051 = vmatprep.subr.bf16.mxu0 %v5295
    %6052 = vmatpush1.bf16.msra.mxu0 %v5294
    %6053 = vmatprep.subr.bf16.mxu0 %v5287
    %6054 = vmatpush1.bf16.msra.mxu0 %v5286
    %6055 = vmatprep.subr.bf16.mxu0 %v5279
    %6056 = vmatpush1.bf16.msra.mxu0 %v5278
    %6057 = vmatprep.subr.bf16.mxu0 %v5399
    %6058 = vmatpush2.bf16.msra.mxu0 %v5398
    %6059 = vmatprep.subr.bf16.mxu0 %v5391
    %6060 = vmatpush2.bf16.msra.mxu0 %v5390
    %6061 = vmatprep.subr.bf16.mxu0 %v5383
    %6062 = vmatpush2.bf16.msra.mxu0 %v5382
    %6063 = vmatprep.subr.bf16.mxu0 %v5375
    %6064 = vmatpush2.bf16.msra.mxu0 %v5374
    %6065 = vmatprep.subr.bf16.mxu0 %v5367
    %6066 = vmatpush2.bf16.msra.mxu0 %v5366
    %6067 = vmatprep.subr.bf16.mxu0 %v5359
    %6068 = vmatpush2.bf16.msra.mxu0 %v5358
    %6069 = vmatprep.subr.bf16.mxu0 %v5351
    %6070 = vmatpush2.bf16.msra.mxu0 %v5350
    %6071 = vmatprep.subr.bf16.mxu0 %v5343
    %6072 = vmatpush2.bf16.msra.mxu0 %v5342
    %6073 = vmatprep.mubr.bf16.mxu0 %v3349
    %6074 = vmatmul.mubr.bf16.gmra.mxu0 %v3348
    %v6075 = vpop.f32.mrf.mxu0
    %v6076 = vadd.f32 %v6035, %v6075
    %v6077 = vpop.f32.mrf.mxu0
    %v6078 = vadd.f32 %v6037, %v6077
    %v6079 = vpop.f32.mrf.mxu0
    %v6080 = vpop.f32.mrf.mxu0
    %6081 = vdwg.mxu0
    %6082 = vmatprep.subr.bf16.mxu0 %v4953
    %6083 = vmatpush1.bf16.msra.mxu0 %v4952
    %6084 = vmatprep.subr.bf16.mxu0 %v4945
    %6085 = vmatpush1.bf16.msra.mxu0 %v4944
    %6086 = vmatprep.subr.bf16.mxu0 %v4937
    %6087 = vmatpush1.bf16.msra.mxu0 %v4936
    %6088 = vmatprep.subr.bf16.mxu0 %v4929
    %6089 = vmatpush1.bf16.msra.mxu0 %v4928
    %6090 = vmatprep.subr.bf16.mxu0 %v4921
    %6091 = vmatpush1.bf16.msra.mxu0 %v4920
    %6092 = vmatprep.subr.bf16.mxu0 %v4913
    %6093 = vmatpush1.bf16.msra.mxu0 %v4912
    %6094 = vmatprep.subr.bf16.mxu0 %v4905
    %6095 = vmatpush1.bf16.msra.mxu0 %v4904
    %6096 = vmatprep.subr.bf16.mxu0 %v4897
    %6097 = vmatpush1.bf16.msra.mxu0 %v4896
    %6098 = vmatprep.subr.bf16.mxu0 %v5017
    %6099 = vmatpush2.bf16.msra.mxu0 %v5016
    %6100 = vmatprep.subr.bf16.mxu0 %v5009
    %6101 = vmatpush2.bf16.msra.mxu0 %v5008
    %6102 = vmatprep.subr.bf16.mxu0 %v5001
    %6103 = vmatpush2.bf16.msra.mxu0 %v5000
    %6104 = vmatprep.subr.bf16.mxu0 %v4993
    %6105 = vmatpush2.bf16.msra.mxu0 %v4992
    %6106 = vmatprep.subr.bf16.mxu0 %v4985
    %6107 = vmatpush2.bf16.msra.mxu0 %v4984
    %6108 = vmatprep.subr.bf16.mxu0 %v4977
    %6109 = vmatpush2.bf16.msra.mxu0 %v4976
    %6110 = vmatprep.subr.bf16.mxu0 %v4969
    %6111 = vmatpush2.bf16.msra.mxu0 %v4968
    %6112 = vmatprep.subr.bf16.mxu0 %v4961
    %6113 = vmatpush2.bf16.msra.mxu0 %v4960
    %6114 = vmatprep.mubr.bf16.mxu0 %v3343
    %6115 = vmatmul.mubr.bf16.gmra.mxu0 %v3342
    %v6116 = vpop.f32.mrf.mxu0
    %v6117 = vadd.f32 %v3222, %v6116
    %v6118 = vpop.f32.mrf.mxu0
    %v6119 = vadd.f32 %v3226, %v6118
    %v6120 = vpop.f32.mrf.mxu0
    %v6121 = vpop.f32.mrf.mxu0
    %6122 = vdwg.mxu0
    %6123 = vmatprep.subr.bf16.mxu0 %v5081
    %6124 = vmatpush1.bf16.msra.mxu0 %v5080
    %6125 = vmatprep.subr.bf16.mxu0 %v5073
    %6126 = vmatpush1.bf16.msra.mxu0 %v5072
    %6127 = vmatprep.subr.bf16.mxu0 %v5065
    %6128 = vmatpush1.bf16.msra.mxu0 %v5064
    %6129 = vmatprep.subr.bf16.mxu0 %v5057
    %6130 = vmatpush1.bf16.msra.mxu0 %v5056
    %6131 = vmatprep.subr.bf16.mxu0 %v5049
    %6132 = vmatpush1.bf16.msra.mxu0 %v5048
    %6133 = vmatprep.subr.bf16.mxu0 %v5041
    %6134 = vmatpush1.bf16.msra.mxu0 %v5040
    %6135 = vmatprep.subr.bf16.mxu0 %v5033
    %6136 = vmatpush1.bf16.msra.mxu0 %v5032
    %6137 = vmatprep.subr.bf16.mxu0 %v5025
    %6138 = vmatpush1.bf16.msra.mxu0 %v5024
    %6139 = vmatprep.subr.bf16.mxu0 %v5145
    %6140 = vmatpush2.bf16.msra.mxu0 %v5144
    %6141 = vmatprep.subr.bf16.mxu0 %v5137
    %6142 = vmatpush2.bf16.msra.mxu0 %v5136
    %6143 = vmatprep.subr.bf16.mxu0 %v5129
    %6144 = vmatpush2.bf16.msra.mxu0 %v5128
    %6145 = vmatprep.subr.bf16.mxu0 %v5121
    %6146 = vmatpush2.bf16.msra.mxu0 %v5120
    %6147 = vmatprep.subr.bf16.mxu0 %v5113
    %6148 = vmatpush2.bf16.msra.mxu0 %v5112
    %6149 = vmatprep.subr.bf16.mxu0 %v5105
    %6150 = vmatpush2.bf16.msra.mxu0 %v5104
    %6151 = vmatprep.subr.bf16.mxu0 %v5097
    %6152 = vmatpush2.bf16.msra.mxu0 %v5096
    %6153 = vmatprep.subr.bf16.mxu0 %v5089
    %6154 = vmatpush2.bf16.msra.mxu0 %v5088
    %6155 = vmatprep.mubr.bf16.mxu0 %v3345
    %6156 = vmatmul.mubr.bf16.gmra.mxu0 %v3344
    %v6157 = vpop.f32.mrf.mxu0
    %v6158 = vadd.f32 %v6117, %v6157
    %v6159 = vpop.f32.mrf.mxu0
    %v6160 = vadd.f32 %v6119, %v6159
    %v6161 = vpop.f32.mrf.mxu0
    %v6162 = vpop.f32.mrf.mxu0
    %6163 = vdwg.mxu0
    %6164 = vmatprep.subr.bf16.mxu0 %v5209
    %6165 = vmatpush1.bf16.msra.mxu0 %v5208
    %6166 = vmatprep.subr.bf16.mxu0 %v5201
    %6167 = vmatpush1.bf16.msra.mxu0 %v5200
    %6168 = vmatprep.subr.bf16.mxu0 %v5193
    %6169 = vmatpush1.bf16.msra.mxu0 %v5192
    %6170 = vmatprep.subr.bf16.mxu0 %v5185
    %6171 = vmatpush1.bf16.msra.mxu0 %v5184
    %6172 = vmatprep.subr.bf16.mxu0 %v5177
    %6173 = vmatpush1.bf16.msra.mxu0 %v5176
    %6174 = vmatprep.subr.bf16.mxu0 %v5169
    %6175 = vmatpush1.bf16.msra.mxu0 %v5168
    %6176 = vmatprep.subr.bf16.mxu0 %v5161
    %6177 = vmatpush1.bf16.msra.mxu0 %v5160
    %6178 = vmatprep.subr.bf16.mxu0 %v5153
    %6179 = vmatpush1.bf16.msra.mxu0 %v5152
    %6180 = vmatprep.subr.bf16.mxu0 %v5273
    %6181 = vmatpush2.bf16.msra.mxu0 %v5272
    %6182 = vmatprep.subr.bf16.mxu0 %v5265
    %6183 = vmatpush2.bf16.msra.mxu0 %v5264
    %6184 = vmatprep.subr.bf16.mxu0 %v5257
    %6185 = vmatpush2.bf16.msra.mxu0 %v5256
    %6186 = vmatprep.subr.bf16.mxu0 %v5249
    %6187 = vmatpush2.bf16.msra.mxu0 %v5248
    %6188 = vmatprep.subr.bf16.mxu0 %v5241
    %6189 = vmatpush2.bf16.msra.mxu0 %v5240
    %6190 = vmatprep.subr.bf16.mxu0 %v5233
    %6191 = vmatpush2.bf16.msra.mxu0 %v5232
    %6192 = vmatprep.subr.bf16.mxu0 %v5225
    %6193 = vmatpush2.bf16.msra.mxu0 %v5224
    %6194 = vmatprep.subr.bf16.mxu0 %v5217
    %6195 = vmatpush2.bf16.msra.mxu0 %v5216
    %6196 = vmatprep.mubr.bf16.mxu0 %v3347
    %6197 = vmatmul.mubr.bf16.gmra.mxu0 %v3346
    %v6198 = vpop.f32.mrf.mxu0
    %v6199 = vadd.f32 %v6158, %v6198
    %v6200 = vpop.f32.mrf.mxu0
    %v6201 = vadd.f32 %v6160, %v6200
    %v6202 = vpop.f32.mrf.mxu0
    %v6203 = vpop.f32.mrf.mxu0
    %6204 = vdwg.mxu0
    %6205 = vmatprep.subr.bf16.mxu0 %v5337
    %6206 = vmatpush1.bf16.msra.mxu0 %v5336
    %6207 = vmatprep.subr.bf16.mxu0 %v5329
    %6208 = vmatpush1.bf16.msra.mxu0 %v5328
    %6209 = vmatprep.subr.bf16.mxu0 %v5321
    %6210 = vmatpush1.bf16.msra.mxu0 %v5320
    %6211 = vmatprep.subr.bf16.mxu0 %v5313
    %6212 = vmatpush1.bf16.msra.mxu0 %v5312
    %6213 = vmatprep.subr.bf16.mxu0 %v5305
    %6214 = vmatpush1.bf16.msra.mxu0 %v5304
    %6215 = vmatprep.subr.bf16.mxu0 %v5297
    %6216 = vmatpush1.bf16.msra.mxu0 %v5296
    %6217 = vmatprep.subr.bf16.mxu0 %v5289
    %6218 = vmatpush1.bf16.msra.mxu0 %v5288
    %6219 = vmatprep.subr.bf16.mxu0 %v5281
    %6220 = vmatpush1.bf16.msra.mxu0 %v5280
    %6221 = vmatprep.subr.bf16.mxu0 %v5401
    %6222 = vmatpush2.bf16.msra.mxu0 %v5400
    %6223 = vmatprep.subr.bf16.mxu0 %v5393
    %6224 = vmatpush2.bf16.msra.mxu0 %v5392
    %6225 = vmatprep.subr.bf16.mxu0 %v5385
    %6226 = vmatpush2.bf16.msra.mxu0 %v5384
    %6227 = vmatprep.subr.bf16.mxu0 %v5377
    %6228 = vmatpush2.bf16.msra.mxu0 %v5376
    %6229 = vmatprep.subr.bf16.mxu0 %v5369
    %6230 = vmatpush2.bf16.msra.mxu0 %v5368
    %6231 = vmatprep.subr.bf16.mxu0 %v5361
    %6232 = vmatpush2.bf16.msra.mxu0 %v5360
    %6233 = vmatprep.subr.bf16.mxu0 %v5353
    %6234 = vmatpush2.bf16.msra.mxu0 %v5352
    %6235 = vmatprep.subr.bf16.mxu0 %v5345
    %6236 = vmatpush2.bf16.msra.mxu0 %v5344
    %6237 = vmatprep.mubr.bf16.mxu0 %v3349
    %6238 = vmatmul.mubr.bf16.gmra.mxu0 %v3348
    %v6239 = vpop.f32.mrf.mxu0
    %v6240 = vadd.f32 %v6199, %v6239
    %v6241 = vpop.f32.mrf.mxu0
    %v6242 = vadd.f32 %v6201, %v6241
    %v6243 = vpop.f32.mrf.mxu0
    %v6244 = vpop.f32.mrf.mxu0
    %6245 = vdwg.mxu0
    %6246 = vmatprep.subr.bf16.mxu0 %v4955
    %6247 = vmatpush1.bf16.msra.mxu0 %v4954
    %6248 = vmatprep.subr.bf16.mxu0 %v4947
    %6249 = vmatpush1.bf16.msra.mxu0 %v4946
    %6250 = vmatprep.subr.bf16.mxu0 %v4939
    %6251 = vmatpush1.bf16.msra.mxu0 %v4938
    %6252 = vmatprep.subr.bf16.mxu0 %v4931
    %6253 = vmatpush1.bf16.msra.mxu0 %v4930
    %6254 = vmatprep.subr.bf16.mxu0 %v4923
    %6255 = vmatpush1.bf16.msra.mxu0 %v4922
    %6256 = vmatprep.subr.bf16.mxu0 %v4915
    %6257 = vmatpush1.bf16.msra.mxu0 %v4914
    %6258 = vmatprep.subr.bf16.mxu0 %v4907
    %6259 = vmatpush1.bf16.msra.mxu0 %v4906
    %6260 = vmatprep.subr.bf16.mxu0 %v4899
    %6261 = vmatpush1.bf16.msra.mxu0 %v4898
    %6262 = vmatprep.subr.bf16.mxu0 %v5019
    %6263 = vmatpush2.bf16.msra.mxu0 %v5018
    %6264 = vmatprep.subr.bf16.mxu0 %v5011
    %6265 = vmatpush2.bf16.msra.mxu0 %v5010
    %6266 = vmatprep.subr.bf16.mxu0 %v5003
    %6267 = vmatpush2.bf16.msra.mxu0 %v5002
    %6268 = vmatprep.subr.bf16.mxu0 %v4995
    %6269 = vmatpush2.bf16.msra.mxu0 %v4994
    %6270 = vmatprep.subr.bf16.mxu0 %v4987
    %6271 = vmatpush2.bf16.msra.mxu0 %v4986
    %6272 = vmatprep.subr.bf16.mxu0 %v4979
    %6273 = vmatpush2.bf16.msra.mxu0 %v4978
    %6274 = vmatprep.subr.bf16.mxu0 %v4971
    %6275 = vmatpush2.bf16.msra.mxu0 %v4970
    %6276 = vmatprep.subr.bf16.mxu0 %v4963
    %6277 = vmatpush2.bf16.msra.mxu0 %v4962
    %6278 = vmatprep.mubr.bf16.mxu0 %v3343
    %6279 = vmatmul.mubr.bf16.gmra.mxu0 %v3342
    %v6280 = vpop.f32.mrf.mxu0
    %v6281 = vadd.f32 %v3230, %v6280
    %v6282 = vpop.f32.mrf.mxu0
    %v6283 = vadd.f32 %v3234, %v6282
    %v6284 = vpop.f32.mrf.mxu0
    %v6285 = vpop.f32.mrf.mxu0
    %6286 = vdwg.mxu0
    %6287 = vmatprep.subr.bf16.mxu0 %v5083
    %6288 = vmatpush1.bf16.msra.mxu0 %v5082
    %6289 = vmatprep.subr.bf16.mxu0 %v5075
    %6290 = vmatpush1.bf16.msra.mxu0 %v5074
    %6291 = vmatprep.subr.bf16.mxu0 %v5067
    %6292 = vmatpush1.bf16.msra.mxu0 %v5066
    %6293 = vmatprep.subr.bf16.mxu0 %v5059
    %6294 = vmatpush1.bf16.msra.mxu0 %v5058
    %6295 = vmatprep.subr.bf16.mxu0 %v5051
    %6296 = vmatpush1.bf16.msra.mxu0 %v5050
    %6297 = vmatprep.subr.bf16.mxu0 %v5043
    %6298 = vmatpush1.bf16.msra.mxu0 %v5042
    %6299 = vmatprep.subr.bf16.mxu0 %v5035
    %6300 = vmatpush1.bf16.msra.mxu0 %v5034
    %6301 = vmatprep.subr.bf16.mxu0 %v5027
    %6302 = vmatpush1.bf16.msra.mxu0 %v5026
    %6303 = vmatprep.subr.bf16.mxu0 %v5147
    %6304 = vmatpush2.bf16.msra.mxu0 %v5146
    %6305 = vmatprep.subr.bf16.mxu0 %v5139
    %6306 = vmatpush2.bf16.msra.mxu0 %v5138
    %6307 = vmatprep.subr.bf16.mxu0 %v5131
    %6308 = vmatpush2.bf16.msra.mxu0 %v5130
    %6309 = vmatprep.subr.bf16.mxu0 %v5123
    %6310 = vmatpush2.bf16.msra.mxu0 %v5122
    %6311 = vmatprep.subr.bf16.mxu0 %v5115
    %6312 = vmatpush2.bf16.msra.mxu0 %v5114
    %6313 = vmatprep.subr.bf16.mxu0 %v5107
    %6314 = vmatpush2.bf16.msra.mxu0 %v5106
    %6315 = vmatprep.subr.bf16.mxu0 %v5099
    %6316 = vmatpush2.bf16.msra.mxu0 %v5098
    %6317 = vmatprep.subr.bf16.mxu0 %v5091
    %6318 = vmatpush2.bf16.msra.mxu0 %v5090
    %6319 = vmatprep.mubr.bf16.mxu0 %v3345
    %6320 = vmatmul.mubr.bf16.gmra.mxu0 %v3344
    %v6321 = vpop.f32.mrf.mxu0
    %v6322 = vadd.f32 %v6281, %v6321
    %v6323 = vpop.f32.mrf.mxu0
    %v6324 = vadd.f32 %v6283, %v6323
    %v6325 = vpop.f32.mrf.mxu0
    %v6326 = vpop.f32.mrf.mxu0
    %6327 = vdwg.mxu0
    %6328 = vmatprep.subr.bf16.mxu0 %v5211
    %6329 = vmatpush1.bf16.msra.mxu0 %v5210
    %6330 = vmatprep.subr.bf16.mxu0 %v5203
    %6331 = vmatpush1.bf16.msra.mxu0 %v5202
    %6332 = vmatprep.subr.bf16.mxu0 %v5195
    %6333 = vmatpush1.bf16.msra.mxu0 %v5194
    %6334 = vmatprep.subr.bf16.mxu0 %v5187
    %6335 = vmatpush1.bf16.msra.mxu0 %v5186
    %6336 = vmatprep.subr.bf16.mxu0 %v5179
    %6337 = vmatpush1.bf16.msra.mxu0 %v5178
    %6338 = vmatprep.subr.bf16.mxu0 %v5171
    %6339 = vmatpush1.bf16.msra.mxu0 %v5170
    %6340 = vmatprep.subr.bf16.mxu0 %v5163
    %6341 = vmatpush1.bf16.msra.mxu0 %v5162
    %6342 = vmatprep.subr.bf16.mxu0 %v5155
    %6343 = vmatpush1.bf16.msra.mxu0 %v5154
    %6344 = vmatprep.subr.bf16.mxu0 %v5275
    %6345 = vmatpush2.bf16.msra.mxu0 %v5274
    %6346 = vmatprep.subr.bf16.mxu0 %v5267
    %6347 = vmatpush2.bf16.msra.mxu0 %v5266
    %6348 = vmatprep.subr.bf16.mxu0 %v5259
    %6349 = vmatpush2.bf16.msra.mxu0 %v5258
    %6350 = vmatprep.subr.bf16.mxu0 %v5251
    %6351 = vmatpush2.bf16.msra.mxu0 %v5250
    %6352 = vmatprep.subr.bf16.mxu0 %v5243
    %6353 = vmatpush2.bf16.msra.mxu0 %v5242
    %6354 = vmatprep.subr.bf16.mxu0 %v5235
    %6355 = vmatpush2.bf16.msra.mxu0 %v5234
    %6356 = vmatprep.subr.bf16.mxu0 %v5227
    %6357 = vmatpush2.bf16.msra.mxu0 %v5226
    %6358 = vmatprep.subr.bf16.mxu0 %v5219
    %6359 = vmatpush2.bf16.msra.mxu0 %v5218
    %6360 = vmatprep.mubr.bf16.mxu0 %v3347
    %6361 = vmatmul.mubr.bf16.gmra.mxu0 %v3346
    %v6362 = vpop.f32.mrf.mxu0
    %v6363 = vadd.f32 %v6322, %v6362
    %v6364 = vpop.f32.mrf.mxu0
    %v6365 = vadd.f32 %v6324, %v6364
    %v6366 = vpop.f32.mrf.mxu0
    %v6367 = vpop.f32.mrf.mxu0
    %6368 = vdwg.mxu0
    %6369 = vmatprep.subr.bf16.mxu0 %v5339
    %6370 = vmatpush1.bf16.msra.mxu0 %v5338
    %6371 = vmatprep.subr.bf16.mxu0 %v5331
    %6372 = vmatpush1.bf16.msra.mxu0 %v5330
    %6373 = vmatprep.subr.bf16.mxu0 %v5323
    %6374 = vmatpush1.bf16.msra.mxu0 %v5322
    %6375 = vmatprep.subr.bf16.mxu0 %v5315
    %6376 = vmatpush1.bf16.msra.mxu0 %v5314
    %6377 = vmatprep.subr.bf16.mxu0 %v5307
    %6378 = vmatpush1.bf16.msra.mxu0 %v5306
    %6379 = vmatprep.subr.bf16.mxu0 %v5299
    %6380 = vmatpush1.bf16.msra.mxu0 %v5298
    %6381 = vmatprep.subr.bf16.mxu0 %v5291
    %6382 = vmatpush1.bf16.msra.mxu0 %v5290
    %6383 = vmatprep.subr.bf16.mxu0 %v5283
    %6384 = vmatpush1.bf16.msra.mxu0 %v5282
    %6385 = vmatprep.subr.bf16.mxu0 %v5403
    %6386 = vmatpush2.bf16.msra.mxu0 %v5402
    %6387 = vmatprep.subr.bf16.mxu0 %v5395
    %6388 = vmatpush2.bf16.msra.mxu0 %v5394
    %6389 = vmatprep.subr.bf16.mxu0 %v5387
    %6390 = vmatpush2.bf16.msra.mxu0 %v5386
    %6391 = vmatprep.subr.bf16.mxu0 %v5379
    %6392 = vmatpush2.bf16.msra.mxu0 %v5378
    %6393 = vmatprep.subr.bf16.mxu0 %v5371
    %6394 = vmatpush2.bf16.msra.mxu0 %v5370
    %6395 = vmatprep.subr.bf16.mxu0 %v5363
    %6396 = vmatpush2.bf16.msra.mxu0 %v5362
    %6397 = vmatprep.subr.bf16.mxu0 %v5355
    %6398 = vmatpush2.bf16.msra.mxu0 %v5354
    %6399 = vmatprep.subr.bf16.mxu0 %v5347
    %6400 = vmatpush2.bf16.msra.mxu0 %v5346
    %6401 = vmatprep.mubr.bf16.mxu0 %v3349
    %6402 = vmatmul.mubr.bf16.gmra.mxu0 %v3348
    %v6403 = vpop.f32.mrf.mxu0
    %v6404 = vadd.f32 %v6363, %v6403
    %v6405 = vpop.f32.mrf.mxu0
    %v6406 = vadd.f32 %v6365, %v6405
    %v6407 = vpop.f32.mrf.mxu0
    %v6408 = vpop.f32.mrf.mxu0
    %6409 = vdwg.mxu0
    %6410 = vmatprep.subr.bf16.mxu0 %v4957
    %6411 = vmatpush1.bf16.msra.mxu0 %v4956
    %6412 = vmatprep.subr.bf16.mxu0 %v4949
    %6413 = vmatpush1.bf16.msra.mxu0 %v4948
    %6414 = vmatprep.subr.bf16.mxu0 %v4941
    %6415 = vmatpush1.bf16.msra.mxu0 %v4940
    %6416 = vmatprep.subr.bf16.mxu0 %v4933
    %6417 = vmatpush1.bf16.msra.mxu0 %v4932
    %6418 = vmatprep.subr.bf16.mxu0 %v4925
    %6419 = vmatpush1.bf16.msra.mxu0 %v4924
    %6420 = vmatprep.subr.bf16.mxu0 %v4917
    %6421 = vmatpush1.bf16.msra.mxu0 %v4916
    %6422 = vmatprep.subr.bf16.mxu0 %v4909
    %6423 = vmatpush1.bf16.msra.mxu0 %v4908
    %6424 = vmatprep.subr.bf16.mxu0 %v4901
    %6425 = vmatpush1.bf16.msra.mxu0 %v4900
    %6426 = vmatprep.subr.bf16.mxu0 %v5021
    %6427 = vmatpush2.bf16.msra.mxu0 %v5020
    %6428 = vmatprep.subr.bf16.mxu0 %v5013
    %6429 = vmatpush2.bf16.msra.mxu0 %v5012
    %6430 = vmatprep.subr.bf16.mxu0 %v5005
    %6431 = vmatpush2.bf16.msra.mxu0 %v5004
    %6432 = vmatprep.subr.bf16.mxu0 %v4997
    %6433 = vmatpush2.bf16.msra.mxu0 %v4996
    %6434 = vmatprep.subr.bf16.mxu0 %v4989
    %6435 = vmatpush2.bf16.msra.mxu0 %v4988
    %6436 = vmatprep.subr.bf16.mxu0 %v4981
    %6437 = vmatpush2.bf16.msra.mxu0 %v4980
    %6438 = vmatprep.subr.bf16.mxu0 %v4973
    %6439 = vmatpush2.bf16.msra.mxu0 %v4972
    %6440 = vmatprep.subr.bf16.mxu0 %v4965
    %6441 = vmatpush2.bf16.msra.mxu0 %v4964
    %6442 = vmatprep.mubr.bf16.mxu0 %v3343
    %6443 = vmatmul.mubr.bf16.gmra.mxu0 %v3342
    %v6444 = vpop.f32.mrf.mxu0
    %v6445 = vadd.f32 %v3238, %v6444
    %v6446 = vpop.f32.mrf.mxu0
    %v6447 = vadd.f32 %v3242, %v6446
    %v6448 = vpop.f32.mrf.mxu0
    %v6449 = vpop.f32.mrf.mxu0
    %6450 = vdwg.mxu0
    %6451 = vmatprep.subr.bf16.mxu0 %v5085
    %6452 = vmatpush1.bf16.msra.mxu0 %v5084
    %6453 = vmatprep.subr.bf16.mxu0 %v5077
    %6454 = vmatpush1.bf16.msra.mxu0 %v5076
    %6455 = vmatprep.subr.bf16.mxu0 %v5069
    %6456 = vmatpush1.bf16.msra.mxu0 %v5068
    %6457 = vmatprep.subr.bf16.mxu0 %v5061
    %6458 = vmatpush1.bf16.msra.mxu0 %v5060
    %6459 = vmatprep.subr.bf16.mxu0 %v5053
    %6460 = vmatpush1.bf16.msra.mxu0 %v5052
    %6461 = vmatprep.subr.bf16.mxu0 %v5045
    %6462 = vmatpush1.bf16.msra.mxu0 %v5044
    %6463 = vmatprep.subr.bf16.mxu0 %v5037
    %6464 = vmatpush1.bf16.msra.mxu0 %v5036
    %6465 = vmatprep.subr.bf16.mxu0 %v5029
    %6466 = vmatpush1.bf16.msra.mxu0 %v5028
    %6467 = vmatprep.subr.bf16.mxu0 %v5149
    %6468 = vmatpush2.bf16.msra.mxu0 %v5148
    %6469 = vmatprep.subr.bf16.mxu0 %v5141
    %6470 = vmatpush2.bf16.msra.mxu0 %v5140
    %6471 = vmatprep.subr.bf16.mxu0 %v5133
    %6472 = vmatpush2.bf16.msra.mxu0 %v5132
    %6473 = vmatprep.subr.bf16.mxu0 %v5125
    %6474 = vmatpush2.bf16.msra.mxu0 %v5124
    %6475 = vmatprep.subr.bf16.mxu0 %v5117
    %6476 = vmatpush2.bf16.msra.mxu0 %v5116
    %6477 = vmatprep.subr.bf16.mxu0 %v5109
    %6478 = vmatpush2.bf16.msra.mxu0 %v5108
    %6479 = vmatprep.subr.bf16.mxu0 %v5101
    %6480 = vmatpush2.bf16.msra.mxu0 %v5100
    %6481 = vmatprep.subr.bf16.mxu0 %v5093
    %6482 = vmatpush2.bf16.msra.mxu0 %v5092
    %6483 = vmatprep.mubr.bf16.mxu0 %v3345
    %6484 = vmatmul.mubr.bf16.gmra.mxu0 %v3344
    %v6485 = vpop.f32.mrf.mxu0
    %v6486 = vadd.f32 %v6445, %v6485
    %v6487 = vpop.f32.mrf.mxu0
    %v6488 = vadd.f32 %v6447, %v6487
    %v6489 = vpop.f32.mrf.mxu0
    %v6490 = vpop.f32.mrf.mxu0
    %6491 = vdwg.mxu0
    %6492 = vmatprep.subr.bf16.mxu0 %v5213
    %6493 = vmatpush1.bf16.msra.mxu0 %v5212
    %6494 = vmatprep.subr.bf16.mxu0 %v5205
    %6495 = vmatpush1.bf16.msra.mxu0 %v5204
    %6496 = vmatprep.subr.bf16.mxu0 %v5197
    %6497 = vmatpush1.bf16.msra.mxu0 %v5196
    %6498 = vmatprep.subr.bf16.mxu0 %v5189
    %6499 = vmatpush1.bf16.msra.mxu0 %v5188
    %6500 = vmatprep.subr.bf16.mxu0 %v5181
    %6501 = vmatpush1.bf16.msra.mxu0 %v5180
    %6502 = vmatprep.subr.bf16.mxu0 %v5173
    %6503 = vmatpush1.bf16.msra.mxu0 %v5172
    %6504 = vmatprep.subr.bf16.mxu0 %v5165
    %6505 = vmatpush1.bf16.msra.mxu0 %v5164
    %6506 = vmatprep.subr.bf16.mxu0 %v5157
    %6507 = vmatpush1.bf16.msra.mxu0 %v5156
    %6508 = vmatprep.subr.bf16.mxu0 %v5277
    %6509 = vmatpush2.bf16.msra.mxu0 %v5276
    %6510 = vmatprep.subr.bf16.mxu0 %v5269
    %6511 = vmatpush2.bf16.msra.mxu0 %v5268
    %6512 = vmatprep.subr.bf16.mxu0 %v5261
    %6513 = vmatpush2.bf16.msra.mxu0 %v5260
    %6514 = vmatprep.subr.bf16.mxu0 %v5253
    %6515 = vmatpush2.bf16.msra.mxu0 %v5252
    %6516 = vmatprep.subr.bf16.mxu0 %v5245
    %6517 = vmatpush2.bf16.msra.mxu0 %v5244
    %6518 = vmatprep.subr.bf16.mxu0 %v5237
    %6519 = vmatpush2.bf16.msra.mxu0 %v5236
    %6520 = vmatprep.subr.bf16.mxu0 %v5229
    %6521 = vmatpush2.bf16.msra.mxu0 %v5228
    %6522 = vmatprep.subr.bf16.mxu0 %v5221
    %6523 = vmatpush2.bf16.msra.mxu0 %v5220
    %6524 = vmatprep.mubr.bf16.mxu0 %v3347
    %6525 = vmatmul.mubr.bf16.gmra.mxu0 %v3346
    %v6526 = vpop.f32.mrf.mxu0
    %v6527 = vadd.f32 %v6486, %v6526
    %v6528 = vpop.f32.mrf.mxu0
    %v6529 = vadd.f32 %v6488, %v6528
    %v6530 = vpop.f32.mrf.mxu0
    %v6531 = vpop.f32.mrf.mxu0
    %6532 = vdwg.mxu0
    %6533 = vmatprep.subr.bf16.mxu0 %v5341
    %6534 = vmatpush1.bf16.msra.mxu0 %v5340
    %6535 = vmatprep.subr.bf16.mxu0 %v5333
    %6536 = vmatpush1.bf16.msra.mxu0 %v5332
    %6537 = vmatprep.subr.bf16.mxu0 %v5325
    %6538 = vmatpush1.bf16.msra.mxu0 %v5324
    %6539 = vmatprep.subr.bf16.mxu0 %v5317
    %6540 = vmatpush1.bf16.msra.mxu0 %v5316
    %6541 = vmatprep.subr.bf16.mxu0 %v5309
    %6542 = vmatpush1.bf16.msra.mxu0 %v5308
    %6543 = vmatprep.subr.bf16.mxu0 %v5301
    %6544 = vmatpush1.bf16.msra.mxu0 %v5300
    %6545 = vmatprep.subr.bf16.mxu0 %v5293
    %6546 = vmatpush1.bf16.msra.mxu0 %v5292
    %6547 = vmatprep.subr.bf16.mxu0 %v5285
    %6548 = vmatpush1.bf16.msra.mxu0 %v5284
    %6549 = vmatprep.subr.bf16.mxu0 %v5405
    %6550 = vmatpush2.bf16.msra.mxu0 %v5404
    %6551 = vmatprep.subr.bf16.mxu0 %v5397
    %6552 = vmatpush2.bf16.msra.mxu0 %v5396
    %6553 = vmatprep.subr.bf16.mxu0 %v5389
    %6554 = vmatpush2.bf16.msra.mxu0 %v5388
    %6555 = vmatprep.subr.bf16.mxu0 %v5381
    %6556 = vmatpush2.bf16.msra.mxu0 %v5380
    %6557 = vmatprep.subr.bf16.mxu0 %v5373
    %6558 = vmatpush2.bf16.msra.mxu0 %v5372
    %6559 = vmatprep.subr.bf16.mxu0 %v5365
    %6560 = vmatpush2.bf16.msra.mxu0 %v5364
    %6561 = vmatprep.subr.bf16.mxu0 %v5357
    %6562 = vmatpush2.bf16.msra.mxu0 %v5356
    %6563 = vmatprep.subr.bf16.mxu0 %v5349
    %6564 = vmatpush2.bf16.msra.mxu0 %v5348
    %6565 = vmatprep.mubr.bf16.mxu0 %v3349
    %6566 = vmatmul.mubr.bf16.gmra.mxu0 %v3348
    %v6567 = vpop.f32.mrf.mxu0
    %v6568 = vadd.f32 %v6527, %v6567
    %v6569 = vpop.f32.mrf.mxu0
    %v6570 = vadd.f32 %v6529, %v6569
    %v6571 = vpop.f32.mrf.mxu0
    %v6572 = vpop.f32.mrf.mxu0
    %6573 = vdwg.mxu0
    %v6574 = vld [vmem:[#allocation13] sm:$0xff]
    %v6575 = vld [vmem:[#allocation13 + $0x8] sm:$0xff]
    %v6576 = vld [vmem:[#allocation13 + $0x10] sm:$0xff]
    %v6577 = vld [vmem:[#allocation13 + $0x18] sm:$0xff]
    %v6578 = vld [vmem:[#allocation13 + $0x20] sm:$0xff]
    %v6579 = vld [vmem:[#allocation13 + $0x28] sm:$0xff]
    %v6580 = vld [vmem:[#allocation13 + $0x30] sm:$0xff]
    %v6581 = vld [vmem:[#allocation13 + $0x38] sm:$0xff]
    %v6582 = vld [vmem:[#allocation13 + $0x40] sm:$0xff]
    %v6583 = vld [vmem:[#allocation13 + $0x48] sm:$0xff]
    %v6584 = vld [vmem:[#allocation13 + $0x50] sm:$0xff]
    %v6585 = vld [vmem:[#allocation13 + $0x58] sm:$0xff]
    %v6586 = vld [vmem:[#allocation13 + $0x60] sm:$0xff]
    %v6587 = vld [vmem:[#allocation13 + $0x68] sm:$0xff]
    %v6588 = vld [vmem:[#allocation13 + $0x70] sm:$0xff]
    %v6589 = vld [vmem:[#allocation13 + $0x78] sm:$0xff]
    %v6590 = vld [vmem:[#allocation13 + $0x80] sm:$0xff]
    %v6591 = vld [vmem:[#allocation13 + $0x88] sm:$0xff]
    %v6592 = vld [vmem:[#allocation13 + $0x90] sm:$0xff]
    %v6593 = vld [vmem:[#allocation13 + $0x98] sm:$0xff]
    %v6594 = vld [vmem:[#allocation13 + $0xa0] sm:$0xff]
    %v6595 = vld [vmem:[#allocation13 + $0xa8] sm:$0xff]
    %v6596 = vld [vmem:[#allocation13 + $0xb0] sm:$0xff]
    %v6597 = vld [vmem:[#allocation13 + $0xb8] sm:$0xff]
    %v6598 = vld [vmem:[#allocation13 + $0xc0] sm:$0xff]
    %v6599 = vld [vmem:[#allocation13 + $0xc8] sm:$0xff]
    %v6600 = vld [vmem:[#allocation13 + $0xd0] sm:$0xff]
    %v6601 = vld [vmem:[#allocation13 + $0xd8] sm:$0xff]
    %v6602 = vld [vmem:[#allocation13 + $0xe0] sm:$0xff]
    %v6603 = vld [vmem:[#allocation13 + $0xe8] sm:$0xff]
    %v6604 = vld [vmem:[#allocation13 + $0xf0] sm:$0xff]
    %v6605 = vld [vmem:[#allocation13 + $0xf8] sm:$0xff]
    %v6638 = vunpack.c.l.b16 %v6574
    %v6639 = vunpack.c.h.b16 %v6574
    %v6640 = vunpack.c.l.b16 %v6575
    %v6641 = vunpack.c.h.b16 %v6575
    %v6642 = vunpack.c.l.b16 %v6576
    %v6643 = vunpack.c.h.b16 %v6576
    %v6644 = vunpack.c.l.b16 %v6577
    %v6645 = vunpack.c.h.b16 %v6577
    %v6646 = vunpack.c.l.b16 %v6578
    %v6647 = vunpack.c.h.b16 %v6578
    %v6648 = vunpack.c.l.b16 %v6579
    %v6649 = vunpack.c.h.b16 %v6579
    %v6650 = vunpack.c.l.b16 %v6580
    %v6651 = vunpack.c.h.b16 %v6580
    %v6652 = vunpack.c.l.b16 %v6581
    %v6653 = vunpack.c.h.b16 %v6581
    %v6654 = vunpack.c.l.b16 %v6582
    %v6655 = vunpack.c.h.b16 %v6582
    %v6656 = vunpack.c.l.b16 %v6583
    %v6657 = vunpack.c.h.b16 %v6583
    %v6658 = vunpack.c.l.b16 %v6584
    %v6659 = vunpack.c.h.b16 %v6584
    %v6660 = vunpack.c.l.b16 %v6585
    %v6661 = vunpack.c.h.b16 %v6585
    %v6662 = vunpack.c.l.b16 %v6586
    %v6663 = vunpack.c.h.b16 %v6586
    %v6664 = vunpack.c.l.b16 %v6587
    %v6665 = vunpack.c.h.b16 %v6587
    %v6666 = vunpack.c.l.b16 %v6588
    %v6667 = vunpack.c.h.b16 %v6588
    %v6668 = vunpack.c.l.b16 %v6589
    %v6669 = vunpack.c.h.b16 %v6589
    %v6670 = vunpack.c.l.b16 %v6590
    %v6671 = vunpack.c.h.b16 %v6590
    %v6672 = vunpack.c.l.b16 %v6591
    %v6673 = vunpack.c.h.b16 %v6591
    %v6674 = vunpack.c.l.b16 %v6592
    %v6675 = vunpack.c.h.b16 %v6592
    %v6676 = vunpack.c.l.b16 %v6593
    %v6677 = vunpack.c.h.b16 %v6593
    %v6678 = vunpack.c.l.b16 %v6594
    %v6679 = vunpack.c.h.b16 %v6594
    %v6680 = vunpack.c.l.b16 %v6595
    %v6681 = vunpack.c.h.b16 %v6595
    %v6682 = vunpack.c.l.b16 %v6596
    %v6683 = vunpack.c.h.b16 %v6596
    %v6684 = vunpack.c.l.b16 %v6597
    %v6685 = vunpack.c.h.b16 %v6597
    %v6686 = vunpack.c.l.b16 %v6598
    %v6687 = vunpack.c.h.b16 %v6598
    %v6688 = vunpack.c.l.b16 %v6599
    %v6689 = vunpack.c.h.b16 %v6599
    %v6690 = vunpack.c.l.b16 %v6600
    %v6691 = vunpack.c.h.b16 %v6600
    %v6692 = vunpack.c.l.b16 %v6601
    %v6693 = vunpack.c.h.b16 %v6601
    %v6694 = vunpack.c.l.b16 %v6602
    %v6695 = vunpack.c.h.b16 %v6602
    %v6696 = vunpack.c.l.b16 %v6603
    %v6697 = vunpack.c.h.b16 %v6603
    %v6698 = vunpack.c.l.b16 %v6604
    %v6699 = vunpack.c.h.b16 %v6604
    %v6700 = vunpack.c.l.b16 %v6605
    %v6701 = vunpack.c.h.b16 %v6605
    %v6702 = vpack.c.b16 %v6646, %v6638
    %v6703 = vpack.c.b16 %v6647, %v6639
    %v6704 = vpack.c.b16 %v6648, %v6640
    %v6705 = vpack.c.b16 %v6649, %v6641
    %v6706 = vpack.c.b16 %v6650, %v6642
    %v6707 = vpack.c.b16 %v6651, %v6643
    %v6708 = vpack.c.b16 %v6652, %v6644
    %v6709 = vpack.c.b16 %v6653, %v6645
    %v6710 = vpack.c.b16 %v6662, %v6654
    %v6711 = vpack.c.b16 %v6663, %v6655
    %v6712 = vpack.c.b16 %v6664, %v6656
    %v6713 = vpack.c.b16 %v6665, %v6657
    %v6714 = vpack.c.b16 %v6666, %v6658
    %v6715 = vpack.c.b16 %v6667, %v6659
    %v6716 = vpack.c.b16 %v6668, %v6660
    %v6717 = vpack.c.b16 %v6669, %v6661
    %v6718 = vpack.c.b16 %v6678, %v6670
    %v6719 = vpack.c.b16 %v6679, %v6671
    %v6720 = vpack.c.b16 %v6680, %v6672
    %v6721 = vpack.c.b16 %v6681, %v6673
    %v6722 = vpack.c.b16 %v6682, %v6674
    %v6723 = vpack.c.b16 %v6683, %v6675
    %v6724 = vpack.c.b16 %v6684, %v6676
    %v6725 = vpack.c.b16 %v6685, %v6677
    %v6726 = vpack.c.b16 %v6694, %v6686
    %v6727 = vpack.c.b16 %v6695, %v6687
    %v6728 = vpack.c.b16 %v6696, %v6688
    %v6729 = vpack.c.b16 %v6697, %v6689
    %v6730 = vpack.c.b16 %v6698, %v6690
    %v6731 = vpack.c.b16 %v6699, %v6691
    %v6732 = vpack.c.b16 %v6700, %v6692
    %v6733 = vpack.c.b16 %v6701, %v6693
    %6766 = vmatprep.subr.bf16.mxu0 0
    %6767 = vmatpush1.bf16.msra.mxu0 0
    %6768 = vmatprep.subr.bf16.mxu0 0
    %6769 = vmatpush1.bf16.msra.mxu0 0
    %6770 = vmatprep.subr.bf16.mxu0 0
    %6771 = vmatpush1.bf16.msra.mxu0 0
    %6772 = vmatprep.subr.bf16.mxu0 0
    %6773 = vmatpush1.bf16.msra.mxu0 0
    %6774 = vmatprep.subr.bf16.mxu0 %v6727
    %6775 = vmatpush1.bf16.msra.mxu0 %v6726
    %6776 = vmatprep.subr.bf16.mxu0 %v6719
    %6777 = vmatpush1.bf16.msra.mxu0 %v6718
    %6778 = vmatprep.subr.bf16.mxu0 %v6711
    %6779 = vmatpush1.bf16.msra.mxu0 %v6710
    %6780 = vmatprep.subr.bf16.mxu0 %v6703
    %6781 = vmatpush1.bf16.msra.mxu0 %v6702
    %6782 = vmatprep.subr.bf16.mxu0 0
    %6783 = vmatpush2.bf16.msra.mxu0 0
    %6784 = vmatprep.subr.bf16.mxu0 0
    %6785 = vmatpush2.bf16.msra.mxu0 0
    %6786 = vmatprep.subr.bf16.mxu0 0
    %6787 = vmatpush2.bf16.msra.mxu0 0
    %6788 = vmatprep.subr.bf16.mxu0 0
    %6789 = vmatpush2.bf16.msra.mxu0 0
    %6790 = vmatprep.subr.bf16.mxu0 0
    %6791 = vmatpush2.bf16.msra.mxu0 0
    %6792 = vmatprep.subr.bf16.mxu0 0
    %6793 = vmatpush2.bf16.msra.mxu0 0
    %6794 = vmatprep.subr.bf16.mxu0 0
    %6795 = vmatpush2.bf16.msra.mxu0 0
    %6796 = vmatprep.subr.bf16.mxu0 0
    %6797 = vmatpush2.bf16.msra.mxu0 0
    %6798 = vmatprep.mubr.bf16.mxu0 0
    %6799 = vmatmul.mubr.bf16.gmra.mxu0 %v539
    %v6800 = vpop.f32.mrf.mxu0
    %v6801 = vadd.f32 0.0, %v6800
    %v6802 = vpop.f32.mrf.mxu0
    %v6803 = vadd.f32 0.0, %v6802
    %v6804 = vpop.f32.mrf.mxu0
    %v6805 = vadd.f32 0.0, %v6804
    %v6806 = vpop.f32.mrf.mxu0
    %v6807 = vadd.f32 0.0, %v6806
    %6808 = vmatprep.mubr.bf16.mxu0 0
    %6809 = vmatmul.mubr.bf16.gmra.mxu0 %v542
    %v6810 = vpop.f32.mrf.mxu0
    %v6811 = vadd.f32 0.0, %v6810
    %v6812 = vpop.f32.mrf.mxu0
    %v6813 = vadd.f32 0.0, %v6812
    %v6814 = vpop.f32.mrf.mxu0
    %v6815 = vadd.f32 0.0, %v6814
    %v6816 = vpop.f32.mrf.mxu0
    %v6817 = vadd.f32 0.0, %v6816
    %6818 = vmatprep.mubr.bf16.mxu0 0
    %6819 = vmatmul.mubr.bf16.gmra.mxu0 %v545
    %v6820 = vpop.f32.mrf.mxu0
    %v6821 = vadd.f32 0.0, %v6820
    %v6822 = vpop.f32.mrf.mxu0
    %v6823 = vadd.f32 0.0, %v6822
    %v6824 = vpop.f32.mrf.mxu0
    %v6825 = vadd.f32 0.0, %v6824
    %v6826 = vpop.f32.mrf.mxu0
    %v6827 = vadd.f32 0.0, %v6826
    %6828 = vmatprep.mubr.bf16.mxu0 0
    %6829 = vmatmul.mubr.bf16.gmra.mxu0 %v548
    %v6830 = vpop.f32.mrf.mxu0
    %v6831 = vadd.f32 0.0, %v6830
    %v6832 = vpop.f32.mrf.mxu0
    %v6833 = vadd.f32 0.0, %v6832
    %v6834 = vpop.f32.mrf.mxu0
    %v6835 = vadd.f32 0.0, %v6834
    %v6836 = vpop.f32.mrf.mxu0
    %v6837 = vadd.f32 0.0, %v6836
    %6838 = vmatprep.mubr.bf16.mxu0 0
    %6839 = vmatmul.mubr.bf16.gmra.mxu0 %v551
    %v6840 = vpop.f32.mrf.mxu0
    %v6841 = vadd.f32 0.0, %v6840
    %v6842 = vpop.f32.mrf.mxu0
    %v6843 = vadd.f32 0.0, %v6842
    %v6844 = vpop.f32.mrf.mxu0
    %v6845 = vadd.f32 0.0, %v6844
    %v6846 = vpop.f32.mrf.mxu0
    %v6847 = vadd.f32 0.0, %v6846
    %6848 = vmatprep.mubr.bf16.mxu0 0
    %6849 = vmatmul.mubr.bf16.gmra.mxu0 %v554
    %v6850 = vpop.f32.mrf.mxu0
    %v6851 = vadd.f32 0.0, %v6850
    %v6852 = vpop.f32.mrf.mxu0
    %v6853 = vadd.f32 0.0, %v6852
    %v6854 = vpop.f32.mrf.mxu0
    %v6855 = vadd.f32 0.0, %v6854
    %v6856 = vpop.f32.mrf.mxu0
    %v6857 = vadd.f32 0.0, %v6856
    %6858 = vmatprep.mubr.bf16.mxu0 0
    %6859 = vmatmul.mubr.bf16.gmra.mxu0 %v557
    %v6860 = vpop.f32.mrf.mxu0
    %v6861 = vadd.f32 0.0, %v6860
    %v6862 = vpop.f32.mrf.mxu0
    %v6863 = vadd.f32 0.0, %v6862
    %v6864 = vpop.f32.mrf.mxu0
    %v6865 = vadd.f32 0.0, %v6864
    %v6866 = vpop.f32.mrf.mxu0
    %v6867 = vadd.f32 0.0, %v6866
    %6868 = vmatprep.mubr.bf16.mxu0 0
    %6869 = vmatmul.mubr.bf16.gmra.mxu0 %v560
    %v6870 = vpop.f32.mrf.mxu0
    %v6871 = vadd.f32 0.0, %v6870
    %v6872 = vpop.f32.mrf.mxu0
    %v6873 = vadd.f32 0.0, %v6872
    %v6874 = vpop.f32.mrf.mxu0
    %v6875 = vadd.f32 0.0, %v6874
    %v6876 = vpop.f32.mrf.mxu0
    %v6877 = vadd.f32 0.0, %v6876
    %6878 = vmatprep.mubr.bf16.mxu0 0
    %6879 = vmatmul.mubr.bf16.gmra.mxu0 %v563
    %v6880 = vpop.f32.mrf.mxu0
    %v6881 = vadd.f32 0.0, %v6880
    %v6882 = vpop.f32.mrf.mxu0
    %v6883 = vadd.f32 0.0, %v6882
    %v6884 = vpop.f32.mrf.mxu0
    %v6885 = vadd.f32 0.0, %v6884
    %v6886 = vpop.f32.mrf.mxu0
    %v6887 = vadd.f32 0.0, %v6886
    %6888 = vmatprep.mubr.bf16.mxu0 0
    %6889 = vmatmul.mubr.bf16.gmra.mxu0 %v566
    %v6890 = vpop.f32.mrf.mxu0
    %v6891 = vadd.f32 0.0, %v6890
    %v6892 = vpop.f32.mrf.mxu0
    %v6893 = vadd.f32 0.0, %v6892
    %v6894 = vpop.f32.mrf.mxu0
    %v6895 = vadd.f32 0.0, %v6894
    %v6896 = vpop.f32.mrf.mxu0
    %v6897 = vadd.f32 0.0, %v6896
    %6898 = vmatprep.mubr.bf16.mxu0 0
    %6899 = vmatmul.mubr.bf16.gmra.mxu0 %v569
    %v6900 = vpop.f32.mrf.mxu0
    %v6901 = vadd.f32 0.0, %v6900
    %v6902 = vpop.f32.mrf.mxu0
    %v6903 = vadd.f32 0.0, %v6902
    %v6904 = vpop.f32.mrf.mxu0
    %v6905 = vadd.f32 0.0, %v6904
    %v6906 = vpop.f32.mrf.mxu0
    %v6907 = vadd.f32 0.0, %v6906
    %6908 = vmatprep.mubr.bf16.mxu0 0
    %6909 = vmatmul.mubr.bf16.gmra.mxu0 %v572
    %v6910 = vpop.f32.mrf.mxu0
    %v6911 = vadd.f32 0.0, %v6910
    %v6912 = vpop.f32.mrf.mxu0
    %v6913 = vadd.f32 0.0, %v6912
    %v6914 = vpop.f32.mrf.mxu0
    %v6915 = vadd.f32 0.0, %v6914
    %v6916 = vpop.f32.mrf.mxu0
    %v6917 = vadd.f32 0.0, %v6916
    %6918 = vmatprep.mubr.bf16.mxu0 0
    %6919 = vmatmul.mubr.bf16.gmra.mxu0 %v575
    %v6920 = vpop.f32.mrf.mxu0
    %v6921 = vadd.f32 0.0, %v6920
    %v6922 = vpop.f32.mrf.mxu0
    %v6923 = vadd.f32 0.0, %v6922
    %v6924 = vpop.f32.mrf.mxu0
    %v6925 = vadd.f32 0.0, %v6924
    %v6926 = vpop.f32.mrf.mxu0
    %v6927 = vadd.f32 0.0, %v6926
    %6928 = vmatprep.mubr.bf16.mxu0 0
    %6929 = vmatmul.mubr.bf16.gmra.mxu0 %v578
    %v6930 = vpop.f32.mrf.mxu0
    %v6931 = vadd.f32 0.0, %v6930
    %v6932 = vpop.f32.mrf.mxu0
    %v6933 = vadd.f32 0.0, %v6932
    %v6934 = vpop.f32.mrf.mxu0
    %v6935 = vadd.f32 0.0, %v6934
    %v6936 = vpop.f32.mrf.mxu0
    %v6937 = vadd.f32 0.0, %v6936
    %6938 = vmatprep.mubr.bf16.mxu0 0
    %6939 = vmatmul.mubr.bf16.gmra.mxu0 %v581
    %v6940 = vpop.f32.mrf.mxu0
    %v6941 = vadd.f32 0.0, %v6940
    %v6942 = vpop.f32.mrf.mxu0
    %v6943 = vadd.f32 0.0, %v6942
    %v6944 = vpop.f32.mrf.mxu0
    %v6945 = vadd.f32 0.0, %v6944
    %v6946 = vpop.f32.mrf.mxu0
    %v6947 = vadd.f32 0.0, %v6946
    %6948 = vmatprep.mubr.bf16.mxu0 0
    %6949 = vmatmul.mubr.bf16.gmra.mxu0 %v584
    %v6950 = vpop.f32.mrf.mxu0
    %v6951 = vadd.f32 0.0, %v6950
    %v6952 = vpop.f32.mrf.mxu0
    %v6953 = vadd.f32 0.0, %v6952
    %v6954 = vpop.f32.mrf.mxu0
    %v6955 = vadd.f32 0.0, %v6954
    %v6956 = vpop.f32.mrf.mxu0
    %v6957 = vadd.f32 0.0, %v6956
    %6958 = vdwg.mxu0
    %6959 = vmatprep.subr.bf16.mxu0 0
    %6960 = vmatpush1.bf16.msra.mxu0 0
    %6961 = vmatprep.subr.bf16.mxu0 0
    %6962 = vmatpush1.bf16.msra.mxu0 0
    %6963 = vmatprep.subr.bf16.mxu0 0
    %6964 = vmatpush1.bf16.msra.mxu0 0
    %6965 = vmatprep.subr.bf16.mxu0 0
    %6966 = vmatpush1.bf16.msra.mxu0 0
    %6967 = vmatprep.subr.bf16.mxu0 %v6729
    %6968 = vmatpush1.bf16.msra.mxu0 %v6728
    %6969 = vmatprep.subr.bf16.mxu0 %v6721
    %6970 = vmatpush1.bf16.msra.mxu0 %v6720
    %6971 = vmatprep.subr.bf16.mxu0 %v6713
    %6972 = vmatpush1.bf16.msra.mxu0 %v6712
    %6973 = vmatprep.subr.bf16.mxu0 %v6705
    %6974 = vmatpush1.bf16.msra.mxu0 %v6704
    %6975 = vmatprep.subr.bf16.mxu0 0
    %6976 = vmatpush2.bf16.msra.mxu0 0
    %6977 = vmatprep.subr.bf16.mxu0 0
    %6978 = vmatpush2.bf16.msra.mxu0 0
    %6979 = vmatprep.subr.bf16.mxu0 0
    %6980 = vmatpush2.bf16.msra.mxu0 0
    %6981 = vmatprep.subr.bf16.mxu0 0
    %6982 = vmatpush2.bf16.msra.mxu0 0
    %6983 = vmatprep.subr.bf16.mxu0 0
    %6984 = vmatpush2.bf16.msra.mxu0 0
    %6985 = vmatprep.subr.bf16.mxu0 0
    %6986 = vmatpush2.bf16.msra.mxu0 0
    %6987 = vmatprep.subr.bf16.mxu0 0
    %6988 = vmatpush2.bf16.msra.mxu0 0
    %6989 = vmatprep.subr.bf16.mxu0 0
    %6990 = vmatpush2.bf16.msra.mxu0 0
    %6991 = vmatprep.mubr.bf16.mxu0 0
    %6992 = vmatmul.mubr.bf16.gmra.mxu0 %v539
    %v6993 = vpop.f32.mrf.mxu0
    %v6994 = vadd.f32 0.0, %v6993
    %v6995 = vpop.f32.mrf.mxu0
    %v6996 = vadd.f32 0.0, %v6995
    %v6997 = vpop.f32.mrf.mxu0
    %v6998 = vadd.f32 0.0, %v6997
    %v6999 = vpop.f32.mrf.mxu0
    %v7000 = vadd.f32 0.0, %v6999
    %7001 = vmatprep.mubr.bf16.mxu0 0
    %7002 = vmatmul.mubr.bf16.gmra.mxu0 %v542
    %v7003 = vpop.f32.mrf.mxu0
    %v7004 = vadd.f32 0.0, %v7003
    %v7005 = vpop.f32.mrf.mxu0
    %v7006 = vadd.f32 0.0, %v7005
    %v7007 = vpop.f32.mrf.mxu0
    %v7008 = vadd.f32 0.0, %v7007
    %v7009 = vpop.f32.mrf.mxu0
    %v7010 = vadd.f32 0.0, %v7009
    %7011 = vmatprep.mubr.bf16.mxu0 0
    %7012 = vmatmul.mubr.bf16.gmra.mxu0 %v545
    %v7013 = vpop.f32.mrf.mxu0
    %v7014 = vadd.f32 0.0, %v7013
    %v7015 = vpop.f32.mrf.mxu0
    %v7016 = vadd.f32 0.0, %v7015
    %v7017 = vpop.f32.mrf.mxu0
    %v7018 = vadd.f32 0.0, %v7017
    %v7019 = vpop.f32.mrf.mxu0
    %v7020 = vadd.f32 0.0, %v7019
    %7021 = vmatprep.mubr.bf16.mxu0 0
    %7022 = vmatmul.mubr.bf16.gmra.mxu0 %v548
    %v7023 = vpop.f32.mrf.mxu0
    %v7024 = vadd.f32 0.0, %v7023
    %v7025 = vpop.f32.mrf.mxu0
    %v7026 = vadd.f32 0.0, %v7025
    %v7027 = vpop.f32.mrf.mxu0
    %v7028 = vadd.f32 0.0, %v7027
    %v7029 = vpop.f32.mrf.mxu0
    %v7030 = vadd.f32 0.0, %v7029
    %7031 = vmatprep.mubr.bf16.mxu0 0
    %7032 = vmatmul.mubr.bf16.gmra.mxu0 %v551
    %v7033 = vpop.f32.mrf.mxu0
    %v7034 = vadd.f32 0.0, %v7033
    %v7035 = vpop.f32.mrf.mxu0
    %v7036 = vadd.f32 0.0, %v7035
    %v7037 = vpop.f32.mrf.mxu0
    %v7038 = vadd.f32 0.0, %v7037
    %v7039 = vpop.f32.mrf.mxu0
    %v7040 = vadd.f32 0.0, %v7039
    %7041 = vmatprep.mubr.bf16.mxu0 0
    %7042 = vmatmul.mubr.bf16.gmra.mxu0 %v554
    %v7043 = vpop.f32.mrf.mxu0
    %v7044 = vadd.f32 0.0, %v7043
    %v7045 = vpop.f32.mrf.mxu0
    %v7046 = vadd.f32 0.0, %v7045
    %v7047 = vpop.f32.mrf.mxu0
    %v7048 = vadd.f32 0.0, %v7047
    %v7049 = vpop.f32.mrf.mxu0
    %v7050 = vadd.f32 0.0, %v7049
    %7051 = vmatprep.mubr.bf16.mxu0 0
    %7052 = vmatmul.mubr.bf16.gmra.mxu0 %v557
    %v7053 = vpop.f32.mrf.mxu0
    %v7054 = vadd.f32 0.0, %v7053
    %v7055 = vpop.f32.mrf.mxu0
    %v7056 = vadd.f32 0.0, %v7055
    %v7057 = vpop.f32.mrf.mxu0
    %v7058 = vadd.f32 0.0, %v7057
    %v7059 = vpop.f32.mrf.mxu0
    %v7060 = vadd.f32 0.0, %v7059
    %7061 = vmatprep.mubr.bf16.mxu0 0
    %7062 = vmatmul.mubr.bf16.gmra.mxu0 %v560
    %v7063 = vpop.f32.mrf.mxu0
    %v7064 = vadd.f32 0.0, %v7063
    %v7065 = vpop.f32.mrf.mxu0
    %v7066 = vadd.f32 0.0, %v7065
    %v7067 = vpop.f32.mrf.mxu0
    %v7068 = vadd.f32 0.0, %v7067
    %v7069 = vpop.f32.mrf.mxu0
    %v7070 = vadd.f32 0.0, %v7069
    %7071 = vmatprep.mubr.bf16.mxu0 0
    %7072 = vmatmul.mubr.bf16.gmra.mxu0 %v563
    %v7073 = vpop.f32.mrf.mxu0
    %v7074 = vadd.f32 0.0, %v7073
    %v7075 = vpop.f32.mrf.mxu0
    %v7076 = vadd.f32 0.0, %v7075
    %v7077 = vpop.f32.mrf.mxu0
    %v7078 = vadd.f32 0.0, %v7077
    %v7079 = vpop.f32.mrf.mxu0
    %v7080 = vadd.f32 0.0, %v7079
    %7081 = vmatprep.mubr.bf16.mxu0 0
    %7082 = vmatmul.mubr.bf16.gmra.mxu0 %v566
    %v7083 = vpop.f32.mrf.mxu0
    %v7084 = vadd.f32 0.0, %v7083
    %v7085 = vpop.f32.mrf.mxu0
    %v7086 = vadd.f32 0.0, %v7085
    %v7087 = vpop.f32.mrf.mxu0
    %v7088 = vadd.f32 0.0, %v7087
    %v7089 = vpop.f32.mrf.mxu0
    %v7090 = vadd.f32 0.0, %v7089
    %7091 = vmatprep.mubr.bf16.mxu0 0
    %7092 = vmatmul.mubr.bf16.gmra.mxu0 %v569
    %v7093 = vpop.f32.mrf.mxu0
    %v7094 = vadd.f32 0.0, %v7093
    %v7095 = vpop.f32.mrf.mxu0
    %v7096 = vadd.f32 0.0, %v7095
    %v7097 = vpop.f32.mrf.mxu0
    %v7098 = vadd.f32 0.0, %v7097
    %v7099 = vpop.f32.mrf.mxu0
    %v7100 = vadd.f32 0.0, %v7099
    %7101 = vmatprep.mubr.bf16.mxu0 0
    %7102 = vmatmul.mubr.bf16.gmra.mxu0 %v572
    %v7103 = vpop.f32.mrf.mxu0
    %v7104 = vadd.f32 0.0, %v7103
    %v7105 = vpop.f32.mrf.mxu0
    %v7106 = vadd.f32 0.0, %v7105
    %v7107 = vpop.f32.mrf.mxu0
    %v7108 = vadd.f32 0.0, %v7107
    %v7109 = vpop.f32.mrf.mxu0
    %v7110 = vadd.f32 0.0, %v7109
    %7111 = vmatprep.mubr.bf16.mxu0 0
    %7112 = vmatmul.mubr.bf16.gmra.mxu0 %v575
    %v7113 = vpop.f32.mrf.mxu0
    %v7114 = vadd.f32 0.0, %v7113
    %v7115 = vpop.f32.mrf.mxu0
    %v7116 = vadd.f32 0.0, %v7115
    %v7117 = vpop.f32.mrf.mxu0
    %v7118 = vadd.f32 0.0, %v7117
    %v7119 = vpop.f32.mrf.mxu0
    %v7120 = vadd.f32 0.0, %v7119
    %7121 = vmatprep.mubr.bf16.mxu0 0
    %7122 = vmatmul.mubr.bf16.gmra.mxu0 %v578
    %v7123 = vpop.f32.mrf.mxu0
    %v7124 = vadd.f32 0.0, %v7123
    %v7125 = vpop.f32.mrf.mxu0
    %v7126 = vadd.f32 0.0, %v7125
    %v7127 = vpop.f32.mrf.mxu0
    %v7128 = vadd.f32 0.0, %v7127
    %v7129 = vpop.f32.mrf.mxu0
    %v7130 = vadd.f32 0.0, %v7129
    %7131 = vmatprep.mubr.bf16.mxu0 0
    %7132 = vmatmul.mubr.bf16.gmra.mxu0 %v581
    %v7133 = vpop.f32.mrf.mxu0
    %v7134 = vadd.f32 0.0, %v7133
    %v7135 = vpop.f32.mrf.mxu0
    %v7136 = vadd.f32 0.0, %v7135
    %v7137 = vpop.f32.mrf.mxu0
    %v7138 = vadd.f32 0.0, %v7137
    %v7139 = vpop.f32.mrf.mxu0
    %v7140 = vadd.f32 0.0, %v7139
    %7141 = vmatprep.mubr.bf16.mxu0 0
    %7142 = vmatmul.mubr.bf16.gmra.mxu0 %v584
    %v7143 = vpop.f32.mrf.mxu0
    %v7144 = vadd.f32 0.0, %v7143
    %v7145 = vpop.f32.mrf.mxu0
    %v7146 = vadd.f32 0.0, %v7145
    %v7147 = vpop.f32.mrf.mxu0
    %v7148 = vadd.f32 0.0, %v7147
    %v7149 = vpop.f32.mrf.mxu0
    %v7150 = vadd.f32 0.0, %v7149
    %7151 = vdwg.mxu0
    %7152 = vmatprep.subr.bf16.mxu0 0
    %7153 = vmatpush1.bf16.msra.mxu0 0
    %7154 = vmatprep.subr.bf16.mxu0 0
    %7155 = vmatpush1.bf16.msra.mxu0 0
    %7156 = vmatprep.subr.bf16.mxu0 0
    %7157 = vmatpush1.bf16.msra.mxu0 0
    %7158 = vmatprep.subr.bf16.mxu0 0
    %7159 = vmatpush1.bf16.msra.mxu0 0
    %7160 = vmatprep.subr.bf16.mxu0 %v6731
    %7161 = vmatpush1.bf16.msra.mxu0 %v6730
    %7162 = vmatprep.subr.bf16.mxu0 %v6723
    %7163 = vmatpush1.bf16.msra.mxu0 %v6722
    %7164 = vmatprep.subr.bf16.mxu0 %v6715
    %7165 = vmatpush1.bf16.msra.mxu0 %v6714
    %7166 = vmatprep.subr.bf16.mxu0 %v6707
    %7167 = vmatpush1.bf16.msra.mxu0 %v6706
    %7168 = vmatprep.subr.bf16.mxu0 0
    %7169 = vmatpush2.bf16.msra.mxu0 0
    %7170 = vmatprep.subr.bf16.mxu0 0
    %7171 = vmatpush2.bf16.msra.mxu0 0
    %7172 = vmatprep.subr.bf16.mxu0 0
    %7173 = vmatpush2.bf16.msra.mxu0 0
    %7174 = vmatprep.subr.bf16.mxu0 0
    %7175 = vmatpush2.bf16.msra.mxu0 0
    %7176 = vmatprep.subr.bf16.mxu0 0
    %7177 = vmatpush2.bf16.msra.mxu0 0
    %7178 = vmatprep.subr.bf16.mxu0 0
    %7179 = vmatpush2.bf16.msra.mxu0 0
    %7180 = vmatprep.subr.bf16.mxu0 0
    %7181 = vmatpush2.bf16.msra.mxu0 0
    %7182 = vmatprep.subr.bf16.mxu0 0
    %7183 = vmatpush2.bf16.msra.mxu0 0
    %7184 = vmatprep.mubr.bf16.mxu0 0
    %7185 = vmatmul.mubr.bf16.gmra.mxu0 %v539
    %v7186 = vpop.f32.mrf.mxu0
    %v7187 = vadd.f32 0.0, %v7186
    %v7188 = vpop.f32.mrf.mxu0
    %v7189 = vadd.f32 0.0, %v7188
    %v7190 = vpop.f32.mrf.mxu0
    %v7191 = vadd.f32 0.0, %v7190
    %v7192 = vpop.f32.mrf.mxu0
    %v7193 = vadd.f32 0.0, %v7192
    %7194 = vmatprep.mubr.bf16.mxu0 0
    %7195 = vmatmul.mubr.bf16.gmra.mxu0 %v542
    %v7196 = vpop.f32.mrf.mxu0
    %v7197 = vadd.f32 0.0, %v7196
    %v7198 = vpop.f32.mrf.mxu0
    %v7199 = vadd.f32 0.0, %v7198
    %v7200 = vpop.f32.mrf.mxu0
    %v7201 = vadd.f32 0.0, %v7200
    %v7202 = vpop.f32.mrf.mxu0
    %v7203 = vadd.f32 0.0, %v7202
    %7204 = vmatprep.mubr.bf16.mxu0 0
    %7205 = vmatmul.mubr.bf16.gmra.mxu0 %v545
    %v7206 = vpop.f32.mrf.mxu0
    %v7207 = vadd.f32 0.0, %v7206
    %v7208 = vpop.f32.mrf.mxu0
    %v7209 = vadd.f32 0.0, %v7208
    %v7210 = vpop.f32.mrf.mxu0
    %v7211 = vadd.f32 0.0, %v7210
    %v7212 = vpop.f32.mrf.mxu0
    %v7213 = vadd.f32 0.0, %v7212
    %7214 = vmatprep.mubr.bf16.mxu0 0
    %7215 = vmatmul.mubr.bf16.gmra.mxu0 %v548
    %v7216 = vpop.f32.mrf.mxu0
    %v7217 = vadd.f32 0.0, %v7216
    %v7218 = vpop.f32.mrf.mxu0
    %v7219 = vadd.f32 0.0, %v7218
    %v7220 = vpop.f32.mrf.mxu0
    %v7221 = vadd.f32 0.0, %v7220
    %v7222 = vpop.f32.mrf.mxu0
    %v7223 = vadd.f32 0.0, %v7222
    %7224 = vmatprep.mubr.bf16.mxu0 0
    %7225 = vmatmul.mubr.bf16.gmra.mxu0 %v551
    %v7226 = vpop.f32.mrf.mxu0
    %v7227 = vadd.f32 0.0, %v7226
    %v7228 = vpop.f32.mrf.mxu0
    %v7229 = vadd.f32 0.0, %v7228
    %v7230 = vpop.f32.mrf.mxu0
    %v7231 = vadd.f32 0.0, %v7230
    %v7232 = vpop.f32.mrf.mxu0
    %v7233 = vadd.f32 0.0, %v7232
    %7234 = vmatprep.mubr.bf16.mxu0 0
    %7235 = vmatmul.mubr.bf16.gmra.mxu0 %v554
    %v7236 = vpop.f32.mrf.mxu0
    %v7237 = vadd.f32 0.0, %v7236
    %v7238 = vpop.f32.mrf.mxu0
    %v7239 = vadd.f32 0.0, %v7238
    %v7240 = vpop.f32.mrf.mxu0
    %v7241 = vadd.f32 0.0, %v7240
    %v7242 = vpop.f32.mrf.mxu0
    %v7243 = vadd.f32 0.0, %v7242
    %7244 = vmatprep.mubr.bf16.mxu0 0
    %7245 = vmatmul.mubr.bf16.gmra.mxu0 %v557
    %v7246 = vpop.f32.mrf.mxu0
    %v7247 = vadd.f32 0.0, %v7246
    %v7248 = vpop.f32.mrf.mxu0
    %v7249 = vadd.f32 0.0, %v7248
    %v7250 = vpop.f32.mrf.mxu0
    %v7251 = vadd.f32 0.0, %v7250
    %v7252 = vpop.f32.mrf.mxu0
    %v7253 = vadd.f32 0.0, %v7252
    %7254 = vmatprep.mubr.bf16.mxu0 0
    %7255 = vmatmul.mubr.bf16.gmra.mxu0 %v560
    %v7256 = vpop.f32.mrf.mxu0
    %v7257 = vadd.f32 0.0, %v7256
    %v7258 = vpop.f32.mrf.mxu0
    %v7259 = vadd.f32 0.0, %v7258
    %v7260 = vpop.f32.mrf.mxu0
    %v7261 = vadd.f32 0.0, %v7260
    %v7262 = vpop.f32.mrf.mxu0
    %v7263 = vadd.f32 0.0, %v7262
    %7264 = vmatprep.mubr.bf16.mxu0 0
    %7265 = vmatmul.mubr.bf16.gmra.mxu0 %v563
    %v7266 = vpop.f32.mrf.mxu0
    %v7267 = vadd.f32 0.0, %v7266
    %v7268 = vpop.f32.mrf.mxu0
    %v7269 = vadd.f32 0.0, %v7268
    %v7270 = vpop.f32.mrf.mxu0
    %v7271 = vadd.f32 0.0, %v7270
    %v7272 = vpop.f32.mrf.mxu0
    %v7273 = vadd.f32 0.0, %v7272
    %7274 = vmatprep.mubr.bf16.mxu0 0
    %7275 = vmatmul.mubr.bf16.gmra.mxu0 %v566
    %v7276 = vpop.f32.mrf.mxu0
    %v7277 = vadd.f32 0.0, %v7276
    %v7278 = vpop.f32.mrf.mxu0
    %v7279 = vadd.f32 0.0, %v7278
    %v7280 = vpop.f32.mrf.mxu0
    %v7281 = vadd.f32 0.0, %v7280
    %v7282 = vpop.f32.mrf.mxu0
    %v7283 = vadd.f32 0.0, %v7282
    %7284 = vmatprep.mubr.bf16.mxu0 0
    %7285 = vmatmul.mubr.bf16.gmra.mxu0 %v569
    %v7286 = vpop.f32.mrf.mxu0
    %v7287 = vadd.f32 0.0, %v7286
    %v7288 = vpop.f32.mrf.mxu0
    %v7289 = vadd.f32 0.0, %v7288
    %v7290 = vpop.f32.mrf.mxu0
    %v7291 = vadd.f32 0.0, %v7290
    %v7292 = vpop.f32.mrf.mxu0
    %v7293 = vadd.f32 0.0, %v7292
    %7294 = vmatprep.mubr.bf16.mxu0 0
    %7295 = vmatmul.mubr.bf16.gmra.mxu0 %v572
    %v7296 = vpop.f32.mrf.mxu0
    %v7297 = vadd.f32 0.0, %v7296
    %v7298 = vpop.f32.mrf.mxu0
    %v7299 = vadd.f32 0.0, %v7298
    %v7300 = vpop.f32.mrf.mxu0
    %v7301 = vadd.f32 0.0, %v7300
    %v7302 = vpop.f32.mrf.mxu0
    %v7303 = vadd.f32 0.0, %v7302
    %7304 = vmatprep.mubr.bf16.mxu0 0
    %7305 = vmatmul.mubr.bf16.gmra.mxu0 %v575
    %v7306 = vpop.f32.mrf.mxu0
    %v7307 = vadd.f32 0.0, %v7306
    %v7308 = vpop.f32.mrf.mxu0
    %v7309 = vadd.f32 0.0, %v7308
    %v7310 = vpop.f32.mrf.mxu0
    %v7311 = vadd.f32 0.0, %v7310
    %v7312 = vpop.f32.mrf.mxu0
    %v7313 = vadd.f32 0.0, %v7312
    %7314 = vmatprep.mubr.bf16.mxu0 0
    %7315 = vmatmul.mubr.bf16.gmra.mxu0 %v578
    %v7316 = vpop.f32.mrf.mxu0
    %v7317 = vadd.f32 0.0, %v7316
    %v7318 = vpop.f32.mrf.mxu0
    %v7319 = vadd.f32 0.0, %v7318
    %v7320 = vpop.f32.mrf.mxu0
    %v7321 = vadd.f32 0.0, %v7320
    %v7322 = vpop.f32.mrf.mxu0
    %v7323 = vadd.f32 0.0, %v7322
    %7324 = vmatprep.mubr.bf16.mxu0 0
    %7325 = vmatmul.mubr.bf16.gmra.mxu0 %v581
    %v7326 = vpop.f32.mrf.mxu0
    %v7327 = vadd.f32 0.0, %v7326
    %v7328 = vpop.f32.mrf.mxu0
    %v7329 = vadd.f32 0.0, %v7328
    %v7330 = vpop.f32.mrf.mxu0
    %v7331 = vadd.f32 0.0, %v7330
    %v7332 = vpop.f32.mrf.mxu0
    %v7333 = vadd.f32 0.0, %v7332
    %7334 = vmatprep.mubr.bf16.mxu0 0
    %7335 = vmatmul.mubr.bf16.gmra.mxu0 %v584
    %v7336 = vpop.f32.mrf.mxu0
    %v7337 = vadd.f32 0.0, %v7336
    %v7338 = vpop.f32.mrf.mxu0
    %v7339 = vadd.f32 0.0, %v7338
    %v7340 = vpop.f32.mrf.mxu0
    %v7341 = vadd.f32 0.0, %v7340
    %v7342 = vpop.f32.mrf.mxu0
    %v7343 = vadd.f32 0.0, %v7342
    %7344 = vdwg.mxu0
    %7345 = vmatprep.subr.bf16.mxu0 0
    %7346 = vmatpush1.bf16.msra.mxu0 0
    %7347 = vmatprep.subr.bf16.mxu0 0
    %7348 = vmatpush1.bf16.msra.mxu0 0
    %7349 = vmatprep.subr.bf16.mxu0 0
    %7350 = vmatpush1.bf16.msra.mxu0 0
    %7351 = vmatprep.subr.bf16.mxu0 0
    %7352 = vmatpush1.bf16.msra.mxu0 0
    %7353 = vmatprep.subr.bf16.mxu0 %v6733
    %7354 = vmatpush1.bf16.msra.mxu0 %v6732
    %7355 = vmatprep.subr.bf16.mxu0 %v6725
    %7356 = vmatpush1.bf16.msra.mxu0 %v6724
    %7357 = vmatprep.subr.bf16.mxu0 %v6717
    %7358 = vmatpush1.bf16.msra.mxu0 %v6716
    %7359 = vmatprep.subr.bf16.mxu0 %v6709
    %7360 = vmatpush1.bf16.msra.mxu0 %v6708
    %7361 = vmatprep.subr.bf16.mxu0 0
    %7362 = vmatpush2.bf16.msra.mxu0 0
    %7363 = vmatprep.subr.bf16.mxu0 0
    %7364 = vmatpush2.bf16.msra.mxu0 0
    %7365 = vmatprep.subr.bf16.mxu0 0
    %7366 = vmatpush2.bf16.msra.mxu0 0
    %7367 = vmatprep.subr.bf16.mxu0 0
    %7368 = vmatpush2.bf16.msra.mxu0 0
    %7369 = vmatprep.subr.bf16.mxu0 0
    %7370 = vmatpush2.bf16.msra.mxu0 0
    %7371 = vmatprep.subr.bf16.mxu0 0
    %7372 = vmatpush2.bf16.msra.mxu0 0
    %7373 = vmatprep.subr.bf16.mxu0 0
    %7374 = vmatpush2.bf16.msra.mxu0 0
    %7375 = vmatprep.subr.bf16.mxu0 0
    %7376 = vmatpush2.bf16.msra.mxu0 0
    %7377 = vmatprep.mubr.bf16.mxu0 0
    %7378 = vmatmul.mubr.bf16.gmra.mxu0 %v539
    %v7379 = vpop.f32.mrf.mxu0
    %v7380 = vadd.f32 0.0, %v7379
    %v7381 = vpop.f32.mrf.mxu0
    %v7382 = vadd.f32 0.0, %v7381
    %v7383 = vpop.f32.mrf.mxu0
    %v7384 = vadd.f32 0.0, %v7383
    %v7385 = vpop.f32.mrf.mxu0
    %v7386 = vadd.f32 0.0, %v7385
    %7387 = vmatprep.mubr.bf16.mxu0 0
    %7388 = vmatmul.mubr.bf16.gmra.mxu0 %v542
    %v7389 = vpop.f32.mrf.mxu0
    %v7390 = vadd.f32 0.0, %v7389
    %v7391 = vpop.f32.mrf.mxu0
    %v7392 = vadd.f32 0.0, %v7391
    %v7393 = vpop.f32.mrf.mxu0
    %v7394 = vadd.f32 0.0, %v7393
    %v7395 = vpop.f32.mrf.mxu0
    %v7396 = vadd.f32 0.0, %v7395
    %7397 = vmatprep.mubr.bf16.mxu0 0
    %7398 = vmatmul.mubr.bf16.gmra.mxu0 %v545
    %v7399 = vpop.f32.mrf.mxu0
    %v7400 = vadd.f32 0.0, %v7399
    %v7401 = vpop.f32.mrf.mxu0
    %v7402 = vadd.f32 0.0, %v7401
    %v7403 = vpop.f32.mrf.mxu0
    %v7404 = vadd.f32 0.0, %v7403
    %v7405 = vpop.f32.mrf.mxu0
    %v7406 = vadd.f32 0.0, %v7405
    %7407 = vmatprep.mubr.bf16.mxu0 0
    %7408 = vmatmul.mubr.bf16.gmra.mxu0 %v548
    %v7409 = vpop.f32.mrf.mxu0
    %v7410 = vadd.f32 0.0, %v7409
    %v7411 = vpop.f32.mrf.mxu0
    %v7412 = vadd.f32 0.0, %v7411
    %v7413 = vpop.f32.mrf.mxu0
    %v7414 = vadd.f32 0.0, %v7413
    %v7415 = vpop.f32.mrf.mxu0
    %v7416 = vadd.f32 0.0, %v7415
    %7417 = vmatprep.mubr.bf16.mxu0 0
    %7418 = vmatmul.mubr.bf16.gmra.mxu0 %v551
    %v7419 = vpop.f32.mrf.mxu0
    %v7420 = vadd.f32 0.0, %v7419
    %v7421 = vpop.f32.mrf.mxu0
    %v7422 = vadd.f32 0.0, %v7421
    %v7423 = vpop.f32.mrf.mxu0
    %v7424 = vadd.f32 0.0, %v7423
    %v7425 = vpop.f32.mrf.mxu0
    %v7426 = vadd.f32 0.0, %v7425
    %7427 = vmatprep.mubr.bf16.mxu0 0
    %7428 = vmatmul.mubr.bf16.gmra.mxu0 %v554
    %v7429 = vpop.f32.mrf.mxu0
    %v7430 = vadd.f32 0.0, %v7429
    %v7431 = vpop.f32.mrf.mxu0
    %v7432 = vadd.f32 0.0, %v7431
    %v7433 = vpop.f32.mrf.mxu0
    %v7434 = vadd.f32 0.0, %v7433
    %v7435 = vpop.f32.mrf.mxu0
    %v7436 = vadd.f32 0.0, %v7435
    %7437 = vmatprep.mubr.bf16.mxu0 0
    %7438 = vmatmul.mubr.bf16.gmra.mxu0 %v557
    %v7439 = vpop.f32.mrf.mxu0
    %v7440 = vadd.f32 0.0, %v7439
    %v7441 = vpop.f32.mrf.mxu0
    %v7442 = vadd.f32 0.0, %v7441
    %v7443 = vpop.f32.mrf.mxu0
    %v7444 = vadd.f32 0.0, %v7443
    %v7445 = vpop.f32.mrf.mxu0
    %v7446 = vadd.f32 0.0, %v7445
    %7447 = vmatprep.mubr.bf16.mxu0 0
    %7448 = vmatmul.mubr.bf16.gmra.mxu0 %v560
    %v7449 = vpop.f32.mrf.mxu0
    %v7450 = vadd.f32 0.0, %v7449
    %v7451 = vpop.f32.mrf.mxu0
    %v7452 = vadd.f32 0.0, %v7451
    %v7453 = vpop.f32.mrf.mxu0
    %v7454 = vadd.f32 0.0, %v7453
    %v7455 = vpop.f32.mrf.mxu0
    %v7456 = vadd.f32 0.0, %v7455
    %7457 = vmatprep.mubr.bf16.mxu0 0
    %7458 = vmatmul.mubr.bf16.gmra.mxu0 %v563
    %v7459 = vpop.f32.mrf.mxu0
    %v7460 = vadd.f32 0.0, %v7459
    %v7461 = vpop.f32.mrf.mxu0
    %v7462 = vadd.f32 0.0, %v7461
    %v7463 = vpop.f32.mrf.mxu0
    %v7464 = vadd.f32 0.0, %v7463
    %v7465 = vpop.f32.mrf.mxu0
    %v7466 = vadd.f32 0.0, %v7465
    %7467 = vmatprep.mubr.bf16.mxu0 0
    %7468 = vmatmul.mubr.bf16.gmra.mxu0 %v566
    %v7469 = vpop.f32.mrf.mxu0
    %v7470 = vadd.f32 0.0, %v7469
    %v7471 = vpop.f32.mrf.mxu0
    %v7472 = vadd.f32 0.0, %v7471
    %v7473 = vpop.f32.mrf.mxu0
    %v7474 = vadd.f32 0.0, %v7473
    %v7475 = vpop.f32.mrf.mxu0
    %v7476 = vadd.f32 0.0, %v7475
    %7477 = vmatprep.mubr.bf16.mxu0 0
    %7478 = vmatmul.mubr.bf16.gmra.mxu0 %v569
    %v7479 = vpop.f32.mrf.mxu0
    %v7480 = vadd.f32 0.0, %v7479
    %v7481 = vpop.f32.mrf.mxu0
    %v7482 = vadd.f32 0.0, %v7481
    %v7483 = vpop.f32.mrf.mxu0
    %v7484 = vadd.f32 0.0, %v7483
    %v7485 = vpop.f32.mrf.mxu0
    %v7486 = vadd.f32 0.0, %v7485
    %7487 = vmatprep.mubr.bf16.mxu0 0
    %7488 = vmatmul.mubr.bf16.gmra.mxu0 %v572
    %v7489 = vpop.f32.mrf.mxu0
    %v7490 = vadd.f32 0.0, %v7489
    %v7491 = vpop.f32.mrf.mxu0
    %v7492 = vadd.f32 0.0, %v7491
    %v7493 = vpop.f32.mrf.mxu0
    %v7494 = vadd.f32 0.0, %v7493
    %v7495 = vpop.f32.mrf.mxu0
    %v7496 = vadd.f32 0.0, %v7495
    %7497 = vmatprep.mubr.bf16.mxu0 0
    %7498 = vmatmul.mubr.bf16.gmra.mxu0 %v575
    %v7499 = vpop.f32.mrf.mxu0
    %v7500 = vadd.f32 0.0, %v7499
    %v7501 = vpop.f32.mrf.mxu0
    %v7502 = vadd.f32 0.0, %v7501
    %v7503 = vpop.f32.mrf.mxu0
    %v7504 = vadd.f32 0.0, %v7503
    %v7505 = vpop.f32.mrf.mxu0
    %v7506 = vadd.f32 0.0, %v7505
    %7507 = vmatprep.mubr.bf16.mxu0 0
    %7508 = vmatmul.mubr.bf16.gmra.mxu0 %v578
    %v7509 = vpop.f32.mrf.mxu0
    %v7510 = vadd.f32 0.0, %v7509
    %v7511 = vpop.f32.mrf.mxu0
    %v7512 = vadd.f32 0.0, %v7511
    %v7513 = vpop.f32.mrf.mxu0
    %v7514 = vadd.f32 0.0, %v7513
    %v7515 = vpop.f32.mrf.mxu0
    %v7516 = vadd.f32 0.0, %v7515
    %7517 = vmatprep.mubr.bf16.mxu0 0
    %7518 = vmatmul.mubr.bf16.gmra.mxu0 %v581
    %v7519 = vpop.f32.mrf.mxu0
    %v7520 = vadd.f32 0.0, %v7519
    %v7521 = vpop.f32.mrf.mxu0
    %v7522 = vadd.f32 0.0, %v7521
    %v7523 = vpop.f32.mrf.mxu0
    %v7524 = vadd.f32 0.0, %v7523
    %v7525 = vpop.f32.mrf.mxu0
    %v7526 = vadd.f32 0.0, %v7525
    %7527 = vmatprep.mubr.bf16.mxu0 0
    %7528 = vmatmul.mubr.bf16.gmra.mxu0 %v584
    %v7529 = vpop.f32.mrf.mxu0
    %v7530 = vadd.f32 0.0, %v7529
    %v7531 = vpop.f32.mrf.mxu0
    %v7532 = vadd.f32 0.0, %v7531
    %v7533 = vpop.f32.mrf.mxu0
    %v7534 = vadd.f32 0.0, %v7533
    %v7535 = vpop.f32.mrf.mxu0
    %v7536 = vadd.f32 0.0, %v7535
    %7537 = vdwg.mxu0
    %v7546 = vcombine.low %v6076, %v6078
    %v7547 = vcombine.low %v6240, %v6242
    %v7548 = vcombine.low %v6404, %v6406
    %v7549 = vcombine.low %v6568, %v6570
    %v7551 = vunpack.c.l.s4 1966171168
    %v7552 = vunpack.c.0.s8 %v7551
    %v7553 = vlaneseq
    %v7554 = vshrl.u32 %v7553, 7
    %v7555 = vsub.s32 %v7552, %v7554
    %v7556 = vrot.slane %v7546, %v7555
    %v7558 = vunpack.c.l.s4 1966171168
    %v7559 = vunpack.c.0.s8 %v7558
    %v7560 = vlaneseq
    %v7561 = vshrl.u32 %v7560, 7
    %v7562 = vsub.s32 %v7559, %v7561
    %v7563 = vrot.slane %v7547, %v7562
    %v7565 = vunpack.c.l.s4 1966171168
    %v7566 = vunpack.c.0.s8 %v7565
    %v7567 = vlaneseq
    %v7568 = vshrl.u32 %v7567, 7
    %v7569 = vsub.s32 %v7566, %v7568
    %v7570 = vrot.slane %v7548, %v7569
    %v7572 = vunpack.c.l.s4 1966171168
    %v7573 = vunpack.c.0.s8 %v7572
    %v7574 = vlaneseq
    %v7575 = vshrl.u32 %v7574, 7
    %v7576 = vsub.s32 %v7573, %v7575
    %v7577 = vrot.slane %v7549, %v7576
    %v7578 = vcombine.low %v7556, %v7563
    %v7579 = vcombine.high %v7556, %v7563
    %v7580 = vcombine.low %v7570, %v7577
    %v7581 = vcombine.high %v7570, %v7577
    %v7583 = vunpack.c.l.s4 1966171168
    %v7584 = vunpack.c.0.s8 %v7583
    %v7585 = vlaneseq
    %v7586 = vshrl.u32 %v7585, 7
    %v7587 = vsub.s32 %v7584, %v7586
    %v7588 = vrot.slane %v7578, %v7587
    %v7590 = vunpack.c.l.s4 1966171168
    %v7591 = vunpack.c.0.s8 %v7590
    %v7592 = vlaneseq
    %v7593 = vshrl.u32 %v7592, 7
    %v7594 = vsub.s32 %v7591, %v7593
    %v7595 = vrot.slane %v7579, %v7594
    %v7597 = vunpack.c.l.s4 1966171168
    %v7598 = vunpack.c.0.s8 %v7597
    %v7599 = vlaneseq
    %v7600 = vshrl.u32 %v7599, 7
    %v7601 = vsub.s32 %v7598, %v7600
    %v7602 = vrot.slane %v7580, %v7601
    %v7604 = vunpack.c.l.s4 1966171168
    %v7605 = vunpack.c.0.s8 %v7604
    %v7606 = vlaneseq
    %v7607 = vshrl.u32 %v7606, 7
    %v7608 = vsub.s32 %v7605, %v7607
    %v7609 = vrot.slane %v7581, %v7608
    %v7610 = vcombine.low %v7588, %v7602
    %v7611 = vcombine.high %v7588, %v7602
    %v7612 = vcombine.low %v7595, %v7609
    %v7613 = vcombine.high %v7595, %v7609
    %v7614 = vlaneseq
    %v7615 = vshrl.u32 %v7614, 7
    %v7616 = vsub.s32 0, %v7615
    %v7617 = vrot.slane %v7610, %v7616
    %v7618 = vlaneseq
    %v7619 = vshrl.u32 %v7618, 7
    %v7620 = vsub.s32 1, %v7619
    %v7621 = vrot.slane %v7610, %v7620
    %v7622 = vlaneseq
    %v7623 = vshrl.u32 %v7622, 7
    %v7624 = vsub.s32 2, %v7623
    %v7625 = vrot.slane %v7610, %v7624
    %v7626 = vlaneseq
    %v7627 = vshrl.u32 %v7626, 7
    %v7628 = vsub.s32 3, %v7627
    %v7629 = vrot.slane %v7610, %v7628
    %v7630 = vlaneseq
    %v7631 = vshrl.u32 %v7630, 7
    %v7632 = vsub.s32 4, %v7631
    %v7633 = vrot.slane %v7610, %v7632
    %v7634 = vlaneseq
    %v7635 = vshrl.u32 %v7634, 7
    %v7636 = vsub.s32 5, %v7635
    %v7637 = vrot.slane %v7610, %v7636
    %v7638 = vlaneseq
    %v7639 = vshrl.u32 %v7638, 7
    %v7640 = vsub.s32 6, %v7639
    %v7641 = vrot.slane %v7610, %v7640
    %v7642 = vlaneseq
    %v7643 = vshrl.u32 %v7642, 7
    %v7644 = vsub.s32 7, %v7643
    %v7645 = vrot.slane %v7610, %v7644
    %v7646 = vlaneseq
    %v7647 = vshrl.u32 %v7646, 7
    %v7648 = vsub.s32 0, %v7647
    %v7649 = vrot.slane %v7612, %v7648
    %v7650 = vlaneseq
    %v7651 = vshrl.u32 %v7650, 7
    %v7652 = vsub.s32 1, %v7651
    %v7653 = vrot.slane %v7612, %v7652
    %v7654 = vlaneseq
    %v7655 = vshrl.u32 %v7654, 7
    %v7656 = vsub.s32 2, %v7655
    %v7657 = vrot.slane %v7612, %v7656
    %v7658 = vlaneseq
    %v7659 = vshrl.u32 %v7658, 7
    %v7660 = vsub.s32 3, %v7659
    %v7661 = vrot.slane %v7612, %v7660
    %v7662 = vlaneseq
    %v7663 = vshrl.u32 %v7662, 7
    %v7664 = vsub.s32 4, %v7663
    %v7665 = vrot.slane %v7612, %v7664
    %v7666 = vlaneseq
    %v7667 = vshrl.u32 %v7666, 7
    %v7668 = vsub.s32 5, %v7667
    %v7669 = vrot.slane %v7612, %v7668
    %v7670 = vlaneseq
    %v7671 = vshrl.u32 %v7670, 7
    %v7672 = vsub.s32 6, %v7671
    %v7673 = vrot.slane %v7612, %v7672
    %v7674 = vlaneseq
    %v7675 = vshrl.u32 %v7674, 7
    %v7676 = vsub.s32 7, %v7675
    %v7677 = vrot.slane %v7612, %v7676
    %v7678 = vlaneseq
    %v7679 = vshrl.u32 %v7678, 7
    %v7680 = vsub.s32 0, %v7679
    %v7681 = vrot.slane %v7611, %v7680
    %v7682 = vlaneseq
    %v7683 = vshrl.u32 %v7682, 7
    %v7684 = vsub.s32 1, %v7683
    %v7685 = vrot.slane %v7611, %v7684
    %v7686 = vlaneseq
    %v7687 = vshrl.u32 %v7686, 7
    %v7688 = vsub.s32 2, %v7687
    %v7689 = vrot.slane %v7611, %v7688
    %v7690 = vlaneseq
    %v7691 = vshrl.u32 %v7690, 7
    %v7692 = vsub.s32 3, %v7691
    %v7693 = vrot.slane %v7611, %v7692
    %v7694 = vlaneseq
    %v7695 = vshrl.u32 %v7694, 7
    %v7696 = vsub.s32 4, %v7695
    %v7697 = vrot.slane %v7611, %v7696
    %v7698 = vlaneseq
    %v7699 = vshrl.u32 %v7698, 7
    %v7700 = vsub.s32 5, %v7699
    %v7701 = vrot.slane %v7611, %v7700
    %v7702 = vlaneseq
    %v7703 = vshrl.u32 %v7702, 7
    %v7704 = vsub.s32 6, %v7703
    %v7705 = vrot.slane %v7611, %v7704
    %v7706 = vlaneseq
    %v7707 = vshrl.u32 %v7706, 7
    %v7708 = vsub.s32 7, %v7707
    %v7709 = vrot.slane %v7611, %v7708
    %v7710 = vlaneseq
    %v7711 = vshrl.u32 %v7710, 7
    %v7712 = vsub.s32 0, %v7711
    %v7713 = vrot.slane %v7613, %v7712
    %v7714 = vlaneseq
    %v7715 = vshrl.u32 %v7714, 7
    %v7716 = vsub.s32 1, %v7715
    %v7717 = vrot.slane %v7613, %v7716
    %v7718 = vlaneseq
    %v7719 = vshrl.u32 %v7718, 7
    %v7720 = vsub.s32 2, %v7719
    %v7721 = vrot.slane %v7613, %v7720
    %v7722 = vlaneseq
    %v7723 = vshrl.u32 %v7722, 7
    %v7724 = vsub.s32 3, %v7723
    %v7725 = vrot.slane %v7613, %v7724
    %v7726 = vlaneseq
    %v7727 = vshrl.u32 %v7726, 7
    %v7728 = vsub.s32 4, %v7727
    %v7729 = vrot.slane %v7613, %v7728
    %v7730 = vlaneseq
    %v7731 = vshrl.u32 %v7730, 7
    %v7732 = vsub.s32 5, %v7731
    %v7733 = vrot.slane %v7613, %v7732
    %v7734 = vlaneseq
    %v7735 = vshrl.u32 %v7734, 7
    %v7736 = vsub.s32 6, %v7735
    %v7737 = vrot.slane %v7613, %v7736
    %v7738 = vlaneseq
    %v7739 = vshrl.u32 %v7738, 7
    %v7740 = vsub.s32 7, %v7739
    %v7741 = vrot.slane %v7613, %v7740
    %v7774 = vadd.f32 %v6801, %v7617
    %v7775 = vadd.f32 %v6803, %v7621
    %v7776 = vadd.f32 %v6994, %v7625
    %v7777 = vadd.f32 %v6996, %v7629
    %v7778 = vadd.f32 %v7187, %v7633
    %v7779 = vadd.f32 %v7189, %v7637
    %v7780 = vadd.f32 %v7380, %v7641
    %v7781 = vadd.f32 %v7382, %v7645
    %v7782 = vadd.f32 %v6805, %v7617
    %v7783 = vadd.f32 %v6807, %v7621
    %v7784 = vadd.f32 %v6998, %v7625
    %v7785 = vadd.f32 %v7000, %v7629
    %v7786 = vadd.f32 %v7191, %v7633
    %v7787 = vadd.f32 %v7193, %v7637
    %v7788 = vadd.f32 %v7384, %v7641
    %v7789 = vadd.f32 %v7386, %v7645
    %v7790 = vadd.f32 %v6811, %v7617
    %v7791 = vadd.f32 %v6813, %v7621
    %v7792 = vadd.f32 %v7004, %v7625
    %v7793 = vadd.f32 %v7006, %v7629
    %v7794 = vadd.f32 %v7197, %v7633
    %v7795 = vadd.f32 %v7199, %v7637
    %v7796 = vadd.f32 %v7390, %v7641
    %v7797 = vadd.f32 %v7392, %v7645
    %v7798 = vadd.f32 %v6815, %v7617
    %v7799 = vadd.f32 %v6817, %v7621
    %v7800 = vadd.f32 %v7008, %v7625
    %v7801 = vadd.f32 %v7010, %v7629
    %v7802 = vadd.f32 %v7201, %v7633
    %v7803 = vadd.f32 %v7203, %v7637
    %v7804 = vadd.f32 %v7394, %v7641
    %v7805 = vadd.f32 %v7396, %v7645
    %v7806 = vadd.f32 %v6821, %v7617
    %v7807 = vadd.f32 %v6823, %v7621
    %v7808 = vadd.f32 %v7014, %v7625
    %v7809 = vadd.f32 %v7016, %v7629
    %v7810 = vadd.f32 %v7207, %v7633
    %v7811 = vadd.f32 %v7209, %v7637
    %v7812 = vadd.f32 %v7400, %v7641
    %v7813 = vadd.f32 %v7402, %v7645
    %v7814 = vadd.f32 %v6825, %v7617
    %v7815 = vadd.f32 %v6827, %v7621
    %v7816 = vadd.f32 %v7018, %v7625
    %v7817 = vadd.f32 %v7020, %v7629
    %v7818 = vadd.f32 %v7211, %v7633
    %v7819 = vadd.f32 %v7213, %v7637
    %v7820 = vadd.f32 %v7404, %v7641
    %v7821 = vadd.f32 %v7406, %v7645
    %v7822 = vadd.f32 %v6831, %v7617
    %v7823 = vadd.f32 %v6833, %v7621
    %v7824 = vadd.f32 %v7024, %v7625
    %v7825 = vadd.f32 %v7026, %v7629
    %v7826 = vadd.f32 %v7217, %v7633
    %v7827 = vadd.f32 %v7219, %v7637
    %v7828 = vadd.f32 %v7410, %v7641
    %v7829 = vadd.f32 %v7412, %v7645
    %v7830 = vadd.f32 %v6835, %v7617
    %v7831 = vadd.f32 %v6837, %v7621
    %v7832 = vadd.f32 %v7028, %v7625
    %v7833 = vadd.f32 %v7030, %v7629
    %v7834 = vadd.f32 %v7221, %v7633
    %v7835 = vadd.f32 %v7223, %v7637
    %v7836 = vadd.f32 %v7414, %v7641
    %v7837 = vadd.f32 %v7416, %v7645
    %v7838 = vadd.f32 %v6841, %v7649
    %v7839 = vadd.f32 %v6843, %v7653
    %v7840 = vadd.f32 %v7034, %v7657
    %v7841 = vadd.f32 %v7036, %v7661
    %v7842 = vadd.f32 %v7227, %v7665
    %v7843 = vadd.f32 %v7229, %v7669
    %v7844 = vadd.f32 %v7420, %v7673
    %v7845 = vadd.f32 %v7422, %v7677
    %v7846 = vadd.f32 %v6845, %v7649
    %v7847 = vadd.f32 %v6847, %v7653
    %v7848 = vadd.f32 %v7038, %v7657
    %v7849 = vadd.f32 %v7040, %v7661
    %v7850 = vadd.f32 %v7231, %v7665
    %v7851 = vadd.f32 %v7233, %v7669
    %v7852 = vadd.f32 %v7424, %v7673
    %v7853 = vadd.f32 %v7426, %v7677
    %v7854 = vadd.f32 %v6851, %v7649
    %v7855 = vadd.f32 %v6853, %v7653
    %v7856 = vadd.f32 %v7044, %v7657
    %v7857 = vadd.f32 %v7046, %v7661
    %v7858 = vadd.f32 %v7237, %v7665
    %v7859 = vadd.f32 %v7239, %v7669
    %v7860 = vadd.f32 %v7430, %v7673
    %v7861 = vadd.f32 %v7432, %v7677
    %v7862 = vadd.f32 %v6855, %v7649
    %v7863 = vadd.f32 %v6857, %v7653
    %v7864 = vadd.f32 %v7048, %v7657
    %v7865 = vadd.f32 %v7050, %v7661
    %v7866 = vadd.f32 %v7241, %v7665
    %v7867 = vadd.f32 %v7243, %v7669
    %v7868 = vadd.f32 %v7434, %v7673
    %v7869 = vadd.f32 %v7436, %v7677
    %v7870 = vadd.f32 %v6861, %v7649
    %v7871 = vadd.f32 %v6863, %v7653
    %v7872 = vadd.f32 %v7054, %v7657
    %v7873 = vadd.f32 %v7056, %v7661
    %v7874 = vadd.f32 %v7247, %v7665
    %v7875 = vadd.f32 %v7249, %v7669
    %v7876 = vadd.f32 %v7440, %v7673
    %v7877 = vadd.f32 %v7442, %v7677
    %v7878 = vadd.f32 %v6865, %v7649
    %v7879 = vadd.f32 %v6867, %v7653
    %v7880 = vadd.f32 %v7058, %v7657
    %v7881 = vadd.f32 %v7060, %v7661
    %v7882 = vadd.f32 %v7251, %v7665
    %v7883 = vadd.f32 %v7253, %v7669
    %v7884 = vadd.f32 %v7444, %v7673
    %v7885 = vadd.f32 %v7446, %v7677
    %v7886 = vadd.f32 %v6871, %v7649
    %v7887 = vadd.f32 %v6873, %v7653
    %v7888 = vadd.f32 %v7064, %v7657
    %v7889 = vadd.f32 %v7066, %v7661
    %v7890 = vadd.f32 %v7257, %v7665
    %v7891 = vadd.f32 %v7259, %v7669
    %v7892 = vadd.f32 %v7450, %v7673
    %v7893 = vadd.f32 %v7452, %v7677
    %v7894 = vadd.f32 %v6875, %v7649
    %v7895 = vadd.f32 %v6877, %v7653
    %v7896 = vadd.f32 %v7068, %v7657
    %v7897 = vadd.f32 %v7070, %v7661
    %v7898 = vadd.f32 %v7261, %v7665
    %v7899 = vadd.f32 %v7263, %v7669
    %v7900 = vadd.f32 %v7454, %v7673
    %v7901 = vadd.f32 %v7456, %v7677
    %v7902 = vadd.f32 %v6881, %v7681
    %v7903 = vadd.f32 %v6883, %v7685
    %v7904 = vadd.f32 %v7074, %v7689
    %v7905 = vadd.f32 %v7076, %v7693
    %v7906 = vadd.f32 %v7267, %v7697
    %v7907 = vadd.f32 %v7269, %v7701
    %v7908 = vadd.f32 %v7460, %v7705
    %v7909 = vadd.f32 %v7462, %v7709
    %v7910 = vadd.f32 %v6885, %v7681
    %v7911 = vadd.f32 %v6887, %v7685
    %v7912 = vadd.f32 %v7078, %v7689
    %v7913 = vadd.f32 %v7080, %v7693
    %v7914 = vadd.f32 %v7271, %v7697
    %v7915 = vadd.f32 %v7273, %v7701
    %v7916 = vadd.f32 %v7464, %v7705
    %v7917 = vadd.f32 %v7466, %v7709
    %v7918 = vadd.f32 %v6891, %v7681
    %v7919 = vadd.f32 %v6893, %v7685
    %v7920 = vadd.f32 %v7084, %v7689
    %v7921 = vadd.f32 %v7086, %v7693
    %v7922 = vadd.f32 %v7277, %v7697
    %v7923 = vadd.f32 %v7279, %v7701
    %v7924 = vadd.f32 %v7470, %v7705
    %v7925 = vadd.f32 %v7472, %v7709
    %v7926 = vadd.f32 %v6895, %v7681
    %v7927 = vadd.f32 %v6897, %v7685
    %v7928 = vadd.f32 %v7088, %v7689
    %v7929 = vadd.f32 %v7090, %v7693
    %v7930 = vadd.f32 %v7281, %v7697
    %v7931 = vadd.f32 %v7283, %v7701
    %v7932 = vadd.f32 %v7474, %v7705
    %v7933 = vadd.f32 %v7476, %v7709
    %v7934 = vadd.f32 %v6901, %v7681
    %v7935 = vadd.f32 %v6903, %v7685
    %v7936 = vadd.f32 %v7094, %v7689
    %v7937 = vadd.f32 %v7096, %v7693
    %v7938 = vadd.f32 %v7287, %v7697
    %v7939 = vadd.f32 %v7289, %v7701
    %v7940 = vadd.f32 %v7480, %v7705
    %v7941 = vadd.f32 %v7482, %v7709
    %v7942 = vadd.f32 %v6905, %v7681
    %v7943 = vadd.f32 %v6907, %v7685
    %v7944 = vadd.f32 %v7098, %v7689
    %v7945 = vadd.f32 %v7100, %v7693
    %v7946 = vadd.f32 %v7291, %v7697
    %v7947 = vadd.f32 %v7293, %v7701
    %v7948 = vadd.f32 %v7484, %v7705
    %v7949 = vadd.f32 %v7486, %v7709
    %v7950 = vadd.f32 %v6911, %v7681
    %v7951 = vadd.f32 %v6913, %v7685
    %v7952 = vadd.f32 %v7104, %v7689
    %v7953 = vadd.f32 %v7106, %v7693
    %v7954 = vadd.f32 %v7297, %v7697
    %v7955 = vadd.f32 %v7299, %v7701
    %v7956 = vadd.f32 %v7490, %v7705
    %v7957 = vadd.f32 %v7492, %v7709
    %v7958 = vadd.f32 %v6915, %v7681
    %v7959 = vadd.f32 %v6917, %v7685
    %v7960 = vadd.f32 %v7108, %v7689
    %v7961 = vadd.f32 %v7110, %v7693
    %v7962 = vadd.f32 %v7301, %v7697
    %v7963 = vadd.f32 %v7303, %v7701
    %v7964 = vadd.f32 %v7494, %v7705
    %v7965 = vadd.f32 %v7496, %v7709
    %v7966 = vadd.f32 %v6921, %v7713
    %v7967 = vadd.f32 %v6923, %v7717
    %v7968 = vadd.f32 %v7114, %v7721
    %v7969 = vadd.f32 %v7116, %v7725
    %v7970 = vadd.f32 %v7307, %v7729
    %v7971 = vadd.f32 %v7309, %v7733
    %v7972 = vadd.f32 %v7500, %v7737
    %v7973 = vadd.f32 %v7502, %v7741
    %v7974 = vadd.f32 %v6925, %v7713
    %v7975 = vadd.f32 %v6927, %v7717
    %v7976 = vadd.f32 %v7118, %v7721
    %v7977 = vadd.f32 %v7120, %v7725
    %v7978 = vadd.f32 %v7311, %v7729
    %v7979 = vadd.f32 %v7313, %v7733
    %v7980 = vadd.f32 %v7504, %v7737
    %v7981 = vadd.f32 %v7506, %v7741
    %v7982 = vadd.f32 %v6931, %v7713
    %v7983 = vadd.f32 %v6933, %v7717
    %v7984 = vadd.f32 %v7124, %v7721
    %v7985 = vadd.f32 %v7126, %v7725
    %v7986 = vadd.f32 %v7317, %v7729
    %v7987 = vadd.f32 %v7319, %v7733
    %v7988 = vadd.f32 %v7510, %v7737
    %v7989 = vadd.f32 %v7512, %v7741
    %v7990 = vadd.f32 %v6935, %v7713
    %v7991 = vadd.f32 %v6937, %v7717
    %v7992 = vadd.f32 %v7128, %v7721
    %v7993 = vadd.f32 %v7130, %v7725
    %v7994 = vadd.f32 %v7321, %v7729
    %v7995 = vadd.f32 %v7323, %v7733
    %v7996 = vadd.f32 %v7514, %v7737
    %v7997 = vadd.f32 %v7516, %v7741
    %v7998 = vadd.f32 %v6941, %v7713
    %v7999 = vadd.f32 %v6943, %v7717
    %v8000 = vadd.f32 %v7134, %v7721
    %v8001 = vadd.f32 %v7136, %v7725
    %v8002 = vadd.f32 %v7327, %v7729
    %v8003 = vadd.f32 %v7329, %v7733
    %v8004 = vadd.f32 %v7520, %v7737
    %v8005 = vadd.f32 %v7522, %v7741
    %v8006 = vadd.f32 %v6945, %v7713
    %v8007 = vadd.f32 %v6947, %v7717
    %v8008 = vadd.f32 %v7138, %v7721
    %v8009 = vadd.f32 %v7140, %v7725
    %v8010 = vadd.f32 %v7331, %v7729
    %v8011 = vadd.f32 %v7333, %v7733
    %v8012 = vadd.f32 %v7524, %v7737
    %v8013 = vadd.f32 %v7526, %v7741
    %v8014 = vadd.f32 %v6951, %v7713
    %v8015 = vadd.f32 %v6953, %v7717
    %v8016 = vadd.f32 %v7144, %v7721
    %v8017 = vadd.f32 %v7146, %v7725
    %v8018 = vadd.f32 %v7337, %v7729
    %v8019 = vadd.f32 %v7339, %v7733
    %v8020 = vadd.f32 %v7530, %v7737
    %v8021 = vadd.f32 %v7532, %v7741
    %v8022 = vadd.f32 %v6955, %v7713
    %v8023 = vadd.f32 %v6957, %v7717
    %v8024 = vadd.f32 %v7148, %v7721
    %v8025 = vadd.f32 %v7150, %v7725
    %v8026 = vadd.f32 %v7341, %v7729
    %v8027 = vadd.f32 %v7343, %v7733
    %v8028 = vadd.f32 %v7534, %v7737
    %v8029 = vadd.f32 %v7536, %v7741
    %v8030 = vmax.f32 %v7774, 0.0
    %v8031 = vmax.f32 %v7775, 0.0
    %v8032 = vmax.f32 %v7776, 0.0
    %v8033 = vmax.f32 %v7777, 0.0
    %v8034 = vmax.f32 %v7778, 0.0
    %v8035 = vmax.f32 %v7779, 0.0
    %v8036 = vmax.f32 %v7780, 0.0
    %v8037 = vmax.f32 %v7781, 0.0
    %v8038 = vmax.f32 %v7782, 0.0
    %v8039 = vmax.f32 %v7783, 0.0
    %v8040 = vmax.f32 %v7784, 0.0
    %v8041 = vmax.f32 %v7785, 0.0
    %v8042 = vmax.f32 %v7786, 0.0
    %v8043 = vmax.f32 %v7787, 0.0
    %v8044 = vmax.f32 %v7788, 0.0
    %v8045 = vmax.f32 %v7789, 0.0
    %v8046 = vmax.f32 %v7790, 0.0
    %v8047 = vmax.f32 %v7791, 0.0
    %v8048 = vmax.f32 %v7792, 0.0
    %v8049 = vmax.f32 %v7793, 0.0
    %v8050 = vmax.f32 %v7794, 0.0
    %v8051 = vmax.f32 %v7795, 0.0
    %v8052 = vmax.f32 %v7796, 0.0
    %v8053 = vmax.f32 %v7797, 0.0
    %v8054 = vmax.f32 %v7798, 0.0
    %v8055 = vmax.f32 %v7799, 0.0
    %v8056 = vmax.f32 %v7800, 0.0
    %v8057 = vmax.f32 %v7801, 0.0
    %v8058 = vmax.f32 %v7802, 0.0
    %v8059 = vmax.f32 %v7803, 0.0
    %v8060 = vmax.f32 %v7804, 0.0
    %v8061 = vmax.f32 %v7805, 0.0
    %v8062 = vmax.f32 %v7806, 0.0
    %v8063 = vmax.f32 %v7807, 0.0
    %v8064 = vmax.f32 %v7808, 0.0
    %v8065 = vmax.f32 %v7809, 0.0
    %v8066 = vmax.f32 %v7810, 0.0
    %v8067 = vmax.f32 %v7811, 0.0
    %v8068 = vmax.f32 %v7812, 0.0
    %v8069 = vmax.f32 %v7813, 0.0
    %v8070 = vmax.f32 %v7814, 0.0
    %v8071 = vmax.f32 %v7815, 0.0
    %v8072 = vmax.f32 %v7816, 0.0
    %v8073 = vmax.f32 %v7817, 0.0
    %v8074 = vmax.f32 %v7818, 0.0
    %v8075 = vmax.f32 %v7819, 0.0
    %v8076 = vmax.f32 %v7820, 0.0
    %v8077 = vmax.f32 %v7821, 0.0
    %v8078 = vmax.f32 %v7822, 0.0
    %v8079 = vmax.f32 %v7823, 0.0
    %v8080 = vmax.f32 %v7824, 0.0
    %v8081 = vmax.f32 %v7825, 0.0
    %v8082 = vmax.f32 %v7826, 0.0
    %v8083 = vmax.f32 %v7827, 0.0
    %v8084 = vmax.f32 %v7828, 0.0
    %v8085 = vmax.f32 %v7829, 0.0
    %v8086 = vmax.f32 %v7830, 0.0
    %v8087 = vmax.f32 %v7831, 0.0
    %v8088 = vmax.f32 %v7832, 0.0
    %v8089 = vmax.f32 %v7833, 0.0
    %v8090 = vmax.f32 %v7834, 0.0
    %v8091 = vmax.f32 %v7835, 0.0
    %v8092 = vmax.f32 %v7836, 0.0
    %v8093 = vmax.f32 %v7837, 0.0
    %v8094 = vmax.f32 %v7838, 0.0
    %v8095 = vmax.f32 %v7839, 0.0
    %v8096 = vmax.f32 %v7840, 0.0
    %v8097 = vmax.f32 %v7841, 0.0
    %v8098 = vmax.f32 %v7842, 0.0
    %v8099 = vmax.f32 %v7843, 0.0
    %v8100 = vmax.f32 %v7844, 0.0
    %v8101 = vmax.f32 %v7845, 0.0
    %v8102 = vmax.f32 %v7846, 0.0
    %v8103 = vmax.f32 %v7847, 0.0
    %v8104 = vmax.f32 %v7848, 0.0
    %v8105 = vmax.f32 %v7849, 0.0
    %v8106 = vmax.f32 %v7850, 0.0
    %v8107 = vmax.f32 %v7851, 0.0
    %v8108 = vmax.f32 %v7852, 0.0
    %v8109 = vmax.f32 %v7853, 0.0
    %v8110 = vmax.f32 %v7854, 0.0
    %v8111 = vmax.f32 %v7855, 0.0
    %v8112 = vmax.f32 %v7856, 0.0
    %v8113 = vmax.f32 %v7857, 0.0
    %v8114 = vmax.f32 %v7858, 0.0
    %v8115 = vmax.f32 %v7859, 0.0
    %v8116 = vmax.f32 %v7860, 0.0
    %v8117 = vmax.f32 %v7861, 0.0
    %v8118 = vmax.f32 %v7862, 0.0
    %v8119 = vmax.f32 %v7863, 0.0
    %v8120 = vmax.f32 %v7864, 0.0
    %v8121 = vmax.f32 %v7865, 0.0
    %v8122 = vmax.f32 %v7866, 0.0
    %v8123 = vmax.f32 %v7867, 0.0
    %v8124 = vmax.f32 %v7868, 0.0
    %v8125 = vmax.f32 %v7869, 0.0
    %v8126 = vmax.f32 %v7870, 0.0
    %v8127 = vmax.f32 %v7871, 0.0
    %v8128 = vmax.f32 %v7872, 0.0
    %v8129 = vmax.f32 %v7873, 0.0
    %v8130 = vmax.f32 %v7874, 0.0
    %v8131 = vmax.f32 %v7875, 0.0
    %v8132 = vmax.f32 %v7876, 0.0
    %v8133 = vmax.f32 %v7877, 0.0
    %v8134 = vmax.f32 %v7878, 0.0
    %v8135 = vmax.f32 %v7879, 0.0
    %v8136 = vmax.f32 %v7880, 0.0
    %v8137 = vmax.f32 %v7881, 0.0
    %v8138 = vmax.f32 %v7882, 0.0
    %v8139 = vmax.f32 %v7883, 0.0
    %v8140 = vmax.f32 %v7884, 0.0
    %v8141 = vmax.f32 %v7885, 0.0
    %v8142 = vmax.f32 %v7886, 0.0
    %v8143 = vmax.f32 %v7887, 0.0
    %v8144 = vmax.f32 %v7888, 0.0
    %v8145 = vmax.f32 %v7889, 0.0
    %v8146 = vmax.f32 %v7890, 0.0
    %v8147 = vmax.f32 %v7891, 0.0
    %v8148 = vmax.f32 %v7892, 0.0
    %v8149 = vmax.f32 %v7893, 0.0
    %v8150 = vmax.f32 %v7894, 0.0
    %v8151 = vmax.f32 %v7895, 0.0
    %v8152 = vmax.f32 %v7896, 0.0
    %v8153 = vmax.f32 %v7897, 0.0
    %v8154 = vmax.f32 %v7898, 0.0
    %v8155 = vmax.f32 %v7899, 0.0
    %v8156 = vmax.f32 %v7900, 0.0
    %v8157 = vmax.f32 %v7901, 0.0
    %v8158 = vmax.f32 %v7902, 0.0
    %v8159 = vmax.f32 %v7903, 0.0
    %v8160 = vmax.f32 %v7904, 0.0
    %v8161 = vmax.f32 %v7905, 0.0
    %v8162 = vmax.f32 %v7906, 0.0
    %v8163 = vmax.f32 %v7907, 0.0
    %v8164 = vmax.f32 %v7908, 0.0
    %v8165 = vmax.f32 %v7909, 0.0
    %v8166 = vmax.f32 %v7910, 0.0
    %v8167 = vmax.f32 %v7911, 0.0
    %v8168 = vmax.f32 %v7912, 0.0
    %v8169 = vmax.f32 %v7913, 0.0
    %v8170 = vmax.f32 %v7914, 0.0
    %v8171 = vmax.f32 %v7915, 0.0
    %v8172 = vmax.f32 %v7916, 0.0
    %v8173 = vmax.f32 %v7917, 0.0
    %v8174 = vmax.f32 %v7918, 0.0
    %v8175 = vmax.f32 %v7919, 0.0
    %v8176 = vmax.f32 %v7920, 0.0
    %v8177 = vmax.f32 %v7921, 0.0
    %v8178 = vmax.f32 %v7922, 0.0
    %v8179 = vmax.f32 %v7923, 0.0
    %v8180 = vmax.f32 %v7924, 0.0
    %v8181 = vmax.f32 %v7925, 0.0
    %v8182 = vmax.f32 %v7926, 0.0
    %v8183 = vmax.f32 %v7927, 0.0
    %v8184 = vmax.f32 %v7928, 0.0
    %v8185 = vmax.f32 %v7929, 0.0
    %v8186 = vmax.f32 %v7930, 0.0
    %v8187 = vmax.f32 %v7931, 0.0
    %v8188 = vmax.f32 %v7932, 0.0
    %v8189 = vmax.f32 %v7933, 0.0
    %v8190 = vmax.f32 %v7934, 0.0
    %v8191 = vmax.f32 %v7935, 0.0
    %v8192 = vmax.f32 %v7936, 0.0
    %v8193 = vmax.f32 %v7937, 0.0
    %v8194 = vmax.f32 %v7938, 0.0
    %v8195 = vmax.f32 %v7939, 0.0
    %v8196 = vmax.f32 %v7940, 0.0
    %v8197 = vmax.f32 %v7941, 0.0
    %v8198 = vmax.f32 %v7942, 0.0
    %v8199 = vmax.f32 %v7943, 0.0
    %v8200 = vmax.f32 %v7944, 0.0
    %v8201 = vmax.f32 %v7945, 0.0
    %v8202 = vmax.f32 %v7946, 0.0
    %v8203 = vmax.f32 %v7947, 0.0
    %v8204 = vmax.f32 %v7948, 0.0
    %v8205 = vmax.f32 %v7949, 0.0
    %v8206 = vmax.f32 %v7950, 0.0
    %v8207 = vmax.f32 %v7951, 0.0
    %v8208 = vmax.f32 %v7952, 0.0
    %v8209 = vmax.f32 %v7953, 0.0
    %v8210 = vmax.f32 %v7954, 0.0
    %v8211 = vmax.f32 %v7955, 0.0
    %v8212 = vmax.f32 %v7956, 0.0
    %v8213 = vmax.f32 %v7957, 0.0
    %v8214 = vmax.f32 %v7958, 0.0
    %v8215 = vmax.f32 %v7959, 0.0
    %v8216 = vmax.f32 %v7960, 0.0
    %v8217 = vmax.f32 %v7961, 0.0
    %v8218 = vmax.f32 %v7962, 0.0
    %v8219 = vmax.f32 %v7963, 0.0
    %v8220 = vmax.f32 %v7964, 0.0
    %v8221 = vmax.f32 %v7965, 0.0
    %v8222 = vmax.f32 %v7966, 0.0
    %v8223 = vmax.f32 %v7967, 0.0
    %v8224 = vmax.f32 %v7968, 0.0
    %v8225 = vmax.f32 %v7969, 0.0
    %v8226 = vmax.f32 %v7970, 0.0
    %v8227 = vmax.f32 %v7971, 0.0
    %v8228 = vmax.f32 %v7972, 0.0
    %v8229 = vmax.f32 %v7973, 0.0
    %v8230 = vmax.f32 %v7974, 0.0
    %v8231 = vmax.f32 %v7975, 0.0
    %v8232 = vmax.f32 %v7976, 0.0
    %v8233 = vmax.f32 %v7977, 0.0
    %v8234 = vmax.f32 %v7978, 0.0
    %v8235 = vmax.f32 %v7979, 0.0
    %v8236 = vmax.f32 %v7980, 0.0
    %v8237 = vmax.f32 %v7981, 0.0
    %v8238 = vmax.f32 %v7982, 0.0
    %v8239 = vmax.f32 %v7983, 0.0
    %v8240 = vmax.f32 %v7984, 0.0
    %v8241 = vmax.f32 %v7985, 0.0
    %v8242 = vmax.f32 %v7986, 0.0
    %v8243 = vmax.f32 %v7987, 0.0
    %v8244 = vmax.f32 %v7988, 0.0
    %v8245 = vmax.f32 %v7989, 0.0
    %v8246 = vmax.f32 %v7990, 0.0
    %v8247 = vmax.f32 %v7991, 0.0
    %v8248 = vmax.f32 %v7992, 0.0
    %v8249 = vmax.f32 %v7993, 0.0
    %v8250 = vmax.f32 %v7994, 0.0
    %v8251 = vmax.f32 %v7995, 0.0
    %v8252 = vmax.f32 %v7996, 0.0
    %v8253 = vmax.f32 %v7997, 0.0
    %v8254 = vmax.f32 %v7998, 0.0
    %v8255 = vmax.f32 %v7999, 0.0
    %v8256 = vmax.f32 %v8000, 0.0
    %v8257 = vmax.f32 %v8001, 0.0
    %v8258 = vmax.f32 %v8002, 0.0
    %v8259 = vmax.f32 %v8003, 0.0
    %v8260 = vmax.f32 %v8004, 0.0
    %v8261 = vmax.f32 %v8005, 0.0
    %v8262 = vmax.f32 %v8006, 0.0
    %v8263 = vmax.f32 %v8007, 0.0
    %v8264 = vmax.f32 %v8008, 0.0
    %v8265 = vmax.f32 %v8009, 0.0
    %v8266 = vmax.f32 %v8010, 0.0
    %v8267 = vmax.f32 %v8011, 0.0
    %v8268 = vmax.f32 %v8012, 0.0
    %v8269 = vmax.f32 %v8013, 0.0
    %v8270 = vmax.f32 %v8014, 0.0
    %v8271 = vmax.f32 %v8015, 0.0
    %v8272 = vmax.f32 %v8016, 0.0
    %v8273 = vmax.f32 %v8017, 0.0
    %v8274 = vmax.f32 %v8018, 0.0
    %v8275 = vmax.f32 %v8019, 0.0
    %v8276 = vmax.f32 %v8020, 0.0
    %v8277 = vmax.f32 %v8021, 0.0
    %v8278 = vmax.f32 %v8022, 0.0
    %v8279 = vmax.f32 %v8023, 0.0
    %v8280 = vmax.f32 %v8024, 0.0
    %v8281 = vmax.f32 %v8025, 0.0
    %v8282 = vmax.f32 %v8026, 0.0
    %v8283 = vmax.f32 %v8027, 0.0
    %v8284 = vmax.f32 %v8028, 0.0
    %v8285 = vmax.f32 %v8029, 0.0
    %v8286 = vpack.c.bf16 %v8038, %v8030
    %v8287 = vpack.c.bf16 %v8039, %v8031
    %v8288 = vpack.c.bf16 %v8040, %v8032
    %v8289 = vpack.c.bf16 %v8041, %v8033
    %v8290 = vpack.c.bf16 %v8042, %v8034
    %v8291 = vpack.c.bf16 %v8043, %v8035
    %v8292 = vpack.c.bf16 %v8044, %v8036
    %v8293 = vpack.c.bf16 %v8045, %v8037
    %v8294 = vpack.c.bf16 %v8054, %v8046
    %v8295 = vpack.c.bf16 %v8055, %v8047
    %v8296 = vpack.c.bf16 %v8056, %v8048
    %v8297 = vpack.c.bf16 %v8057, %v8049
    %v8298 = vpack.c.bf16 %v8058, %v8050
    %v8299 = vpack.c.bf16 %v8059, %v8051
    %v8300 = vpack.c.bf16 %v8060, %v8052
    %v8301 = vpack.c.bf16 %v8061, %v8053
    %v8302 = vpack.c.bf16 %v8070, %v8062
    %v8303 = vpack.c.bf16 %v8071, %v8063
    %v8304 = vpack.c.bf16 %v8072, %v8064
    %v8305 = vpack.c.bf16 %v8073, %v8065
    %v8306 = vpack.c.bf16 %v8074, %v8066
    %v8307 = vpack.c.bf16 %v8075, %v8067
    %v8308 = vpack.c.bf16 %v8076, %v8068
    %v8309 = vpack.c.bf16 %v8077, %v8069
    %v8310 = vpack.c.bf16 %v8086, %v8078
    %v8311 = vpack.c.bf16 %v8087, %v8079
    %v8312 = vpack.c.bf16 %v8088, %v8080
    %v8313 = vpack.c.bf16 %v8089, %v8081
    %v8314 = vpack.c.bf16 %v8090, %v8082
    %v8315 = vpack.c.bf16 %v8091, %v8083
    %v8316 = vpack.c.bf16 %v8092, %v8084
    %v8317 = vpack.c.bf16 %v8093, %v8085
    %v8318 = vpack.c.bf16 %v8102, %v8094
    %v8319 = vpack.c.bf16 %v8103, %v8095
    %v8320 = vpack.c.bf16 %v8104, %v8096
    %v8321 = vpack.c.bf16 %v8105, %v8097
    %v8322 = vpack.c.bf16 %v8106, %v8098
    %v8323 = vpack.c.bf16 %v8107, %v8099
    %v8324 = vpack.c.bf16 %v8108, %v8100
    %v8325 = vpack.c.bf16 %v8109, %v8101
    %v8326 = vpack.c.bf16 %v8118, %v8110
    %v8327 = vpack.c.bf16 %v8119, %v8111
    %v8328 = vpack.c.bf16 %v8120, %v8112
    %v8329 = vpack.c.bf16 %v8121, %v8113
    %v8330 = vpack.c.bf16 %v8122, %v8114
    %v8331 = vpack.c.bf16 %v8123, %v8115
    %v8332 = vpack.c.bf16 %v8124, %v8116
    %v8333 = vpack.c.bf16 %v8125, %v8117
    %v8334 = vpack.c.bf16 %v8134, %v8126
    %v8335 = vpack.c.bf16 %v8135, %v8127
    %v8336 = vpack.c.bf16 %v8136, %v8128
    %v8337 = vpack.c.bf16 %v8137, %v8129
    %v8338 = vpack.c.bf16 %v8138, %v8130
    %v8339 = vpack.c.bf16 %v8139, %v8131
    %v8340 = vpack.c.bf16 %v8140, %v8132
    %v8341 = vpack.c.bf16 %v8141, %v8133
    %v8342 = vpack.c.bf16 %v8150, %v8142
    %v8343 = vpack.c.bf16 %v8151, %v8143
    %v8344 = vpack.c.bf16 %v8152, %v8144
    %v8345 = vpack.c.bf16 %v8153, %v8145
    %v8346 = vpack.c.bf16 %v8154, %v8146
    %v8347 = vpack.c.bf16 %v8155, %v8147
    %v8348 = vpack.c.bf16 %v8156, %v8148
    %v8349 = vpack.c.bf16 %v8157, %v8149
    %v8350 = vpack.c.bf16 %v8166, %v8158
    %v8351 = vpack.c.bf16 %v8167, %v8159
    %v8352 = vpack.c.bf16 %v8168, %v8160
    %v8353 = vpack.c.bf16 %v8169, %v8161
    %v8354 = vpack.c.bf16 %v8170, %v8162
    %v8355 = vpack.c.bf16 %v8171, %v8163
    %v8356 = vpack.c.bf16 %v8172, %v8164
    %v8357 = vpack.c.bf16 %v8173, %v8165
    %v8358 = vpack.c.bf16 %v8182, %v8174
    %v8359 = vpack.c.bf16 %v8183, %v8175
    %v8360 = vpack.c.bf16 %v8184, %v8176
    %v8361 = vpack.c.bf16 %v8185, %v8177
    %v8362 = vpack.c.bf16 %v8186, %v8178
    %v8363 = vpack.c.bf16 %v8187, %v8179
    %v8364 = vpack.c.bf16 %v8188, %v8180
    %v8365 = vpack.c.bf16 %v8189, %v8181
    %v8366 = vpack.c.bf16 %v8198, %v8190
    %v8367 = vpack.c.bf16 %v8199, %v8191
    %v8368 = vpack.c.bf16 %v8200, %v8192
    %v8369 = vpack.c.bf16 %v8201, %v8193
    %v8370 = vpack.c.bf16 %v8202, %v8194
    %v8371 = vpack.c.bf16 %v8203, %v8195
    %v8372 = vpack.c.bf16 %v8204, %v8196
    %v8373 = vpack.c.bf16 %v8205, %v8197
    %v8374 = vpack.c.bf16 %v8214, %v8206
    %v8375 = vpack.c.bf16 %v8215, %v8207
    %v8376 = vpack.c.bf16 %v8216, %v8208
    %v8377 = vpack.c.bf16 %v8217, %v8209
    %v8378 = vpack.c.bf16 %v8218, %v8210
    %v8379 = vpack.c.bf16 %v8219, %v8211
    %v8380 = vpack.c.bf16 %v8220, %v8212
    %v8381 = vpack.c.bf16 %v8221, %v8213
    %v8382 = vpack.c.bf16 %v8230, %v8222
    %v8383 = vpack.c.bf16 %v8231, %v8223
    %v8384 = vpack.c.bf16 %v8232, %v8224
    %v8385 = vpack.c.bf16 %v8233, %v8225
    %v8386 = vpack.c.bf16 %v8234, %v8226
    %v8387 = vpack.c.bf16 %v8235, %v8227
    %v8388 = vpack.c.bf16 %v8236, %v8228
    %v8389 = vpack.c.bf16 %v8237, %v8229
    %v8390 = vpack.c.bf16 %v8246, %v8238
    %v8391 = vpack.c.bf16 %v8247, %v8239
    %v8392 = vpack.c.bf16 %v8248, %v8240
    %v8393 = vpack.c.bf16 %v8249, %v8241
    %v8394 = vpack.c.bf16 %v8250, %v8242
    %v8395 = vpack.c.bf16 %v8251, %v8243
    %v8396 = vpack.c.bf16 %v8252, %v8244
    %v8397 = vpack.c.bf16 %v8253, %v8245
    %v8398 = vpack.c.bf16 %v8262, %v8254
    %v8399 = vpack.c.bf16 %v8263, %v8255
    %v8400 = vpack.c.bf16 %v8264, %v8256
    %v8401 = vpack.c.bf16 %v8265, %v8257
    %v8402 = vpack.c.bf16 %v8266, %v8258
    %v8403 = vpack.c.bf16 %v8267, %v8259
    %v8404 = vpack.c.bf16 %v8268, %v8260
    %v8405 = vpack.c.bf16 %v8269, %v8261
    %v8406 = vpack.c.bf16 %v8278, %v8270
    %v8407 = vpack.c.bf16 %v8279, %v8271
    %v8408 = vpack.c.bf16 %v8280, %v8272
    %v8409 = vpack.c.bf16 %v8281, %v8273
    %v8410 = vpack.c.bf16 %v8282, %v8274
    %v8411 = vpack.c.bf16 %v8283, %v8275
    %v8412 = vpack.c.bf16 %v8284, %v8276
    %v8413 = vpack.c.bf16 %v8285, %v8277
    %v8414 = vld [vmem:[#allocation17] sm:$0xff]
    %v8415 = vld [vmem:[#allocation17 + $0x8] sm:$0xff]
    %v8416 = vld [vmem:[#allocation17 + $0x10] sm:$0xff]
    %v8417 = vld [vmem:[#allocation17 + $0x18] sm:$0xff]
    %v8418 = vld [vmem:[#allocation17 + $0x20] sm:$0xff]
    %v8419 = vld [vmem:[#allocation17 + $0x28] sm:$0xff]
    %v8420 = vld [vmem:[#allocation17 + $0x30] sm:$0xff]
    %v8421 = vld [vmem:[#allocation17 + $0x38] sm:$0xff]
    %v8422 = vld [vmem:[#allocation17 + $0x40] sm:$0xff]
    %v8423 = vld [vmem:[#allocation17 + $0x48] sm:$0xff]
    %v8424 = vld [vmem:[#allocation17 + $0x50] sm:$0xff]
    %v8425 = vld [vmem:[#allocation17 + $0x58] sm:$0xff]
    %v8426 = vld [vmem:[#allocation17 + $0x60] sm:$0xff]
    %v8427 = vld [vmem:[#allocation17 + $0x68] sm:$0xff]
    %v8428 = vld [vmem:[#allocation17 + $0x70] sm:$0xff]
    %v8429 = vld [vmem:[#allocation17 + $0x78] sm:$0xff]
    %v8430 = vld [vmem:[#allocation17 + $0x80] sm:$0xff]
    %v8431 = vld [vmem:[#allocation17 + $0x88] sm:$0xff]
    %v8432 = vld [vmem:[#allocation17 + $0x90] sm:$0xff]
    %v8433 = vld [vmem:[#allocation17 + $0x98] sm:$0xff]
    %v8434 = vld [vmem:[#allocation17 + $0xa0] sm:$0xff]
    %v8435 = vld [vmem:[#allocation17 + $0xa8] sm:$0xff]
    %v8436 = vld [vmem:[#allocation17 + $0xb0] sm:$0xff]
    %v8437 = vld [vmem:[#allocation17 + $0xb8] sm:$0xff]
    %v8438 = vld [vmem:[#allocation17 + $0xc0] sm:$0xff]
    %v8439 = vld [vmem:[#allocation17 + $0xc8] sm:$0xff]
    %v8440 = vld [vmem:[#allocation17 + $0xd0] sm:$0xff]
    %v8441 = vld [vmem:[#allocation17 + $0xd8] sm:$0xff]
    %v8442 = vld [vmem:[#allocation17 + $0xe0] sm:$0xff]
    %v8443 = vld [vmem:[#allocation17 + $0xe8] sm:$0xff]
    %v8444 = vld [vmem:[#allocation17 + $0xf0] sm:$0xff]
    %v8445 = vld [vmem:[#allocation17 + $0xf8] sm:$0xff]
    %v8446 = vld [vmem:[#allocation17 + $0x100] sm:$0xff]
    %v8447 = vld [vmem:[#allocation17 + $0x108] sm:$0xff]
    %v8448 = vld [vmem:[#allocation17 + $0x110] sm:$0xff]
    %v8449 = vld [vmem:[#allocation17 + $0x118] sm:$0xff]
    %v8450 = vld [vmem:[#allocation17 + $0x120] sm:$0xff]
    %v8451 = vld [vmem:[#allocation17 + $0x128] sm:$0xff]
    %v8452 = vld [vmem:[#allocation17 + $0x130] sm:$0xff]
    %v8453 = vld [vmem:[#allocation17 + $0x138] sm:$0xff]
    %v8454 = vld [vmem:[#allocation17 + $0x140] sm:$0xff]
    %v8455 = vld [vmem:[#allocation17 + $0x148] sm:$0xff]
    %v8456 = vld [vmem:[#allocation17 + $0x150] sm:$0xff]
    %v8457 = vld [vmem:[#allocation17 + $0x158] sm:$0xff]
    %v8458 = vld [vmem:[#allocation17 + $0x160] sm:$0xff]
    %v8459 = vld [vmem:[#allocation17 + $0x168] sm:$0xff]
    %v8460 = vld [vmem:[#allocation17 + $0x170] sm:$0xff]
    %v8461 = vld [vmem:[#allocation17 + $0x178] sm:$0xff]
    %v8462 = vld [vmem:[#allocation17 + $0x180] sm:$0xff]
    %v8463 = vld [vmem:[#allocation17 + $0x188] sm:$0xff]
    %v8464 = vld [vmem:[#allocation17 + $0x190] sm:$0xff]
    %v8465 = vld [vmem:[#allocation17 + $0x198] sm:$0xff]
    %v8466 = vld [vmem:[#allocation17 + $0x1a0] sm:$0xff]
    %v8467 = vld [vmem:[#allocation17 + $0x1a8] sm:$0xff]
    %v8468 = vld [vmem:[#allocation17 + $0x1b0] sm:$0xff]
    %v8469 = vld [vmem:[#allocation17 + $0x1b8] sm:$0xff]
    %v8470 = vld [vmem:[#allocation17 + $0x1c0] sm:$0xff]
    %v8471 = vld [vmem:[#allocation17 + $0x1c8] sm:$0xff]
    %v8472 = vld [vmem:[#allocation17 + $0x1d0] sm:$0xff]
    %v8473 = vld [vmem:[#allocation17 + $0x1d8] sm:$0xff]
    %v8474 = vld [vmem:[#allocation17 + $0x1e0] sm:$0xff]
    %v8475 = vld [vmem:[#allocation17 + $0x1e8] sm:$0xff]
    %v8476 = vld [vmem:[#allocation17 + $0x1f0] sm:$0xff]
    %v8477 = vld [vmem:[#allocation17 + $0x1f8] sm:$0xff]
    %v8478 = vld [vmem:[#allocation17 + $0x200] sm:$0xff]
    %v8479 = vld [vmem:[#allocation17 + $0x208] sm:$0xff]
    %v8480 = vld [vmem:[#allocation17 + $0x210] sm:$0xff]
    %v8481 = vld [vmem:[#allocation17 + $0x218] sm:$0xff]
    %v8482 = vld [vmem:[#allocation17 + $0x220] sm:$0xff]
    %v8483 = vld [vmem:[#allocation17 + $0x228] sm:$0xff]
    %v8484 = vld [vmem:[#allocation17 + $0x230] sm:$0xff]
    %v8485 = vld [vmem:[#allocation17 + $0x238] sm:$0xff]
    %v8486 = vld [vmem:[#allocation17 + $0x240] sm:$0xff]
    %v8487 = vld [vmem:[#allocation17 + $0x248] sm:$0xff]
    %v8488 = vld [vmem:[#allocation17 + $0x250] sm:$0xff]
    %v8489 = vld [vmem:[#allocation17 + $0x258] sm:$0xff]
    %v8490 = vld [vmem:[#allocation17 + $0x260] sm:$0xff]
    %v8491 = vld [vmem:[#allocation17 + $0x268] sm:$0xff]
    %v8492 = vld [vmem:[#allocation17 + $0x270] sm:$0xff]
    %v8493 = vld [vmem:[#allocation17 + $0x278] sm:$0xff]
    %v8494 = vld [vmem:[#allocation17 + $0x280] sm:$0xff]
    %v8495 = vld [vmem:[#allocation17 + $0x288] sm:$0xff]
    %v8496 = vld [vmem:[#allocation17 + $0x290] sm:$0xff]
    %v8497 = vld [vmem:[#allocation17 + $0x298] sm:$0xff]
    %v8498 = vld [vmem:[#allocation17 + $0x2a0] sm:$0xff]
    %v8499 = vld [vmem:[#allocation17 + $0x2a8] sm:$0xff]
    %v8500 = vld [vmem:[#allocation17 + $0x2b0] sm:$0xff]
    %v8501 = vld [vmem:[#allocation17 + $0x2b8] sm:$0xff]
    %v8502 = vld [vmem:[#allocation17 + $0x2c0] sm:$0xff]
    %v8503 = vld [vmem:[#allocation17 + $0x2c8] sm:$0xff]
    %v8504 = vld [vmem:[#allocation17 + $0x2d0] sm:$0xff]
    %v8505 = vld [vmem:[#allocation17 + $0x2d8] sm:$0xff]
    %v8506 = vld [vmem:[#allocation17 + $0x2e0] sm:$0xff]
    %v8507 = vld [vmem:[#allocation17 + $0x2e8] sm:$0xff]
    %v8508 = vld [vmem:[#allocation17 + $0x2f0] sm:$0xff]
    %v8509 = vld [vmem:[#allocation17 + $0x2f8] sm:$0xff]
    %v8510 = vld [vmem:[#allocation17 + $0x300] sm:$0xff]
    %v8511 = vld [vmem:[#allocation17 + $0x308] sm:$0xff]
    %v8512 = vld [vmem:[#allocation17 + $0x310] sm:$0xff]
    %v8513 = vld [vmem:[#allocation17 + $0x318] sm:$0xff]
    %v8514 = vld [vmem:[#allocation17 + $0x320] sm:$0xff]
    %v8515 = vld [vmem:[#allocation17 + $0x328] sm:$0xff]
    %v8516 = vld [vmem:[#allocation17 + $0x330] sm:$0xff]
    %v8517 = vld [vmem:[#allocation17 + $0x338] sm:$0xff]
    %v8518 = vld [vmem:[#allocation17 + $0x340] sm:$0xff]
    %v8519 = vld [vmem:[#allocation17 + $0x348] sm:$0xff]
    %v8520 = vld [vmem:[#allocation17 + $0x350] sm:$0xff]
    %v8521 = vld [vmem:[#allocation17 + $0x358] sm:$0xff]
    %v8522 = vld [vmem:[#allocation17 + $0x360] sm:$0xff]
    %v8523 = vld [vmem:[#allocation17 + $0x368] sm:$0xff]
    %v8524 = vld [vmem:[#allocation17 + $0x370] sm:$0xff]
    %v8525 = vld [vmem:[#allocation17 + $0x378] sm:$0xff]
    %v8526 = vld [vmem:[#allocation17 + $0x380] sm:$0xff]
    %v8527 = vld [vmem:[#allocation17 + $0x388] sm:$0xff]
    %v8528 = vld [vmem:[#allocation17 + $0x390] sm:$0xff]
    %v8529 = vld [vmem:[#allocation17 + $0x398] sm:$0xff]
    %v8530 = vld [vmem:[#allocation17 + $0x3a0] sm:$0xff]
    %v8531 = vld [vmem:[#allocation17 + $0x3a8] sm:$0xff]
    %v8532 = vld [vmem:[#allocation17 + $0x3b0] sm:$0xff]
    %v8533 = vld [vmem:[#allocation17 + $0x3b8] sm:$0xff]
    %v8534 = vld [vmem:[#allocation17 + $0x3c0] sm:$0xff]
    %v8535 = vld [vmem:[#allocation17 + $0x3c8] sm:$0xff]
    %v8536 = vld [vmem:[#allocation17 + $0x3d0] sm:$0xff]
    %v8537 = vld [vmem:[#allocation17 + $0x3d8] sm:$0xff]
    %v8538 = vld [vmem:[#allocation17 + $0x3e0] sm:$0xff]
    %v8539 = vld [vmem:[#allocation17 + $0x3e8] sm:$0xff]
    %v8540 = vld [vmem:[#allocation17 + $0x3f0] sm:$0xff]
    %v8541 = vld [vmem:[#allocation17 + $0x3f8] sm:$0xff]
    %v8542 = vld [vmem:[#allocation17 + $0x400] sm:$0xff]
    %v8543 = vld [vmem:[#allocation17 + $0x408] sm:$0xff]
    %v8544 = vld [vmem:[#allocation17 + $0x410] sm:$0xff]
    %v8545 = vld [vmem:[#allocation17 + $0x418] sm:$0xff]
    %v8546 = vld [vmem:[#allocation17 + $0x420] sm:$0xff]
    %v8547 = vld [vmem:[#allocation17 + $0x428] sm:$0xff]
    %v8548 = vld [vmem:[#allocation17 + $0x430] sm:$0xff]
    %v8549 = vld [vmem:[#allocation17 + $0x438] sm:$0xff]
    %v8550 = vld [vmem:[#allocation17 + $0x440] sm:$0xff]
    %v8551 = vld [vmem:[#allocation17 + $0x448] sm:$0xff]
    %v8552 = vld [vmem:[#allocation17 + $0x450] sm:$0xff]
    %v8553 = vld [vmem:[#allocation17 + $0x458] sm:$0xff]
    %v8554 = vld [vmem:[#allocation17 + $0x460] sm:$0xff]
    %v8555 = vld [vmem:[#allocation17 + $0x468] sm:$0xff]
    %v8556 = vld [vmem:[#allocation17 + $0x470] sm:$0xff]
    %v8557 = vld [vmem:[#allocation17 + $0x478] sm:$0xff]
    %v8558 = vld [vmem:[#allocation17 + $0x480] sm:$0xff]
    %v8559 = vld [vmem:[#allocation17 + $0x488] sm:$0xff]
    %v8560 = vld [vmem:[#allocation17 + $0x490] sm:$0xff]
    %v8561 = vld [vmem:[#allocation17 + $0x498] sm:$0xff]
    %v8562 = vld [vmem:[#allocation17 + $0x4a0] sm:$0xff]
    %v8563 = vld [vmem:[#allocation17 + $0x4a8] sm:$0xff]
    %v8564 = vld [vmem:[#allocation17 + $0x4b0] sm:$0xff]
    %v8565 = vld [vmem:[#allocation17 + $0x4b8] sm:$0xff]
    %v8566 = vld [vmem:[#allocation17 + $0x4c0] sm:$0xff]
    %v8567 = vld [vmem:[#allocation17 + $0x4c8] sm:$0xff]
    %v8568 = vld [vmem:[#allocation17 + $0x4d0] sm:$0xff]
    %v8569 = vld [vmem:[#allocation17 + $0x4d8] sm:$0xff]
    %v8570 = vld [vmem:[#allocation17 + $0x4e0] sm:$0xff]
    %v8571 = vld [vmem:[#allocation17 + $0x4e8] sm:$0xff]
    %v8572 = vld [vmem:[#allocation17 + $0x4f0] sm:$0xff]
    %v8573 = vld [vmem:[#allocation17 + $0x4f8] sm:$0xff]
    %v8574 = vld [vmem:[#allocation17 + $0x500] sm:$0xff]
    %v8575 = vld [vmem:[#allocation17 + $0x508] sm:$0xff]
    %v8576 = vld [vmem:[#allocation17 + $0x510] sm:$0xff]
    %v8577 = vld [vmem:[#allocation17 + $0x518] sm:$0xff]
    %v8578 = vld [vmem:[#allocation17 + $0x520] sm:$0xff]
    %v8579 = vld [vmem:[#allocation17 + $0x528] sm:$0xff]
    %v8580 = vld [vmem:[#allocation17 + $0x530] sm:$0xff]
    %v8581 = vld [vmem:[#allocation17 + $0x538] sm:$0xff]
    %v8582 = vld [vmem:[#allocation17 + $0x540] sm:$0xff]
    %v8583 = vld [vmem:[#allocation17 + $0x548] sm:$0xff]
    %v8584 = vld [vmem:[#allocation17 + $0x550] sm:$0xff]
    %v8585 = vld [vmem:[#allocation17 + $0x558] sm:$0xff]
    %v8586 = vld [vmem:[#allocation17 + $0x560] sm:$0xff]
    %v8587 = vld [vmem:[#allocation17 + $0x568] sm:$0xff]
    %v8588 = vld [vmem:[#allocation17 + $0x570] sm:$0xff]
    %v8589 = vld [vmem:[#allocation17 + $0x578] sm:$0xff]
    %v8590 = vld [vmem:[#allocation17 + $0x580] sm:$0xff]
    %v8591 = vld [vmem:[#allocation17 + $0x588] sm:$0xff]
    %v8592 = vld [vmem:[#allocation17 + $0x590] sm:$0xff]
    %v8593 = vld [vmem:[#allocation17 + $0x598] sm:$0xff]
    %v8594 = vld [vmem:[#allocation17 + $0x5a0] sm:$0xff]
    %v8595 = vld [vmem:[#allocation17 + $0x5a8] sm:$0xff]
    %v8596 = vld [vmem:[#allocation17 + $0x5b0] sm:$0xff]
    %v8597 = vld [vmem:[#allocation17 + $0x5b8] sm:$0xff]
    %v8598 = vld [vmem:[#allocation17 + $0x5c0] sm:$0xff]
    %v8599 = vld [vmem:[#allocation17 + $0x5c8] sm:$0xff]
    %v8600 = vld [vmem:[#allocation17 + $0x5d0] sm:$0xff]
    %v8601 = vld [vmem:[#allocation17 + $0x5d8] sm:$0xff]
    %v8602 = vld [vmem:[#allocation17 + $0x5e0] sm:$0xff]
    %v8603 = vld [vmem:[#allocation17 + $0x5e8] sm:$0xff]
    %v8604 = vld [vmem:[#allocation17 + $0x5f0] sm:$0xff]
    %v8605 = vld [vmem:[#allocation17 + $0x5f8] sm:$0xff]
    %v8606 = vld [vmem:[#allocation17 + $0x600] sm:$0xff]
    %v8607 = vld [vmem:[#allocation17 + $0x608] sm:$0xff]
    %v8608 = vld [vmem:[#allocation17 + $0x610] sm:$0xff]
    %v8609 = vld [vmem:[#allocation17 + $0x618] sm:$0xff]
    %v8610 = vld [vmem:[#allocation17 + $0x620] sm:$0xff]
    %v8611 = vld [vmem:[#allocation17 + $0x628] sm:$0xff]
    %v8612 = vld [vmem:[#allocation17 + $0x630] sm:$0xff]
    %v8613 = vld [vmem:[#allocation17 + $0x638] sm:$0xff]
    %v8614 = vld [vmem:[#allocation17 + $0x640] sm:$0xff]
    %v8615 = vld [vmem:[#allocation17 + $0x648] sm:$0xff]
    %v8616 = vld [vmem:[#allocation17 + $0x650] sm:$0xff]
    %v8617 = vld [vmem:[#allocation17 + $0x658] sm:$0xff]
    %v8618 = vld [vmem:[#allocation17 + $0x660] sm:$0xff]
    %v8619 = vld [vmem:[#allocation17 + $0x668] sm:$0xff]
    %v8620 = vld [vmem:[#allocation17 + $0x670] sm:$0xff]
    %v8621 = vld [vmem:[#allocation17 + $0x678] sm:$0xff]
    %v8622 = vld [vmem:[#allocation17 + $0x680] sm:$0xff]
    %v8623 = vld [vmem:[#allocation17 + $0x688] sm:$0xff]
    %v8624 = vld [vmem:[#allocation17 + $0x690] sm:$0xff]
    %v8625 = vld [vmem:[#allocation17 + $0x698] sm:$0xff]
    %v8626 = vld [vmem:[#allocation17 + $0x6a0] sm:$0xff]
    %v8627 = vld [vmem:[#allocation17 + $0x6a8] sm:$0xff]
    %v8628 = vld [vmem:[#allocation17 + $0x6b0] sm:$0xff]
    %v8629 = vld [vmem:[#allocation17 + $0x6b8] sm:$0xff]
    %v8630 = vld [vmem:[#allocation17 + $0x6c0] sm:$0xff]
    %v8631 = vld [vmem:[#allocation17 + $0x6c8] sm:$0xff]
    %v8632 = vld [vmem:[#allocation17 + $0x6d0] sm:$0xff]
    %v8633 = vld [vmem:[#allocation17 + $0x6d8] sm:$0xff]
    %v8634 = vld [vmem:[#allocation17 + $0x6e0] sm:$0xff]
    %v8635 = vld [vmem:[#allocation17 + $0x6e8] sm:$0xff]
    %v8636 = vld [vmem:[#allocation17 + $0x6f0] sm:$0xff]
    %v8637 = vld [vmem:[#allocation17 + $0x6f8] sm:$0xff]
    %v8638 = vld [vmem:[#allocation17 + $0x700] sm:$0xff]
    %v8639 = vld [vmem:[#allocation17 + $0x708] sm:$0xff]
    %v8640 = vld [vmem:[#allocation17 + $0x710] sm:$0xff]
    %v8641 = vld [vmem:[#allocation17 + $0x718] sm:$0xff]
    %v8642 = vld [vmem:[#allocation17 + $0x720] sm:$0xff]
    %v8643 = vld [vmem:[#allocation17 + $0x728] sm:$0xff]
    %v8644 = vld [vmem:[#allocation17 + $0x730] sm:$0xff]
    %v8645 = vld [vmem:[#allocation17 + $0x738] sm:$0xff]
    %v8646 = vld [vmem:[#allocation17 + $0x740] sm:$0xff]
    %v8647 = vld [vmem:[#allocation17 + $0x748] sm:$0xff]
    %v8648 = vld [vmem:[#allocation17 + $0x750] sm:$0xff]
    %v8649 = vld [vmem:[#allocation17 + $0x758] sm:$0xff]
    %v8650 = vld [vmem:[#allocation17 + $0x760] sm:$0xff]
    %v8651 = vld [vmem:[#allocation17 + $0x768] sm:$0xff]
    %v8652 = vld [vmem:[#allocation17 + $0x770] sm:$0xff]
    %v8653 = vld [vmem:[#allocation17 + $0x778] sm:$0xff]
    %v8654 = vld [vmem:[#allocation17 + $0x780] sm:$0xff]
    %v8655 = vld [vmem:[#allocation17 + $0x788] sm:$0xff]
    %v8656 = vld [vmem:[#allocation17 + $0x790] sm:$0xff]
    %v8657 = vld [vmem:[#allocation17 + $0x798] sm:$0xff]
    %v8658 = vld [vmem:[#allocation17 + $0x7a0] sm:$0xff]
    %v8659 = vld [vmem:[#allocation17 + $0x7a8] sm:$0xff]
    %v8660 = vld [vmem:[#allocation17 + $0x7b0] sm:$0xff]
    %v8661 = vld [vmem:[#allocation17 + $0x7b8] sm:$0xff]
    %v8662 = vld [vmem:[#allocation17 + $0x7c0] sm:$0xff]
    %v8663 = vld [vmem:[#allocation17 + $0x7c8] sm:$0xff]
    %v8664 = vld [vmem:[#allocation17 + $0x7d0] sm:$0xff]
    %v8665 = vld [vmem:[#allocation17 + $0x7d8] sm:$0xff]
    %v8666 = vld [vmem:[#allocation17 + $0x7e0] sm:$0xff]
    %v8667 = vld [vmem:[#allocation17 + $0x7e8] sm:$0xff]
    %v8668 = vld [vmem:[#allocation17 + $0x7f0] sm:$0xff]
    %v8669 = vld [vmem:[#allocation17 + $0x7f8] sm:$0xff]
    %v8670 = vld [vmem:[#allocation19] sm:$0xf]
    %v8672 = vlaneseq
    %v8673 = vshrl.u32 %v8672, 7
    %v8674 = vsub.s32 0, %v8673
    %v8675 = vrot.slane %v8670, %v8674
    %v8676 = vlaneseq
    %v8677 = vshrl.u32 %v8676, 7
    %v8678 = vsub.s32 1, %v8677
    %v8679 = vrot.slane %v8670, %v8678
    %v8680 = vlaneseq
    %v8681 = vshrl.u32 %v8680, 7
    %v8682 = vsub.s32 2, %v8681
    %v8683 = vrot.slane %v8670, %v8682
    %v8684 = vlaneseq
    %v8685 = vshrl.u32 %v8684, 7
    %v8686 = vsub.s32 3, %v8685
    %v8687 = vrot.slane %v8670, %v8686
    %v8948 = vunpack.c.l.b16 %v8414
    %v8949 = vunpack.c.h.b16 %v8414
    %v8950 = vunpack.c.l.b16 %v8415
    %v8951 = vunpack.c.h.b16 %v8415
    %v8952 = vunpack.c.l.b16 %v8416
    %v8953 = vunpack.c.h.b16 %v8416
    %v8954 = vunpack.c.l.b16 %v8417
    %v8955 = vunpack.c.h.b16 %v8417
    %v8956 = vunpack.c.l.b16 %v8418
    %v8957 = vunpack.c.h.b16 %v8418
    %v8958 = vunpack.c.l.b16 %v8419
    %v8959 = vunpack.c.h.b16 %v8419
    %v8960 = vunpack.c.l.b16 %v8420
    %v8961 = vunpack.c.h.b16 %v8420
    %v8962 = vunpack.c.l.b16 %v8421
    %v8963 = vunpack.c.h.b16 %v8421
    %v8964 = vunpack.c.l.b16 %v8422
    %v8965 = vunpack.c.h.b16 %v8422
    %v8966 = vunpack.c.l.b16 %v8423
    %v8967 = vunpack.c.h.b16 %v8423
    %v8968 = vunpack.c.l.b16 %v8424
    %v8969 = vunpack.c.h.b16 %v8424
    %v8970 = vunpack.c.l.b16 %v8425
    %v8971 = vunpack.c.h.b16 %v8425
    %v8972 = vunpack.c.l.b16 %v8426
    %v8973 = vunpack.c.h.b16 %v8426
    %v8974 = vunpack.c.l.b16 %v8427
    %v8975 = vunpack.c.h.b16 %v8427
    %v8976 = vunpack.c.l.b16 %v8428
    %v8977 = vunpack.c.h.b16 %v8428
    %v8978 = vunpack.c.l.b16 %v8429
    %v8979 = vunpack.c.h.b16 %v8429
    %v8980 = vunpack.c.l.b16 %v8430
    %v8981 = vunpack.c.h.b16 %v8430
    %v8982 = vunpack.c.l.b16 %v8431
    %v8983 = vunpack.c.h.b16 %v8431
    %v8984 = vunpack.c.l.b16 %v8432
    %v8985 = vunpack.c.h.b16 %v8432
    %v8986 = vunpack.c.l.b16 %v8433
    %v8987 = vunpack.c.h.b16 %v8433
    %v8988 = vunpack.c.l.b16 %v8434
    %v8989 = vunpack.c.h.b16 %v8434
    %v8990 = vunpack.c.l.b16 %v8435
    %v8991 = vunpack.c.h.b16 %v8435
    %v8992 = vunpack.c.l.b16 %v8436
    %v8993 = vunpack.c.h.b16 %v8436
    %v8994 = vunpack.c.l.b16 %v8437
    %v8995 = vunpack.c.h.b16 %v8437
    %v8996 = vunpack.c.l.b16 %v8438
    %v8997 = vunpack.c.h.b16 %v8438
    %v8998 = vunpack.c.l.b16 %v8439
    %v8999 = vunpack.c.h.b16 %v8439
    %v9000 = vunpack.c.l.b16 %v8440
    %v9001 = vunpack.c.h.b16 %v8440
    %v9002 = vunpack.c.l.b16 %v8441
    %v9003 = vunpack.c.h.b16 %v8441
    %v9004 = vunpack.c.l.b16 %v8442
    %v9005 = vunpack.c.h.b16 %v8442
    %v9006 = vunpack.c.l.b16 %v8443
    %v9007 = vunpack.c.h.b16 %v8443
    %v9008 = vunpack.c.l.b16 %v8444
    %v9009 = vunpack.c.h.b16 %v8444
    %v9010 = vunpack.c.l.b16 %v8445
    %v9011 = vunpack.c.h.b16 %v8445
    %v9012 = vunpack.c.l.b16 %v8446
    %v9013 = vunpack.c.h.b16 %v8446
    %v9014 = vunpack.c.l.b16 %v8447
    %v9015 = vunpack.c.h.b16 %v8447
    %v9016 = vunpack.c.l.b16 %v8448
    %v9017 = vunpack.c.h.b16 %v8448
    %v9018 = vunpack.c.l.b16 %v8449
    %v9019 = vunpack.c.h.b16 %v8449
    %v9020 = vunpack.c.l.b16 %v8450
    %v9021 = vunpack.c.h.b16 %v8450
    %v9022 = vunpack.c.l.b16 %v8451
    %v9023 = vunpack.c.h.b16 %v8451
    %v9024 = vunpack.c.l.b16 %v8452
    %v9025 = vunpack.c.h.b16 %v8452
    %v9026 = vunpack.c.l.b16 %v8453
    %v9027 = vunpack.c.h.b16 %v8453
    %v9028 = vunpack.c.l.b16 %v8454
    %v9029 = vunpack.c.h.b16 %v8454
    %v9030 = vunpack.c.l.b16 %v8455
    %v9031 = vunpack.c.h.b16 %v8455
    %v9032 = vunpack.c.l.b16 %v8456
    %v9033 = vunpack.c.h.b16 %v8456
    %v9034 = vunpack.c.l.b16 %v8457
    %v9035 = vunpack.c.h.b16 %v8457
    %v9036 = vunpack.c.l.b16 %v8458
    %v9037 = vunpack.c.h.b16 %v8458
    %v9038 = vunpack.c.l.b16 %v8459
    %v9039 = vunpack.c.h.b16 %v8459
    %v9040 = vunpack.c.l.b16 %v8460
    %v9041 = vunpack.c.h.b16 %v8460
    %v9042 = vunpack.c.l.b16 %v8461
    %v9043 = vunpack.c.h.b16 %v8461
    %v9044 = vunpack.c.l.b16 %v8462
    %v9045 = vunpack.c.h.b16 %v8462
    %v9046 = vunpack.c.l.b16 %v8463
    %v9047 = vunpack.c.h.b16 %v8463
    %v9048 = vunpack.c.l.b16 %v8464
    %v9049 = vunpack.c.h.b16 %v8464
    %v9050 = vunpack.c.l.b16 %v8465
    %v9051 = vunpack.c.h.b16 %v8465
    %v9052 = vunpack.c.l.b16 %v8466
    %v9053 = vunpack.c.h.b16 %v8466
    %v9054 = vunpack.c.l.b16 %v8467
    %v9055 = vunpack.c.h.b16 %v8467
    %v9056 = vunpack.c.l.b16 %v8468
    %v9057 = vunpack.c.h.b16 %v8468
    %v9058 = vunpack.c.l.b16 %v8469
    %v9059 = vunpack.c.h.b16 %v8469
    %v9060 = vunpack.c.l.b16 %v8470
    %v9061 = vunpack.c.h.b16 %v8470
    %v9062 = vunpack.c.l.b16 %v8471
    %v9063 = vunpack.c.h.b16 %v8471
    %v9064 = vunpack.c.l.b16 %v8472
    %v9065 = vunpack.c.h.b16 %v8472
    %v9066 = vunpack.c.l.b16 %v8473
    %v9067 = vunpack.c.h.b16 %v8473
    %v9068 = vunpack.c.l.b16 %v8474
    %v9069 = vunpack.c.h.b16 %v8474
    %v9070 = vunpack.c.l.b16 %v8475
    %v9071 = vunpack.c.h.b16 %v8475
    %v9072 = vunpack.c.l.b16 %v8476
    %v9073 = vunpack.c.h.b16 %v8476
    %v9074 = vunpack.c.l.b16 %v8477
    %v9075 = vunpack.c.h.b16 %v8477
    %v9076 = vunpack.c.l.b16 %v8478
    %v9077 = vunpack.c.h.b16 %v8478
    %v9078 = vunpack.c.l.b16 %v8479
    %v9079 = vunpack.c.h.b16 %v8479
    %v9080 = vunpack.c.l.b16 %v8480
    %v9081 = vunpack.c.h.b16 %v8480
    %v9082 = vunpack.c.l.b16 %v8481
    %v9083 = vunpack.c.h.b16 %v8481
    %v9084 = vunpack.c.l.b16 %v8482
    %v9085 = vunpack.c.h.b16 %v8482
    %v9086 = vunpack.c.l.b16 %v8483
    %v9087 = vunpack.c.h.b16 %v8483
    %v9088 = vunpack.c.l.b16 %v8484
    %v9089 = vunpack.c.h.b16 %v8484
    %v9090 = vunpack.c.l.b16 %v8485
    %v9091 = vunpack.c.h.b16 %v8485
    %v9092 = vunpack.c.l.b16 %v8486
    %v9093 = vunpack.c.h.b16 %v8486
    %v9094 = vunpack.c.l.b16 %v8487
    %v9095 = vunpack.c.h.b16 %v8487
    %v9096 = vunpack.c.l.b16 %v8488
    %v9097 = vunpack.c.h.b16 %v8488
    %v9098 = vunpack.c.l.b16 %v8489
    %v9099 = vunpack.c.h.b16 %v8489
    %v9100 = vunpack.c.l.b16 %v8490
    %v9101 = vunpack.c.h.b16 %v8490
    %v9102 = vunpack.c.l.b16 %v8491
    %v9103 = vunpack.c.h.b16 %v8491
    %v9104 = vunpack.c.l.b16 %v8492
    %v9105 = vunpack.c.h.b16 %v8492
    %v9106 = vunpack.c.l.b16 %v8493
    %v9107 = vunpack.c.h.b16 %v8493
    %v9108 = vunpack.c.l.b16 %v8494
    %v9109 = vunpack.c.h.b16 %v8494
    %v9110 = vunpack.c.l.b16 %v8495
    %v9111 = vunpack.c.h.b16 %v8495
    %v9112 = vunpack.c.l.b16 %v8496
    %v9113 = vunpack.c.h.b16 %v8496
    %v9114 = vunpack.c.l.b16 %v8497
    %v9115 = vunpack.c.h.b16 %v8497
    %v9116 = vunpack.c.l.b16 %v8498
    %v9117 = vunpack.c.h.b16 %v8498
    %v9118 = vunpack.c.l.b16 %v8499
    %v9119 = vunpack.c.h.b16 %v8499
    %v9120 = vunpack.c.l.b16 %v8500
    %v9121 = vunpack.c.h.b16 %v8500
    %v9122 = vunpack.c.l.b16 %v8501
    %v9123 = vunpack.c.h.b16 %v8501
    %v9124 = vunpack.c.l.b16 %v8502
    %v9125 = vunpack.c.h.b16 %v8502
    %v9126 = vunpack.c.l.b16 %v8503
    %v9127 = vunpack.c.h.b16 %v8503
    %v9128 = vunpack.c.l.b16 %v8504
    %v9129 = vunpack.c.h.b16 %v8504
    %v9130 = vunpack.c.l.b16 %v8505
    %v9131 = vunpack.c.h.b16 %v8505
    %v9132 = vunpack.c.l.b16 %v8506
    %v9133 = vunpack.c.h.b16 %v8506
    %v9134 = vunpack.c.l.b16 %v8507
    %v9135 = vunpack.c.h.b16 %v8507
    %v9136 = vunpack.c.l.b16 %v8508
    %v9137 = vunpack.c.h.b16 %v8508
    %v9138 = vunpack.c.l.b16 %v8509
    %v9139 = vunpack.c.h.b16 %v8509
    %v9140 = vunpack.c.l.b16 %v8510
    %v9141 = vunpack.c.h.b16 %v8510
    %v9142 = vunpack.c.l.b16 %v8511
    %v9143 = vunpack.c.h.b16 %v8511
    %v9144 = vunpack.c.l.b16 %v8512
    %v9145 = vunpack.c.h.b16 %v8512
    %v9146 = vunpack.c.l.b16 %v8513
    %v9147 = vunpack.c.h.b16 %v8513
    %v9148 = vunpack.c.l.b16 %v8514
    %v9149 = vunpack.c.h.b16 %v8514
    %v9150 = vunpack.c.l.b16 %v8515
    %v9151 = vunpack.c.h.b16 %v8515
    %v9152 = vunpack.c.l.b16 %v8516
    %v9153 = vunpack.c.h.b16 %v8516
    %v9154 = vunpack.c.l.b16 %v8517
    %v9155 = vunpack.c.h.b16 %v8517
    %v9156 = vunpack.c.l.b16 %v8518
    %v9157 = vunpack.c.h.b16 %v8518
    %v9158 = vunpack.c.l.b16 %v8519
    %v9159 = vunpack.c.h.b16 %v8519
    %v9160 = vunpack.c.l.b16 %v8520
    %v9161 = vunpack.c.h.b16 %v8520
    %v9162 = vunpack.c.l.b16 %v8521
    %v9163 = vunpack.c.h.b16 %v8521
    %v9164 = vunpack.c.l.b16 %v8522
    %v9165 = vunpack.c.h.b16 %v8522
    %v9166 = vunpack.c.l.b16 %v8523
    %v9167 = vunpack.c.h.b16 %v8523
    %v9168 = vunpack.c.l.b16 %v8524
    %v9169 = vunpack.c.h.b16 %v8524
    %v9170 = vunpack.c.l.b16 %v8525
    %v9171 = vunpack.c.h.b16 %v8525
    %v9172 = vunpack.c.l.b16 %v8526
    %v9173 = vunpack.c.h.b16 %v8526
    %v9174 = vunpack.c.l.b16 %v8527
    %v9175 = vunpack.c.h.b16 %v8527
    %v9176 = vunpack.c.l.b16 %v8528
    %v9177 = vunpack.c.h.b16 %v8528
    %v9178 = vunpack.c.l.b16 %v8529
    %v9179 = vunpack.c.h.b16 %v8529
    %v9180 = vunpack.c.l.b16 %v8530
    %v9181 = vunpack.c.h.b16 %v8530
    %v9182 = vunpack.c.l.b16 %v8531
    %v9183 = vunpack.c.h.b16 %v8531
    %v9184 = vunpack.c.l.b16 %v8532
    %v9185 = vunpack.c.h.b16 %v8532
    %v9186 = vunpack.c.l.b16 %v8533
    %v9187 = vunpack.c.h.b16 %v8533
    %v9188 = vunpack.c.l.b16 %v8534
    %v9189 = vunpack.c.h.b16 %v8534
    %v9190 = vunpack.c.l.b16 %v8535
    %v9191 = vunpack.c.h.b16 %v8535
    %v9192 = vunpack.c.l.b16 %v8536
    %v9193 = vunpack.c.h.b16 %v8536
    %v9194 = vunpack.c.l.b16 %v8537
    %v9195 = vunpack.c.h.b16 %v8537
    %v9196 = vunpack.c.l.b16 %v8538
    %v9197 = vunpack.c.h.b16 %v8538
    %v9198 = vunpack.c.l.b16 %v8539
    %v9199 = vunpack.c.h.b16 %v8539
    %v9200 = vunpack.c.l.b16 %v8540
    %v9201 = vunpack.c.h.b16 %v8540
    %v9202 = vunpack.c.l.b16 %v8541
    %v9203 = vunpack.c.h.b16 %v8541
    %v9204 = vunpack.c.l.b16 %v8542
    %v9205 = vunpack.c.h.b16 %v8542
    %v9206 = vunpack.c.l.b16 %v8543
    %v9207 = vunpack.c.h.b16 %v8543
    %v9208 = vunpack.c.l.b16 %v8544
    %v9209 = vunpack.c.h.b16 %v8544
    %v9210 = vunpack.c.l.b16 %v8545
    %v9211 = vunpack.c.h.b16 %v8545
    %v9212 = vunpack.c.l.b16 %v8546
    %v9213 = vunpack.c.h.b16 %v8546
    %v9214 = vunpack.c.l.b16 %v8547
    %v9215 = vunpack.c.h.b16 %v8547
    %v9216 = vunpack.c.l.b16 %v8548
    %v9217 = vunpack.c.h.b16 %v8548
    %v9218 = vunpack.c.l.b16 %v8549
    %v9219 = vunpack.c.h.b16 %v8549
    %v9220 = vunpack.c.l.b16 %v8550
    %v9221 = vunpack.c.h.b16 %v8550
    %v9222 = vunpack.c.l.b16 %v8551
    %v9223 = vunpack.c.h.b16 %v8551
    %v9224 = vunpack.c.l.b16 %v8552
    %v9225 = vunpack.c.h.b16 %v8552
    %v9226 = vunpack.c.l.b16 %v8553
    %v9227 = vunpack.c.h.b16 %v8553
    %v9228 = vunpack.c.l.b16 %v8554
    %v9229 = vunpack.c.h.b16 %v8554
    %v9230 = vunpack.c.l.b16 %v8555
    %v9231 = vunpack.c.h.b16 %v8555
    %v9232 = vunpack.c.l.b16 %v8556
    %v9233 = vunpack.c.h.b16 %v8556
    %v9234 = vunpack.c.l.b16 %v8557
    %v9235 = vunpack.c.h.b16 %v8557
    %v9236 = vunpack.c.l.b16 %v8558
    %v9237 = vunpack.c.h.b16 %v8558
    %v9238 = vunpack.c.l.b16 %v8559
    %v9239 = vunpack.c.h.b16 %v8559
    %v9240 = vunpack.c.l.b16 %v8560
    %v9241 = vunpack.c.h.b16 %v8560
    %v9242 = vunpack.c.l.b16 %v8561
    %v9243 = vunpack.c.h.b16 %v8561
    %v9244 = vunpack.c.l.b16 %v8562
    %v9245 = vunpack.c.h.b16 %v8562
    %v9246 = vunpack.c.l.b16 %v8563
    %v9247 = vunpack.c.h.b16 %v8563
    %v9248 = vunpack.c.l.b16 %v8564
    %v9249 = vunpack.c.h.b16 %v8564
    %v9250 = vunpack.c.l.b16 %v8565
    %v9251 = vunpack.c.h.b16 %v8565
    %v9252 = vunpack.c.l.b16 %v8566
    %v9253 = vunpack.c.h.b16 %v8566
    %v9254 = vunpack.c.l.b16 %v8567
    %v9255 = vunpack.c.h.b16 %v8567
    %v9256 = vunpack.c.l.b16 %v8568
    %v9257 = vunpack.c.h.b16 %v8568
    %v9258 = vunpack.c.l.b16 %v8569
    %v9259 = vunpack.c.h.b16 %v8569
    %v9260 = vunpack.c.l.b16 %v8570
    %v9261 = vunpack.c.h.b16 %v8570
    %v9262 = vunpack.c.l.b16 %v8571
    %v9263 = vunpack.c.h.b16 %v8571
    %v9264 = vunpack.c.l.b16 %v8572
    %v9265 = vunpack.c.h.b16 %v8572
    %v9266 = vunpack.c.l.b16 %v8573
    %v9267 = vunpack.c.h.b16 %v8573
    %v9268 = vunpack.c.l.b16 %v8574
    %v9269 = vunpack.c.h.b16 %v8574
    %v9270 = vunpack.c.l.b16 %v8575
    %v9271 = vunpack.c.h.b16 %v8575
    %v9272 = vunpack.c.l.b16 %v8576
    %v9273 = vunpack.c.h.b16 %v8576
    %v9274 = vunpack.c.l.b16 %v8577
    %v9275 = vunpack.c.h.b16 %v8577
    %v9276 = vunpack.c.l.b16 %v8578
    %v9277 = vunpack.c.h.b16 %v8578
    %v9278 = vunpack.c.l.b16 %v8579
    %v9279 = vunpack.c.h.b16 %v8579
    %v9280 = vunpack.c.l.b16 %v8580
    %v9281 = vunpack.c.h.b16 %v8580
    %v9282 = vunpack.c.l.b16 %v8581
    %v9283 = vunpack.c.h.b16 %v8581
    %v9284 = vunpack.c.l.b16 %v8582
    %v9285 = vunpack.c.h.b16 %v8582
    %v9286 = vunpack.c.l.b16 %v8583
    %v9287 = vunpack.c.h.b16 %v8583
    %v9288 = vunpack.c.l.b16 %v8584
    %v9289 = vunpack.c.h.b16 %v8584
    %v9290 = vunpack.c.l.b16 %v8585
    %v9291 = vunpack.c.h.b16 %v8585
    %v9292 = vunpack.c.l.b16 %v8586
    %v9293 = vunpack.c.h.b16 %v8586
    %v9294 = vunpack.c.l.b16 %v8587
    %v9295 = vunpack.c.h.b16 %v8587
    %v9296 = vunpack.c.l.b16 %v8588
    %v9297 = vunpack.c.h.b16 %v8588
    %v9298 = vunpack.c.l.b16 %v8589
    %v9299 = vunpack.c.h.b16 %v8589
    %v9300 = vunpack.c.l.b16 %v8590
    %v9301 = vunpack.c.h.b16 %v8590
    %v9302 = vunpack.c.l.b16 %v8591
    %v9303 = vunpack.c.h.b16 %v8591
    %v9304 = vunpack.c.l.b16 %v8592
    %v9305 = vunpack.c.h.b16 %v8592
    %v9306 = vunpack.c.l.b16 %v8593
    %v9307 = vunpack.c.h.b16 %v8593
    %v9308 = vunpack.c.l.b16 %v8594
    %v9309 = vunpack.c.h.b16 %v8594
    %v9310 = vunpack.c.l.b16 %v8595
    %v9311 = vunpack.c.h.b16 %v8595
    %v9312 = vunpack.c.l.b16 %v8596
    %v9313 = vunpack.c.h.b16 %v8596
    %v9314 = vunpack.c.l.b16 %v8597
    %v9315 = vunpack.c.h.b16 %v8597
    %v9316 = vunpack.c.l.b16 %v8598
    %v9317 = vunpack.c.h.b16 %v8598
    %v9318 = vunpack.c.l.b16 %v8599
    %v9319 = vunpack.c.h.b16 %v8599
    %v9320 = vunpack.c.l.b16 %v8600
    %v9321 = vunpack.c.h.b16 %v8600
    %v9322 = vunpack.c.l.b16 %v8601
    %v9323 = vunpack.c.h.b16 %v8601
    %v9324 = vunpack.c.l.b16 %v8602
    %v9325 = vunpack.c.h.b16 %v8602
    %v9326 = vunpack.c.l.b16 %v8603
    %v9327 = vunpack.c.h.b16 %v8603
    %v9328 = vunpack.c.l.b16 %v8604
    %v9329 = vunpack.c.h.b16 %v8604
    %v9330 = vunpack.c.l.b16 %v8605
    %v9331 = vunpack.c.h.b16 %v8605
    %v9332 = vunpack.c.l.b16 %v8606
    %v9333 = vunpack.c.h.b16 %v8606
    %v9334 = vunpack.c.l.b16 %v8607
    %v9335 = vunpack.c.h.b16 %v8607
    %v9336 = vunpack.c.l.b16 %v8608
    %v9337 = vunpack.c.h.b16 %v8608
    %v9338 = vunpack.c.l.b16 %v8609
    %v9339 = vunpack.c.h.b16 %v8609
    %v9340 = vunpack.c.l.b16 %v8610
    %v9341 = vunpack.c.h.b16 %v8610
    %v9342 = vunpack.c.l.b16 %v8611
    %v9343 = vunpack.c.h.b16 %v8611
    %v9344 = vunpack.c.l.b16 %v8612
    %v9345 = vunpack.c.h.b16 %v8612
    %v9346 = vunpack.c.l.b16 %v8613
    %v9347 = vunpack.c.h.b16 %v8613
    %v9348 = vunpack.c.l.b16 %v8614
    %v9349 = vunpack.c.h.b16 %v8614
    %v9350 = vunpack.c.l.b16 %v8615
    %v9351 = vunpack.c.h.b16 %v8615
    %v9352 = vunpack.c.l.b16 %v8616
    %v9353 = vunpack.c.h.b16 %v8616
    %v9354 = vunpack.c.l.b16 %v8617
    %v9355 = vunpack.c.h.b16 %v8617
    %v9356 = vunpack.c.l.b16 %v8618
    %v9357 = vunpack.c.h.b16 %v8618
    %v9358 = vunpack.c.l.b16 %v8619
    %v9359 = vunpack.c.h.b16 %v8619
    %v9360 = vunpack.c.l.b16 %v8620
    %v9361 = vunpack.c.h.b16 %v8620
    %v9362 = vunpack.c.l.b16 %v8621
    %v9363 = vunpack.c.h.b16 %v8621
    %v9364 = vunpack.c.l.b16 %v8622
    %v9365 = vunpack.c.h.b16 %v8622
    %v9366 = vunpack.c.l.b16 %v8623
    %v9367 = vunpack.c.h.b16 %v8623
    %v9368 = vunpack.c.l.b16 %v8624
    %v9369 = vunpack.c.h.b16 %v8624
    %v9370 = vunpack.c.l.b16 %v8625
    %v9371 = vunpack.c.h.b16 %v8625
    %v9372 = vunpack.c.l.b16 %v8626
    %v9373 = vunpack.c.h.b16 %v8626
    %v9374 = vunpack.c.l.b16 %v8627
    %v9375 = vunpack.c.h.b16 %v8627
    %v9376 = vunpack.c.l.b16 %v8628
    %v9377 = vunpack.c.h.b16 %v8628
    %v9378 = vunpack.c.l.b16 %v8629
    %v9379 = vunpack.c.h.b16 %v8629
    %v9380 = vunpack.c.l.b16 %v8630
    %v9381 = vunpack.c.h.b16 %v8630
    %v9382 = vunpack.c.l.b16 %v8631
    %v9383 = vunpack.c.h.b16 %v8631
    %v9384 = vunpack.c.l.b16 %v8632
    %v9385 = vunpack.c.h.b16 %v8632
    %v9386 = vunpack.c.l.b16 %v8633
    %v9387 = vunpack.c.h.b16 %v8633
    %v9388 = vunpack.c.l.b16 %v8634
    %v9389 = vunpack.c.h.b16 %v8634
    %v9390 = vunpack.c.l.b16 %v8635
    %v9391 = vunpack.c.h.b16 %v8635
    %v9392 = vunpack.c.l.b16 %v8636
    %v9393 = vunpack.c.h.b16 %v8636
    %v9394 = vunpack.c.l.b16 %v8637
    %v9395 = vunpack.c.h.b16 %v8637
    %v9396 = vunpack.c.l.b16 %v8638
    %v9397 = vunpack.c.h.b16 %v8638
    %v9398 = vunpack.c.l.b16 %v8639
    %v9399 = vunpack.c.h.b16 %v8639
    %v9400 = vunpack.c.l.b16 %v8640
    %v9401 = vunpack.c.h.b16 %v8640
    %v9402 = vunpack.c.l.b16 %v8641
    %v9403 = vunpack.c.h.b16 %v8641
    %v9404 = vunpack.c.l.b16 %v8642
    %v9405 = vunpack.c.h.b16 %v8642
    %v9406 = vunpack.c.l.b16 %v8643
    %v9407 = vunpack.c.h.b16 %v8643
    %v9408 = vunpack.c.l.b16 %v8644
    %v9409 = vunpack.c.h.b16 %v8644
    %v9410 = vunpack.c.l.b16 %v8645
    %v9411 = vunpack.c.h.b16 %v8645
    %v9412 = vunpack.c.l.b16 %v8646
    %v9413 = vunpack.c.h.b16 %v8646
    %v9414 = vunpack.c.l.b16 %v8647
    %v9415 = vunpack.c.h.b16 %v8647
    %v9416 = vunpack.c.l.b16 %v8648
    %v9417 = vunpack.c.h.b16 %v8648
    %v9418 = vunpack.c.l.b16 %v8649
    %v9419 = vunpack.c.h.b16 %v8649
    %v9420 = vunpack.c.l.b16 %v8650
    %v9421 = vunpack.c.h.b16 %v8650
    %v9422 = vunpack.c.l.b16 %v8651
    %v9423 = vunpack.c.h.b16 %v8651
    %v9424 = vunpack.c.l.b16 %v8652
    %v9425 = vunpack.c.h.b16 %v8652
    %v9426 = vunpack.c.l.b16 %v8653
    %v9427 = vunpack.c.h.b16 %v8653
    %v9428 = vunpack.c.l.b16 %v8654
    %v9429 = vunpack.c.h.b16 %v8654
    %v9430 = vunpack.c.l.b16 %v8655
    %v9431 = vunpack.c.h.b16 %v8655
    %v9432 = vunpack.c.l.b16 %v8656
    %v9433 = vunpack.c.h.b16 %v8656
    %v9434 = vunpack.c.l.b16 %v8657
    %v9435 = vunpack.c.h.b16 %v8657
    %v9436 = vunpack.c.l.b16 %v8658
    %v9437 = vunpack.c.h.b16 %v8658
    %v9438 = vunpack.c.l.b16 %v8659
    %v9439 = vunpack.c.h.b16 %v8659
    %v9440 = vunpack.c.l.b16 %v8660
    %v9441 = vunpack.c.h.b16 %v8660
    %v9442 = vunpack.c.l.b16 %v8661
    %v9443 = vunpack.c.h.b16 %v8661
    %v9444 = vunpack.c.l.b16 %v8662
    %v9445 = vunpack.c.h.b16 %v8662
    %v9446 = vunpack.c.l.b16 %v8663
    %v9447 = vunpack.c.h.b16 %v8663
    %v9448 = vunpack.c.l.b16 %v8664
    %v9449 = vunpack.c.h.b16 %v8664
    %v9450 = vunpack.c.l.b16 %v8665
    %v9451 = vunpack.c.h.b16 %v8665
    %v9452 = vunpack.c.l.b16 %v8666
    %v9453 = vunpack.c.h.b16 %v8666
    %v9454 = vunpack.c.l.b16 %v8667
    %v9455 = vunpack.c.h.b16 %v8667
    %v9456 = vunpack.c.l.b16 %v8668
    %v9457 = vunpack.c.h.b16 %v8668
    %v9458 = vunpack.c.l.b16 %v8669
    %v9459 = vunpack.c.h.b16 %v8669
    %v9460 = vpack.c.b16 %v8952, %v8948
    %v9461 = vpack.c.b16 %v8953, %v8949
    %v9462 = vpack.c.b16 %v8954, %v8950
    %v9463 = vpack.c.b16 %v8955, %v8951
    %v9464 = vpack.c.b16 %v8960, %v8956
    %v9465 = vpack.c.b16 %v8961, %v8957
    %v9466 = vpack.c.b16 %v8962, %v8958
    %v9467 = vpack.c.b16 %v8963, %v8959
    %v9468 = vpack.c.b16 %v8968, %v8964
    %v9469 = vpack.c.b16 %v8969, %v8965
    %v9470 = vpack.c.b16 %v8970, %v8966
    %v9471 = vpack.c.b16 %v8971, %v8967
    %v9472 = vpack.c.b16 %v8976, %v8972
    %v9473 = vpack.c.b16 %v8977, %v8973
    %v9474 = vpack.c.b16 %v8978, %v8974
    %v9475 = vpack.c.b16 %v8979, %v8975
    %v9476 = vpack.c.b16 %v8984, %v8980
    %v9477 = vpack.c.b16 %v8985, %v8981
    %v9478 = vpack.c.b16 %v8986, %v8982
    %v9479 = vpack.c.b16 %v8987, %v8983
    %v9480 = vpack.c.b16 %v8992, %v8988
    %v9481 = vpack.c.b16 %v8993, %v8989
    %v9482 = vpack.c.b16 %v8994, %v8990
    %v9483 = vpack.c.b16 %v8995, %v8991
    %v9484 = vpack.c.b16 %v9000, %v8996
    %v9485 = vpack.c.b16 %v9001, %v8997
    %v9486 = vpack.c.b16 %v9002, %v8998
    %v9487 = vpack.c.b16 %v9003, %v8999
    %v9488 = vpack.c.b16 %v9008, %v9004
    %v9489 = vpack.c.b16 %v9009, %v9005
    %v9490 = vpack.c.b16 %v9010, %v9006
    %v9491 = vpack.c.b16 %v9011, %v9007
    %v9492 = vpack.c.b16 %v9016, %v9012
    %v9493 = vpack.c.b16 %v9017, %v9013
    %v9494 = vpack.c.b16 %v9018, %v9014
    %v9495 = vpack.c.b16 %v9019, %v9015
    %v9496 = vpack.c.b16 %v9024, %v9020
    %v9497 = vpack.c.b16 %v9025, %v9021
    %v9498 = vpack.c.b16 %v9026, %v9022
    %v9499 = vpack.c.b16 %v9027, %v9023
    %v9500 = vpack.c.b16 %v9032, %v9028
    %v9501 = vpack.c.b16 %v9033, %v9029
    %v9502 = vpack.c.b16 %v9034, %v9030
    %v9503 = vpack.c.b16 %v9035, %v9031
    %v9504 = vpack.c.b16 %v9040, %v9036
    %v9505 = vpack.c.b16 %v9041, %v9037
    %v9506 = vpack.c.b16 %v9042, %v9038
    %v9507 = vpack.c.b16 %v9043, %v9039
    %v9508 = vpack.c.b16 %v9048, %v9044
    %v9509 = vpack.c.b16 %v9049, %v9045
    %v9510 = vpack.c.b16 %v9050, %v9046
    %v9511 = vpack.c.b16 %v9051, %v9047
    %v9512 = vpack.c.b16 %v9056, %v9052
    %v9513 = vpack.c.b16 %v9057, %v9053
    %v9514 = vpack.c.b16 %v9058, %v9054
    %v9515 = vpack.c.b16 %v9059, %v9055
    %v9516 = vpack.c.b16 %v9064, %v9060
    %v9517 = vpack.c.b16 %v9065, %v9061
    %v9518 = vpack.c.b16 %v9066, %v9062
    %v9519 = vpack.c.b16 %v9067, %v9063
    %v9520 = vpack.c.b16 %v9072, %v9068
    %v9521 = vpack.c.b16 %v9073, %v9069
    %v9522 = vpack.c.b16 %v9074, %v9070
    %v9523 = vpack.c.b16 %v9075, %v9071
    %v9524 = vpack.c.b16 %v9080, %v9076
    %v9525 = vpack.c.b16 %v9081, %v9077
    %v9526 = vpack.c.b16 %v9082, %v9078
    %v9527 = vpack.c.b16 %v9083, %v9079
    %v9528 = vpack.c.b16 %v9088, %v9084
    %v9529 = vpack.c.b16 %v9089, %v9085
    %v9530 = vpack.c.b16 %v9090, %v9086
    %v9531 = vpack.c.b16 %v9091, %v9087
    %v9532 = vpack.c.b16 %v9096, %v9092
    %v9533 = vpack.c.b16 %v9097, %v9093
    %v9534 = vpack.c.b16 %v9098, %v9094
    %v9535 = vpack.c.b16 %v9099, %v9095
    %v9536 = vpack.c.b16 %v9104, %v9100
    %v9537 = vpack.c.b16 %v9105, %v9101
    %v9538 = vpack.c.b16 %v9106, %v9102
    %v9539 = vpack.c.b16 %v9107, %v9103
    %v9540 = vpack.c.b16 %v9112, %v9108
    %v9541 = vpack.c.b16 %v9113, %v9109
    %v9542 = vpack.c.b16 %v9114, %v9110
    %v9543 = vpack.c.b16 %v9115, %v9111
    %v9544 = vpack.c.b16 %v9120, %v9116
    %v9545 = vpack.c.b16 %v9121, %v9117
    %v9546 = vpack.c.b16 %v9122, %v9118
    %v9547 = vpack.c.b16 %v9123, %v9119
    %v9548 = vpack.c.b16 %v9128, %v9124
    %v9549 = vpack.c.b16 %v9129, %v9125
    %v9550 = vpack.c.b16 %v9130, %v9126
    %v9551 = vpack.c.b16 %v9131, %v9127
    %v9552 = vpack.c.b16 %v9136, %v9132
    %v9553 = vpack.c.b16 %v9137, %v9133
    %v9554 = vpack.c.b16 %v9138, %v9134
    %v9555 = vpack.c.b16 %v9139, %v9135
    %v9556 = vpack.c.b16 %v9144, %v9140
    %v9557 = vpack.c.b16 %v9145, %v9141
    %v9558 = vpack.c.b16 %v9146, %v9142
    %v9559 = vpack.c.b16 %v9147, %v9143
    %v9560 = vpack.c.b16 %v9152, %v9148
    %v9561 = vpack.c.b16 %v9153, %v9149
    %v9562 = vpack.c.b16 %v9154, %v9150
    %v9563 = vpack.c.b16 %v9155, %v9151
    %v9564 = vpack.c.b16 %v9160, %v9156
    %v9565 = vpack.c.b16 %v9161, %v9157
    %v9566 = vpack.c.b16 %v9162, %v9158
    %v9567 = vpack.c.b16 %v9163, %v9159
    %v9568 = vpack.c.b16 %v9168, %v9164
    %v9569 = vpack.c.b16 %v9169, %v9165
    %v9570 = vpack.c.b16 %v9170, %v9166
    %v9571 = vpack.c.b16 %v9171, %v9167
    %v9572 = vpack.c.b16 %v9176, %v9172
    %v9573 = vpack.c.b16 %v9177, %v9173
    %v9574 = vpack.c.b16 %v9178, %v9174
    %v9575 = vpack.c.b16 %v9179, %v9175
    %v9576 = vpack.c.b16 %v9184, %v9180
    %v9577 = vpack.c.b16 %v9185, %v9181
    %v9578 = vpack.c.b16 %v9186, %v9182
    %v9579 = vpack.c.b16 %v9187, %v9183
    %v9580 = vpack.c.b16 %v9192, %v9188
    %v9581 = vpack.c.b16 %v9193, %v9189
    %v9582 = vpack.c.b16 %v9194, %v9190
    %v9583 = vpack.c.b16 %v9195, %v9191
    %v9584 = vpack.c.b16 %v9200, %v9196
    %v9585 = vpack.c.b16 %v9201, %v9197
    %v9586 = vpack.c.b16 %v9202, %v9198
    %v9587 = vpack.c.b16 %v9203, %v9199
    %v9588 = vpack.c.b16 %v9208, %v9204
    %v9589 = vpack.c.b16 %v9209, %v9205
    %v9590 = vpack.c.b16 %v9210, %v9206
    %v9591 = vpack.c.b16 %v9211, %v9207
    %v9592 = vpack.c.b16 %v9216, %v9212
    %v9593 = vpack.c.b16 %v9217, %v9213
    %v9594 = vpack.c.b16 %v9218, %v9214
    %v9595 = vpack.c.b16 %v9219, %v9215
    %v9596 = vpack.c.b16 %v9224, %v9220
    %v9597 = vpack.c.b16 %v9225, %v9221
    %v9598 = vpack.c.b16 %v9226, %v9222
    %v9599 = vpack.c.b16 %v9227, %v9223
    %v9600 = vpack.c.b16 %v9232, %v9228
    %v9601 = vpack.c.b16 %v9233, %v9229
    %v9602 = vpack.c.b16 %v9234, %v9230
    %v9603 = vpack.c.b16 %v9235, %v9231
    %v9604 = vpack.c.b16 %v9240, %v9236
    %v9605 = vpack.c.b16 %v9241, %v9237
    %v9606 = vpack.c.b16 %v9242, %v9238
    %v9607 = vpack.c.b16 %v9243, %v9239
    %v9608 = vpack.c.b16 %v9248, %v9244
    %v9609 = vpack.c.b16 %v9249, %v9245
    %v9610 = vpack.c.b16 %v9250, %v9246
    %v9611 = vpack.c.b16 %v9251, %v9247
    %v9612 = vpack.c.b16 %v9256, %v9252
    %v9613 = vpack.c.b16 %v9257, %v9253
    %v9614 = vpack.c.b16 %v9258, %v9254
    %v9615 = vpack.c.b16 %v9259, %v9255
    %v9616 = vpack.c.b16 %v9264, %v9260
    %v9617 = vpack.c.b16 %v9265, %v9261
    %v9618 = vpack.c.b16 %v9266, %v9262
    %v9619 = vpack.c.b16 %v9267, %v9263
    %v9620 = vpack.c.b16 %v9272, %v9268
    %v9621 = vpack.c.b16 %v9273, %v9269
    %v9622 = vpack.c.b16 %v9274, %v9270
    %v9623 = vpack.c.b16 %v9275, %v9271
    %v9624 = vpack.c.b16 %v9280, %v9276
    %v9625 = vpack.c.b16 %v9281, %v9277
    %v9626 = vpack.c.b16 %v9282, %v9278
    %v9627 = vpack.c.b16 %v9283, %v9279
    %v9628 = vpack.c.b16 %v9288, %v9284
    %v9629 = vpack.c.b16 %v9289, %v9285
    %v9630 = vpack.c.b16 %v9290, %v9286
    %v9631 = vpack.c.b16 %v9291, %v9287
    %v9632 = vpack.c.b16 %v9296, %v9292
    %v9633 = vpack.c.b16 %v9297, %v9293
    %v9634 = vpack.c.b16 %v9298, %v9294
    %v9635 = vpack.c.b16 %v9299, %v9295
    %v9636 = vpack.c.b16 %v9304, %v9300
    %v9637 = vpack.c.b16 %v9305, %v9301
    %v9638 = vpack.c.b16 %v9306, %v9302
    %v9639 = vpack.c.b16 %v9307, %v9303
    %v9640 = vpack.c.b16 %v9312, %v9308
    %v9641 = vpack.c.b16 %v9313, %v9309
    %v9642 = vpack.c.b16 %v9314, %v9310
    %v9643 = vpack.c.b16 %v9315, %v9311
    %v9644 = vpack.c.b16 %v9320, %v9316
    %v9645 = vpack.c.b16 %v9321, %v9317
    %v9646 = vpack.c.b16 %v9322, %v9318
    %v9647 = vpack.c.b16 %v9323, %v9319
    %v9648 = vpack.c.b16 %v9328, %v9324
    %v9649 = vpack.c.b16 %v9329, %v9325
    %v9650 = vpack.c.b16 %v9330, %v9326
    %v9651 = vpack.c.b16 %v9331, %v9327
    %v9652 = vpack.c.b16 %v9336, %v9332
    %v9653 = vpack.c.b16 %v9337, %v9333
    %v9654 = vpack.c.b16 %v9338, %v9334
    %v9655 = vpack.c.b16 %v9339, %v9335
    %v9656 = vpack.c.b16 %v9344, %v9340
    %v9657 = vpack.c.b16 %v9345, %v9341
    %v9658 = vpack.c.b16 %v9346, %v9342
    %v9659 = vpack.c.b16 %v9347, %v9343
    %v9660 = vpack.c.b16 %v9352, %v9348
    %v9661 = vpack.c.b16 %v9353, %v9349
    %v9662 = vpack.c.b16 %v9354, %v9350
    %v9663 = vpack.c.b16 %v9355, %v9351
    %v9664 = vpack.c.b16 %v9360, %v9356
    %v9665 = vpack.c.b16 %v9361, %v9357
    %v9666 = vpack.c.b16 %v9362, %v9358
    %v9667 = vpack.c.b16 %v9363, %v9359
    %v9668 = vpack.c.b16 %v9368, %v9364
    %v9669 = vpack.c.b16 %v9369, %v9365
    %v9670 = vpack.c.b16 %v9370, %v9366
    %v9671 = vpack.c.b16 %v9371, %v9367
    %v9672 = vpack.c.b16 %v9376, %v9372
    %v9673 = vpack.c.b16 %v9377, %v9373
    %v9674 = vpack.c.b16 %v9378, %v9374
    %v9675 = vpack.c.b16 %v9379, %v9375
    %v9676 = vpack.c.b16 %v9384, %v9380
    %v9677 = vpack.c.b16 %v9385, %v9381
    %v9678 = vpack.c.b16 %v9386, %v9382
    %v9679 = vpack.c.b16 %v9387, %v9383
    %v9680 = vpack.c.b16 %v9392, %v9388
    %v9681 = vpack.c.b16 %v9393, %v9389
    %v9682 = vpack.c.b16 %v9394, %v9390
    %v9683 = vpack.c.b16 %v9395, %v9391
    %v9684 = vpack.c.b16 %v9400, %v9396
    %v9685 = vpack.c.b16 %v9401, %v9397
    %v9686 = vpack.c.b16 %v9402, %v9398
    %v9687 = vpack.c.b16 %v9403, %v9399
    %v9688 = vpack.c.b16 %v9408, %v9404
    %v9689 = vpack.c.b16 %v9409, %v9405
    %v9690 = vpack.c.b16 %v9410, %v9406
    %v9691 = vpack.c.b16 %v9411, %v9407
    %v9692 = vpack.c.b16 %v9416, %v9412
    %v9693 = vpack.c.b16 %v9417, %v9413
    %v9694 = vpack.c.b16 %v9418, %v9414
    %v9695 = vpack.c.b16 %v9419, %v9415
    %v9696 = vpack.c.b16 %v9424, %v9420
    %v9697 = vpack.c.b16 %v9425, %v9421
    %v9698 = vpack.c.b16 %v9426, %v9422
    %v9699 = vpack.c.b16 %v9427, %v9423
    %v9700 = vpack.c.b16 %v9432, %v9428
    %v9701 = vpack.c.b16 %v9433, %v9429
    %v9702 = vpack.c.b16 %v9434, %v9430
    %v9703 = vpack.c.b16 %v9435, %v9431
    %v9704 = vpack.c.b16 %v9440, %v9436
    %v9705 = vpack.c.b16 %v9441, %v9437
    %v9706 = vpack.c.b16 %v9442, %v9438
    %v9707 = vpack.c.b16 %v9443, %v9439
    %v9708 = vpack.c.b16 %v9448, %v9444
    %v9709 = vpack.c.b16 %v9449, %v9445
    %v9710 = vpack.c.b16 %v9450, %v9446
    %v9711 = vpack.c.b16 %v9451, %v9447
    %v9712 = vpack.c.b16 %v9456, %v9452
    %v9713 = vpack.c.b16 %v9457, %v9453
    %v9714 = vpack.c.b16 %v9458, %v9454
    %v9715 = vpack.c.b16 %v9459, %v9455
    %9972 = vmatprep.subr.bf16.mxu0 %v9489
    %9973 = vmatpush1.bf16.msra.mxu0 %v9488
    %9974 = vmatprep.subr.bf16.mxu0 %v9485
    %9975 = vmatpush1.bf16.msra.mxu0 %v9484
    %9976 = vmatprep.subr.bf16.mxu0 %v9481
    %9977 = vmatpush1.bf16.msra.mxu0 %v9480
    %9978 = vmatprep.subr.bf16.mxu0 %v9477
    %9979 = vmatpush1.bf16.msra.mxu0 %v9476
    %9980 = vmatprep.subr.bf16.mxu0 %v9473
    %9981 = vmatpush1.bf16.msra.mxu0 %v9472
    %9982 = vmatprep.subr.bf16.mxu0 %v9469
    %9983 = vmatpush1.bf16.msra.mxu0 %v9468
    %9984 = vmatprep.subr.bf16.mxu0 %v9465
    %9985 = vmatpush1.bf16.msra.mxu0 %v9464
    %9986 = vmatprep.subr.bf16.mxu0 %v9461
    %9987 = vmatpush1.bf16.msra.mxu0 %v9460
    %9988 = vmatprep.subr.bf16.mxu0 %v9521
    %9989 = vmatpush2.bf16.msra.mxu0 %v9520
    %9990 = vmatprep.subr.bf16.mxu0 %v9517
    %9991 = vmatpush2.bf16.msra.mxu0 %v9516
    %9992 = vmatprep.subr.bf16.mxu0 %v9513
    %9993 = vmatpush2.bf16.msra.mxu0 %v9512
    %9994 = vmatprep.subr.bf16.mxu0 %v9509
    %9995 = vmatpush2.bf16.msra.mxu0 %v9508
    %9996 = vmatprep.subr.bf16.mxu0 %v9505
    %9997 = vmatpush2.bf16.msra.mxu0 %v9504
    %9998 = vmatprep.subr.bf16.mxu0 %v9501
    %9999 = vmatpush2.bf16.msra.mxu0 %v9500
    %10000 = vmatprep.subr.bf16.mxu0 %v9497
    %10001 = vmatpush2.bf16.msra.mxu0 %v9496
    %10002 = vmatprep.subr.bf16.mxu0 %v9493
    %10003 = vmatpush2.bf16.msra.mxu0 %v9492
    %10004 = vmatprep.mubr.bf16.mxu0 %v8287
    %10005 = vmatmul.mubr.bf16.gmra.mxu0 %v8286
    %v10006 = vpop.f32.mrf.mxu0
    %v10007 = vadd.f32 %v8675, %v10006
    %v10008 = vpop.f32.mrf.mxu0
    %v10009 = vadd.f32 %v8679, %v10008
    %v10010 = vpop.f32.mrf.mxu0
    %v10011 = vadd.f32 %v8675, %v10010
    %v10012 = vpop.f32.mrf.mxu0
    %v10013 = vadd.f32 %v8679, %v10012
    %10014 = vmatprep.mubr.bf16.mxu0 %v8295
    %10015 = vmatmul.mubr.bf16.gmra.mxu0 %v8294
    %v10016 = vpop.f32.mrf.mxu0
    %v10017 = vadd.f32 %v8675, %v10016
    %v10018 = vpop.f32.mrf.mxu0
    %v10019 = vadd.f32 %v8679, %v10018
    %v10020 = vpop.f32.mrf.mxu0
    %v10021 = vadd.f32 %v8675, %v10020
    %v10022 = vpop.f32.mrf.mxu0
    %v10023 = vadd.f32 %v8679, %v10022
    %10024 = vmatprep.mubr.bf16.mxu0 %v8303
    %10025 = vmatmul.mubr.bf16.gmra.mxu0 %v8302
    %v10026 = vpop.f32.mrf.mxu0
    %v10027 = vadd.f32 %v8675, %v10026
    %v10028 = vpop.f32.mrf.mxu0
    %v10029 = vadd.f32 %v8679, %v10028
    %v10030 = vpop.f32.mrf.mxu0
    %v10031 = vadd.f32 %v8675, %v10030
    %v10032 = vpop.f32.mrf.mxu0
    %v10033 = vadd.f32 %v8679, %v10032
    %10034 = vmatprep.mubr.bf16.mxu0 %v8311
    %10035 = vmatmul.mubr.bf16.gmra.mxu0 %v8310
    %v10036 = vpop.f32.mrf.mxu0
    %v10037 = vadd.f32 %v8675, %v10036
    %v10038 = vpop.f32.mrf.mxu0
    %v10039 = vadd.f32 %v8679, %v10038
    %v10040 = vpop.f32.mrf.mxu0
    %v10041 = vadd.f32 %v8675, %v10040
    %v10042 = vpop.f32.mrf.mxu0
    %v10043 = vadd.f32 %v8679, %v10042
    %10044 = vmatprep.mubr.bf16.mxu0 %v8319
    %10045 = vmatmul.mubr.bf16.gmra.mxu0 %v8318
    %v10046 = vpop.f32.mrf.mxu0
    %v10047 = vadd.f32 %v8675, %v10046
    %v10048 = vpop.f32.mrf.mxu0
    %v10049 = vadd.f32 %v8679, %v10048
    %v10050 = vpop.f32.mrf.mxu0
    %v10051 = vadd.f32 %v8675, %v10050
    %v10052 = vpop.f32.mrf.mxu0
    %v10053 = vadd.f32 %v8679, %v10052
    %10054 = vmatprep.mubr.bf16.mxu0 %v8327
    %10055 = vmatmul.mubr.bf16.gmra.mxu0 %v8326
    %v10056 = vpop.f32.mrf.mxu0
    %v10057 = vadd.f32 %v8675, %v10056
    %v10058 = vpop.f32.mrf.mxu0
    %v10059 = vadd.f32 %v8679, %v10058
    %v10060 = vpop.f32.mrf.mxu0
    %v10061 = vadd.f32 %v8675, %v10060
    %v10062 = vpop.f32.mrf.mxu0
    %v10063 = vadd.f32 %v8679, %v10062
    %10064 = vmatprep.mubr.bf16.mxu0 %v8335
    %10065 = vmatmul.mubr.bf16.gmra.mxu0 %v8334
    %v10066 = vpop.f32.mrf.mxu0
    %v10067 = vadd.f32 %v8675, %v10066
    %v10068 = vpop.f32.mrf.mxu0
    %v10069 = vadd.f32 %v8679, %v10068
    %v10070 = vpop.f32.mrf.mxu0
    %v10071 = vadd.f32 %v8675, %v10070
    %v10072 = vpop.f32.mrf.mxu0
    %v10073 = vadd.f32 %v8679, %v10072
    %10074 = vmatprep.mubr.bf16.mxu0 %v8343
    %10075 = vmatmul.mubr.bf16.gmra.mxu0 %v8342
    %v10076 = vpop.f32.mrf.mxu0
    %v10077 = vadd.f32 %v8675, %v10076
    %v10078 = vpop.f32.mrf.mxu0
    %v10079 = vadd.f32 %v8679, %v10078
    %v10080 = vpop.f32.mrf.mxu0
    %v10081 = vadd.f32 %v8675, %v10080
    %v10082 = vpop.f32.mrf.mxu0
    %v10083 = vadd.f32 %v8679, %v10082
    %10084 = vmatprep.mubr.bf16.mxu0 %v8351
    %10085 = vmatmul.mubr.bf16.gmra.mxu0 %v8350
    %v10086 = vpop.f32.mrf.mxu0
    %v10087 = vadd.f32 %v8675, %v10086
    %v10088 = vpop.f32.mrf.mxu0
    %v10089 = vadd.f32 %v8679, %v10088
    %v10090 = vpop.f32.mrf.mxu0
    %v10091 = vadd.f32 %v8675, %v10090
    %v10092 = vpop.f32.mrf.mxu0
    %v10093 = vadd.f32 %v8679, %v10092
    %10094 = vmatprep.mubr.bf16.mxu0 %v8359
    %10095 = vmatmul.mubr.bf16.gmra.mxu0 %v8358
    %v10096 = vpop.f32.mrf.mxu0
    %v10097 = vadd.f32 %v8675, %v10096
    %v10098 = vpop.f32.mrf.mxu0
    %v10099 = vadd.f32 %v8679, %v10098
    %v10100 = vpop.f32.mrf.mxu0
    %v10101 = vadd.f32 %v8675, %v10100
    %v10102 = vpop.f32.mrf.mxu0
    %v10103 = vadd.f32 %v8679, %v10102
    %10104 = vmatprep.mubr.bf16.mxu0 %v8367
    %10105 = vmatmul.mubr.bf16.gmra.mxu0 %v8366
    %v10106 = vpop.f32.mrf.mxu0
    %v10107 = vadd.f32 %v8675, %v10106
    %v10108 = vpop.f32.mrf.mxu0
    %v10109 = vadd.f32 %v8679, %v10108
    %v10110 = vpop.f32.mrf.mxu0
    %v10111 = vadd.f32 %v8675, %v10110
    %v10112 = vpop.f32.mrf.mxu0
    %v10113 = vadd.f32 %v8679, %v10112
    %10114 = vmatprep.mubr.bf16.mxu0 %v8375
    %10115 = vmatmul.mubr.bf16.gmra.mxu0 %v8374
    %v10116 = vpop.f32.mrf.mxu0
    %v10117 = vadd.f32 %v8675, %v10116
    %v10118 = vpop.f32.mrf.mxu0
    %v10119 = vadd.f32 %v8679, %v10118
    %v10120 = vpop.f32.mrf.mxu0
    %v10121 = vadd.f32 %v8675, %v10120
    %v10122 = vpop.f32.mrf.mxu0
    %v10123 = vadd.f32 %v8679, %v10122
    %10124 = vmatprep.mubr.bf16.mxu0 %v8383
    %10125 = vmatmul.mubr.bf16.gmra.mxu0 %v8382
    %v10126 = vpop.f32.mrf.mxu0
    %v10127 = vadd.f32 %v8675, %v10126
    %v10128 = vpop.f32.mrf.mxu0
    %v10129 = vadd.f32 %v8679, %v10128
    %v10130 = vpop.f32.mrf.mxu0
    %v10131 = vadd.f32 %v8675, %v10130
    %v10132 = vpop.f32.mrf.mxu0
    %v10133 = vadd.f32 %v8679, %v10132
    %10134 = vmatprep.mubr.bf16.mxu0 %v8391
    %10135 = vmatmul.mubr.bf16.gmra.mxu0 %v8390
    %v10136 = vpop.f32.mrf.mxu0
    %v10137 = vadd.f32 %v8675, %v10136
    %v10138 = vpop.f32.mrf.mxu0
    %v10139 = vadd.f32 %v8679, %v10138
    %v10140 = vpop.f32.mrf.mxu0
    %v10141 = vadd.f32 %v8675, %v10140
    %v10142 = vpop.f32.mrf.mxu0
    %v10143 = vadd.f32 %v8679, %v10142
    %10144 = vmatprep.mubr.bf16.mxu0 %v8399
    %10145 = vmatmul.mubr.bf16.gmra.mxu0 %v8398
    %v10146 = vpop.f32.mrf.mxu0
    %v10147 = vadd.f32 %v8675, %v10146
    %v10148 = vpop.f32.mrf.mxu0
    %v10149 = vadd.f32 %v8679, %v10148
    %v10150 = vpop.f32.mrf.mxu0
    %v10151 = vadd.f32 %v8675, %v10150
    %v10152 = vpop.f32.mrf.mxu0
    %v10153 = vadd.f32 %v8679, %v10152
    %10154 = vmatprep.mubr.bf16.mxu0 %v8407
    %10155 = vmatmul.mubr.bf16.gmra.mxu0 %v8406
    %v10156 = vpop.f32.mrf.mxu0
    %v10157 = vadd.f32 %v8675, %v10156
    %v10158 = vpop.f32.mrf.mxu0
    %v10159 = vadd.f32 %v8679, %v10158
    %v10160 = vpop.f32.mrf.mxu0
    %v10161 = vadd.f32 %v8675, %v10160
    %v10162 = vpop.f32.mrf.mxu0
    %v10163 = vadd.f32 %v8679, %v10162
    %10164 = vdwg.mxu0
    %10165 = vmatprep.subr.bf16.mxu0 %v9553
    %10166 = vmatpush1.bf16.msra.mxu0 %v9552
    %10167 = vmatprep.subr.bf16.mxu0 %v9549
    %10168 = vmatpush1.bf16.msra.mxu0 %v9548
    %10169 = vmatprep.subr.bf16.mxu0 %v9545
    %10170 = vmatpush1.bf16.msra.mxu0 %v9544
    %10171 = vmatprep.subr.bf16.mxu0 %v9541
    %10172 = vmatpush1.bf16.msra.mxu0 %v9540
    %10173 = vmatprep.subr.bf16.mxu0 %v9537
    %10174 = vmatpush1.bf16.msra.mxu0 %v9536
    %10175 = vmatprep.subr.bf16.mxu0 %v9533
    %10176 = vmatpush1.bf16.msra.mxu0 %v9532
    %10177 = vmatprep.subr.bf16.mxu0 %v9529
    %10178 = vmatpush1.bf16.msra.mxu0 %v9528
    %10179 = vmatprep.subr.bf16.mxu0 %v9525
    %10180 = vmatpush1.bf16.msra.mxu0 %v9524
    %10181 = vmatprep.subr.bf16.mxu0 %v9585
    %10182 = vmatpush2.bf16.msra.mxu0 %v9584
    %10183 = vmatprep.subr.bf16.mxu0 %v9581
    %10184 = vmatpush2.bf16.msra.mxu0 %v9580
    %10185 = vmatprep.subr.bf16.mxu0 %v9577
    %10186 = vmatpush2.bf16.msra.mxu0 %v9576
    %10187 = vmatprep.subr.bf16.mxu0 %v9573
    %10188 = vmatpush2.bf16.msra.mxu0 %v9572
    %10189 = vmatprep.subr.bf16.mxu0 %v9569
    %10190 = vmatpush2.bf16.msra.mxu0 %v9568
    %10191 = vmatprep.subr.bf16.mxu0 %v9565
    %10192 = vmatpush2.bf16.msra.mxu0 %v9564
    %10193 = vmatprep.subr.bf16.mxu0 %v9561
    %10194 = vmatpush2.bf16.msra.mxu0 %v9560
    %10195 = vmatprep.subr.bf16.mxu0 %v9557
    %10196 = vmatpush2.bf16.msra.mxu0 %v9556
    %10197 = vmatprep.mubr.bf16.mxu0 %v8289
    %10198 = vmatmul.mubr.bf16.gmra.mxu0 %v8288
    %v10199 = vpop.f32.mrf.mxu0
    %v10200 = vadd.f32 %v10007, %v10199
    %v10201 = vpop.f32.mrf.mxu0
    %v10202 = vadd.f32 %v10009, %v10201
    %v10203 = vpop.f32.mrf.mxu0
    %v10204 = vadd.f32 %v10011, %v10203
    %v10205 = vpop.f32.mrf.mxu0
    %v10206 = vadd.f32 %v10013, %v10205
    %10207 = vmatprep.mubr.bf16.mxu0 %v8297
    %10208 = vmatmul.mubr.bf16.gmra.mxu0 %v8296
    %v10209 = vpop.f32.mrf.mxu0
    %v10210 = vadd.f32 %v10017, %v10209
    %v10211 = vpop.f32.mrf.mxu0
    %v10212 = vadd.f32 %v10019, %v10211
    %v10213 = vpop.f32.mrf.mxu0
    %v10214 = vadd.f32 %v10021, %v10213
    %v10215 = vpop.f32.mrf.mxu0
    %v10216 = vadd.f32 %v10023, %v10215
    %10217 = vmatprep.mubr.bf16.mxu0 %v8305
    %10218 = vmatmul.mubr.bf16.gmra.mxu0 %v8304
    %v10219 = vpop.f32.mrf.mxu0
    %v10220 = vadd.f32 %v10027, %v10219
    %v10221 = vpop.f32.mrf.mxu0
    %v10222 = vadd.f32 %v10029, %v10221
    %v10223 = vpop.f32.mrf.mxu0
    %v10224 = vadd.f32 %v10031, %v10223
    %v10225 = vpop.f32.mrf.mxu0
    %v10226 = vadd.f32 %v10033, %v10225
    %10227 = vmatprep.mubr.bf16.mxu0 %v8313
    %10228 = vmatmul.mubr.bf16.gmra.mxu0 %v8312
    %v10229 = vpop.f32.mrf.mxu0
    %v10230 = vadd.f32 %v10037, %v10229
    %v10231 = vpop.f32.mrf.mxu0
    %v10232 = vadd.f32 %v10039, %v10231
    %v10233 = vpop.f32.mrf.mxu0
    %v10234 = vadd.f32 %v10041, %v10233
    %v10235 = vpop.f32.mrf.mxu0
    %v10236 = vadd.f32 %v10043, %v10235
    %10237 = vmatprep.mubr.bf16.mxu0 %v8321
    %10238 = vmatmul.mubr.bf16.gmra.mxu0 %v8320
    %v10239 = vpop.f32.mrf.mxu0
    %v10240 = vadd.f32 %v10047, %v10239
    %v10241 = vpop.f32.mrf.mxu0
    %v10242 = vadd.f32 %v10049, %v10241
    %v10243 = vpop.f32.mrf.mxu0
    %v10244 = vadd.f32 %v10051, %v10243
    %v10245 = vpop.f32.mrf.mxu0
    %v10246 = vadd.f32 %v10053, %v10245
    %10247 = vmatprep.mubr.bf16.mxu0 %v8329
    %10248 = vmatmul.mubr.bf16.gmra.mxu0 %v8328
    %v10249 = vpop.f32.mrf.mxu0
    %v10250 = vadd.f32 %v10057, %v10249
    %v10251 = vpop.f32.mrf.mxu0
    %v10252 = vadd.f32 %v10059, %v10251
    %v10253 = vpop.f32.mrf.mxu0
    %v10254 = vadd.f32 %v10061, %v10253
    %v10255 = vpop.f32.mrf.mxu0
    %v10256 = vadd.f32 %v10063, %v10255
    %10257 = vmatprep.mubr.bf16.mxu0 %v8337
    %10258 = vmatmul.mubr.bf16.gmra.mxu0 %v8336
    %v10259 = vpop.f32.mrf.mxu0
    %v10260 = vadd.f32 %v10067, %v10259
    %v10261 = vpop.f32.mrf.mxu0
    %v10262 = vadd.f32 %v10069, %v10261
    %v10263 = vpop.f32.mrf.mxu0
    %v10264 = vadd.f32 %v10071, %v10263
    %v10265 = vpop.f32.mrf.mxu0
    %v10266 = vadd.f32 %v10073, %v10265
    %10267 = vmatprep.mubr.bf16.mxu0 %v8345
    %10268 = vmatmul.mubr.bf16.gmra.mxu0 %v8344
    %v10269 = vpop.f32.mrf.mxu0
    %v10270 = vadd.f32 %v10077, %v10269
    %v10271 = vpop.f32.mrf.mxu0
    %v10272 = vadd.f32 %v10079, %v10271
    %v10273 = vpop.f32.mrf.mxu0
    %v10274 = vadd.f32 %v10081, %v10273
    %v10275 = vpop.f32.mrf.mxu0
    %v10276 = vadd.f32 %v10083, %v10275
    %10277 = vmatprep.mubr.bf16.mxu0 %v8353
    %10278 = vmatmul.mubr.bf16.gmra.mxu0 %v8352
    %v10279 = vpop.f32.mrf.mxu0
    %v10280 = vadd.f32 %v10087, %v10279
    %v10281 = vpop.f32.mrf.mxu0
    %v10282 = vadd.f32 %v10089, %v10281
    %v10283 = vpop.f32.mrf.mxu0
    %v10284 = vadd.f32 %v10091, %v10283
    %v10285 = vpop.f32.mrf.mxu0
    %v10286 = vadd.f32 %v10093, %v10285
    %10287 = vmatprep.mubr.bf16.mxu0 %v8361
    %10288 = vmatmul.mubr.bf16.gmra.mxu0 %v8360
    %v10289 = vpop.f32.mrf.mxu0
    %v10290 = vadd.f32 %v10097, %v10289
    %v10291 = vpop.f32.mrf.mxu0
    %v10292 = vadd.f32 %v10099, %v10291
    %v10293 = vpop.f32.mrf.mxu0
    %v10294 = vadd.f32 %v10101, %v10293
    %v10295 = vpop.f32.mrf.mxu0
    %v10296 = vadd.f32 %v10103, %v10295
    %10297 = vmatprep.mubr.bf16.mxu0 %v8369
    %10298 = vmatmul.mubr.bf16.gmra.mxu0 %v8368
    %v10299 = vpop.f32.mrf.mxu0
    %v10300 = vadd.f32 %v10107, %v10299
    %v10301 = vpop.f32.mrf.mxu0
    %v10302 = vadd.f32 %v10109, %v10301
    %v10303 = vpop.f32.mrf.mxu0
    %v10304 = vadd.f32 %v10111, %v10303
    %v10305 = vpop.f32.mrf.mxu0
    %v10306 = vadd.f32 %v10113, %v10305
    %10307 = vmatprep.mubr.bf16.mxu0 %v8377
    %10308 = vmatmul.mubr.bf16.gmra.mxu0 %v8376
    %v10309 = vpop.f32.mrf.mxu0
    %v10310 = vadd.f32 %v10117, %v10309
    %v10311 = vpop.f32.mrf.mxu0
    %v10312 = vadd.f32 %v10119, %v10311
    %v10313 = vpop.f32.mrf.mxu0
    %v10314 = vadd.f32 %v10121, %v10313
    %v10315 = vpop.f32.mrf.mxu0
    %v10316 = vadd.f32 %v10123, %v10315
    %10317 = vmatprep.mubr.bf16.mxu0 %v8385
    %10318 = vmatmul.mubr.bf16.gmra.mxu0 %v8384
    %v10319 = vpop.f32.mrf.mxu0
    %v10320 = vadd.f32 %v10127, %v10319
    %v10321 = vpop.f32.mrf.mxu0
    %v10322 = vadd.f32 %v10129, %v10321
    %v10323 = vpop.f32.mrf.mxu0
    %v10324 = vadd.f32 %v10131, %v10323
    %v10325 = vpop.f32.mrf.mxu0
    %v10326 = vadd.f32 %v10133, %v10325
    %10327 = vmatprep.mubr.bf16.mxu0 %v8393
    %10328 = vmatmul.mubr.bf16.gmra.mxu0 %v8392
    %v10329 = vpop.f32.mrf.mxu0
    %v10330 = vadd.f32 %v10137, %v10329
    %v10331 = vpop.f32.mrf.mxu0
    %v10332 = vadd.f32 %v10139, %v10331
    %v10333 = vpop.f32.mrf.mxu0
    %v10334 = vadd.f32 %v10141, %v10333
    %v10335 = vpop.f32.mrf.mxu0
    %v10336 = vadd.f32 %v10143, %v10335
    %10337 = vmatprep.mubr.bf16.mxu0 %v8401
    %10338 = vmatmul.mubr.bf16.gmra.mxu0 %v8400
    %v10339 = vpop.f32.mrf.mxu0
    %v10340 = vadd.f32 %v10147, %v10339
    %v10341 = vpop.f32.mrf.mxu0
    %v10342 = vadd.f32 %v10149, %v10341
    %v10343 = vpop.f32.mrf.mxu0
    %v10344 = vadd.f32 %v10151, %v10343
    %v10345 = vpop.f32.mrf.mxu0
    %v10346 = vadd.f32 %v10153, %v10345
    %10347 = vmatprep.mubr.bf16.mxu0 %v8409
    %10348 = vmatmul.mubr.bf16.gmra.mxu0 %v8408
    %v10349 = vpop.f32.mrf.mxu0
    %v10350 = vadd.f32 %v10157, %v10349
    %v10351 = vpop.f32.mrf.mxu0
    %v10352 = vadd.f32 %v10159, %v10351
    %v10353 = vpop.f32.mrf.mxu0
    %v10354 = vadd.f32 %v10161, %v10353
    %v10355 = vpop.f32.mrf.mxu0
    %v10356 = vadd.f32 %v10163, %v10355
    %10357 = vdwg.mxu0
    %10358 = vmatprep.subr.bf16.mxu0 %v9617
    %10359 = vmatpush1.bf16.msra.mxu0 %v9616
    %10360 = vmatprep.subr.bf16.mxu0 %v9613
    %10361 = vmatpush1.bf16.msra.mxu0 %v9612
    %10362 = vmatprep.subr.bf16.mxu0 %v9609
    %10363 = vmatpush1.bf16.msra.mxu0 %v9608
    %10364 = vmatprep.subr.bf16.mxu0 %v9605
    %10365 = vmatpush1.bf16.msra.mxu0 %v9604
    %10366 = vmatprep.subr.bf16.mxu0 %v9601
    %10367 = vmatpush1.bf16.msra.mxu0 %v9600
    %10368 = vmatprep.subr.bf16.mxu0 %v9597
    %10369 = vmatpush1.bf16.msra.mxu0 %v9596
    %10370 = vmatprep.subr.bf16.mxu0 %v9593
    %10371 = vmatpush1.bf16.msra.mxu0 %v9592
    %10372 = vmatprep.subr.bf16.mxu0 %v9589
    %10373 = vmatpush1.bf16.msra.mxu0 %v9588
    %10374 = vmatprep.subr.bf16.mxu0 %v9649
    %10375 = vmatpush2.bf16.msra.mxu0 %v9648
    %10376 = vmatprep.subr.bf16.mxu0 %v9645
    %10377 = vmatpush2.bf16.msra.mxu0 %v9644
    %10378 = vmatprep.subr.bf16.mxu0 %v9641
    %10379 = vmatpush2.bf16.msra.mxu0 %v9640
    %10380 = vmatprep.subr.bf16.mxu0 %v9637
    %10381 = vmatpush2.bf16.msra.mxu0 %v9636
    %10382 = vmatprep.subr.bf16.mxu0 %v9633
    %10383 = vmatpush2.bf16.msra.mxu0 %v9632
    %10384 = vmatprep.subr.bf16.mxu0 %v9629
    %10385 = vmatpush2.bf16.msra.mxu0 %v9628
    %10386 = vmatprep.subr.bf16.mxu0 %v9625
    %10387 = vmatpush2.bf16.msra.mxu0 %v9624
    %10388 = vmatprep.subr.bf16.mxu0 %v9621
    %10389 = vmatpush2.bf16.msra.mxu0 %v9620
    %10390 = vmatprep.mubr.bf16.mxu0 %v8291
    %10391 = vmatmul.mubr.bf16.gmra.mxu0 %v8290
    %v10392 = vpop.f32.mrf.mxu0
    %v10393 = vadd.f32 %v10200, %v10392
    %v10394 = vpop.f32.mrf.mxu0
    %v10395 = vadd.f32 %v10202, %v10394
    %v10396 = vpop.f32.mrf.mxu0
    %v10397 = vadd.f32 %v10204, %v10396
    %v10398 = vpop.f32.mrf.mxu0
    %v10399 = vadd.f32 %v10206, %v10398
    %10400 = vmatprep.mubr.bf16.mxu0 %v8299
    %10401 = vmatmul.mubr.bf16.gmra.mxu0 %v8298
    %v10402 = vpop.f32.mrf.mxu0
    %v10403 = vadd.f32 %v10210, %v10402
    %v10404 = vpop.f32.mrf.mxu0
    %v10405 = vadd.f32 %v10212, %v10404
    %v10406 = vpop.f32.mrf.mxu0
    %v10407 = vadd.f32 %v10214, %v10406
    %v10408 = vpop.f32.mrf.mxu0
    %v10409 = vadd.f32 %v10216, %v10408
    %10410 = vmatprep.mubr.bf16.mxu0 %v8307
    %10411 = vmatmul.mubr.bf16.gmra.mxu0 %v8306
    %v10412 = vpop.f32.mrf.mxu0
    %v10413 = vadd.f32 %v10220, %v10412
    %v10414 = vpop.f32.mrf.mxu0
    %v10415 = vadd.f32 %v10222, %v10414
    %v10416 = vpop.f32.mrf.mxu0
    %v10417 = vadd.f32 %v10224, %v10416
    %v10418 = vpop.f32.mrf.mxu0
    %v10419 = vadd.f32 %v10226, %v10418
    %10420 = vmatprep.mubr.bf16.mxu0 %v8315
    %10421 = vmatmul.mubr.bf16.gmra.mxu0 %v8314
    %v10422 = vpop.f32.mrf.mxu0
    %v10423 = vadd.f32 %v10230, %v10422
    %v10424 = vpop.f32.mrf.mxu0
    %v10425 = vadd.f32 %v10232, %v10424
    %v10426 = vpop.f32.mrf.mxu0
    %v10427 = vadd.f32 %v10234, %v10426
    %v10428 = vpop.f32.mrf.mxu0
    %v10429 = vadd.f32 %v10236, %v10428
    %10430 = vmatprep.mubr.bf16.mxu0 %v8323
    %10431 = vmatmul.mubr.bf16.gmra.mxu0 %v8322
    %v10432 = vpop.f32.mrf.mxu0
    %v10433 = vadd.f32 %v10240, %v10432
    %v10434 = vpop.f32.mrf.mxu0
    %v10435 = vadd.f32 %v10242, %v10434
    %v10436 = vpop.f32.mrf.mxu0
    %v10437 = vadd.f32 %v10244, %v10436
    %v10438 = vpop.f32.mrf.mxu0
    %v10439 = vadd.f32 %v10246, %v10438
    %10440 = vmatprep.mubr.bf16.mxu0 %v8331
    %10441 = vmatmul.mubr.bf16.gmra.mxu0 %v8330
    %v10442 = vpop.f32.mrf.mxu0
    %v10443 = vadd.f32 %v10250, %v10442
    %v10444 = vpop.f32.mrf.mxu0
    %v10445 = vadd.f32 %v10252, %v10444
    %v10446 = vpop.f32.mrf.mxu0
    %v10447 = vadd.f32 %v10254, %v10446
    %v10448 = vpop.f32.mrf.mxu0
    %v10449 = vadd.f32 %v10256, %v10448
    %10450 = vmatprep.mubr.bf16.mxu0 %v8339
    %10451 = vmatmul.mubr.bf16.gmra.mxu0 %v8338
    %v10452 = vpop.f32.mrf.mxu0
    %v10453 = vadd.f32 %v10260, %v10452
    %v10454 = vpop.f32.mrf.mxu0
    %v10455 = vadd.f32 %v10262, %v10454
    %v10456 = vpop.f32.mrf.mxu0
    %v10457 = vadd.f32 %v10264, %v10456
    %v10458 = vpop.f32.mrf.mxu0
    %v10459 = vadd.f32 %v10266, %v10458
    %10460 = vmatprep.mubr.bf16.mxu0 %v8347
    %10461 = vmatmul.mubr.bf16.gmra.mxu0 %v8346
    %v10462 = vpop.f32.mrf.mxu0
    %v10463 = vadd.f32 %v10270, %v10462
    %v10464 = vpop.f32.mrf.mxu0
    %v10465 = vadd.f32 %v10272, %v10464
    %v10466 = vpop.f32.mrf.mxu0
    %v10467 = vadd.f32 %v10274, %v10466
    %v10468 = vpop.f32.mrf.mxu0
    %v10469 = vadd.f32 %v10276, %v10468
    %10470 = vmatprep.mubr.bf16.mxu0 %v8355
    %10471 = vmatmul.mubr.bf16.gmra.mxu0 %v8354
    %v10472 = vpop.f32.mrf.mxu0
    %v10473 = vadd.f32 %v10280, %v10472
    %v10474 = vpop.f32.mrf.mxu0
    %v10475 = vadd.f32 %v10282, %v10474
    %v10476 = vpop.f32.mrf.mxu0
    %v10477 = vadd.f32 %v10284, %v10476
    %v10478 = vpop.f32.mrf.mxu0
    %v10479 = vadd.f32 %v10286, %v10478
    %10480 = vmatprep.mubr.bf16.mxu0 %v8363
    %10481 = vmatmul.mubr.bf16.gmra.mxu0 %v8362
    %v10482 = vpop.f32.mrf.mxu0
    %v10483 = vadd.f32 %v10290, %v10482
    %v10484 = vpop.f32.mrf.mxu0
    %v10485 = vadd.f32 %v10292, %v10484
    %v10486 = vpop.f32.mrf.mxu0
    %v10487 = vadd.f32 %v10294, %v10486
    %v10488 = vpop.f32.mrf.mxu0
    %v10489 = vadd.f32 %v10296, %v10488
    %10490 = vmatprep.mubr.bf16.mxu0 %v8371
    %10491 = vmatmul.mubr.bf16.gmra.mxu0 %v8370
    %v10492 = vpop.f32.mrf.mxu0
    %v10493 = vadd.f32 %v10300, %v10492
    %v10494 = vpop.f32.mrf.mxu0
    %v10495 = vadd.f32 %v10302, %v10494
    %v10496 = vpop.f32.mrf.mxu0
    %v10497 = vadd.f32 %v10304, %v10496
    %v10498 = vpop.f32.mrf.mxu0
    %v10499 = vadd.f32 %v10306, %v10498
    %10500 = vmatprep.mubr.bf16.mxu0 %v8379
    %10501 = vmatmul.mubr.bf16.gmra.mxu0 %v8378
    %v10502 = vpop.f32.mrf.mxu0
    %v10503 = vadd.f32 %v10310, %v10502
    %v10504 = vpop.f32.mrf.mxu0
    %v10505 = vadd.f32 %v10312, %v10504
    %v10506 = vpop.f32.mrf.mxu0
    %v10507 = vadd.f32 %v10314, %v10506
    %v10508 = vpop.f32.mrf.mxu0
    %v10509 = vadd.f32 %v10316, %v10508
    %10510 = vmatprep.mubr.bf16.mxu0 %v8387
    %10511 = vmatmul.mubr.bf16.gmra.mxu0 %v8386
    %v10512 = vpop.f32.mrf.mxu0
    %v10513 = vadd.f32 %v10320, %v10512
    %v10514 = vpop.f32.mrf.mxu0
    %v10515 = vadd.f32 %v10322, %v10514
    %v10516 = vpop.f32.mrf.mxu0
    %v10517 = vadd.f32 %v10324, %v10516
    %v10518 = vpop.f32.mrf.mxu0
    %v10519 = vadd.f32 %v10326, %v10518
    %10520 = vmatprep.mubr.bf16.mxu0 %v8395
    %10521 = vmatmul.mubr.bf16.gmra.mxu0 %v8394
    %v10522 = vpop.f32.mrf.mxu0
    %v10523 = vadd.f32 %v10330, %v10522
    %v10524 = vpop.f32.mrf.mxu0
    %v10525 = vadd.f32 %v10332, %v10524
    %v10526 = vpop.f32.mrf.mxu0
    %v10527 = vadd.f32 %v10334, %v10526
    %v10528 = vpop.f32.mrf.mxu0
    %v10529 = vadd.f32 %v10336, %v10528
    %10530 = vmatprep.mubr.bf16.mxu0 %v8403
    %10531 = vmatmul.mubr.bf16.gmra.mxu0 %v8402
    %v10532 = vpop.f32.mrf.mxu0
    %v10533 = vadd.f32 %v10340, %v10532
    %v10534 = vpop.f32.mrf.mxu0
    %v10535 = vadd.f32 %v10342, %v10534
    %v10536 = vpop.f32.mrf.mxu0
    %v10537 = vadd.f32 %v10344, %v10536
    %v10538 = vpop.f32.mrf.mxu0
    %v10539 = vadd.f32 %v10346, %v10538
    %10540 = vmatprep.mubr.bf16.mxu0 %v8411
    %10541 = vmatmul.mubr.bf16.gmra.mxu0 %v8410
    %v10542 = vpop.f32.mrf.mxu0
    %v10543 = vadd.f32 %v10350, %v10542
    %v10544 = vpop.f32.mrf.mxu0
    %v10545 = vadd.f32 %v10352, %v10544
    %v10546 = vpop.f32.mrf.mxu0
    %v10547 = vadd.f32 %v10354, %v10546
    %v10548 = vpop.f32.mrf.mxu0
    %v10549 = vadd.f32 %v10356, %v10548
    %10550 = vdwg.mxu0
    %10551 = vmatprep.subr.bf16.mxu0 %v9681
    %10552 = vmatpush1.bf16.msra.mxu0 %v9680
    %10553 = vmatprep.subr.bf16.mxu0 %v9677
    %10554 = vmatpush1.bf16.msra.mxu0 %v9676
    %10555 = vmatprep.subr.bf16.mxu0 %v9673
    %10556 = vmatpush1.bf16.msra.mxu0 %v9672
    %10557 = vmatprep.subr.bf16.mxu0 %v9669
    %10558 = vmatpush1.bf16.msra.mxu0 %v9668
    %10559 = vmatprep.subr.bf16.mxu0 %v9665
    %10560 = vmatpush1.bf16.msra.mxu0 %v9664
    %10561 = vmatprep.subr.bf16.mxu0 %v9661
    %10562 = vmatpush1.bf16.msra.mxu0 %v9660
    %10563 = vmatprep.subr.bf16.mxu0 %v9657
    %10564 = vmatpush1.bf16.msra.mxu0 %v9656
    %10565 = vmatprep.subr.bf16.mxu0 %v9653
    %10566 = vmatpush1.bf16.msra.mxu0 %v9652
    %10567 = vmatprep.subr.bf16.mxu0 %v9713
    %10568 = vmatpush2.bf16.msra.mxu0 %v9712
    %10569 = vmatprep.subr.bf16.mxu0 %v9709
    %10570 = vmatpush2.bf16.msra.mxu0 %v9708
    %10571 = vmatprep.subr.bf16.mxu0 %v9705
    %10572 = vmatpush2.bf16.msra.mxu0 %v9704
    %10573 = vmatprep.subr.bf16.mxu0 %v9701
    %10574 = vmatpush2.bf16.msra.mxu0 %v9700
    %10575 = vmatprep.subr.bf16.mxu0 %v9697
    %10576 = vmatpush2.bf16.msra.mxu0 %v9696
    %10577 = vmatprep.subr.bf16.mxu0 %v9693
    %10578 = vmatpush2.bf16.msra.mxu0 %v9692
    %10579 = vmatprep.subr.bf16.mxu0 %v9689
    %10580 = vmatpush2.bf16.msra.mxu0 %v9688
    %10581 = vmatprep.subr.bf16.mxu0 %v9685
    %10582 = vmatpush2.bf16.msra.mxu0 %v9684
    %10583 = vmatprep.mubr.bf16.mxu0 %v8293
    %10584 = vmatmul.mubr.bf16.gmra.mxu0 %v8292
    %v10585 = vpop.f32.mrf.mxu0
    %v10586 = vadd.f32 %v10393, %v10585
    %v10587 = vpop.f32.mrf.mxu0
    %v10588 = vadd.f32 %v10395, %v10587
    %v10589 = vpop.f32.mrf.mxu0
    %v10590 = vadd.f32 %v10397, %v10589
    %v10591 = vpop.f32.mrf.mxu0
    %v10592 = vadd.f32 %v10399, %v10591
    %10593 = vmatprep.mubr.bf16.mxu0 %v8301
    %10594 = vmatmul.mubr.bf16.gmra.mxu0 %v8300
    %v10595 = vpop.f32.mrf.mxu0
    %v10596 = vadd.f32 %v10403, %v10595
    %v10597 = vpop.f32.mrf.mxu0
    %v10598 = vadd.f32 %v10405, %v10597
    %v10599 = vpop.f32.mrf.mxu0
    %v10600 = vadd.f32 %v10407, %v10599
    %v10601 = vpop.f32.mrf.mxu0
    %v10602 = vadd.f32 %v10409, %v10601
    %10603 = vmatprep.mubr.bf16.mxu0 %v8309
    %10604 = vmatmul.mubr.bf16.gmra.mxu0 %v8308
    %v10605 = vpop.f32.mrf.mxu0
    %v10606 = vadd.f32 %v10413, %v10605
    %v10607 = vpop.f32.mrf.mxu0
    %v10608 = vadd.f32 %v10415, %v10607
    %v10609 = vpop.f32.mrf.mxu0
    %v10610 = vadd.f32 %v10417, %v10609
    %v10611 = vpop.f32.mrf.mxu0
    %v10612 = vadd.f32 %v10419, %v10611
    %10613 = vmatprep.mubr.bf16.mxu0 %v8317
    %10614 = vmatmul.mubr.bf16.gmra.mxu0 %v8316
    %v10615 = vpop.f32.mrf.mxu0
    %v10616 = vadd.f32 %v10423, %v10615
    %v10617 = vpop.f32.mrf.mxu0
    %v10618 = vadd.f32 %v10425, %v10617
    %v10619 = vpop.f32.mrf.mxu0
    %v10620 = vadd.f32 %v10427, %v10619
    %v10621 = vpop.f32.mrf.mxu0
    %v10622 = vadd.f32 %v10429, %v10621
    %10623 = vmatprep.mubr.bf16.mxu0 %v8325
    %10624 = vmatmul.mubr.bf16.gmra.mxu0 %v8324
    %v10625 = vpop.f32.mrf.mxu0
    %v10626 = vadd.f32 %v10433, %v10625
    %v10627 = vpop.f32.mrf.mxu0
    %v10628 = vadd.f32 %v10435, %v10627
    %v10629 = vpop.f32.mrf.mxu0
    %v10630 = vadd.f32 %v10437, %v10629
    %v10631 = vpop.f32.mrf.mxu0
    %v10632 = vadd.f32 %v10439, %v10631
    %10633 = vmatprep.mubr.bf16.mxu0 %v8333
    %10634 = vmatmul.mubr.bf16.gmra.mxu0 %v8332
    %v10635 = vpop.f32.mrf.mxu0
    %v10636 = vadd.f32 %v10443, %v10635
    %v10637 = vpop.f32.mrf.mxu0
    %v10638 = vadd.f32 %v10445, %v10637
    %v10639 = vpop.f32.mrf.mxu0
    %v10640 = vadd.f32 %v10447, %v10639
    %v10641 = vpop.f32.mrf.mxu0
    %v10642 = vadd.f32 %v10449, %v10641
    %10643 = vmatprep.mubr.bf16.mxu0 %v8341
    %10644 = vmatmul.mubr.bf16.gmra.mxu0 %v8340
    %v10645 = vpop.f32.mrf.mxu0
    %v10646 = vadd.f32 %v10453, %v10645
    %v10647 = vpop.f32.mrf.mxu0
    %v10648 = vadd.f32 %v10455, %v10647
    %v10649 = vpop.f32.mrf.mxu0
    %v10650 = vadd.f32 %v10457, %v10649
    %v10651 = vpop.f32.mrf.mxu0
    %v10652 = vadd.f32 %v10459, %v10651
    %10653 = vmatprep.mubr.bf16.mxu0 %v8349
    %10654 = vmatmul.mubr.bf16.gmra.mxu0 %v8348
    %v10655 = vpop.f32.mrf.mxu0
    %v10656 = vadd.f32 %v10463, %v10655
    %v10657 = vpop.f32.mrf.mxu0
    %v10658 = vadd.f32 %v10465, %v10657
    %v10659 = vpop.f32.mrf.mxu0
    %v10660 = vadd.f32 %v10467, %v10659
    %v10661 = vpop.f32.mrf.mxu0
    %v10662 = vadd.f32 %v10469, %v10661
    %10663 = vmatprep.mubr.bf16.mxu0 %v8357
    %10664 = vmatmul.mubr.bf16.gmra.mxu0 %v8356
    %v10665 = vpop.f32.mrf.mxu0
    %v10666 = vadd.f32 %v10473, %v10665
    %v10667 = vpop.f32.mrf.mxu0
    %v10668 = vadd.f32 %v10475, %v10667
    %v10669 = vpop.f32.mrf.mxu0
    %v10670 = vadd.f32 %v10477, %v10669
    %v10671 = vpop.f32.mrf.mxu0
    %v10672 = vadd.f32 %v10479, %v10671
    %10673 = vmatprep.mubr.bf16.mxu0 %v8365
    %10674 = vmatmul.mubr.bf16.gmra.mxu0 %v8364
    %v10675 = vpop.f32.mrf.mxu0
    %v10676 = vadd.f32 %v10483, %v10675
    %v10677 = vpop.f32.mrf.mxu0
    %v10678 = vadd.f32 %v10485, %v10677
    %v10679 = vpop.f32.mrf.mxu0
    %v10680 = vadd.f32 %v10487, %v10679
    %v10681 = vpop.f32.mrf.mxu0
    %v10682 = vadd.f32 %v10489, %v10681
    %10683 = vmatprep.mubr.bf16.mxu0 %v8373
    %10684 = vmatmul.mubr.bf16.gmra.mxu0 %v8372
    %v10685 = vpop.f32.mrf.mxu0
    %v10686 = vadd.f32 %v10493, %v10685
    %v10687 = vpop.f32.mrf.mxu0
    %v10688 = vadd.f32 %v10495, %v10687
    %v10689 = vpop.f32.mrf.mxu0
    %v10690 = vadd.f32 %v10497, %v10689
    %v10691 = vpop.f32.mrf.mxu0
    %v10692 = vadd.f32 %v10499, %v10691
    %10693 = vmatprep.mubr.bf16.mxu0 %v8381
    %10694 = vmatmul.mubr.bf16.gmra.mxu0 %v8380
    %v10695 = vpop.f32.mrf.mxu0
    %v10696 = vadd.f32 %v10503, %v10695
    %v10697 = vpop.f32.mrf.mxu0
    %v10698 = vadd.f32 %v10505, %v10697
    %v10699 = vpop.f32.mrf.mxu0
    %v10700 = vadd.f32 %v10507, %v10699
    %v10701 = vpop.f32.mrf.mxu0
    %v10702 = vadd.f32 %v10509, %v10701
    %10703 = vmatprep.mubr.bf16.mxu0 %v8389
    %10704 = vmatmul.mubr.bf16.gmra.mxu0 %v8388
    %v10705 = vpop.f32.mrf.mxu0
    %v10706 = vadd.f32 %v10513, %v10705
    %v10707 = vpop.f32.mrf.mxu0
    %v10708 = vadd.f32 %v10515, %v10707
    %v10709 = vpop.f32.mrf.mxu0
    %v10710 = vadd.f32 %v10517, %v10709
    %v10711 = vpop.f32.mrf.mxu0
    %v10712 = vadd.f32 %v10519, %v10711
    %10713 = vmatprep.mubr.bf16.mxu0 %v8397
    %10714 = vmatmul.mubr.bf16.gmra.mxu0 %v8396
    %v10715 = vpop.f32.mrf.mxu0
    %v10716 = vadd.f32 %v10523, %v10715
    %v10717 = vpop.f32.mrf.mxu0
    %v10718 = vadd.f32 %v10525, %v10717
    %v10719 = vpop.f32.mrf.mxu0
    %v10720 = vadd.f32 %v10527, %v10719
    %v10721 = vpop.f32.mrf.mxu0
    %v10722 = vadd.f32 %v10529, %v10721
    %10723 = vmatprep.mubr.bf16.mxu0 %v8405
    %10724 = vmatmul.mubr.bf16.gmra.mxu0 %v8404
    %v10725 = vpop.f32.mrf.mxu0
    %v10726 = vadd.f32 %v10533, %v10725
    %v10727 = vpop.f32.mrf.mxu0
    %v10728 = vadd.f32 %v10535, %v10727
    %v10729 = vpop.f32.mrf.mxu0
    %v10730 = vadd.f32 %v10537, %v10729
    %v10731 = vpop.f32.mrf.mxu0
    %v10732 = vadd.f32 %v10539, %v10731
    %10733 = vmatprep.mubr.bf16.mxu0 %v8413
    %10734 = vmatmul.mubr.bf16.gmra.mxu0 %v8412
    %v10735 = vpop.f32.mrf.mxu0
    %v10736 = vadd.f32 %v10543, %v10735
    %v10737 = vpop.f32.mrf.mxu0
    %v10738 = vadd.f32 %v10545, %v10737
    %v10739 = vpop.f32.mrf.mxu0
    %v10740 = vadd.f32 %v10547, %v10739
    %v10741 = vpop.f32.mrf.mxu0
    %v10742 = vadd.f32 %v10549, %v10741
    %10743 = vdwg.mxu0
    %10744 = vmatprep.subr.bf16.mxu0 %v9491
    %10745 = vmatpush1.bf16.msra.mxu0 %v9490
    %10746 = vmatprep.subr.bf16.mxu0 %v9487
    %10747 = vmatpush1.bf16.msra.mxu0 %v9486
    %10748 = vmatprep.subr.bf16.mxu0 %v9483
    %10749 = vmatpush1.bf16.msra.mxu0 %v9482
    %10750 = vmatprep.subr.bf16.mxu0 %v9479
    %10751 = vmatpush1.bf16.msra.mxu0 %v9478
    %10752 = vmatprep.subr.bf16.mxu0 %v9475
    %10753 = vmatpush1.bf16.msra.mxu0 %v9474
    %10754 = vmatprep.subr.bf16.mxu0 %v9471
    %10755 = vmatpush1.bf16.msra.mxu0 %v9470
    %10756 = vmatprep.subr.bf16.mxu0 %v9467
    %10757 = vmatpush1.bf16.msra.mxu0 %v9466
    %10758 = vmatprep.subr.bf16.mxu0 %v9463
    %10759 = vmatpush1.bf16.msra.mxu0 %v9462
    %10760 = vmatprep.subr.bf16.mxu0 %v9523
    %10761 = vmatpush2.bf16.msra.mxu0 %v9522
    %10762 = vmatprep.subr.bf16.mxu0 %v9519
    %10763 = vmatpush2.bf16.msra.mxu0 %v9518
    %10764 = vmatprep.subr.bf16.mxu0 %v9515
    %10765 = vmatpush2.bf16.msra.mxu0 %v9514
    %10766 = vmatprep.subr.bf16.mxu0 %v9511
    %10767 = vmatpush2.bf16.msra.mxu0 %v9510
    %10768 = vmatprep.subr.bf16.mxu0 %v9507
    %10769 = vmatpush2.bf16.msra.mxu0 %v9506
    %10770 = vmatprep.subr.bf16.mxu0 %v9503
    %10771 = vmatpush2.bf16.msra.mxu0 %v9502
    %10772 = vmatprep.subr.bf16.mxu0 %v9499
    %10773 = vmatpush2.bf16.msra.mxu0 %v9498
    %10774 = vmatprep.subr.bf16.mxu0 %v9495
    %10775 = vmatpush2.bf16.msra.mxu0 %v9494
    %10776 = vmatprep.mubr.bf16.mxu0 %v8287
    %10777 = vmatmul.mubr.bf16.gmra.mxu0 %v8286
    %v10778 = vpop.f32.mrf.mxu0
    %v10779 = vadd.f32 %v8683, %v10778
    %v10780 = vpop.f32.mrf.mxu0
    %v10781 = vadd.f32 %v8687, %v10780
    %v10782 = vpop.f32.mrf.mxu0
    %v10783 = vadd.f32 %v8683, %v10782
    %v10784 = vpop.f32.mrf.mxu0
    %v10785 = vadd.f32 %v8687, %v10784
    %10786 = vmatprep.mubr.bf16.mxu0 %v8295
    %10787 = vmatmul.mubr.bf16.gmra.mxu0 %v8294
    %v10788 = vpop.f32.mrf.mxu0
    %v10789 = vadd.f32 %v8683, %v10788
    %v10790 = vpop.f32.mrf.mxu0
    %v10791 = vadd.f32 %v8687, %v10790
    %v10792 = vpop.f32.mrf.mxu0
    %v10793 = vadd.f32 %v8683, %v10792
    %v10794 = vpop.f32.mrf.mxu0
    %v10795 = vadd.f32 %v8687, %v10794
    %10796 = vmatprep.mubr.bf16.mxu0 %v8303
    %10797 = vmatmul.mubr.bf16.gmra.mxu0 %v8302
    %v10798 = vpop.f32.mrf.mxu0
    %v10799 = vadd.f32 %v8683, %v10798
    %v10800 = vpop.f32.mrf.mxu0
    %v10801 = vadd.f32 %v8687, %v10800
    %v10802 = vpop.f32.mrf.mxu0
    %v10803 = vadd.f32 %v8683, %v10802
    %v10804 = vpop.f32.mrf.mxu0
    %v10805 = vadd.f32 %v8687, %v10804
    %10806 = vmatprep.mubr.bf16.mxu0 %v8311
    %10807 = vmatmul.mubr.bf16.gmra.mxu0 %v8310
    %v10808 = vpop.f32.mrf.mxu0
    %v10809 = vadd.f32 %v8683, %v10808
    %v10810 = vpop.f32.mrf.mxu0
    %v10811 = vadd.f32 %v8687, %v10810
    %v10812 = vpop.f32.mrf.mxu0
    %v10813 = vadd.f32 %v8683, %v10812
    %v10814 = vpop.f32.mrf.mxu0
    %v10815 = vadd.f32 %v8687, %v10814
    %10816 = vmatprep.mubr.bf16.mxu0 %v8319
    %10817 = vmatmul.mubr.bf16.gmra.mxu0 %v8318
    %v10818 = vpop.f32.mrf.mxu0
    %v10819 = vadd.f32 %v8683, %v10818
    %v10820 = vpop.f32.mrf.mxu0
    %v10821 = vadd.f32 %v8687, %v10820
    %v10822 = vpop.f32.mrf.mxu0
    %v10823 = vadd.f32 %v8683, %v10822
    %v10824 = vpop.f32.mrf.mxu0
    %v10825 = vadd.f32 %v8687, %v10824
    %10826 = vmatprep.mubr.bf16.mxu0 %v8327
    %10827 = vmatmul.mubr.bf16.gmra.mxu0 %v8326
    %v10828 = vpop.f32.mrf.mxu0
    %v10829 = vadd.f32 %v8683, %v10828
    %v10830 = vpop.f32.mrf.mxu0
    %v10831 = vadd.f32 %v8687, %v10830
    %v10832 = vpop.f32.mrf.mxu0
    %v10833 = vadd.f32 %v8683, %v10832
    %v10834 = vpop.f32.mrf.mxu0
    %v10835 = vadd.f32 %v8687, %v10834
    %10836 = vmatprep.mubr.bf16.mxu0 %v8335
    %10837 = vmatmul.mubr.bf16.gmra.mxu0 %v8334
    %v10838 = vpop.f32.mrf.mxu0
    %v10839 = vadd.f32 %v8683, %v10838
    %v10840 = vpop.f32.mrf.mxu0
    %v10841 = vadd.f32 %v8687, %v10840
    %v10842 = vpop.f32.mrf.mxu0
    %v10843 = vadd.f32 %v8683, %v10842
    %v10844 = vpop.f32.mrf.mxu0
    %v10845 = vadd.f32 %v8687, %v10844
    %10846 = vmatprep.mubr.bf16.mxu0 %v8343
    %10847 = vmatmul.mubr.bf16.gmra.mxu0 %v8342
    %v10848 = vpop.f32.mrf.mxu0
    %v10849 = vadd.f32 %v8683, %v10848
    %v10850 = vpop.f32.mrf.mxu0
    %v10851 = vadd.f32 %v8687, %v10850
    %v10852 = vpop.f32.mrf.mxu0
    %v10853 = vadd.f32 %v8683, %v10852
    %v10854 = vpop.f32.mrf.mxu0
    %v10855 = vadd.f32 %v8687, %v10854
    %10856 = vmatprep.mubr.bf16.mxu0 %v8351
    %10857 = vmatmul.mubr.bf16.gmra.mxu0 %v8350
    %v10858 = vpop.f32.mrf.mxu0
    %v10859 = vadd.f32 %v8683, %v10858
    %v10860 = vpop.f32.mrf.mxu0
    %v10861 = vadd.f32 %v8687, %v10860
    %v10862 = vpop.f32.mrf.mxu0
    %v10863 = vadd.f32 %v8683, %v10862
    %v10864 = vpop.f32.mrf.mxu0
    %v10865 = vadd.f32 %v8687, %v10864
    %10866 = vmatprep.mubr.bf16.mxu0 %v8359
    %10867 = vmatmul.mubr.bf16.gmra.mxu0 %v8358
    %v10868 = vpop.f32.mrf.mxu0
    %v10869 = vadd.f32 %v8683, %v10868
    %v10870 = vpop.f32.mrf.mxu0
    %v10871 = vadd.f32 %v8687, %v10870
    %v10872 = vpop.f32.mrf.mxu0
    %v10873 = vadd.f32 %v8683, %v10872
    %v10874 = vpop.f32.mrf.mxu0
    %v10875 = vadd.f32 %v8687, %v10874
    %10876 = vmatprep.mubr.bf16.mxu0 %v8367
    %10877 = vmatmul.mubr.bf16.gmra.mxu0 %v8366
    %v10878 = vpop.f32.mrf.mxu0
    %v10879 = vadd.f32 %v8683, %v10878
    %v10880 = vpop.f32.mrf.mxu0
    %v10881 = vadd.f32 %v8687, %v10880
    %v10882 = vpop.f32.mrf.mxu0
    %v10883 = vadd.f32 %v8683, %v10882
    %v10884 = vpop.f32.mrf.mxu0
    %v10885 = vadd.f32 %v8687, %v10884
    %10886 = vmatprep.mubr.bf16.mxu0 %v8375
    %10887 = vmatmul.mubr.bf16.gmra.mxu0 %v8374
    %v10888 = vpop.f32.mrf.mxu0
    %v10889 = vadd.f32 %v8683, %v10888
    %v10890 = vpop.f32.mrf.mxu0
    %v10891 = vadd.f32 %v8687, %v10890
    %v10892 = vpop.f32.mrf.mxu0
    %v10893 = vadd.f32 %v8683, %v10892
    %v10894 = vpop.f32.mrf.mxu0
    %v10895 = vadd.f32 %v8687, %v10894
    %10896 = vmatprep.mubr.bf16.mxu0 %v8383
    %10897 = vmatmul.mubr.bf16.gmra.mxu0 %v8382
    %v10898 = vpop.f32.mrf.mxu0
    %v10899 = vadd.f32 %v8683, %v10898
    %v10900 = vpop.f32.mrf.mxu0
    %v10901 = vadd.f32 %v8687, %v10900
    %v10902 = vpop.f32.mrf.mxu0
    %v10903 = vadd.f32 %v8683, %v10902
    %v10904 = vpop.f32.mrf.mxu0
    %v10905 = vadd.f32 %v8687, %v10904
    %10906 = vmatprep.mubr.bf16.mxu0 %v8391
    %10907 = vmatmul.mubr.bf16.gmra.mxu0 %v8390
    %v10908 = vpop.f32.mrf.mxu0
    %v10909 = vadd.f32 %v8683, %v10908
    %v10910 = vpop.f32.mrf.mxu0
    %v10911 = vadd.f32 %v8687, %v10910
    %v10912 = vpop.f32.mrf.mxu0
    %v10913 = vadd.f32 %v8683, %v10912
    %v10914 = vpop.f32.mrf.mxu0
    %v10915 = vadd.f32 %v8687, %v10914
    %10916 = vmatprep.mubr.bf16.mxu0 %v8399
    %10917 = vmatmul.mubr.bf16.gmra.mxu0 %v8398
    %v10918 = vpop.f32.mrf.mxu0
    %v10919 = vadd.f32 %v8683, %v10918
    %v10920 = vpop.f32.mrf.mxu0
    %v10921 = vadd.f32 %v8687, %v10920
    %v10922 = vpop.f32.mrf.mxu0
    %v10923 = vadd.f32 %v8683, %v10922
    %v10924 = vpop.f32.mrf.mxu0
    %v10925 = vadd.f32 %v8687, %v10924
    %10926 = vmatprep.mubr.bf16.mxu0 %v8407
    %10927 = vmatmul.mubr.bf16.gmra.mxu0 %v8406
    %v10928 = vpop.f32.mrf.mxu0
    %v10929 = vadd.f32 %v8683, %v10928
    %v10930 = vpop.f32.mrf.mxu0
    %v10931 = vadd.f32 %v8687, %v10930
    %v10932 = vpop.f32.mrf.mxu0
    %v10933 = vadd.f32 %v8683, %v10932
    %v10934 = vpop.f32.mrf.mxu0
    %v10935 = vadd.f32 %v8687, %v10934
    %10936 = vdwg.mxu0
    %10937 = vmatprep.subr.bf16.mxu0 %v9555
    %10938 = vmatpush1.bf16.msra.mxu0 %v9554
    %10939 = vmatprep.subr.bf16.mxu0 %v9551
    %10940 = vmatpush1.bf16.msra.mxu0 %v9550
    %10941 = vmatprep.subr.bf16.mxu0 %v9547
    %10942 = vmatpush1.bf16.msra.mxu0 %v9546
    %10943 = vmatprep.subr.bf16.mxu0 %v9543
    %10944 = vmatpush1.bf16.msra.mxu0 %v9542
    %10945 = vmatprep.subr.bf16.mxu0 %v9539
    %10946 = vmatpush1.bf16.msra.mxu0 %v9538
    %10947 = vmatprep.subr.bf16.mxu0 %v9535
    %10948 = vmatpush1.bf16.msra.mxu0 %v9534
    %10949 = vmatprep.subr.bf16.mxu0 %v9531
    %10950 = vmatpush1.bf16.msra.mxu0 %v9530
    %10951 = vmatprep.subr.bf16.mxu0 %v9527
    %10952 = vmatpush1.bf16.msra.mxu0 %v9526
    %10953 = vmatprep.subr.bf16.mxu0 %v9587
    %10954 = vmatpush2.bf16.msra.mxu0 %v9586
    %10955 = vmatprep.subr.bf16.mxu0 %v9583
    %10956 = vmatpush2.bf16.msra.mxu0 %v9582
    %10957 = vmatprep.subr.bf16.mxu0 %v9579
    %10958 = vmatpush2.bf16.msra.mxu0 %v9578
    %10959 = vmatprep.subr.bf16.mxu0 %v9575
    %10960 = vmatpush2.bf16.msra.mxu0 %v9574
    %10961 = vmatprep.subr.bf16.mxu0 %v9571
    %10962 = vmatpush2.bf16.msra.mxu0 %v9570
    %10963 = vmatprep.subr.bf16.mxu0 %v9567
    %10964 = vmatpush2.bf16.msra.mxu0 %v9566
    %10965 = vmatprep.subr.bf16.mxu0 %v9563
    %10966 = vmatpush2.bf16.msra.mxu0 %v9562
    %10967 = vmatprep.subr.bf16.mxu0 %v9559
    %10968 = vmatpush2.bf16.msra.mxu0 %v9558
    %10969 = vmatprep.mubr.bf16.mxu0 %v8289
    %10970 = vmatmul.mubr.bf16.gmra.mxu0 %v8288
    %v10971 = vpop.f32.mrf.mxu0
    %v10972 = vadd.f32 %v10779, %v10971
    %v10973 = vpop.f32.mrf.mxu0
    %v10974 = vadd.f32 %v10781, %v10973
    %v10975 = vpop.f32.mrf.mxu0
    %v10976 = vadd.f32 %v10783, %v10975
    %v10977 = vpop.f32.mrf.mxu0
    %v10978 = vadd.f32 %v10785, %v10977
    %10979 = vmatprep.mubr.bf16.mxu0 %v8297
    %10980 = vmatmul.mubr.bf16.gmra.mxu0 %v8296
    %v10981 = vpop.f32.mrf.mxu0
    %v10982 = vadd.f32 %v10789, %v10981
    %v10983 = vpop.f32.mrf.mxu0
    %v10984 = vadd.f32 %v10791, %v10983
    %v10985 = vpop.f32.mrf.mxu0
    %v10986 = vadd.f32 %v10793, %v10985
    %v10987 = vpop.f32.mrf.mxu0
    %v10988 = vadd.f32 %v10795, %v10987
    %10989 = vmatprep.mubr.bf16.mxu0 %v8305
    %10990 = vmatmul.mubr.bf16.gmra.mxu0 %v8304
    %v10991 = vpop.f32.mrf.mxu0
    %v10992 = vadd.f32 %v10799, %v10991
    %v10993 = vpop.f32.mrf.mxu0
    %v10994 = vadd.f32 %v10801, %v10993
    %v10995 = vpop.f32.mrf.mxu0
    %v10996 = vadd.f32 %v10803, %v10995
    %v10997 = vpop.f32.mrf.mxu0
    %v10998 = vadd.f32 %v10805, %v10997
    %10999 = vmatprep.mubr.bf16.mxu0 %v8313
    %11000 = vmatmul.mubr.bf16.gmra.mxu0 %v8312
    %v11001 = vpop.f32.mrf.mxu0
    %v11002 = vadd.f32 %v10809, %v11001
    %v11003 = vpop.f32.mrf.mxu0
    %v11004 = vadd.f32 %v10811, %v11003
    %v11005 = vpop.f32.mrf.mxu0
    %v11006 = vadd.f32 %v10813, %v11005
    %v11007 = vpop.f32.mrf.mxu0
    %v11008 = vadd.f32 %v10815, %v11007
    %11009 = vmatprep.mubr.bf16.mxu0 %v8321
    %11010 = vmatmul.mubr.bf16.gmra.mxu0 %v8320
    %v11011 = vpop.f32.mrf.mxu0
    %v11012 = vadd.f32 %v10819, %v11011
    %v11013 = vpop.f32.mrf.mxu0
    %v11014 = vadd.f32 %v10821, %v11013
    %v11015 = vpop.f32.mrf.mxu0
    %v11016 = vadd.f32 %v10823, %v11015
    %v11017 = vpop.f32.mrf.mxu0
    %v11018 = vadd.f32 %v10825, %v11017
    %11019 = vmatprep.mubr.bf16.mxu0 %v8329
    %11020 = vmatmul.mubr.bf16.gmra.mxu0 %v8328
    %v11021 = vpop.f32.mrf.mxu0
    %v11022 = vadd.f32 %v10829, %v11021
    %v11023 = vpop.f32.mrf.mxu0
    %v11024 = vadd.f32 %v10831, %v11023
    %v11025 = vpop.f32.mrf.mxu0
    %v11026 = vadd.f32 %v10833, %v11025
    %v11027 = vpop.f32.mrf.mxu0
    %v11028 = vadd.f32 %v10835, %v11027
    %11029 = vmatprep.mubr.bf16.mxu0 %v8337
    %11030 = vmatmul.mubr.bf16.gmra.mxu0 %v8336
    %v11031 = vpop.f32.mrf.mxu0
    %v11032 = vadd.f32 %v10839, %v11031
    %v11033 = vpop.f32.mrf.mxu0
    %v11034 = vadd.f32 %v10841, %v11033
    %v11035 = vpop.f32.mrf.mxu0
    %v11036 = vadd.f32 %v10843, %v11035
    %v11037 = vpop.f32.mrf.mxu0
    %v11038 = vadd.f32 %v10845, %v11037
    %11039 = vmatprep.mubr.bf16.mxu0 %v8345
    %11040 = vmatmul.mubr.bf16.gmra.mxu0 %v8344
    %v11041 = vpop.f32.mrf.mxu0
    %v11042 = vadd.f32 %v10849, %v11041
    %v11043 = vpop.f32.mrf.mxu0
    %v11044 = vadd.f32 %v10851, %v11043
    %v11045 = vpop.f32.mrf.mxu0
    %v11046 = vadd.f32 %v10853, %v11045
    %v11047 = vpop.f32.mrf.mxu0
    %v11048 = vadd.f32 %v10855, %v11047
    %11049 = vmatprep.mubr.bf16.mxu0 %v8353
    %11050 = vmatmul.mubr.bf16.gmra.mxu0 %v8352
    %v11051 = vpop.f32.mrf.mxu0
    %v11052 = vadd.f32 %v10859, %v11051
    %v11053 = vpop.f32.mrf.mxu0
    %v11054 = vadd.f32 %v10861, %v11053
    %v11055 = vpop.f32.mrf.mxu0
    %v11056 = vadd.f32 %v10863, %v11055
    %v11057 = vpop.f32.mrf.mxu0
    %v11058 = vadd.f32 %v10865, %v11057
    %11059 = vmatprep.mubr.bf16.mxu0 %v8361
    %11060 = vmatmul.mubr.bf16.gmra.mxu0 %v8360
    %v11061 = vpop.f32.mrf.mxu0
    %v11062 = vadd.f32 %v10869, %v11061
    %v11063 = vpop.f32.mrf.mxu0
    %v11064 = vadd.f32 %v10871, %v11063
    %v11065 = vpop.f32.mrf.mxu0
    %v11066 = vadd.f32 %v10873, %v11065
    %v11067 = vpop.f32.mrf.mxu0
    %v11068 = vadd.f32 %v10875, %v11067
    %11069 = vmatprep.mubr.bf16.mxu0 %v8369
    %11070 = vmatmul.mubr.bf16.gmra.mxu0 %v8368
    %v11071 = vpop.f32.mrf.mxu0
    %v11072 = vadd.f32 %v10879, %v11071
    %v11073 = vpop.f32.mrf.mxu0
    %v11074 = vadd.f32 %v10881, %v11073
    %v11075 = vpop.f32.mrf.mxu0
    %v11076 = vadd.f32 %v10883, %v11075
    %v11077 = vpop.f32.mrf.mxu0
    %v11078 = vadd.f32 %v10885, %v11077
    %11079 = vmatprep.mubr.bf16.mxu0 %v8377
    %11080 = vmatmul.mubr.bf16.gmra.mxu0 %v8376
    %v11081 = vpop.f32.mrf.mxu0
    %v11082 = vadd.f32 %v10889, %v11081
    %v11083 = vpop.f32.mrf.mxu0
    %v11084 = vadd.f32 %v10891, %v11083
    %v11085 = vpop.f32.mrf.mxu0
    %v11086 = vadd.f32 %v10893, %v11085
    %v11087 = vpop.f32.mrf.mxu0
    %v11088 = vadd.f32 %v10895, %v11087
    %11089 = vmatprep.mubr.bf16.mxu0 %v8385
    %11090 = vmatmul.mubr.bf16.gmra.mxu0 %v8384
    %v11091 = vpop.f32.mrf.mxu0
    %v11092 = vadd.f32 %v10899, %v11091
    %v11093 = vpop.f32.mrf.mxu0
    %v11094 = vadd.f32 %v10901, %v11093
    %v11095 = vpop.f32.mrf.mxu0
    %v11096 = vadd.f32 %v10903, %v11095
    %v11097 = vpop.f32.mrf.mxu0
    %v11098 = vadd.f32 %v10905, %v11097
    %11099 = vmatprep.mubr.bf16.mxu0 %v8393
    %11100 = vmatmul.mubr.bf16.gmra.mxu0 %v8392
    %v11101 = vpop.f32.mrf.mxu0
    %v11102 = vadd.f32 %v10909, %v11101
    %v11103 = vpop.f32.mrf.mxu0
    %v11104 = vadd.f32 %v10911, %v11103
    %v11105 = vpop.f32.mrf.mxu0
    %v11106 = vadd.f32 %v10913, %v11105
    %v11107 = vpop.f32.mrf.mxu0
    %v11108 = vadd.f32 %v10915, %v11107
    %11109 = vmatprep.mubr.bf16.mxu0 %v8401
    %11110 = vmatmul.mubr.bf16.gmra.mxu0 %v8400
    %v11111 = vpop.f32.mrf.mxu0
    %v11112 = vadd.f32 %v10919, %v11111
    %v11113 = vpop.f32.mrf.mxu0
    %v11114 = vadd.f32 %v10921, %v11113
    %v11115 = vpop.f32.mrf.mxu0
    %v11116 = vadd.f32 %v10923, %v11115
    %v11117 = vpop.f32.mrf.mxu0
    %v11118 = vadd.f32 %v10925, %v11117
    %11119 = vmatprep.mubr.bf16.mxu0 %v8409
    %11120 = vmatmul.mubr.bf16.gmra.mxu0 %v8408
    %v11121 = vpop.f32.mrf.mxu0
    %v11122 = vadd.f32 %v10929, %v11121
    %v11123 = vpop.f32.mrf.mxu0
    %v11124 = vadd.f32 %v10931, %v11123
    %v11125 = vpop.f32.mrf.mxu0
    %v11126 = vadd.f32 %v10933, %v11125
    %v11127 = vpop.f32.mrf.mxu0
    %v11128 = vadd.f32 %v10935, %v11127
    %11129 = vdwg.mxu0
    %11130 = vmatprep.subr.bf16.mxu0 %v9619
    %11131 = vmatpush1.bf16.msra.mxu0 %v9618
    %11132 = vmatprep.subr.bf16.mxu0 %v9615
    %11133 = vmatpush1.bf16.msra.mxu0 %v9614
    %11134 = vmatprep.subr.bf16.mxu0 %v9611
    %11135 = vmatpush1.bf16.msra.mxu0 %v9610
    %11136 = vmatprep.subr.bf16.mxu0 %v9607
    %11137 = vmatpush1.bf16.msra.mxu0 %v9606
    %11138 = vmatprep.subr.bf16.mxu0 %v9603
    %11139 = vmatpush1.bf16.msra.mxu0 %v9602
    %11140 = vmatprep.subr.bf16.mxu0 %v9599
    %11141 = vmatpush1.bf16.msra.mxu0 %v9598
    %11142 = vmatprep.subr.bf16.mxu0 %v9595
    %11143 = vmatpush1.bf16.msra.mxu0 %v9594
    %11144 = vmatprep.subr.bf16.mxu0 %v9591
    %11145 = vmatpush1.bf16.msra.mxu0 %v9590
    %11146 = vmatprep.subr.bf16.mxu0 %v9651
    %11147 = vmatpush2.bf16.msra.mxu0 %v9650
    %11148 = vmatprep.subr.bf16.mxu0 %v9647
    %11149 = vmatpush2.bf16.msra.mxu0 %v9646
    %11150 = vmatprep.subr.bf16.mxu0 %v9643
    %11151 = vmatpush2.bf16.msra.mxu0 %v9642
    %11152 = vmatprep.subr.bf16.mxu0 %v9639
    %11153 = vmatpush2.bf16.msra.mxu0 %v9638
    %11154 = vmatprep.subr.bf16.mxu0 %v9635
    %11155 = vmatpush2.bf16.msra.mxu0 %v9634
    %11156 = vmatprep.subr.bf16.mxu0 %v9631
    %11157 = vmatpush2.bf16.msra.mxu0 %v9630
    %11158 = vmatprep.subr.bf16.mxu0 %v9627
    %11159 = vmatpush2.bf16.msra.mxu0 %v9626
    %11160 = vmatprep.subr.bf16.mxu0 %v9623
    %11161 = vmatpush2.bf16.msra.mxu0 %v9622
    %11162 = vmatprep.mubr.bf16.mxu0 %v8291
    %11163 = vmatmul.mubr.bf16.gmra.mxu0 %v8290
    %v11164 = vpop.f32.mrf.mxu0
    %v11165 = vadd.f32 %v10972, %v11164
    %v11166 = vpop.f32.mrf.mxu0
    %v11167 = vadd.f32 %v10974, %v11166
    %v11168 = vpop.f32.mrf.mxu0
    %v11169 = vadd.f32 %v10976, %v11168
    %v11170 = vpop.f32.mrf.mxu0
    %v11171 = vadd.f32 %v10978, %v11170
    %11172 = vmatprep.mubr.bf16.mxu0 %v8299
    %11173 = vmatmul.mubr.bf16.gmra.mxu0 %v8298
    %v11174 = vpop.f32.mrf.mxu0
    %v11175 = vadd.f32 %v10982, %v11174
    %v11176 = vpop.f32.mrf.mxu0
    %v11177 = vadd.f32 %v10984, %v11176
    %v11178 = vpop.f32.mrf.mxu0
    %v11179 = vadd.f32 %v10986, %v11178
    %v11180 = vpop.f32.mrf.mxu0
    %v11181 = vadd.f32 %v10988, %v11180
    %11182 = vmatprep.mubr.bf16.mxu0 %v8307
    %11183 = vmatmul.mubr.bf16.gmra.mxu0 %v8306
    %v11184 = vpop.f32.mrf.mxu0
    %v11185 = vadd.f32 %v10992, %v11184
    %v11186 = vpop.f32.mrf.mxu0
    %v11187 = vadd.f32 %v10994, %v11186
    %v11188 = vpop.f32.mrf.mxu0
    %v11189 = vadd.f32 %v10996, %v11188
    %v11190 = vpop.f32.mrf.mxu0
    %v11191 = vadd.f32 %v10998, %v11190
    %11192 = vmatprep.mubr.bf16.mxu0 %v8315
    %11193 = vmatmul.mubr.bf16.gmra.mxu0 %v8314
    %v11194 = vpop.f32.mrf.mxu0
    %v11195 = vadd.f32 %v11002, %v11194
    %v11196 = vpop.f32.mrf.mxu0
    %v11197 = vadd.f32 %v11004, %v11196
    %v11198 = vpop.f32.mrf.mxu0
    %v11199 = vadd.f32 %v11006, %v11198
    %v11200 = vpop.f32.mrf.mxu0
    %v11201 = vadd.f32 %v11008, %v11200
    %11202 = vmatprep.mubr.bf16.mxu0 %v8323
    %11203 = vmatmul.mubr.bf16.gmra.mxu0 %v8322
    %v11204 = vpop.f32.mrf.mxu0
    %v11205 = vadd.f32 %v11012, %v11204
    %v11206 = vpop.f32.mrf.mxu0
    %v11207 = vadd.f32 %v11014, %v11206
    %v11208 = vpop.f32.mrf.mxu0
    %v11209 = vadd.f32 %v11016, %v11208
    %v11210 = vpop.f32.mrf.mxu0
    %v11211 = vadd.f32 %v11018, %v11210
    %11212 = vmatprep.mubr.bf16.mxu0 %v8331
    %11213 = vmatmul.mubr.bf16.gmra.mxu0 %v8330
    %v11214 = vpop.f32.mrf.mxu0
    %v11215 = vadd.f32 %v11022, %v11214
    %v11216 = vpop.f32.mrf.mxu0
    %v11217 = vadd.f32 %v11024, %v11216
    %v11218 = vpop.f32.mrf.mxu0
    %v11219 = vadd.f32 %v11026, %v11218
    %v11220 = vpop.f32.mrf.mxu0
    %v11221 = vadd.f32 %v11028, %v11220
    %11222 = vmatprep.mubr.bf16.mxu0 %v8339
    %11223 = vmatmul.mubr.bf16.gmra.mxu0 %v8338
    %v11224 = vpop.f32.mrf.mxu0
    %v11225 = vadd.f32 %v11032, %v11224
    %v11226 = vpop.f32.mrf.mxu0
    %v11227 = vadd.f32 %v11034, %v11226
    %v11228 = vpop.f32.mrf.mxu0
    %v11229 = vadd.f32 %v11036, %v11228
    %v11230 = vpop.f32.mrf.mxu0
    %v11231 = vadd.f32 %v11038, %v11230
    %11232 = vmatprep.mubr.bf16.mxu0 %v8347
    %11233 = vmatmul.mubr.bf16.gmra.mxu0 %v8346
    %v11234 = vpop.f32.mrf.mxu0
    %v11235 = vadd.f32 %v11042, %v11234
    %v11236 = vpop.f32.mrf.mxu0
    %v11237 = vadd.f32 %v11044, %v11236
    %v11238 = vpop.f32.mrf.mxu0
    %v11239 = vadd.f32 %v11046, %v11238
    %v11240 = vpop.f32.mrf.mxu0
    %v11241 = vadd.f32 %v11048, %v11240
    %11242 = vmatprep.mubr.bf16.mxu0 %v8355
    %11243 = vmatmul.mubr.bf16.gmra.mxu0 %v8354
    %v11244 = vpop.f32.mrf.mxu0
    %v11245 = vadd.f32 %v11052, %v11244
    %v11246 = vpop.f32.mrf.mxu0
    %v11247 = vadd.f32 %v11054, %v11246
    %v11248 = vpop.f32.mrf.mxu0
    %v11249 = vadd.f32 %v11056, %v11248
    %v11250 = vpop.f32.mrf.mxu0
    %v11251 = vadd.f32 %v11058, %v11250
    %11252 = vmatprep.mubr.bf16.mxu0 %v8363
    %11253 = vmatmul.mubr.bf16.gmra.mxu0 %v8362
    %v11254 = vpop.f32.mrf.mxu0
    %v11255 = vadd.f32 %v11062, %v11254
    %v11256 = vpop.f32.mrf.mxu0
    %v11257 = vadd.f32 %v11064, %v11256
    %v11258 = vpop.f32.mrf.mxu0
    %v11259 = vadd.f32 %v11066, %v11258
    %v11260 = vpop.f32.mrf.mxu0
    %v11261 = vadd.f32 %v11068, %v11260
    %11262 = vmatprep.mubr.bf16.mxu0 %v8371
    %11263 = vmatmul.mubr.bf16.gmra.mxu0 %v8370
    %v11264 = vpop.f32.mrf.mxu0
    %v11265 = vadd.f32 %v11072, %v11264
    %v11266 = vpop.f32.mrf.mxu0
    %v11267 = vadd.f32 %v11074, %v11266
    %v11268 = vpop.f32.mrf.mxu0
    %v11269 = vadd.f32 %v11076, %v11268
    %v11270 = vpop.f32.mrf.mxu0
    %v11271 = vadd.f32 %v11078, %v11270
    %11272 = vmatprep.mubr.bf16.mxu0 %v8379
    %11273 = vmatmul.mubr.bf16.gmra.mxu0 %v8378
    %v11274 = vpop.f32.mrf.mxu0
    %v11275 = vadd.f32 %v11082, %v11274
    %v11276 = vpop.f32.mrf.mxu0
    %v11277 = vadd.f32 %v11084, %v11276
    %v11278 = vpop.f32.mrf.mxu0
    %v11279 = vadd.f32 %v11086, %v11278
    %v11280 = vpop.f32.mrf.mxu0
    %v11281 = vadd.f32 %v11088, %v11280
    %11282 = vmatprep.mubr.bf16.mxu0 %v8387
    %11283 = vmatmul.mubr.bf16.gmra.mxu0 %v8386
    %v11284 = vpop.f32.mrf.mxu0
    %v11285 = vadd.f32 %v11092, %v11284
    %v11286 = vpop.f32.mrf.mxu0
    %v11287 = vadd.f32 %v11094, %v11286
    %v11288 = vpop.f32.mrf.mxu0
    %v11289 = vadd.f32 %v11096, %v11288
    %v11290 = vpop.f32.mrf.mxu0
    %v11291 = vadd.f32 %v11098, %v11290
    %11292 = vmatprep.mubr.bf16.mxu0 %v8395
    %11293 = vmatmul.mubr.bf16.gmra.mxu0 %v8394
    %v11294 = vpop.f32.mrf.mxu0
    %v11295 = vadd.f32 %v11102, %v11294
    %v11296 = vpop.f32.mrf.mxu0
    %v11297 = vadd.f32 %v11104, %v11296
    %v11298 = vpop.f32.mrf.mxu0
    %v11299 = vadd.f32 %v11106, %v11298
    %v11300 = vpop.f32.mrf.mxu0
    %v11301 = vadd.f32 %v11108, %v11300
    %11302 = vmatprep.mubr.bf16.mxu0 %v8403
    %11303 = vmatmul.mubr.bf16.gmra.mxu0 %v8402
    %v11304 = vpop.f32.mrf.mxu0
    %v11305 = vadd.f32 %v11112, %v11304
    %v11306 = vpop.f32.mrf.mxu0
    %v11307 = vadd.f32 %v11114, %v11306
    %v11308 = vpop.f32.mrf.mxu0
    %v11309 = vadd.f32 %v11116, %v11308
    %v11310 = vpop.f32.mrf.mxu0
    %v11311 = vadd.f32 %v11118, %v11310
    %11312 = vmatprep.mubr.bf16.mxu0 %v8411
    %11313 = vmatmul.mubr.bf16.gmra.mxu0 %v8410
    %v11314 = vpop.f32.mrf.mxu0
    %v11315 = vadd.f32 %v11122, %v11314
    %v11316 = vpop.f32.mrf.mxu0
    %v11317 = vadd.f32 %v11124, %v11316
    %v11318 = vpop.f32.mrf.mxu0
    %v11319 = vadd.f32 %v11126, %v11318
    %v11320 = vpop.f32.mrf.mxu0
    %v11321 = vadd.f32 %v11128, %v11320
    %11322 = vdwg.mxu0
    %11323 = vmatprep.subr.bf16.mxu0 %v9683
    %11324 = vmatpush1.bf16.msra.mxu0 %v9682
    %11325 = vmatprep.subr.bf16.mxu0 %v9679
    %11326 = vmatpush1.bf16.msra.mxu0 %v9678
    %11327 = vmatprep.subr.bf16.mxu0 %v9675
    %11328 = vmatpush1.bf16.msra.mxu0 %v9674
    %11329 = vmatprep.subr.bf16.mxu0 %v9671
    %11330 = vmatpush1.bf16.msra.mxu0 %v9670
    %11331 = vmatprep.subr.bf16.mxu0 %v9667
    %11332 = vmatpush1.bf16.msra.mxu0 %v9666
    %11333 = vmatprep.subr.bf16.mxu0 %v9663
    %11334 = vmatpush1.bf16.msra.mxu0 %v9662
    %11335 = vmatprep.subr.bf16.mxu0 %v9659
    %11336 = vmatpush1.bf16.msra.mxu0 %v9658
    %11337 = vmatprep.subr.bf16.mxu0 %v9655
    %11338 = vmatpush1.bf16.msra.mxu0 %v9654
    %11339 = vmatprep.subr.bf16.mxu0 %v9715
    %11340 = vmatpush2.bf16.msra.mxu0 %v9714
    %11341 = vmatprep.subr.bf16.mxu0 %v9711
    %11342 = vmatpush2.bf16.msra.mxu0 %v9710
    %11343 = vmatprep.subr.bf16.mxu0 %v9707
    %11344 = vmatpush2.bf16.msra.mxu0 %v9706
    %11345 = vmatprep.subr.bf16.mxu0 %v9703
    %11346 = vmatpush2.bf16.msra.mxu0 %v9702
    %11347 = vmatprep.subr.bf16.mxu0 %v9699
    %11348 = vmatpush2.bf16.msra.mxu0 %v9698
    %11349 = vmatprep.subr.bf16.mxu0 %v9695
    %11350 = vmatpush2.bf16.msra.mxu0 %v9694
    %11351 = vmatprep.subr.bf16.mxu0 %v9691
    %11352 = vmatpush2.bf16.msra.mxu0 %v9690
    %11353 = vmatprep.subr.bf16.mxu0 %v9687
    %11354 = vmatpush2.bf16.msra.mxu0 %v9686
    %11355 = vmatprep.mubr.bf16.mxu0 %v8293
    %11356 = vmatmul.mubr.bf16.gmra.mxu0 %v8292
    %v11357 = vpop.f32.mrf.mxu0
    %v11358 = vadd.f32 %v11165, %v11357
    %v11359 = vpop.f32.mrf.mxu0
    %v11360 = vadd.f32 %v11167, %v11359
    %v11361 = vpop.f32.mrf.mxu0
    %v11362 = vadd.f32 %v11169, %v11361
    %v11363 = vpop.f32.mrf.mxu0
    %v11364 = vadd.f32 %v11171, %v11363
    %11365 = vmatprep.mubr.bf16.mxu0 %v8301
    %11366 = vmatmul.mubr.bf16.gmra.mxu0 %v8300
    %v11367 = vpop.f32.mrf.mxu0
    %v11368 = vadd.f32 %v11175, %v11367
    %v11369 = vpop.f32.mrf.mxu0
    %v11370 = vadd.f32 %v11177, %v11369
    %v11371 = vpop.f32.mrf.mxu0
    %v11372 = vadd.f32 %v11179, %v11371
    %v11373 = vpop.f32.mrf.mxu0
    %v11374 = vadd.f32 %v11181, %v11373
    %11375 = vmatprep.mubr.bf16.mxu0 %v8309
    %11376 = vmatmul.mubr.bf16.gmra.mxu0 %v8308
    %v11377 = vpop.f32.mrf.mxu0
    %v11378 = vadd.f32 %v11185, %v11377
    %v11379 = vpop.f32.mrf.mxu0
    %v11380 = vadd.f32 %v11187, %v11379
    %v11381 = vpop.f32.mrf.mxu0
    %v11382 = vadd.f32 %v11189, %v11381
    %v11383 = vpop.f32.mrf.mxu0
    %v11384 = vadd.f32 %v11191, %v11383
    %11385 = vmatprep.mubr.bf16.mxu0 %v8317
    %11386 = vmatmul.mubr.bf16.gmra.mxu0 %v8316
    %v11387 = vpop.f32.mrf.mxu0
    %v11388 = vadd.f32 %v11195, %v11387
    %v11389 = vpop.f32.mrf.mxu0
    %v11390 = vadd.f32 %v11197, %v11389
    %v11391 = vpop.f32.mrf.mxu0
    %v11392 = vadd.f32 %v11199, %v11391
    %v11393 = vpop.f32.mrf.mxu0
    %v11394 = vadd.f32 %v11201, %v11393
    %11395 = vmatprep.mubr.bf16.mxu0 %v8325
    %11396 = vmatmul.mubr.bf16.gmra.mxu0 %v8324
    %v11397 = vpop.f32.mrf.mxu0
    %v11398 = vadd.f32 %v11205, %v11397
    %v11399 = vpop.f32.mrf.mxu0
    %v11400 = vadd.f32 %v11207, %v11399
    %v11401 = vpop.f32.mrf.mxu0
    %v11402 = vadd.f32 %v11209, %v11401
    %v11403 = vpop.f32.mrf.mxu0
    %v11404 = vadd.f32 %v11211, %v11403
    %11405 = vmatprep.mubr.bf16.mxu0 %v8333
    %11406 = vmatmul.mubr.bf16.gmra.mxu0 %v8332
    %v11407 = vpop.f32.mrf.mxu0
    %v11408 = vadd.f32 %v11215, %v11407
    %v11409 = vpop.f32.mrf.mxu0
    %v11410 = vadd.f32 %v11217, %v11409
    %v11411 = vpop.f32.mrf.mxu0
    %v11412 = vadd.f32 %v11219, %v11411
    %v11413 = vpop.f32.mrf.mxu0
    %v11414 = vadd.f32 %v11221, %v11413
    %11415 = vmatprep.mubr.bf16.mxu0 %v8341
    %11416 = vmatmul.mubr.bf16.gmra.mxu0 %v8340
    %v11417 = vpop.f32.mrf.mxu0
    %v11418 = vadd.f32 %v11225, %v11417
    %v11419 = vpop.f32.mrf.mxu0
    %v11420 = vadd.f32 %v11227, %v11419
    %v11421 = vpop.f32.mrf.mxu0
    %v11422 = vadd.f32 %v11229, %v11421
    %v11423 = vpop.f32.mrf.mxu0
    %v11424 = vadd.f32 %v11231, %v11423
    %11425 = vmatprep.mubr.bf16.mxu0 %v8349
    %11426 = vmatmul.mubr.bf16.gmra.mxu0 %v8348
    %v11427 = vpop.f32.mrf.mxu0
    %v11428 = vadd.f32 %v11235, %v11427
    %v11429 = vpop.f32.mrf.mxu0
    %v11430 = vadd.f32 %v11237, %v11429
    %v11431 = vpop.f32.mrf.mxu0
    %v11432 = vadd.f32 %v11239, %v11431
    %v11433 = vpop.f32.mrf.mxu0
    %v11434 = vadd.f32 %v11241, %v11433
    %11435 = vmatprep.mubr.bf16.mxu0 %v8357
    %11436 = vmatmul.mubr.bf16.gmra.mxu0 %v8356
    %v11437 = vpop.f32.mrf.mxu0
    %v11438 = vadd.f32 %v11245, %v11437
    %v11439 = vpop.f32.mrf.mxu0
    %v11440 = vadd.f32 %v11247, %v11439
    %v11441 = vpop.f32.mrf.mxu0
    %v11442 = vadd.f32 %v11249, %v11441
    %v11443 = vpop.f32.mrf.mxu0
    %v11444 = vadd.f32 %v11251, %v11443
    %11445 = vmatprep.mubr.bf16.mxu0 %v8365
    %11446 = vmatmul.mubr.bf16.gmra.mxu0 %v8364
    %v11447 = vpop.f32.mrf.mxu0
    %v11448 = vadd.f32 %v11255, %v11447
    %v11449 = vpop.f32.mrf.mxu0
    %v11450 = vadd.f32 %v11257, %v11449
    %v11451 = vpop.f32.mrf.mxu0
    %v11452 = vadd.f32 %v11259, %v11451
    %v11453 = vpop.f32.mrf.mxu0
    %v11454 = vadd.f32 %v11261, %v11453
    %11455 = vmatprep.mubr.bf16.mxu0 %v8373
    %11456 = vmatmul.mubr.bf16.gmra.mxu0 %v8372
    %v11457 = vpop.f32.mrf.mxu0
    %v11458 = vadd.f32 %v11265, %v11457
    %v11459 = vpop.f32.mrf.mxu0
    %v11460 = vadd.f32 %v11267, %v11459
    %v11461 = vpop.f32.mrf.mxu0
    %v11462 = vadd.f32 %v11269, %v11461
    %v11463 = vpop.f32.mrf.mxu0
    %v11464 = vadd.f32 %v11271, %v11463
    %11465 = vmatprep.mubr.bf16.mxu0 %v8381
    %11466 = vmatmul.mubr.bf16.gmra.mxu0 %v8380
    %v11467 = vpop.f32.mrf.mxu0
    %v11468 = vadd.f32 %v11275, %v11467
    %v11469 = vpop.f32.mrf.mxu0
    %v11470 = vadd.f32 %v11277, %v11469
    %v11471 = vpop.f32.mrf.mxu0
    %v11472 = vadd.f32 %v11279, %v11471
    %v11473 = vpop.f32.mrf.mxu0
    %v11474 = vadd.f32 %v11281, %v11473
    %11475 = vmatprep.mubr.bf16.mxu0 %v8389
    %11476 = vmatmul.mubr.bf16.gmra.mxu0 %v8388
    %v11477 = vpop.f32.mrf.mxu0
    %v11478 = vadd.f32 %v11285, %v11477
    %v11479 = vpop.f32.mrf.mxu0
    %v11480 = vadd.f32 %v11287, %v11479
    %v11481 = vpop.f32.mrf.mxu0
    %v11482 = vadd.f32 %v11289, %v11481
    %v11483 = vpop.f32.mrf.mxu0
    %v11484 = vadd.f32 %v11291, %v11483
    %11485 = vmatprep.mubr.bf16.mxu0 %v8397
    %11486 = vmatmul.mubr.bf16.gmra.mxu0 %v8396
    %v11487 = vpop.f32.mrf.mxu0
    %v11488 = vadd.f32 %v11295, %v11487
    %v11489 = vpop.f32.mrf.mxu0
    %v11490 = vadd.f32 %v11297, %v11489
    %v11491 = vpop.f32.mrf.mxu0
    %v11492 = vadd.f32 %v11299, %v11491
    %v11493 = vpop.f32.mrf.mxu0
    %v11494 = vadd.f32 %v11301, %v11493
    %11495 = vmatprep.mubr.bf16.mxu0 %v8405
    %11496 = vmatmul.mubr.bf16.gmra.mxu0 %v8404
    %v11497 = vpop.f32.mrf.mxu0
    %v11498 = vadd.f32 %v11305, %v11497
    %v11499 = vpop.f32.mrf.mxu0
    %v11500 = vadd.f32 %v11307, %v11499
    %v11501 = vpop.f32.mrf.mxu0
    %v11502 = vadd.f32 %v11309, %v11501
    %v11503 = vpop.f32.mrf.mxu0
    %v11504 = vadd.f32 %v11311, %v11503
    %11505 = vmatprep.mubr.bf16.mxu0 %v8413
    %11506 = vmatmul.mubr.bf16.gmra.mxu0 %v8412
    %v11507 = vpop.f32.mrf.mxu0
    %v11508 = vadd.f32 %v11315, %v11507
    %v11509 = vpop.f32.mrf.mxu0
    %v11510 = vadd.f32 %v11317, %v11509
    %v11511 = vpop.f32.mrf.mxu0
    %v11512 = vadd.f32 %v11319, %v11511
    %v11513 = vpop.f32.mrf.mxu0
    %v11514 = vadd.f32 %v11321, %v11513
    %11515 = vdwg.mxu0
    %v11516 = vmax.f32 %v10586, %v10590
    %v11517 = vmax.f32 %v11516, %v10596
    %v11518 = vmax.f32 %v11517, %v10600
    %v11519 = vmax.f32 %v11518, %v10606
    %v11520 = vmax.f32 %v11519, %v10610
    %v11521 = vmax.f32 %v11520, %v10616
    %v11522 = vmax.f32 %v11521, %v10620
    %v11523 = vrot.slane %v11522, 4
    %v11524 = vmax.f32 %v11522, %v11523
    %v11525 = vrot.slane %v11524, 2
    %v11526 = vmax.f32 %v11524, %v11525
    %v11527 = vrot.slane %v11526, 1
    %v11528 = vmax.f32 %v11526, %v11527
    %v11529 = vmax.f32 %v10588, %v10592
    %v11530 = vmax.f32 %v11529, %v10598
    %v11531 = vmax.f32 %v11530, %v10602
    %v11532 = vmax.f32 %v11531, %v10608
    %v11533 = vmax.f32 %v11532, %v10612
    %v11534 = vmax.f32 %v11533, %v10618
    %v11535 = vmax.f32 %v11534, %v10622
    %v11536 = vrot.slane %v11535, 4
    %v11537 = vmax.f32 %v11535, %v11536
    %v11538 = vrot.slane %v11537, 2
    %v11539 = vmax.f32 %v11537, %v11538
    %v11540 = vrot.slane %v11539, 1
    %v11541 = vmax.f32 %v11539, %v11540
    %v11542 = vmax.f32 %v11358, %v11362
    %v11543 = vmax.f32 %v11542, %v11368
    %v11544 = vmax.f32 %v11543, %v11372
    %v11545 = vmax.f32 %v11544, %v11378
    %v11546 = vmax.f32 %v11545, %v11382
    %v11547 = vmax.f32 %v11546, %v11388
    %v11548 = vmax.f32 %v11547, %v11392
    %v11549 = vrot.slane %v11548, 4
    %v11550 = vmax.f32 %v11548, %v11549
    %v11551 = vrot.slane %v11550, 2
    %v11552 = vmax.f32 %v11550, %v11551
    %v11553 = vrot.slane %v11552, 1
    %v11554 = vmax.f32 %v11552, %v11553
    %v11555 = vmax.f32 %v11360, %v11364
    %v11556 = vmax.f32 %v11555, %v11370
    %v11557 = vmax.f32 %v11556, %v11374
    %v11558 = vmax.f32 %v11557, %v11380
    %v11559 = vmax.f32 %v11558, %v11384
    %v11560 = vmax.f32 %v11559, %v11390
    %v11561 = vmax.f32 %v11560, %v11394
    %v11562 = vrot.slane %v11561, 4
    %v11563 = vmax.f32 %v11561, %v11562
    %v11564 = vrot.slane %v11563, 2
    %v11565 = vmax.f32 %v11563, %v11564
    %v11566 = vrot.slane %v11565, 1
    %v11567 = vmax.f32 %v11565, %v11566
    %v11568 = vmax.f32 %v10626, %v10630
    %v11569 = vmax.f32 %v11568, %v10636
    %v11570 = vmax.f32 %v11569, %v10640
    %v11571 = vmax.f32 %v11570, %v10646
    %v11572 = vmax.f32 %v11571, %v10650
    %v11573 = vmax.f32 %v11572, %v10656
    %v11574 = vmax.f32 %v11573, %v10660
    %v11575 = vrot.slane %v11574, 4
    %v11576 = vmax.f32 %v11574, %v11575
    %v11577 = vrot.slane %v11576, 2
    %v11578 = vmax.f32 %v11576, %v11577
    %v11579 = vrot.slane %v11578, 1
    %v11580 = vmax.f32 %v11578, %v11579
    %v11581 = vmax.f32 %v10628, %v10632
    %v11582 = vmax.f32 %v11581, %v10638
    %v11583 = vmax.f32 %v11582, %v10642
    %v11584 = vmax.f32 %v11583, %v10648
    %v11585 = vmax.f32 %v11584, %v10652
    %v11586 = vmax.f32 %v11585, %v10658
    %v11587 = vmax.f32 %v11586, %v10662
    %v11588 = vrot.slane %v11587, 4
    %v11589 = vmax.f32 %v11587, %v11588
    %v11590 = vrot.slane %v11589, 2
    %v11591 = vmax.f32 %v11589, %v11590
    %v11592 = vrot.slane %v11591, 1
    %v11593 = vmax.f32 %v11591, %v11592
    %v11594 = vmax.f32 %v11398, %v11402
    %v11595 = vmax.f32 %v11594, %v11408
    %v11596 = vmax.f32 %v11595, %v11412
    %v11597 = vmax.f32 %v11596, %v11418
    %v11598 = vmax.f32 %v11597, %v11422
    %v11599 = vmax.f32 %v11598, %v11428
    %v11600 = vmax.f32 %v11599, %v11432
    %v11601 = vrot.slane %v11600, 4
    %v11602 = vmax.f32 %v11600, %v11601
    %v11603 = vrot.slane %v11602, 2
    %v11604 = vmax.f32 %v11602, %v11603
    %v11605 = vrot.slane %v11604, 1
    %v11606 = vmax.f32 %v11604, %v11605
    %v11607 = vmax.f32 %v11400, %v11404
    %v11608 = vmax.f32 %v11607, %v11410
    %v11609 = vmax.f32 %v11608, %v11414
    %v11610 = vmax.f32 %v11609, %v11420
    %v11611 = vmax.f32 %v11610, %v11424
    %v11612 = vmax.f32 %v11611, %v11430
    %v11613 = vmax.f32 %v11612, %v11434
    %v11614 = vrot.slane %v11613, 4
    %v11615 = vmax.f32 %v11613, %v11614
    %v11616 = vrot.slane %v11615, 2
    %v11617 = vmax.f32 %v11615, %v11616
    %v11618 = vrot.slane %v11617, 1
    %v11619 = vmax.f32 %v11617, %v11618
    %v11620 = vmax.f32 %v10666, %v10670
    %v11621 = vmax.f32 %v11620, %v10676
    %v11622 = vmax.f32 %v11621, %v10680
    %v11623 = vmax.f32 %v11622, %v10686
    %v11624 = vmax.f32 %v11623, %v10690
    %v11625 = vmax.f32 %v11624, %v10696
    %v11626 = vmax.f32 %v11625, %v10700
    %v11627 = vrot.slane %v11626, 4
    %v11628 = vmax.f32 %v11626, %v11627
    %v11629 = vrot.slane %v11628, 2
    %v11630 = vmax.f32 %v11628, %v11629
    %v11631 = vrot.slane %v11630, 1
    %v11632 = vmax.f32 %v11630, %v11631
    %v11633 = vmax.f32 %v10668, %v10672
    %v11634 = vmax.f32 %v11633, %v10678
    %v11635 = vmax.f32 %v11634, %v10682
    %v11636 = vmax.f32 %v11635, %v10688
    %v11637 = vmax.f32 %v11636, %v10692
    %v11638 = vmax.f32 %v11637, %v10698
    %v11639 = vmax.f32 %v11638, %v10702
    %v11640 = vrot.slane %v11639, 4
    %v11641 = vmax.f32 %v11639, %v11640
    %v11642 = vrot.slane %v11641, 2
    %v11643 = vmax.f32 %v11641, %v11642
    %v11644 = vrot.slane %v11643, 1
    %v11645 = vmax.f32 %v11643, %v11644
    %v11646 = vmax.f32 %v11438, %v11442
    %v11647 = vmax.f32 %v11646, %v11448
    %v11648 = vmax.f32 %v11647, %v11452
    %v11649 = vmax.f32 %v11648, %v11458
    %v11650 = vmax.f32 %v11649, %v11462
    %v11651 = vmax.f32 %v11650, %v11468
    %v11652 = vmax.f32 %v11651, %v11472
    %v11653 = vrot.slane %v11652, 4
    %v11654 = vmax.f32 %v11652, %v11653
    %v11655 = vrot.slane %v11654, 2
    %v11656 = vmax.f32 %v11654, %v11655
    %v11657 = vrot.slane %v11656, 1
    %v11658 = vmax.f32 %v11656, %v11657
    %v11659 = vmax.f32 %v11440, %v11444
    %v11660 = vmax.f32 %v11659, %v11450
    %v11661 = vmax.f32 %v11660, %v11454
    %v11662 = vmax.f32 %v11661, %v11460
    %v11663 = vmax.f32 %v11662, %v11464
    %v11664 = vmax.f32 %v11663, %v11470
    %v11665 = vmax.f32 %v11664, %v11474
    %v11666 = vrot.slane %v11665, 4
    %v11667 = vmax.f32 %v11665, %v11666
    %v11668 = vrot.slane %v11667, 2
    %v11669 = vmax.f32 %v11667, %v11668
    %v11670 = vrot.slane %v11669, 1
    %v11671 = vmax.f32 %v11669, %v11670
    %v11672 = vmax.f32 %v10706, %v10710
    %v11673 = vmax.f32 %v11672, %v10716
    %v11674 = vmax.f32 %v11673, %v10720
    %v11675 = vmax.f32 %v11674, %v10726
    %v11676 = vmax.f32 %v11675, %v10730
    %v11677 = vmax.f32 %v11676, %v10736
    %v11678 = vmax.f32 %v11677, %v10740
    %v11679 = vrot.slane %v11678, 4
    %v11680 = vmax.f32 %v11678, %v11679
    %v11681 = vrot.slane %v11680, 2
    %v11682 = vmax.f32 %v11680, %v11681
    %v11683 = vrot.slane %v11682, 1
    %v11684 = vmax.f32 %v11682, %v11683
    %v11685 = vmax.f32 %v10708, %v10712
    %v11686 = vmax.f32 %v11685, %v10718
    %v11687 = vmax.f32 %v11686, %v10722
    %v11688 = vmax.f32 %v11687, %v10728
    %v11689 = vmax.f32 %v11688, %v10732
    %v11690 = vmax.f32 %v11689, %v10738
    %v11691 = vmax.f32 %v11690, %v10742
    %v11692 = vrot.slane %v11691, 4
    %v11693 = vmax.f32 %v11691, %v11692
    %v11694 = vrot.slane %v11693, 2
    %v11695 = vmax.f32 %v11693, %v11694
    %v11696 = vrot.slane %v11695, 1
    %v11697 = vmax.f32 %v11695, %v11696
    %v11698 = vmax.f32 %v11478, %v11482
    %v11699 = vmax.f32 %v11698, %v11488
    %v11700 = vmax.f32 %v11699, %v11492
    %v11701 = vmax.f32 %v11700, %v11498
    %v11702 = vmax.f32 %v11701, %v11502
    %v11703 = vmax.f32 %v11702, %v11508
    %v11704 = vmax.f32 %v11703, %v11512
    %v11705 = vrot.slane %v11704, 4
    %v11706 = vmax.f32 %v11704, %v11705
    %v11707 = vrot.slane %v11706, 2
    %v11708 = vmax.f32 %v11706, %v11707
    %v11709 = vrot.slane %v11708, 1
    %v11710 = vmax.f32 %v11708, %v11709
    %v11711 = vmax.f32 %v11480, %v11484
    %v11712 = vmax.f32 %v11711, %v11490
    %v11713 = vmax.f32 %v11712, %v11494
    %v11714 = vmax.f32 %v11713, %v11500
    %v11715 = vmax.f32 %v11714, %v11504
    %v11716 = vmax.f32 %v11715, %v11510
    %v11717 = vmax.f32 %v11716, %v11514
    %v11718 = vrot.slane %v11717, 4
    %v11719 = vmax.f32 %v11717, %v11718
    %v11720 = vrot.slane %v11719, 2
    %v11721 = vmax.f32 %v11719, %v11720
    %v11722 = vrot.slane %v11721, 1
    %v11723 = vmax.f32 %v11721, %v11722
    %v11740 = vcombine.low %v11528, %v11541
    %v11741 = vcombine.low %v11554, %v11567
    %v11742 = vcombine.low %v11580, %v11593
    %v11743 = vcombine.low %v11606, %v11619
    %v11744 = vcombine.low %v11632, %v11645
    %v11745 = vcombine.low %v11658, %v11671
    %v11746 = vcombine.low %v11684, %v11697
    %v11747 = vcombine.low %v11710, %v11723
    %v11748 = vrot.slane %v11742, 7
    %v11749 = vsel %vm3315, %v11748, %v11740
    %vm11750 = vcmask 1045509
    %v11751 = vsel %vm11750, %v11748, %v11749
    %v11752 = vrot.slane %v11744, 6
    %v11753 = vsel %vm3317, %v11752, %v11751
    %vm11754 = vcmask 1046534
    %v11755 = vsel %vm11754, %v11752, %v11753
    %v11756 = vrot.slane %v11746, 5
    %v11757 = vsel %vm3319, %v11756, %v11755
    %vm11758 = vcmask 1047559
    %v11759 = vsel %vm11758, %v11756, %v11757
    %v11760 = vrot.slane %v11743, 7
    %v11761 = vsel %vm3315, %v11760, %v11741
    %v11762 = vsel %vm11750, %v11760, %v11761
    %v11763 = vrot.slane %v11745, 6
    %v11764 = vsel %vm3317, %v11763, %v11762
    %v11765 = vsel %vm11754, %v11763, %v11764
    %v11766 = vrot.slane %v11747, 5
    %v11767 = vsel %vm3319, %v11766, %v11765
    %v11768 = vsel %vm11758, %v11766, %v11767
    %11771 = vst [vmem:[#allocation20] sm:$0xff] %v11759
    %11772 = vst [vmem:[#allocation20 + $0x8] sm:$0xff] %v11768
    // Predicated region
    $region94: #{tpu_custom_call.1} parent=1 // pred_check
      _
    $region95: #{tpu_custom_call.1} parent=1 // pred_check_branch
      %11774 = sbr.rel (0) target = $region97
    $region96: #{tpu_custom_call.1} parent=1 // pred_region
      %s11776 = ssub.s32 256, 256
      %11777 = vsyncadd [#allocation4], %s11776
      %s11779 = sshll.u32 [#allocation20], 4
      %s11780 = int_to_ptr.vmem [resolvable:$true] %s11779
      %11782 = dma.vmem_to_hbm [thread:$0]  %s11780, 256, %s12, [#allocation4]
    $region97: #{tpu_custom_call.1} parent=1 // pred_fallthru
      _
    // Predicated region
    $region98: #{tpu_custom_call.1} parent=1 // pred_check
      _
    $region99: #{tpu_custom_call.1} parent=1 // pred_check_branch
      %11784 = sbr.rel (0) target = $region101
    $region100: #{tpu_custom_call.1} parent=1 // pred_region
      %11785 = dma.done [#allocation4], 256
    $region101: #{tpu_custom_call.1} parent=1 // pred_fallthru
      _
    %11786 = vsyncpa [#allocation3], 1
    %11787 = vsyncpa [#allocation6], 1
    %11788 = vsyncpa [#allocation9], 1
    %11789 = vsyncpa [#allocation12], 1
    %11790 = vsyncpa [#allocation15], 1
    %11791 = vsyncpa [#allocation18], 1
    %11792 = vsyncpa [#allocation4], 1

</llo_original>
